<compile_context>
chip_gen: v5e
topology: v5e:2x2
jax: 0.10.0
libtpu: 0.0.40
codegen_flags: <defaults>
</compile_context>

<pallas_src>
import functools
import math

import jax
import jax.numpy as jnp
from jax.experimental import pallas as pl
from jax.experimental.pallas import tpu as pltpu

EPS = 1e-6
D_MODEL = 512
D_FF = 64
N_HEADS = 8
N_LAYERS = 2                 # spec stacks N=8 identical layers; 2 keeps the demo small
NEG_INF = -1e9

MAX_MM_ROW_BLOCK = 256       # row tile for the matmul kernels
MAX_NORM_ROW_BLOCK = 1024    # row tile for the mem-bound final LayerNorm
VMEM_LIMIT = 32 << 20        # explicit scoped-VMEM budget (fits v7x's 64 MiB physical VMEM)


def _round_up(x, m):
    return ((x + m - 1) // m) * m


def _row_tile(rows, cap):
    """Pick a row tile: multiple of 8, <= cap, >=2 grid steps when possible (v7x dual TC),
    and bounded zero-row padding waste."""
    p8 = _round_up(rows, 8)
    t = min(cap, p8)
    if p8 >= 16:
        t = min(t, _round_up((p8 + 1) // 2, 8))
    while t > 8 and (_round_up(rows, t) - rows) > max(8, rows // 8):
        t = max(8, _round_up(t // 2, 8))
    return t


def _pad_rows(x2d, tile):
    rows = x2d.shape[0]
    padded = _round_up(rows, tile)
    if padded != rows:
        x2d = jnp.pad(x2d, ((0, padded - rows), (0, 0)))
    return x2d, padded


# ----------------------------- in-kernel helpers -----------------------------

def _ln(x, g, b, feat, eps):
    """PyTorch-module LayerNorm: mean, unbiased std (N-1), eps added to std.
    Two-pass mean/variance (avoids the catastrophic-cancellation risk of sum-of-squares)."""
    mean = jnp.sum(x, axis=-1, keepdims=True) * (1.0 / feat)
    d = x - mean
    var = jnp.sum(d * d, axis=-1, keepdims=True) * (1.0 / (feat - 1))
    inv = pl.reciprocal(jnp.sqrt(var) + eps, approx=False)
    return g * d * inv + b


# ----------------------------- kernels -----------------------------

def _layernorm_kernel(x_ref, g_ref, b_ref, o_ref, *, feat, eps):
    x = x_ref[...].astype(jnp.float32)
    y = _ln(x, g_ref[...].astype(jnp.float32), b_ref[...].astype(jnp.float32), feat, eps)
    o_ref[...] = y.astype(o_ref.dtype)


def _norm_qkv_kernel(x_ref, g_ref, bn_ref, wq_ref, bq_ref, wkv_ref, bkv_ref,
                     q_ref, kv_ref, *, feat, eps):
    """Pre-norm computed once, fused into the Q projection and the wide (K|V) projection."""
    x = x_ref[...].astype(jnp.float32)
    xn = _ln(x, g_ref[...].astype(jnp.float32), bn_ref[...].astype(jnp.float32), feat, eps)
    q = jnp.dot(xn, wq_ref[...], preferred_element_type=jnp.float32) + bq_ref[...]
    kv = jnp.dot(xn, wkv_ref[...], preferred_element_type=jnp.float32) + bkv_ref[...]
    q_ref[...] = q.astype(q_ref.dtype)
    kv_ref[...] = kv.astype(kv_ref.dtype)


def _norm_linear_kernel(x_ref, g_ref, bn_ref, w_ref, b_ref, o_ref, *, feat, eps):
    x = x_ref[...].astype(jnp.float32)
    xn = _ln(x, g_ref[...].astype(jnp.float32), bn_ref[...].astype(jnp.float32), feat, eps)
    y = jnp.dot(xn, w_ref[...], preferred_element_type=jnp.float32) + b_ref[...]
    o_ref[...] = y.astype(o_ref.dtype)


def _linear_kernel(x_ref, w_ref, b_ref, o_ref):
    y = jnp.dot(x_ref[...].astype(jnp.float32), w_ref[...],
                preferred_element_type=jnp.float32) + b_ref[...]
    o_ref[...] = y.astype(o_ref.dtype)


def _linear_residual_kernel(res_ref, x_ref, w_ref, b_ref, o_ref):
    """Output projection with the residual add fused (no separate XLA add / HBM round-trip)."""
    y = jnp.dot(x_ref[...].astype(jnp.float32), w_ref[...],
                preferred_element_type=jnp.float32) + b_ref[...]
    o_ref[...] = (res_ref[...].astype(jnp.float32) + y).astype(o_ref.dtype)


def _norm_ffn_residual_kernel(x_ref, g_ref, bn_ref, w1_ref, b1_ref, w2_ref, b2_ref,
                              o_ref, *, feat, eps):
    """norm2 -> W1 -> ReLU -> W2 -> +residual; the (tm, d_ff=64) intermediate stays in VMEM."""
    x = x_ref[...].astype(jnp.float32)
    xn = _ln(x, g_ref[...].astype(jnp.float32), bn_ref[...].astype(jnp.float32), feat, eps)
    h = jnp.dot(xn, w1_ref[...], preferred_element_type=jnp.float32) + b1_ref[...]
    h = jnp.maximum(h, 0.0)
    y = jnp.dot(h, w2_ref[...], preferred_element_type=jnp.float32) + b2_ref[...]
    o_ref[...] = (x + y).astype(o_ref.dtype)


def _attention_kernel(q_ref, kv_ref, m_ref, o_ref, *, head, dk, scale):
    """One grid step per batch element; all heads handled in-kernel by static column slices.

    q_ref : (Sq, head*dk)     kv_ref: (Sk, 2*head*dk)  (K in first half, V in second)
    m_ref : (head, Sq, Sk)    o_ref : (Sq, head*dk)
    No head split/merge transposes and no batch-broadcast of the mask ever hit HBM.
    """
    d = head * dk
    for h in range(head):          # static unroll over heads
        q = q_ref[:, h * dk:(h + 1) * dk].astype(jnp.float32)
        k = kv_ref[:, h * dk:(h + 1) * dk].astype(jnp.float32)
        v = kv_ref[:, d + h * dk:d + (h + 1) * dk].astype(jnp.float32)
        s = jax.lax.dot_general(q, k, (((1,), (1,)), ((), ())),
                                preferred_element_type=jnp.float32) * scale
        s = jnp.where(m_ref[h] == 0, NEG_INF, s)           # masked_fill(mask == 0, -1e9)
        s = s - jnp.max(s, axis=-1, keepdims=True)
        p = jnp.exp(s)
        p = p * pl.reciprocal(jnp.sum(p, axis=-1, keepdims=True), approx=True)
        o = jnp.dot(p, v, preferred_element_type=jnp.float32)
        o_ref[:, h * dk:(h + 1) * dk] = o.astype(o_ref.dtype)


# ---------------------- pallas_call builders (cached -> built once per shape) ----------------------

_PARAMS_1D = pltpu.CompilerParams(dimension_semantics=("parallel",),
                                  vmem_limit_bytes=VMEM_LIMIT)


@functools.lru_cache(maxsize=None)
def _build_layer_norm(padded_rows, feat, rb, eps):
    kernel = functools.partial(_layernorm_kernel, feat=feat, eps=eps)
    return pl.pallas_call(
        kernel,
        out_shape=jax.ShapeDtypeStruct((padded_rows, feat), jnp.float32),
        grid=(padded_rows // rb,),
        in_specs=[pl.BlockSpec((rb, feat), lambda i: (i, 0)),
                  pl.BlockSpec((1, feat), lambda i: (0, 0)),
                  pl.BlockSpec((1, feat), lambda i: (0, 0))],
        out_specs=pl.BlockSpec((rb, feat), lambda i: (i, 0)),
        compiler_params=_PARAMS_1D,
    )


@functools.lru_cache(maxsize=None)
def _build_norm_qkv(padded_rows, d_in, d_q, d_kv, tm, eps):
    kernel = functools.partial(_norm_qkv_kernel, feat=d_in, eps=eps)
    return pl.pallas_call(
        kernel,
        out_shape=(jax.ShapeDtypeStruct((padded_rows, d_q), jnp.float32),
                   jax.ShapeDtypeStruct((padded_rows, d_kv), jnp.float32)),
        grid=(padded_rows // tm,),
        in_specs=[pl.BlockSpec((tm, d_in), lambda i: (i, 0)),
                  pl.BlockSpec((1, d_in), lambda i: (0, 0)),
                  pl.BlockSpec((1, d_in), lambda i: (0, 0)),
                  pl.BlockSpec((d_in, d_q), lambda i: (0, 0)),    # weights stay resident
                  pl.BlockSpec((1, d_q), lambda i: (0, 0)),
                  pl.BlockSpec((d_in, d_kv), lambda i: (0, 0)),
                  pl.BlockSpec((1, d_kv), lambda i: (0, 0))],
        out_specs=(pl.BlockSpec((tm, d_q), lambda i: (i, 0)),
                   pl.BlockSpec((tm, d_kv), lambda i: (i, 0))),
        compiler_params=_PARAMS_1D,
    )


@functools.lru_cache(maxsize=None)
def _build_norm_linear(padded_rows, d_in, d_out, tm, eps):
    kernel = functools.partial(_norm_linear_kernel, feat=d_in, eps=eps)
    return pl.pallas_call(
        kernel,
        out_shape=jax.ShapeDtypeStruct((padded_rows, d_out), jnp.float32),
        grid=(padded_rows // tm,),
        in_specs=[pl.BlockSpec((tm, d_in), lambda i: (i, 0)),
                  pl.BlockSpec((1, d_in), lambda i: (0, 0)),
                  pl.BlockSpec((1, d_in), lambda i: (0, 0)),
                  pl.BlockSpec((d_in, d_out), lambda i: (0, 0)),
                  pl.BlockSpec((1, d_out), lambda i: (0, 0))],
        out_specs=pl.BlockSpec((tm, d_out), lambda i: (i, 0)),
        compiler_params=_PARAMS_1D,
    )


@functools.lru_cache(maxsize=None)
def _build_linear(padded_rows, d_in, d_out, tm):
    return pl.pallas_call(
        _linear_kernel,
        out_shape=jax.ShapeDtypeStruct((padded_rows, d_out), jnp.float32),
        grid=(padded_rows // tm,),
        in_specs=[pl.BlockSpec((tm, d_in), lambda i: (i, 0)),
                  pl.BlockSpec((d_in, d_out), lambda i: (0, 0)),
                  pl.BlockSpec((1, d_out), lambda i: (0, 0))],
        out_specs=pl.BlockSpec((tm, d_out), lambda i: (i, 0)),
        compiler_params=_PARAMS_1D,
    )


@functools.lru_cache(maxsize=None)
def _build_linear_residual(padded_rows, d_in, d_out, tm):
    return pl.pallas_call(
        _linear_residual_kernel,
        out_shape=jax.ShapeDtypeStruct((padded_rows, d_out), jnp.float32),
        grid=(padded_rows // tm,),
        in_specs=[pl.BlockSpec((tm, d_out), lambda i: (i, 0)),   # residual
                  pl.BlockSpec((tm, d_in), lambda i: (i, 0)),
                  pl.BlockSpec((d_in, d_out), lambda i: (0, 0)),
                  pl.BlockSpec((1, d_out), lambda i: (0, 0))],
        out_specs=pl.BlockSpec((tm, d_out), lambda i: (i, 0)),
        compiler_params=_PARAMS_1D,
    )


@functools.lru_cache(maxsize=None)
def _build_norm_ffn(padded_rows, d_in, d_ff, d_out, tm, eps):
    kernel = functools.partial(_norm_ffn_residual_kernel, feat=d_in, eps=eps)
    return pl.pallas_call(
        kernel,
        out_shape=jax.ShapeDtypeStruct((padded_rows, d_out), jnp.float32),
        grid=(padded_rows // tm,),
        in_specs=[pl.BlockSpec((tm, d_in), lambda i: (i, 0)),
                  pl.BlockSpec((1, d_in), lambda i: (0, 0)),
                  pl.BlockSpec((1, d_in), lambda i: (0, 0)),
                  pl.BlockSpec((d_in, d_ff), lambda i: (0, 0)),
                  pl.BlockSpec((1, d_ff), lambda i: (0, 0)),
                  pl.BlockSpec((d_ff, d_out), lambda i: (0, 0)),
                  pl.BlockSpec((1, d_out), lambda i: (0, 0))],
        out_specs=pl.BlockSpec((tm, d_out), lambda i: (i, 0)),
        compiler_params=_PARAMS_1D,
    )


@functools.lru_cache(maxsize=None)
def _build_attention(batch, sq, sk, head, dk, scale):
    d = head * dk
    kernel = functools.partial(_attention_kernel, head=head, dk=dk, scale=scale)
    return pl.pallas_call(
        kernel,
        out_shape=jax.ShapeDtypeStruct((batch, sq, d), jnp.float32),
        grid=(batch,),
        in_specs=[pl.BlockSpec((None, sq, d), lambda b: (b, 0, 0)),
                  pl.BlockSpec((None, sk, 2 * d), lambda b: (b, 0, 0)),
                  pl.BlockSpec((head, sq, sk), lambda b: (0, 0, 0))],   # no batch broadcast
        out_specs=pl.BlockSpec((None, sq, d), lambda b: (b, 0, 0)),
        compiler_params=_PARAMS_1D,
    )


# ----------------------------- wrappers -----------------------------

def layer_norm(x, gamma, beta, *, eps=EPS):
    shape = x.shape
    feat = shape[-1]
    rows = math.prod(shape[:-1])
    x2d = x.reshape(rows, feat)
    rb = _row_tile(rows, MAX_NORM_ROW_BLOCK)
    x2d, padded = _pad_rows(x2d, rb)
    out = _build_layer_norm(padded, feat, rb, float(eps))(
        x2d, gamma.reshape(1, feat), beta.reshape(1, feat))
    return out[:rows].reshape(shape)


def norm_qkv(x2d, gamma, beta, wq, bq, wkv, bkv, *, eps=EPS):
    rows, d_in = x2d.shape
    d_q, d_kv = wq.shape[1], wkv.shape[1]
    tm = _row_tile(rows, MAX_MM_ROW_BLOCK)
    xp, padded = _pad_rows(x2d, tm)
    q, kv = _build_norm_qkv(padded, d_in, d_q, d_kv, tm, float(eps))(
        xp, gamma.reshape(1, d_in), beta.reshape(1, d_in),
        wq, bq.reshape(1, d_q), wkv, bkv.reshape(1, d_kv))
    return q[:rows], kv[:rows]


def norm_linear(x2d, gamma, beta, w, b, *, eps=EPS):
    rows, d_in = x2d.shape
    d_out = w.shape[1]
    tm = _row_tile(rows, MAX_MM_ROW_BLOCK)
    xp, padded = _pad_rows(x2d, tm)
    return _build_norm_linear(padded, d_in, d_out, tm, float(eps))(
        xp, gamma.reshape(1, d_in), beta.reshape(1, d_in), w, b.reshape(1, d_out))[:rows]


def linear(x2d, w, b):
    rows, d_in = x2d.shape
    d_out = w.shape[1]
    tm = _row_tile(rows, MAX_MM_ROW_BLOCK)
    xp, padded = _pad_rows(x2d, tm)
    return _build_linear(padded, d_in, d_out, tm)(xp, w, b.reshape(1, d_out))[:rows]


def linear_residual(res2d, x2d, w, b):
    rows, d_in = x2d.shape
    d_out = w.shape[1]
    tm = _row_tile(rows, MAX_MM_ROW_BLOCK)
    xp, padded = _pad_rows(x2d, tm)
    rp, _ = _pad_rows(res2d, tm)
    return _build_linear_residual(padded, d_in, d_out, tm)(rp, xp, w, b.reshape(1, d_out))[:rows]


def norm_ffn_residual(x2d, gamma, beta, w1, b1, w2, b2, *, eps=EPS):
    rows, d_in = x2d.shape
    d_ff, d_out = w1.shape[1], w2.shape[1]
    tm = _row_tile(rows, MAX_MM_ROW_BLOCK)
    xp, padded = _pad_rows(x2d, tm)
    return _build_norm_ffn(padded, d_in, d_ff, d_out, tm, float(eps))(
        xp, gamma.reshape(1, d_in), beta.reshape(1, d_in),
        w1, b1.reshape(1, d_ff), w2, b2.reshape(1, d_out))[:rows]


def attention(q2d, kv2d, mask, batch, sq, sk, head):
    d = q2d.shape[-1]
    dk = d // head
    q3 = q2d.reshape(batch, sq, d)           # free reshapes, head-major layout preserved
    kv3 = kv2d.reshape(batch, sk, 2 * d)
    call = _build_attention(batch, sq, sk, head, dk, 1.0 / math.sqrt(dk))
    ctx = call(q3, kv3, mask.astype(jnp.float32))
    return ctx.reshape(batch * sq, d)


# ----------------------------- decoder -----------------------------

def decoder_layer(lp, x, memory, source_mask, target_mask, *, head=N_HEADS):
    b, sq, d = x.shape
    sk = memory.shape[1]
    x2d = x.reshape(b * sq, d)
    m2d = memory.reshape(b * sk, d)

    # sublayer 0: masked self-attention.
    # norm0 computed once, fused into the Q projection and the concatenated (K|V) projection.
    n, a = lp["norm0"], lp["self_attn"]
    wkv = jnp.concatenate([a["wk"]["w"], a["wv"]["w"]], axis=1)
    bkv = jnp.concatenate([a["wk"]["b"], a["wv"]["b"]], axis=0)
    q, kv = norm_qkv(x2d, n["a"], n["b"], a["wq"]["w"], a["wq"]["b"], wkv, bkv)
    ctx = attention(q, kv, target_mask, b, sq, sq, head)
    x2d = linear_residual(x2d, ctx, a["wo"]["w"], a["wo"]["b"])   # residual fused in-kernel

    # sublayer 1: encoder-decoder attention; Q from norm1(x), K/V from memory (one wide KV GEMM)
    n, a = lp["norm1"], lp["src_attn"]
    wkv = jnp.concatenate([a["wk"]["w"], a["wv"]["w"]], axis=1)
    bkv = jnp.concatenate([a["wk"]["b"], a["wv"]["b"]], axis=0)
    q = norm_linear(x2d, n["a"], n["b"], a["wq"]["w"], a["wq"]["b"])
    kv = linear(m2d, wkv, bkv)
    ctx = attention(q, kv, source_mask, b, sq, sk, head)
    x2d = linear_residual(x2d, ctx, a["wo"]["w"], a["wo"]["b"])

    # sublayer 2: fully fused FFN (norm2 -> W1 -> ReLU -> W2 -> +residual)
    n, f = lp["norm2"], lp["ff"]
    x2d = norm_ffn_residual(x2d, n["a"], n["b"], f["w1"]["w"], f["w1"]["b"],
                            f["w2"]["w"], f["w2"]["b"])
    return x2d.reshape(b, sq, d)


def decoder(params, x, memory, source_mask, target_mask):
    for lp in params["layers"]:
        x = decoder_layer(lp, x, memory, source_mask, target_mask)
    return layer_norm(x, params["norm"]["a"], params["norm"]["b"])


# ----------------------------- parameters -----------------------------

def _init_linear(key, d_in, d_out):
    kw, kb = jax.random.split(key)
    bound = 1.0 / math.sqrt(d_in)
    return {"w": jax.random.uniform(kw, (d_in, d_out), jnp.float32, -bound, bound),
            "b": jax.random.uniform(kb, (d_out,), jnp.float32, -bound, bound)}


def _init_norm(feat):
    return {"a": jnp.ones((feat,), jnp.float32), "b": jnp.zeros((feat,), jnp.float32)}


def _init_mha(key, d_model):
    ks = jax.random.split(key, 4)
    return {"wq": _init_linear(ks[0], d_model, d_model),
            "wk": _init_linear(ks[1], d_model, d_model),
            "wv": _init_linear(ks[2], d_model, d_model),
            "wo": _init_linear(ks[3], d_model, d_model)}


def init_decoder_params(key, n_layers, d_model, d_ff):
    layers = []
    for lk in jax.random.split(key, n_layers):
        ks = jax.random.split(lk, 4)
        layers.append({
            "self_attn": _init_mha(ks[0], d_model),
            "src_attn": _init_mha(ks[1], d_model),
            "ff": {"w1": _init_linear(ks[2], d_model, d_ff),
                   "w2": _init_linear(ks[3], d_ff, d_model)},
            "norm0": _init_norm(d_model),
            "norm1": _init_norm(d_model),
            "norm2": _init_norm(d_model),
        })
    return {"layers": layers, "norm": _init_norm(d_model)}


# ----------------------------- pure-JAX reference -----------------------------
# Uses default matmul precision (same MXU regime as the kernels).

def _ref_layer_norm(x, g, b, eps=EPS):
    mean = jnp.mean(x, axis=-1, keepdims=True)
    var = jnp.sum((x - mean) ** 2, axis=-1, keepdims=True) / (x.shape[-1] - 1)
    return g * (x - mean) / (jnp.sqrt(var) + eps) + b


def _ref_linear(p, x):
    return jnp.dot(x, p["w"]) + p["b"]


def _ref_mha(p, q, k, v, mask, head):
    b, sq, d = q.shape
    sk = k.shape[1]
    dk = d // head
    qh = _ref_linear(p["wq"], q).reshape(b, sq, head, dk).transpose(0, 2, 1, 3)
    kh = _ref_linear(p["wk"], k).reshape(b, sk, head, dk).transpose(0, 2, 1, 3)
    vh = _ref_linear(p["wv"], v).reshape(b, sk, head, dk).transpose(0, 2, 1, 3)
    s = jnp.einsum("bhqd,bhkd->bhqk", qh, kh) / math.sqrt(dk)
    s = jnp.where(mask[None] == 0, NEG_INF, s)
    attn = jax.nn.softmax(s, axis=-1)
    ctx = jnp.einsum("bhqk,bhkd->bhqd", attn, vh)
    ctx = ctx.transpose(0, 2, 1, 3).reshape(b, sq, d)
    return _ref_linear(p["wo"], ctx)


def _ref_decoder(params, x, memory, source_mask, target_mask):
    for lp in params["layers"]:
        y = _ref_layer_norm(x, lp["norm0"]["a"], lp["norm0"]["b"])
        x = x + _ref_mha(lp["self_attn"], y, y, y, target_mask, N_HEADS)
        y = _ref_layer_norm(x, lp["norm1"]["a"], lp["norm1"]["b"])
        x = x + _ref_mha(lp["src_attn"], y, memory, memory, source_mask, N_HEADS)
        y = _ref_layer_norm(x, lp["norm2"]["a"], lp["norm2"]["b"])
        x = x + _ref_linear(lp["ff"]["w2"], jnp.maximum(_ref_linear(lp["ff"]["w1"], y), 0.0))
    return _ref_layer_norm(x, params["norm"]["a"], params["norm"]["b"])


# ----------------------------- demo -----------------------------

if __name__ == "__main__":
    batch, seq, d_model = 2, 4, D_MODEL           # mask in the spec is (8, 4, 4) -> seq = 4
    key = jax.random.PRNGKey(0)
    kx, km, kp = jax.random.split(key, 3)
    x = jax.random.normal(kx, (batch, seq, d_model), jnp.float32)        # target embeddings (pe_result)
    memory = jax.random.normal(km, (batch, seq, d_model), jnp.float32)   # encoder output (en_result)
    source_mask = jnp.zeros((N_HEADS, seq, seq), jnp.float32)            # Variable(torch.zeros(8, 4, 4))
    target_mask = jnp.zeros((N_HEADS, seq, seq), jnp.float32)

    params = init_decoder_params(kp, N_LAYERS, d_model, D_FF)

    decoder_jit = jax.jit(decoder)
    out = decoder_jit(params, x, memory, source_mask, target_mask)
    out = jax.block_until_ready(out)

    # sanity checks against a pure-JAX reference implementing identical math
    ref = _ref_decoder(params, x, memory, source_mask, target_mask)
    assert out.shape == (batch, seq, d_model)
    assert bool(jnp.all(jnp.isfinite(out)))
    err = float(jnp.max(jnp.abs(out - ref)))
    # both paths use default MXU precision (bf16 passes, fp32 accumulation)
    assert err < 2e-2, f"decoder max abs err {err}"

    # standalone LayerNorm kernel check (original module semantics, no matmuls -> tight tol)
    ln_out = layer_norm(x, params["norm"]["a"], params["norm"]["b"])
    ln_ref = _ref_layer_norm(x, params["norm"]["a"], params["norm"]["b"])
    ln_err = float(jnp.max(jnp.abs(ln_out - ln_ref)))
    assert ln_err < 1e-4, f"layernorm max abs err {ln_err}"

    print("KERNEL_OK")
</pallas_src>

<mosaic_0001>
module attributes {stable_mosaic.version = 11 : i64} {
  func.func @_norm_qkv_kernel(%arg0: i32, %arg1: memref<8x512xf32, #tpu.memory_space<vmem>>, %arg2: memref<1x512xf32, #tpu.memory_space<vmem>>, %arg3: memref<1x512xf32, #tpu.memory_space<vmem>>, %arg4: memref<512x512xf32, #tpu.memory_space<vmem>>, %arg5: memref<1x512xf32, #tpu.memory_space<vmem>>, %arg6: memref<512x1024xf32, #tpu.memory_space<vmem>>, %arg7: memref<1x1024xf32, #tpu.memory_space<vmem>>, %arg8: memref<8x512xf32, #tpu.memory_space<vmem>>, %arg9: memref<8x1024xf32, #tpu.memory_space<vmem>>) attributes {dimension_semantics = [#tpu.dimension_semantics<parallel>], iteration_bounds = array<i64: 1>, scalar_prefetch = 0 : i64, scratch_operands = 0 : i64, tpu.core_type = #tpu.core_type<tc>, window_params = [{transform_indices = @transform_0, window_bounds = array<i64: 8, 512>}, {pipeline_mode = #tpu.pipeline_mode<synchronous>, transform_indices = @transform_1, window_bounds = array<i64: 1, 512>}, {pipeline_mode = #tpu.pipeline_mode<synchronous>, transform_indices = @transform_2, window_bounds = array<i64: 1, 512>}, {pipeline_mode = #tpu.pipeline_mode<synchronous>, transform_indices = @transform_3, window_bounds = array<i64: 512, 512>}, {pipeline_mode = #tpu.pipeline_mode<synchronous>, transform_indices = @transform_4, window_bounds = array<i64: 1, 512>}, {pipeline_mode = #tpu.pipeline_mode<synchronous>, transform_indices = @transform_5, window_bounds = array<i64: 512, 1024>}, {pipeline_mode = #tpu.pipeline_mode<synchronous>, transform_indices = @transform_6, window_bounds = array<i64: 1, 1024>}, {transform_indices = @transform_7, window_bounds = array<i64: 8, 512>}, {transform_indices = @transform_8, window_bounds = array<i64: 8, 1024>}]} {
    %c0 = arith.constant 0 : index
    %c0_0 = arith.constant 0 : index
    %0 = vector.load %arg1[%c0, %c0_0] : memref<8x512xf32, #tpu.memory_space<vmem>>, vector<8x512xf32>
    %c0_1 = arith.constant 0 : index
    %c0_2 = arith.constant 0 : index
    %1 = vector.load %arg2[%c0_1, %c0_2] : memref<1x512xf32, #tpu.memory_space<vmem>>, vector<1x512xf32>
    %c0_3 = arith.constant 0 : index
    %c0_4 = arith.constant 0 : index
    %2 = vector.load %arg3[%c0_3, %c0_4] : memref<1x512xf32, #tpu.memory_space<vmem>>, vector<1x512xf32>
    %cst = arith.constant dense<0.000000e+00> : vector<8xf32>
    %3 = vector.multi_reduction <add>, %0, %cst [1] : vector<8x512xf32> to vector<8xf32>
    %4 = vector.shape_cast %3 : vector<8xf32> to vector<8x1xf32>
    %cst_5 = arith.constant 0.001953125 : f32
    %5 = vector.broadcast %cst_5 : f32 to vector<8x1xf32>
    %6 = arith.mulf %4, %5 : vector<8x1xf32>
    %7 = vector.broadcast %6 : vector<8x1xf32> to vector<8x512xf32>
    %8 = arith.subf %0, %7 : vector<8x512xf32>
    %9 = arith.mulf %8, %8 : vector<8x512xf32>
    %cst_6 = arith.constant dense<0.000000e+00> : vector<8xf32>
    %10 = vector.multi_reduction <add>, %9, %cst_6 [1] : vector<8x512xf32> to vector<8xf32>
    %11 = vector.shape_cast %10 : vector<8xf32> to vector<8x1xf32>
    %cst_7 = arith.constant 0.00195694715 : f32
    %12 = vector.broadcast %cst_7 : f32 to vector<8x1xf32>
    %13 = arith.mulf %11, %12 : vector<8x1xf32>
    %14 = math.sqrt %13 : vector<8x1xf32>
    %cst_8 = arith.constant 9.99999997E-7 : f32
    %15 = vector.broadcast %cst_8 : f32 to vector<8x1xf32>
    %16 = arith.addf %14, %15 : vector<8x1xf32>
    %17 = tpu.reciprocal %16 : vector<8x1xf32> -> vector<8x1xf32>
    %18 = vector.broadcast %1 : vector<1x512xf32> to vector<8x512xf32>
    %19 = arith.mulf %18, %8 : vector<8x512xf32>
    %20 = vector.broadcast %17 : vector<8x1xf32> to vector<8x512xf32>
    %21 = arith.mulf %19, %20 : vector<8x512xf32>
    %22 = vector.broadcast %2 : vector<1x512xf32> to vector<8x512xf32>
    %23 = arith.addf %21, %22 : vector<8x512xf32>
    %c0_9 = arith.constant 0 : index
    %c0_10 = arith.constant 0 : index
    %24 = vector.load %arg4[%c0_9, %c0_10] : memref<512x512xf32, #tpu.memory_space<vmem>>, vector<512x512xf32>
    %cst_11 = arith.constant dense<0.000000e+00> : vector<8x512xf32>
    %25 = tpu.matmul %23, %24, %cst_11 {dimension_numbers = #tpu.dot_dimension_numbers<[1], [0], [0], [1], [0, 0, 1, 1], [], []>} : vector<8x512xf32>, vector<512x512xf32>, vector<8x512xf32> -> vector<8x512xf32>
    %c0_12 = arith.constant 0 : index
    %c0_13 = arith.constant 0 : index
    %26 = vector.load %arg5[%c0_12, %c0_13] : memref<1x512xf32, #tpu.memory_space<vmem>>, vector<1x512xf32>
    %27 = vector.broadcast %26 : vector<1x512xf32> to vector<8x512xf32>
    %28 = arith.addf %25, %27 : vector<8x512xf32>
    %c0_14 = arith.constant 0 : index
    %c0_15 = arith.constant 0 : index
    %29 = vector.load %arg6[%c0_14, %c0_15] : memref<512x1024xf32, #tpu.memory_space<vmem>>, vector<512x1024xf32>
    %cst_16 = arith.constant dense<0.000000e+00> : vector<8x1024xf32>
    %30 = tpu.matmul %23, %29, %cst_16 {dimension_numbers = #tpu.dot_dimension_numbers<[1], [0], [0], [1], [0, 0, 1, 1], [], []>} : vector<8x512xf32>, vector<512x1024xf32>, vector<8x1024xf32> -> vector<8x1024xf32>
    %c0_17 = arith.constant 0 : index
    %c0_18 = arith.constant 0 : index
    %31 = vector.load %arg7[%c0_17, %c0_18] : memref<1x1024xf32, #tpu.memory_space<vmem>>, vector<1x1024xf32>
    %32 = vector.broadcast %31 : vector<1x1024xf32> to vector<8x1024xf32>
    %33 = arith.addf %30, %32 : vector<8x1024xf32>
    %c0_19 = arith.constant 0 : index
    %c0_20 = arith.constant 0 : index
    %34 = vector.load %arg8[%c0_19, %c0_20] : memref<8x512xf32, #tpu.memory_space<vmem>>, vector<8x512xf32>
    tpu.vector_store %arg8[%c0_19, %c0_20], %28 {strides = array<i32>} : memref<8x512xf32, #tpu.memory_space<vmem>>, vector<8x512xf32>,
    %c0_21 = arith.constant 0 : index
    %c0_22 = arith.constant 0 : index
    %35 = vector.load %arg9[%c0_21, %c0_22] : memref<8x1024xf32, #tpu.memory_space<vmem>>, vector<8x1024xf32>
    tpu.vector_store %arg9[%c0_21, %c0_22], %33 {strides = array<i32>} : memref<8x1024xf32, #tpu.memory_space<vmem>>, vector<8x1024xf32>,
    return
  }
  func.func @transform_0(%arg0: i32) -> (i32, i32) {
    %c0_i32 = arith.constant 0 : i32
    %c0_i32_0 = arith.constant 0 : i32
    return %arg0, %c0_i32 : i32, i32
  }
  func.func @transform_1(%arg0: i32) -> (i32, i32) {
    %c0_i32 = arith.constant 0 : i32
    %c0_i32_0 = arith.constant 0 : i32
    %c0_i32_1 = arith.constant 0 : i32
    return %c0_i32, %c0_i32_0 : i32, i32
  }
  func.func @transform_2(%arg0: i32) -> (i32, i32) {
    %c0_i32 = arith.constant 0 : i32
    %c0_i32_0 = arith.constant 0 : i32
    %c0_i32_1 = arith.constant 0 : i32
    return %c0_i32, %c0_i32_0 : i32, i32
  }
  func.func @transform_3(%arg0: i32) -> (i32, i32) {
    %c0_i32 = arith.constant 0 : i32
    %c0_i32_0 = arith.constant 0 : i32
    %c0_i32_1 = arith.constant 0 : i32
    return %c0_i32, %c0_i32_0 : i32, i32
  }
  func.func @transform_4(%arg0: i32) -> (i32, i32) {
    %c0_i32 = arith.constant 0 : i32
    %c0_i32_0 = arith.constant 0 : i32
    %c0_i32_1 = arith.constant 0 : i32
    return %c0_i32, %c0_i32_0 : i32, i32
  }
  func.func @transform_5(%arg0: i32) -> (i32, i32) {
    %c0_i32 = arith.constant 0 : i32
    %c0_i32_0 = arith.constant 0 : i32
    %c0_i32_1 = arith.constant 0 : i32
    return %c0_i32, %c0_i32_0 : i32, i32
  }
  func.func @transform_6(%arg0: i32) -> (i32, i32) {
    %c0_i32 = arith.constant 0 : i32
    %c0_i32_0 = arith.constant 0 : i32
    %c0_i32_1 = arith.constant 0 : i32
    return %c0_i32, %c0_i32_0 : i32, i32
  }
  func.func @transform_7(%arg0: i32) -> (i32, i32) {
    %c0_i32 = arith.constant 0 : i32
    %c0_i32_0 = arith.constant 0 : i32
    return %arg0, %c0_i32 : i32, i32
  }
  func.func @transform_8(%arg0: i32) -> (i32, i32) {
    %c0_i32 = arith.constant 0 : i32
    %c0_i32_0 = arith.constant 0 : i32
    return %arg0, %c0_i32 : i32, i32
  }
}

module attributes {stable_mosaic.version = 11 : i64} {
  func.func @_attention_kernel(%arg0: i32, %arg1: memref<1x4x512xf32, #tpu.memory_space<vmem>>, %arg2: memref<1x4x1024xf32, #tpu.memory_space<vmem>>, %arg3: memref<8x4x4xf32, #tpu.memory_space<vmem>>, %arg4: memref<1x4x512xf32, #tpu.memory_space<vmem>>) attributes {dimension_semantics = [#tpu.dimension_semantics<parallel>], iteration_bounds = array<i64: 2>, scalar_prefetch = 0 : i64, scratch_operands = 0 : i64, tpu.core_type = #tpu.core_type<tc>, window_params = [{transform_indices = @transform_0, window_bounds = array<i64: 1, 4, 512>}, {transform_indices = @transform_1, window_bounds = array<i64: 1, 4, 1024>}, {pipeline_mode = #tpu.pipeline_mode<synchronous>, transform_indices = @transform_2, window_bounds = array<i64: 8, 4, 4>}, {transform_indices = @transform_3, window_bounds = array<i64: 1, 4, 512>}]} {
    %c0 = arith.constant 0 : index
    %c0_0 = arith.constant 0 : index
    %c0_1 = arith.constant 0 : index
    %0 = vector.load %arg1[%c0, %c0_0, %c0_1] : memref<1x4x512xf32, #tpu.memory_space<vmem>>, vector<1x4x64xf32>
    %1 = vector.shape_cast %0 : vector<1x4x64xf32> to vector<4x64xf32>
    %c0_2 = arith.constant 0 : index
    %c0_3 = arith.constant 0 : index
    %c0_4 = arith.constant 0 : index
    %2 = vector.load %arg2[%c0_2, %c0_3, %c0_4] : memref<1x4x1024xf32, #tpu.memory_space<vmem>>, vector<1x4x64xf32>
    %3 = vector.shape_cast %2 : vector<1x4x64xf32> to vector<4x64xf32>
    %c0_5 = arith.constant 0 : index
    %c0_6 = arith.constant 0 : index
    %c512 = arith.constant 512 : index
    %4 = vector.load %arg2[%c0_5, %c0_6, %c512] : memref<1x4x1024xf32, #tpu.memory_space<vmem>>, vector<1x4x64xf32>
    %5 = vector.shape_cast %4 : vector<1x4x64xf32> to vector<4x64xf32>
    %cst = arith.constant dense<0.000000e+00> : vector<4x4xf32>
    %6 = tpu.matmul %1, %3, %cst {dimension_numbers = #tpu.dot_dimension_numbers<[1], [1], [0], [0], [0, 0, 1, 0], [], []>} : vector<4x64xf32>, vector<4x64xf32>, vector<4x4xf32> -> vector<4x4xf32>
    %cst_7 = arith.constant 1.250000e-01 : f32
    %7 = vector.broadcast %cst_7 : f32 to vector<4x4xf32>
    %8 = arith.mulf %6, %7 : vector<4x4xf32>
    %c0_8 = arith.constant 0 : index
    %c0_9 = arith.constant 0 : index
    %c0_10 = arith.constant 0 : index
    %9 = vector.load %arg3[%c0_8, %c0_9, %c0_10] : memref<8x4x4xf32, #tpu.memory_space<vmem>>, vector<1x4x4xf32>
    %10 = vector.shape_cast %9 : vector<1x4x4xf32> to vector<4x4xf32>
    %cst_11 = arith.constant 0.000000e+00 : f32
    %11 = vector.broadcast %cst_11 : f32 to vector<4x4xf32>
    %12 = arith.cmpf oeq, %10, %11 : vector<4x4xf32>
    %cst_12 = arith.constant -1.000000e+09 : f32
    %13 = vector.broadcast %cst_12 : f32 to vector<4x4xf32>
    %14 = arith.select %12, %13, %8 : vector<4x4xi1>, vector<4x4xf32>
    %cst_13 = arith.constant dense<0xFF800000> : vector<4xf32>
    %15 = vector.multi_reduction <maximumf>, %14, %cst_13 [1] : vector<4x4xf32> to vector<4xf32>
    %16 = vector.shape_cast %15 : vector<4xf32> to vector<4x1xf32>
    %17 = vector.broadcast %16 : vector<4x1xf32> to vector<4x4xf32>
    %18 = arith.subf %14, %17 : vector<4x4xf32>
    %19 = math.exp %18 : vector<4x4xf32>
    %cst_14 = arith.constant dense<0.000000e+00> : vector<4xf32>
    %20 = vector.multi_reduction <add>, %19, %cst_14 [1] : vector<4x4xf32> to vector<4xf32>
    %21 = vector.shape_cast %20 : vector<4xf32> to vector<4x1xf32>
    %22 = tpu.reciprocal %21 {approx = true} : vector<4x1xf32> -> vector<4x1xf32>
    %23 = vector.broadcast %22 : vector<4x1xf32> to vector<4x4xf32>
    %24 = arith.mulf %19, %23 : vector<4x4xf32>
    %cst_15 = arith.constant dense<0.000000e+00> : vector<4x64xf32>
    %25 = tpu.matmul %24, %5, %cst_15 {dimension_numbers = #tpu.dot_dimension_numbers<[1], [0], [0], [1], [0, 0, 1, 1], [], []>} : vector<4x4xf32>, vector<4x64xf32>, vector<4x64xf32> -> vector<4x64xf32>
    %c0_16 = arith.constant 0 : index
    %c0_17 = arith.constant 0 : index
    %c0_18 = arith.constant 0 : index
    %26 = vector.load %arg4[%c0_16, %c0_17, %c0_18] : memref<1x4x512xf32, #tpu.memory_space<vmem>>, vector<1x4x64xf32>
    %27 = vector.shape_cast %26 : vector<1x4x64xf32> to vector<4x64xf32>
    %28 = vector.shape_cast %25 : vector<4x64xf32> to vector<1x4x64xf32>
    tpu.vector_store %arg4[%c0_16, %c0_17, %c0_18], %28 {strides = array<i32>} : memref<1x4x512xf32, #tpu.memory_space<vmem>>, vector<1x4x64xf32>,
    %c0_19 = arith.constant 0 : index
    %c0_20 = arith.constant 0 : index
    %c64 = arith.constant 64 : index
    %29 = vector.load %arg1[%c0_19, %c0_20, %c64] : memref<1x4x512xf32, #tpu.memory_space<vmem>>, vector<1x4x64xf32>
    %30 = vector.shape_cast %29 : vector<1x4x64xf32> to vector<4x64xf32>
    %c0_21 = arith.constant 0 : index
    %c0_22 = arith.constant 0 : index
    %c64_23 = arith.constant 64 : index
    %31 = vector.load %arg2[%c0_21, %c0_22, %c64_23] : memref<1x4x1024xf32, #tpu.memory_space<vmem>>, vector<1x4x64xf32>
    %32 = vector.shape_cast %31 : vector<1x4x64xf32> to vector<4x64xf32>
    %c0_24 = arith.constant 0 : index
    %c0_25 = arith.constant 0 : index
    %c576 = arith.constant 576 : index
    %33 = vector.load %arg2[%c0_24, %c0_25, %c576] : memref<1x4x1024xf32, #tpu.memory_space<vmem>>, vector<1x4x64xf32>
    %34 = vector.shape_cast %33 : vector<1x4x64xf32> to vector<4x64xf32>
    %cst_26 = arith.constant dense<0.000000e+00> : vector<4x4xf32>
    %35 = tpu.matmul %30, %32, %cst_26 {dimension_numbers = #tpu.dot_dimension_numbers<[1], [1], [0], [0], [0, 0, 1, 0], [], []>} : vector<4x64xf32>, vector<4x64xf32>, vector<4x4xf32> -> vector<4x4xf32>
    %cst_27 = arith.constant 1.250000e-01 : f32
    %36 = vector.broadcast %cst_27 : f32 to vector<4x4xf32>
    %37 = arith.mulf %35, %36 : vector<4x4xf32>
    %c1 = arith.constant 1 : index
    %c0_28 = arith.constant 0 : index
    %c0_29 = arith.constant 0 : index
    %38 = vector.load %arg3[%c1, %c0_28, %c0_29] : memref<8x4x4xf32, #tpu.memory_space<vmem>>, vector<1x4x4xf32>
    %39 = vector.shape_cast %38 : vector<1x4x4xf32> to vector<4x4xf32>
    %cst_30 = arith.constant 0.000000e+00 : f32
    %40 = vector.broadcast %cst_30 : f32 to vector<4x4xf32>
    %41 = arith.cmpf oeq, %39, %40 : vector<4x4xf32>
    %cst_31 = arith.constant -1.000000e+09 : f32
    %42 = vector.broadcast %cst_31 : f32 to vector<4x4xf32>
    %43 = arith.select %41, %42, %37 : vector<4x4xi1>, vector<4x4xf32>
    %cst_32 = arith.constant dense<0xFF800000> : vector<4xf32>
    %44 = vector.multi_reduction <maximumf>, %43, %cst_32 [1] : vector<4x4xf32> to vector<4xf32>
    %45 = vector.shape_cast %44 : vector<4xf32> to vector<4x1xf32>
    %46 = vector.broadcast %45 : vector<4x1xf32> to vector<4x4xf32>
    %47 = arith.subf %43, %46 : vector<4x4xf32>
    %48 = math.exp %47 : vector<4x4xf32>
    %cst_33 = arith.constant dense<0.000000e+00> : vector<4xf32>
    %49 = vector.multi_reduction <add>, %48, %cst_33 [1] : vector<4x4xf32> to vector<4xf32>
    %50 = vector.shape_cast %49 : vector<4xf32> to vector<4x1xf32>
    %51 = tpu.reciprocal %50 {approx = true} : vector<4x1xf32> -> vector<4x1xf32>
    %52 = vector.broadcast %51 : vector<4x1xf32> to vector<4x4xf32>
    %53 = arith.mulf %48, %52 : vector<4x4xf32>
    %cst_34 = arith.constant dense<0.000000e+00> : vector<4x64xf32>
    %54 = tpu.matmul %53, %34, %cst_34 {dimension_numbers = #tpu.dot_dimension_numbers<[1], [0], [0], [1], [0, 0, 1, 1], [], []>} : vector<4x4xf32>, vector<4x64xf32>, vector<4x64xf32> -> vector<4x64xf32>
    %c0_35 = arith.constant 0 : index
    %c0_36 = arith.constant 0 : index
    %c64_37 = arith.constant 64 : index
    %55 = vector.load %arg4[%c0_35, %c0_36, %c64_37] : memref<1x4x512xf32, #tpu.memory_space<vmem>>, vector<1x4x64xf32>
    %56 = vector.shape_cast %55 : vector<1x4x64xf32> to vector<4x64xf32>
    %57 = vector.shape_cast %54 : vector<4x64xf32> to vector<1x4x64xf32>
    tpu.vector_store %arg4[%c0_35, %c0_36, %c64_37], %57 {strides = array<i32>} : memref<1x4x512xf32, #tpu.memory_space<vmem>>, vector<1x4x64xf32>,
    %c0_38 = arith.constant 0 : index
    %c0_39 = arith.constant 0 : index
    %c128 = arith.constant 128 : index
    %58 = vector.load %arg1[%c0_38, %c0_39, %c128] : memref<1x4x512xf32, #tpu.memory_space<vmem>>, vector<1x4x64xf32>
    %59 = vector.shape_cast %58 : vector<1x4x64xf32> to vector<4x64xf32>
    %c0_40 = arith.constant 0 : index
    %c0_41 = arith.constant 0 : index
    %c128_42 = arith.constant 128 : index
    %60 = vector.load %arg2[%c0_40, %c0_41, %c128_42] : memref<1x4x1024xf32, #tpu.memory_space<vmem>>, vector<1x4x64xf32>
    %61 = vector.shape_cast %60 : vector<1x4x64xf32> to vector<4x64xf32>
    %c0_43 = arith.constant 0 : index
    %c0_44 = arith.constant 0 : index
    %c640 = arith.constant 640 : index
    %62 = vector.load %arg2[%c0_43, %c0_44, %c640] : memref<1x4x1024xf32, #tpu.memory_space<vmem>>, vector<1x4x64xf32>
    %63 = vector.shape_cast %62 : vector<1x4x64xf32> to vector<4x64xf32>
    %cst_45 = arith.constant dense<0.000000e+00> : vector<4x4xf32>
    %64 = tpu.matmul %59, %61, %cst_45 {dimension_numbers = #tpu.dot_dimension_numbers<[1], [1], [0], [0], [0, 0, 1, 0], [], []>} : vector<4x64xf32>, vector<4x64xf32>, vector<4x4xf32> -> vector<4x4xf32>
    %cst_46 = arith.constant 1.250000e-01 : f32
    %65 = vector.broadcast %cst_46 : f32 to vector<4x4xf32>
    %66 = arith.mulf %64, %65 : vector<4x4xf32>
    %c2 = arith.constant 2 : index
    %c0_47 = arith.constant 0 : index
    %c0_48 = arith.constant 0 : index
    %67 = vector.load %arg3[%c2, %c0_47, %c0_48] : memref<8x4x4xf32, #tpu.memory_space<vmem>>, vector<1x4x4xf32>
    %68 = vector.shape_cast %67 : vector<1x4x4xf32> to vector<4x4xf32>
    %cst_49 = arith.constant 0.000000e+00 : f32
    %69 = vector.broadcast %cst_49 : f32 to vector<4x4xf32>
    %70 = arith.cmpf oeq, %68, %69 : vector<4x4xf32>
    %cst_50 = arith.constant -1.000000e+09 : f32
    %71 = vector.broadcast %cst_50 : f32 to vector<4x4xf32>
    %72 = arith.select %70, %71, %66 : vector<4x4xi1>, vector<4x4xf32>
    %cst_51 = arith.constant dense<0xFF800000> : vector<4xf32>
    %73 = vector.multi_reduction <maximumf>, %72, %cst_51 [1] : vector<4x4xf32> to vector<4xf32>
    %74 = vector.shape_cast %73 : vector<4xf32> to vector<4x1xf32>
    %75 = vector.broadcast %74 : vector<4x1xf32> to vector<4x4xf32>
    %76 = arith.subf %72, %75 : vector<4x4xf32>
    %77 = math.exp %76 : vector<4x4xf32>
    %cst_52 = arith.constant dense<0.000000e+00> : vector<4xf32>
    %78 = vector.multi_reduction <add>, %77, %cst_52 [1] : vector<4x4xf32> to vector<4xf32>
    %79 = vector.shape_cast %78 : vector<4xf32> to vector<4x1xf32>
    %80 = tpu.reciprocal %79 {approx = true} : vector<4x1xf32> -> vector<4x1xf32>
    %81 = vector.broadcast %80 : vector<4x1xf32> to vector<4x4xf32>
    %82 = arith.mulf %77, %81 : vector<4x4xf32>
    %cst_53 = arith.constant dense<0.000000e+00> : vector<4x64xf32>
    %83 = tpu.matmul %82, %63, %cst_53 {dimension_numbers = #tpu.dot_dimension_numbers<[1], [0], [0], [1], [0, 0, 1, 1], [], []>} : vector<4x4xf32>, vector<4x64xf32>, vector<4x64xf32> -> vector<4x64xf32>
    %c0_54 = arith.constant 0 : index
    %c0_55 = arith.constant 0 : index
    %c128_56 = arith.constant 128 : index
    %84 = vector.load %arg4[%c0_54, %c0_55, %c128_56] : memref<1x4x512xf32, #tpu.memory_space<vmem>>, vector<1x4x64xf32>
    %85 = vector.shape_cast %84 : vector<1x4x64xf32> to vector<4x64xf32>
    %86 = vector.shape_cast %83 : vector<4x64xf32> to vector<1x4x64xf32>
    tpu.vector_store %arg4[%c0_54, %c0_55, %c128_56], %86 {strides = array<i32>} : memref<1x4x512xf32, #tpu.memory_space<vmem>>, vector<1x4x64xf32>,
    %c0_57 = arith.constant 0 : index
    %c0_58 = arith.constant 0 : index
    %c192 = arith.constant 192 : index
    %87 = vector.load %arg1[%c0_57, %c0_58, %c192] : memref<1x4x512xf32, #tpu.memory_space<vmem>>, vector<1x4x64xf32>
    %88 = vector.shape_cast %87 : vector<1x4x64xf32> to vector<4x64xf32>
    %c0_59 = arith.constant 0 : index
    %c0_60 = arith.constant 0 : index
    %c192_61 = arith.constant 192 : index
    %89 = vector.load %arg2[%c0_59, %c0_60, %c192_61] : memref<1x4x1024xf32, #tpu.memory_space<vmem>>, vector<1x4x64xf32>
    %90 = vector.shape_cast %89 : vector<1x4x64xf32> to vector<4x64xf32>
    %c0_62 = arith.constant 0 : index
    %c0_63 = arith.constant 0 : index
    %c704 = arith.constant 704 : index
    %91 = vector.load %arg2[%c0_62, %c0_63, %c704] : memref<1x4x1024xf32, #tpu.memory_space<vmem>>, vector<1x4x64xf32>
    %92 = vector.shape_cast %91 : vector<1x4x64xf32> to vector<4x64xf32>
    %cst_64 = arith.constant dense<0.000000e+00> : vector<4x4xf32>
    %93 = tpu.matmul %88, %90, %cst_64 {dimension_numbers = #tpu.dot_dimension_numbers<[1], [1], [0], [0], [0, 0, 1, 0], [], []>} : vector<4x64xf32>, vector<4x64xf32>, vector<4x4xf32> -> vector<4x4xf32>
    %cst_65 = arith.constant 1.250000e-01 : f32
    %94 = vector.broadcast %cst_65 : f32 to vector<4x4xf32>
    %95 = arith.mulf %93, %94 : vector<4x4xf32>
    %c3 = arith.constant 3 : index
    %c0_66 = arith.constant 0 : index
    %c0_67 = arith.constant 0 : index
    %96 = vector.load %arg3[%c3, %c0_66, %c0_67] : memref<8x4x4xf32, #tpu.memory_space<vmem>>, vector<1x4x4xf32>
    %97 = vector.shape_cast %96 : vector<1x4x4xf32> to vector<4x4xf32>
    %cst_68 = arith.constant 0.000000e+00 : f32
    %98 = vector.broadcast %cst_68 : f32 to vector<4x4xf32>
    %99 = arith.cmpf oeq, %97, %98 : vector<4x4xf32>
    %cst_69 = arith.constant -1.000000e+09 : f32
    %100 = vector.broadcast %cst_69 : f32 to vector<4x4xf32>
    %101 = arith.select %99, %100, %95 : vector<4x4xi1>, vector<4x4xf32>
    %cst_70 = arith.constant dense<0xFF800000> : vector<4xf32>
    %102 = vector.multi_reduction <maximumf>, %101, %cst_70 [1] : vector<4x4xf32> to vector<4xf32>
    %103 = vector.shape_cast %102 : vector<4xf32> to vector<4x1xf32>
    %104 = vector.broadcast %103 : vector<4x1xf32> to vector<4x4xf32>
    %105 = arith.subf %101, %104 : vector<4x4xf32>
    %106 = math.exp %105 : vector<4x4xf32>
    %cst_71 = arith.constant dense<0.000000e+00> : vector<4xf32>
    %107 = vector.multi_reduction <add>, %106, %cst_71 [1] : vector<4x4xf32> to vector<4xf32>
    %108 = vector.shape_cast %107 : vector<4xf32> to vector<4x1xf32>
    %109 = tpu.reciprocal %108 {approx = true} : vector<4x1xf32> -> vector<4x1xf32>
    %110 = vector.broadcast %109 : vector<4x1xf32> to vector<4x4xf32>
    %111 = arith.mulf %106, %110 : vector<4x4xf32>
    %cst_72 = arith.constant dense<0.000000e+00> : vector<4x64xf32>
    %112 = tpu.matmul %111, %92, %cst_72 {dimension_numbers = #tpu.dot_dimension_numbers<[1], [0], [0], [1], [0, 0, 1, 1], [], []>} : vector<4x4xf32>, vector<4x64xf32>, vector<4x64xf32> -> vector<4x64xf32>
    %c0_73 = arith.constant 0 : index
    %c0_74 = arith.constant 0 : index
    %c192_75 = arith.constant 192 : index
    %113 = vector.load %arg4[%c0_73, %c0_74, %c192_75] : memref<1x4x512xf32, #tpu.memory_space<vmem>>, vector<1x4x64xf32>
    %114 = vector.shape_cast %113 : vector<1x4x64xf32> to vector<4x64xf32>
    %115 = vector.shape_cast %112 : vector<4x64xf32> to vector<1x4x64xf32>
    tpu.vector_store %arg4[%c0_73, %c0_74, %c192_75], %115 {strides = array<i32>} : memref<1x4x512xf32, #tpu.memory_space<vmem>>, vector<1x4x64xf32>,
    %c0_76 = arith.constant 0 : index
    %c0_77 = arith.constant 0 : index
    %c256 = arith.constant 256 : index
    %116 = vector.load %arg1[%c0_76, %c0_77, %c256] : memref<1x4x512xf32, #tpu.memory_space<vmem>>, vector<1x4x64xf32>
    %117 = vector.shape_cast %116 : vector<1x4x64xf32> to vector<4x64xf32>
    %c0_78 = arith.constant 0 : index
    %c0_79 = arith.constant 0 : index
    %c256_80 = arith.constant 256 : index
    %118 = vector.load %arg2[%c0_78, %c0_79, %c256_80] : memref<1x4x1024xf32, #tpu.memory_space<vmem>>, vector<1x4x64xf32>
    %119 = vector.shape_cast %118 : vector<1x4x64xf32> to vector<4x64xf32>
    %c0_81 = arith.constant 0 : index
    %c0_82 = arith.constant 0 : index
    %c768 = arith.constant 768 : index
    %120 = vector.load %arg2[%c0_81, %c0_82, %c768] : memref<1x4x1024xf32, #tpu.memory_space<vmem>>, vector<1x4x64xf32>
    %121 = vector.shape_cast %120 : vector<1x4x64xf32> to vector<4x64xf32>
    %cst_83 = arith.constant dense<0.000000e+00> : vector<4x4xf32>
    %122 = tpu.matmul %117, %119, %cst_83 {dimension_numbers = #tpu.dot_dimension_numbers<[1], [1], [0], [0], [0, 0, 1, 0], [], []>} : vector<4x64xf32>, vector<4x64xf32>, vector<4x4xf32> -> vector<4x4xf32>
    %cst_84 = arith.constant 1.250000e-01 : f32
    %123 = vector.broadcast %cst_84 : f32 to vector<4x4xf32>
    %124 = arith.mulf %122, %123 : vector<4x4xf32>
    %c4 = arith.constant 4 : index
    %c0_85 = arith.constant 0 : index
    %c0_86 = arith.constant 0 : index
    %125 = vector.load %arg3[%c4, %c0_85, %c0_86] : memref<8x4x4xf32, #tpu.memory_space<vmem>>, vector<1x4x4xf32>
    %126 = vector.shape_cast %125 : vector<1x4x4xf32> to vector<4x4xf32>
    %cst_87 = arith.constant 0.000000e+00 : f32
    %127 = vector.broadcast %cst_87 : f32 to vector<4x4xf32>
    %128 = arith.cmpf oeq, %126, %127 : vector<4x4xf32>
    %cst_88 = arith.constant -1.000000e+09 : f32
    %129 = vector.broadcast %cst_88 : f32 to vector<4x4xf32>
    %130 = arith.select %128, %129, %124 : vector<4x4xi1>, vector<4x4xf32>
    %cst_89 = arith.constant dense<0xFF800000> : vector<4xf32>
    %131 = vector.multi_reduction <maximumf>, %130, %cst_89 [1] : vector<4x4xf32> to vector<4xf32>
    %132 = vector.shape_cast %131 : vector<4xf32> to vector<4x1xf32>
    %133 = vector.broadcast %132 : vector<4x1xf32> to vector<4x4xf32>
    %134 = arith.subf %130, %133 : vector<4x4xf32>
    %135 = math.exp %134 : vector<4x4xf32>
    %cst_90 = arith.constant dense<0.000000e+00> : vector<4xf32>
    %136 = vector.multi_reduction <add>, %135, %cst_90 [1] : vector<4x4xf32> to vector<4xf32>
    %137 = vector.shape_cast %136 : vector<4xf32> to vector<4x1xf32>
    %138 = tpu.reciprocal %137 {approx = true} : vector<4x1xf32> -> vector<4x1xf32>
    %139 = vector.broadcast %138 : vector<4x1xf32> to vector<4x4xf32>
    %140 = arith.mulf %135, %139 : vector<4x4xf32>
    %cst_91 = arith.constant dense<0.000000e+00> : vector<4x64xf32>
    %141 = tpu.matmul %140, %121, %cst_91 {dimension_numbers = #tpu.dot_dimension_numbers<[1], [0], [0], [1], [0, 0, 1, 1], [], []>} : vector<4x4xf32>, vector<4x64xf32>, vector<4x64xf32> -> vector<4x64xf32>
    %c0_92 = arith.constant 0 : index
    %c0_93 = arith.constant 0 : index
    %c256_94 = arith.constant 256 : index
    %142 = vector.load %arg4[%c0_92, %c0_93, %c256_94] : memref<1x4x512xf32, #tpu.memory_space<vmem>>, vector<1x4x64xf32>
    %143 = vector.shape_cast %142 : vector<1x4x64xf32> to vector<4x64xf32>
    %144 = vector.shape_cast %141 : vector<4x64xf32> to vector<1x4x64xf32>
    tpu.vector_store %arg4[%c0_92, %c0_93, %c256_94], %144 {strides = array<i32>} : memref<1x4x512xf32, #tpu.memory_space<vmem>>, vector<1x4x64xf32>,
    %c0_95 = arith.constant 0 : index
    %c0_96 = arith.constant 0 : index
    %c320 = arith.constant 320 : index
    %145 = vector.load %arg1[%c0_95, %c0_96, %c320] : memref<1x4x512xf32, #tpu.memory_space<vmem>>, vector<1x4x64xf32>
    %146 = vector.shape_cast %145 : vector<1x4x64xf32> to vector<4x64xf32>
    %c0_97 = arith.constant 0 : index
    %c0_98 = arith.constant 0 : index
    %c320_99 = arith.constant 320 : index
    %147 = vector.load %arg2[%c0_97, %c0_98, %c320_99] : memref<1x4x1024xf32, #tpu.memory_space<vmem>>, vector<1x4x64xf32>
    %148 = vector.shape_cast %147 : vector<1x4x64xf32> to vector<4x64xf32>
    %c0_100 = arith.constant 0 : index
    %c0_101 = arith.constant 0 : index
    %c832 = arith.constant 832 : index
    %149 = vector.load %arg2[%c0_100, %c0_101, %c832] : memref<1x4x1024xf32, #tpu.memory_space<vmem>>, vector<1x4x64xf32>
    %150 = vector.shape_cast %149 : vector<1x4x64xf32> to vector<4x64xf32>
    %cst_102 = arith.constant dense<0.000000e+00> : vector<4x4xf32>
    %151 = tpu.matmul %146, %148, %cst_102 {dimension_numbers = #tpu.dot_dimension_numbers<[1], [1], [0], [0], [0, 0, 1, 0], [], []>} : vector<4x64xf32>, vector<4x64xf32>, vector<4x4xf32> -> vector<4x4xf32>
    %cst_103 = arith.constant 1.250000e-01 : f32
    %152 = vector.broadcast %cst_103 : f32 to vector<4x4xf32>
    %153 = arith.mulf %151, %152 : vector<4x4xf32>
    %c5 = arith.constant 5 : index
    %c0_104 = arith.constant 0 : index
    %c0_105 = arith.constant 0 : index
    %154 = vector.load %arg3[%c5, %c0_104, %c0_105] : memref<8x4x4xf32, #tpu.memory_space<vmem>>, vector<1x4x4xf32>
    %155 = vector.shape_cast %154 : vector<1x4x4xf32> to vector<4x4xf32>
    %cst_106 = arith.constant 0.000000e+00 : f32
    %156 = vector.broadcast %cst_106 : f32 to vector<4x4xf32>
    %157 = arith.cmpf oeq, %155, %156 : vector<4x4xf32>
    %cst_107 = arith.constant -1.000000e+09 : f32
    %158 = vector.broadcast %cst_107 : f32 to vector<4x4xf32>
    %159 = arith.select %157, %158, %153 : vector<4x4xi1>, vector<4x4xf32>
    %cst_108 = arith.constant dense<0xFF800000> : vector<4xf32>
    %160 = vector.multi_reduction <maximumf>, %159, %cst_108 [1] : vector<4x4xf32> to vector<4xf32>
    %161 = vector.shape_cast %160 : vector<4xf32> to vector<4x1xf32>
    %162 = vector.broadcast %161 : vector<4x1xf32> to vector<4x4xf32>
    %163 = arith.subf %159, %162 : vector<4x4xf32>
    %164 = math.exp %163 : vector<4x4xf32>
    %cst_109 = arith.constant dense<0.000000e+00> : vector<4xf32>
    %165 = vector.multi_reduction <add>, %164, %cst_109 [1] : vector<4x4xf32> to vector<4xf32>
    %166 = vector.shape_cast %165 : vector<4xf32> to vector<4x1xf32>
    %167 = tpu.reciprocal %166 {approx = true} : vector<4x1xf32> -> vector<4x1xf32>
    %168 = vector.broadcast %167 : vector<4x1xf32> to vector<4x4xf32>
    %169 = arith.mulf %164, %168 : vector<4x4xf32>
    %cst_110 = arith.constant dense<0.000000e+00> : vector<4x64xf32>
    %170 = tpu.matmul %169, %150, %cst_110 {dimension_numbers = #tpu.dot_dimension_numbers<[1], [0], [0], [1], [0, 0, 1, 1], [], []>} : vector<4x4xf32>, vector<4x64xf32>, vector<4x64xf32> -> vector<4x64xf32>
    %c0_111 = arith.constant 0 : index
    %c0_112 = arith.constant 0 : index
    %c320_113 = arith.constant 320 : index
    %171 = vector.load %arg4[%c0_111, %c0_112, %c320_113] : memref<1x4x512xf32, #tpu.memory_space<vmem>>, vector<1x4x64xf32>
    %172 = vector.shape_cast %171 : vector<1x4x64xf32> to vector<4x64xf32>
    %173 = vector.shape_cast %170 : vector<4x64xf32> to vector<1x4x64xf32>
    tpu.vector_store %arg4[%c0_111, %c0_112, %c320_113], %173 {strides = array<i32>} : memref<1x4x512xf32, #tpu.memory_space<vmem>>, vector<1x4x64xf32>,
    %c0_114 = arith.constant 0 : index
    %c0_115 = arith.constant 0 : index
    %c384 = arith.constant 384 : index
    %174 = vector.load %arg1[%c0_114, %c0_115, %c384] : memref<1x4x512xf32, #tpu.memory_space<vmem>>, vector<1x4x64xf32>
    %175 = vector.shape_cast %174 : vector<1x4x64xf32> to vector<4x64xf32>
    %c0_116 = arith.constant 0 : index
    %c0_117 = arith.constant 0 : index
    %c384_118 = arith.constant 384 : index
    %176 = vector.load %arg2[%c0_116, %c0_117, %c384_118] : memref<1x4x1024xf32, #tpu.memory_space<vmem>>, vector<1x4x64xf32>
    %177 = vector.shape_cast %176 : vector<1x4x64xf32> to vector<4x64xf32>
    %c0_119 = arith.constant 0 : index
    %c0_120 = arith.constant 0 : index
    %c896 = arith.constant 896 : index
    %178 = vector.load %arg2[%c0_119, %c0_120, %c896] : memref<1x4x1024xf32, #tpu.memory_space<vmem>>, vector<1x4x64xf32>
    %179 = vector.shape_cast %178 : vector<1x4x64xf32> to vector<4x64xf32>
    %cst_121 = arith.constant dense<0.000000e+00> : vector<4x4xf32>
    %180 = tpu.matmul %175, %177, %cst_121 {dimension_numbers = #tpu.dot_dimension_numbers<[1], [1], [0], [0], [0, 0, 1, 0], [], []>} : vector<4x64xf32>, vector<4x64xf32>, vector<4x4xf32> -> vector<4x4xf32>
    %cst_122 = arith.constant 1.250000e-01 : f32
    %181 = vector.broadcast %cst_122 : f32 to vector<4x4xf32>
    %182 = arith.mulf %180, %181 : vector<4x4xf32>
    %c6 = arith.constant 6 : index
    %c0_123 = arith.constant 0 : index
    %c0_124 = arith.constant 0 : index
    %183 = vector.load %arg3[%c6, %c0_123, %c0_124] : memref<8x4x4xf32, #tpu.memory_space<vmem>>, vector<1x4x4xf32>
    %184 = vector.shape_cast %183 : vector<1x4x4xf32> to vector<4x4xf32>
    %cst_125 = arith.constant 0.000000e+00 : f32
    %185 = vector.broadcast %cst_125 : f32 to vector<4x4xf32>
    %186 = arith.cmpf oeq, %184, %185 : vector<4x4xf32>
    %cst_126 = arith.constant -1.000000e+09 : f32
    %187 = vector.broadcast %cst_126 : f32 to vector<4x4xf32>
    %188 = arith.select %186, %187, %182 : vector<4x4xi1>, vector<4x4xf32>
    %cst_127 = arith.constant dense<0xFF800000> : vector<4xf32>
    %189 = vector.multi_reduction <maximumf>, %188, %cst_127 [1] : vector<4x4xf32> to vector<4xf32>
    %190 = vector.shape_cast %189 : vector<4xf32> to vector<4x1xf32>
    %191 = vector.broadcast %190 : vector<4x1xf32> to vector<4x4xf32>
    %192 = arith.subf %188, %191 : vector<4x4xf32>
    %193 = math.exp %192 : vector<4x4xf32>
    %cst_128 = arith.constant dense<0.000000e+00> : vector<4xf32>
    %194 = vector.multi_reduction <add>, %193, %cst_128 [1] : vector<4x4xf32> to vector<4xf32>
    %195 = vector.shape_cast %194 : vector<4xf32> to vector<4x1xf32>
    %196 = tpu.reciprocal %195 {approx = true} : vector<4x1xf32> -> vector<4x1xf32>
    %197 = vector.broadcast %196 : vector<4x1xf32> to vector<4x4xf32>
    %198 = arith.mulf %193, %197 : vector<4x4xf32>
    %cst_129 = arith.constant dense<0.000000e+00> : vector<4x64xf32>
    %199 = tpu.matmul %198, %179, %cst_129 {dimension_numbers = #tpu.dot_dimension_numbers<[1], [0], [0], [1], [0, 0, 1, 1], [], []>} : vector<4x4xf32>, vector<4x64xf32>, vector<4x64xf32> -> vector<4x64xf32>
    %c0_130 = arith.constant 0 : index
    %c0_131 = arith.constant 0 : index
    %c384_132 = arith.constant 384 : index
    %200 = vector.load %arg4[%c0_130, %c0_131, %c384_132] : memref<1x4x512xf32, #tpu.memory_space<vmem>>, vector<1x4x64xf32>
    %201 = vector.shape_cast %200 : vector<1x4x64xf32> to vector<4x64xf32>
    %202 = vector.shape_cast %199 : vector<4x64xf32> to vector<1x4x64xf32>
    tpu.vector_store %arg4[%c0_130, %c0_131, %c384_132], %202 {strides = array<i32>} : memref<1x4x512xf32, #tpu.memory_space<vmem>>, vector<1x4x64xf32>,
    %c0_133 = arith.constant 0 : index
    %c0_134 = arith.constant 0 : index
    %c448 = arith.constant 448 : index
    %203 = vector.load %arg1[%c0_133, %c0_134, %c448] : memref<1x4x512xf32, #tpu.memory_space<vmem>>, vector<1x4x64xf32>
    %204 = vector.shape_cast %203 : vector<1x4x64xf32> to vector<4x64xf32>
    %c0_135 = arith.constant 0 : index
    %c0_136 = arith.constant 0 : index
    %c448_137 = arith.constant 448 : index
    %205 = vector.load %arg2[%c0_135, %c0_136, %c448_137] : memref<1x4x1024xf32, #tpu.memory_space<vmem>>, vector<1x4x64xf32>
    %206 = vector.shape_cast %205 : vector<1x4x64xf32> to vector<4x64xf32>
    %c0_138 = arith.constant 0 : index
    %c0_139 = arith.constant 0 : index
    %c960 = arith.constant 960 : index
    %207 = vector.load %arg2[%c0_138, %c0_139, %c960] : memref<1x4x1024xf32, #tpu.memory_space<vmem>>, vector<1x4x64xf32>
    %208 = vector.shape_cast %207 : vector<1x4x64xf32> to vector<4x64xf32>
    %cst_140 = arith.constant dense<0.000000e+00> : vector<4x4xf32>
    %209 = tpu.matmul %204, %206, %cst_140 {dimension_numbers = #tpu.dot_dimension_numbers<[1], [1], [0], [0], [0, 0, 1, 0], [], []>} : vector<4x64xf32>, vector<4x64xf32>, vector<4x4xf32> -> vector<4x4xf32>
    %cst_141 = arith.constant 1.250000e-01 : f32
    %210 = vector.broadcast %cst_141 : f32 to vector<4x4xf32>
    %211 = arith.mulf %209, %210 : vector<4x4xf32>
    %c7 = arith.constant 7 : index
    %c0_142 = arith.constant 0 : index
    %c0_143 = arith.constant 0 : index
    %212 = vector.load %arg3[%c7, %c0_142, %c0_143] : memref<8x4x4xf32, #tpu.memory_space<vmem>>, vector<1x4x4xf32>
    %213 = vector.shape_cast %212 : vector<1x4x4xf32> to vector<4x4xf32>
    %cst_144 = arith.constant 0.000000e+00 : f32
    %214 = vector.broadcast %cst_144 : f32 to vector<4x4xf32>
    %215 = arith.cmpf oeq, %213, %214 : vector<4x4xf32>
    %cst_145 = arith.constant -1.000000e+09 : f32
    %216 = vector.broadcast %cst_145 : f32 to vector<4x4xf32>
    %217 = arith.select %215, %216, %211 : vector<4x4xi1>, vector<4x4xf32>
    %cst_146 = arith.constant dense<0xFF800000> : vector<4xf32>
    %218 = vector.multi_reduction <maximumf>, %217, %cst_146 [1] : vector<4x4xf32> to vector<4xf32>
    %219 = vector.shape_cast %218 : vector<4xf32> to vector<4x1xf32>
    %220 = vector.broadcast %219 : vector<4x1xf32> to vector<4x4xf32>
    %221 = arith.subf %217, %220 : vector<4x4xf32>
    %222 = math.exp %221 : vector<4x4xf32>
    %cst_147 = arith.constant dense<0.000000e+00> : vector<4xf32>
    %223 = vector.multi_reduction <add>, %222, %cst_147 [1] : vector<4x4xf32> to vector<4xf32>
    %224 = vector.shape_cast %223 : vector<4xf32> to vector<4x1xf32>
    %225 = tpu.reciprocal %224 {approx = true} : vector<4x1xf32> -> vector<4x1xf32>
    %226 = vector.broadcast %225 : vector<4x1xf32> to vector<4x4xf32>
    %227 = arith.mulf %222, %226 : vector<4x4xf32>
    %cst_148 = arith.constant dense<0.000000e+00> : vector<4x64xf32>
    %228 = tpu.matmul %227, %208, %cst_148 {dimension_numbers = #tpu.dot_dimension_numbers<[1], [0], [0], [1], [0, 0, 1, 1], [], []>} : vector<4x4xf32>, vector<4x64xf32>, vector<4x64xf32> -> vector<4x64xf32>
    %c0_149 = arith.constant 0 : index
    %c0_150 = arith.constant 0 : index
    %c448_151 = arith.constant 448 : index
    %229 = vector.load %arg4[%c0_149, %c0_150, %c448_151] : memref<1x4x512xf32, #tpu.memory_space<vmem>>, vector<1x4x64xf32>
    %230 = vector.shape_cast %229 : vector<1x4x64xf32> to vector<4x64xf32>
    %231 = vector.shape_cast %228 : vector<4x64xf32> to vector<1x4x64xf32>
    tpu.vector_store %arg4[%c0_149, %c0_150, %c448_151], %231 {strides = array<i32>} : memref<1x4x512xf32, #tpu.memory_space<vmem>>, vector<1x4x64xf32>,
    return
  }
  func.func @transform_0(%arg0: i32) -> (i32, i32, i32) {
    %c0_i32 = arith.constant 0 : i32
    %c0_i32_0 = arith.constant 0 : i32
    %c0_i32_1 = arith.constant 0 : i32
    return %arg0, %c0_i32, %c0_i32_0 : i32, i32, i32
  }
  func.func @transform_1(%arg0: i32) -> (i32, i32, i32) {
    %c0_i32 = arith.constant 0 : i32
    %c0_i32_0 = arith.constant 0 : i32
    %c0_i32_1 = arith.constant 0 : i32
    return %arg0, %c0_i32, %c0_i32_0 : i32, i32, i32
  }
  func.func @transform_2(%arg0: i32) -> (i32, i32, i32) {
    %c0_i32 = arith.constant 0 : i32
    %c0_i32_0 = arith.constant 0 : i32
    %c0_i32_1 = arith.constant 0 : i32
    %c0_i32_2 = arith.constant 0 : i32
    return %c0_i32, %c0_i32_0, %c0_i32_1 : i32, i32, i32
  }
  func.func @transform_3(%arg0: i32) -> (i32, i32, i32) {
    %c0_i32 = arith.constant 0 : i32
    %c0_i32_0 = arith.constant 0 : i32
    %c0_i32_1 = arith.constant 0 : i32
    return %arg0, %c0_i32, %c0_i32_0 : i32, i32, i32
  }
}

module attributes {stable_mosaic.version = 11 : i64} {
  func.func @_linear_residual_kernel(%arg0: i32, %arg1: memref<8x512xf32, #tpu.memory_space<vmem>>, %arg2: memref<8x512xf32, #tpu.memory_space<vmem>>, %arg3: memref<512x512xf32, #tpu.memory_space<vmem>>, %arg4: memref<1x512xf32, #tpu.memory_space<vmem>>, %arg5: memref<8x512xf32, #tpu.memory_space<vmem>>) attributes {dimension_semantics = [#tpu.dimension_semantics<parallel>], iteration_bounds = array<i64: 1>, scalar_prefetch = 0 : i64, scratch_operands = 0 : i64, tpu.core_type = #tpu.core_type<tc>, window_params = [{transform_indices = @transform_0, window_bounds = array<i64: 8, 512>}, {transform_indices = @transform_1, window_bounds = array<i64: 8, 512>}, {pipeline_mode = #tpu.pipeline_mode<synchronous>, transform_indices = @transform_2, window_bounds = array<i64: 512, 512>}, {pipeline_mode = #tpu.pipeline_mode<synchronous>, transform_indices = @transform_3, window_bounds = array<i64: 1, 512>}, {transform_indices = @transform_4, window_bounds = array<i64: 8, 512>}]} {
    %c0 = arith.constant 0 : index
    %c0_0 = arith.constant 0 : index
    %0 = vector.load %arg2[%c0, %c0_0] : memref<8x512xf32, #tpu.memory_space<vmem>>, vector<8x512xf32>
    %c0_1 = arith.constant 0 : index
    %c0_2 = arith.constant 0 : index
    %1 = vector.load %arg3[%c0_1, %c0_2] : memref<512x512xf32, #tpu.memory_space<vmem>>, vector<512x512xf32>
    %cst = arith.constant dense<0.000000e+00> : vector<8x512xf32>
    %2 = tpu.matmul %0, %1, %cst {dimension_numbers = #tpu.dot_dimension_numbers<[1], [0], [0], [1], [0, 0, 1, 1], [], []>} : vector<8x512xf32>, vector<512x512xf32>, vector<8x512xf32> -> vector<8x512xf32>
    %c0_3 = arith.constant 0 : index
    %c0_4 = arith.constant 0 : index
    %3 = vector.load %arg4[%c0_3, %c0_4] : memref<1x512xf32, #tpu.memory_space<vmem>>, vector<1x512xf32>
    %4 = vector.broadcast %3 : vector<1x512xf32> to vector<8x512xf32>
    %5 = arith.addf %2, %4 : vector<8x512xf32>
    %c0_5 = arith.constant 0 : index
    %c0_6 = arith.constant 0 : index
    %6 = vector.load %arg1[%c0_5, %c0_6] : memref<8x512xf32, #tpu.memory_space<vmem>>, vector<8x512xf32>
    %7 = arith.addf %6, %5 : vector<8x512xf32>
    %c0_7 = arith.constant 0 : index
    %c0_8 = arith.constant 0 : index
    %8 = vector.load %arg5[%c0_7, %c0_8] : memref<8x512xf32, #tpu.memory_space<vmem>>, vector<8x512xf32>
    tpu.vector_store %arg5[%c0_7, %c0_8], %7 {strides = array<i32>} : memref<8x512xf32, #tpu.memory_space<vmem>>, vector<8x512xf32>,
    return
  }
  func.func @transform_0(%arg0: i32) -> (i32, i32) {
    %c0_i32 = arith.constant 0 : i32
    %c0_i32_0 = arith.constant 0 : i32
    return %arg0, %c0_i32 : i32, i32
  }
  func.func @transform_1(%arg0: i32) -> (i32, i32) {
    %c0_i32 = arith.constant 0 : i32
    %c0_i32_0 = arith.constant 0 : i32
    return %arg0, %c0_i32 : i32, i32
  }
  func.func @transform_2(%arg0: i32) -> (i32, i32) {
    %c0_i32 = arith.constant 0 : i32
    %c0_i32_0 = arith.constant 0 : i32
    %c0_i32_1 = arith.constant 0 : i32
    return %c0_i32, %c0_i32_0 : i32, i32
  }
  func.func @transform_3(%arg0: i32) -> (i32, i32) {
    %c0_i32 = arith.constant 0 : i32
    %c0_i32_0 = arith.constant 0 : i32
    %c0_i32_1 = arith.constant 0 : i32
    return %c0_i32, %c0_i32_0 : i32, i32
  }
  func.func @transform_4(%arg0: i32) -> (i32, i32) {
    %c0_i32 = arith.constant 0 : i32
    %c0_i32_0 = arith.constant 0 : i32
    return %arg0, %c0_i32 : i32, i32
  }
}

module attributes {stable_mosaic.version = 11 : i64} {
  func.func @_norm_linear_kernel(%arg0: i32, %arg1: memref<8x512xf32, #tpu.memory_space<vmem>>, %arg2: memref<1x512xf32, #tpu.memory_space<vmem>>, %arg3: memref<1x512xf32, #tpu.memory_space<vmem>>, %arg4: memref<512x512xf32, #tpu.memory_space<vmem>>, %arg5: memref<1x512xf32, #tpu.memory_space<vmem>>, %arg6: memref<8x512xf32, #tpu.memory_space<vmem>>) attributes {dimension_semantics = [#tpu.dimension_semantics<parallel>], iteration_bounds = array<i64: 1>, scalar_prefetch = 0 : i64, scratch_operands = 0 : i64, tpu.core_type = #tpu.core_type<tc>, window_params = [{transform_indices = @transform_0, window_bounds = array<i64: 8, 512>}, {pipeline_mode = #tpu.pipeline_mode<synchronous>, transform_indices = @transform_1, window_bounds = array<i64: 1, 512>}, {pipeline_mode = #tpu.pipeline_mode<synchronous>, transform_indices = @transform_2, window_bounds = array<i64: 1, 512>}, {pipeline_mode = #tpu.pipeline_mode<synchronous>, transform_indices = @transform_3, window_bounds = array<i64: 512, 512>}, {pipeline_mode = #tpu.pipeline_mode<synchronous>, transform_indices = @transform_4, window_bounds = array<i64: 1, 512>}, {transform_indices = @transform_5, window_bounds = array<i64: 8, 512>}]} {
    %c0 = arith.constant 0 : index
    %c0_0 = arith.constant 0 : index
    %0 = vector.load %arg1[%c0, %c0_0] : memref<8x512xf32, #tpu.memory_space<vmem>>, vector<8x512xf32>
    %c0_1 = arith.constant 0 : index
    %c0_2 = arith.constant 0 : index
    %1 = vector.load %arg2[%c0_1, %c0_2] : memref<1x512xf32, #tpu.memory_space<vmem>>, vector<1x512xf32>
    %c0_3 = arith.constant 0 : index
    %c0_4 = arith.constant 0 : index
    %2 = vector.load %arg3[%c0_3, %c0_4] : memref<1x512xf32, #tpu.memory_space<vmem>>, vector<1x512xf32>
    %cst = arith.constant dense<0.000000e+00> : vector<8xf32>
    %3 = vector.multi_reduction <add>, %0, %cst [1] : vector<8x512xf32> to vector<8xf32>
    %4 = vector.shape_cast %3 : vector<8xf32> to vector<8x1xf32>
    %cst_5 = arith.constant 0.001953125 : f32
    %5 = vector.broadcast %cst_5 : f32 to vector<8x1xf32>
    %6 = arith.mulf %4, %5 : vector<8x1xf32>
    %7 = vector.broadcast %6 : vector<8x1xf32> to vector<8x512xf32>
    %8 = arith.subf %0, %7 : vector<8x512xf32>
    %9 = arith.mulf %8, %8 : vector<8x512xf32>
    %cst_6 = arith.constant dense<0.000000e+00> : vector<8xf32>
    %10 = vector.multi_reduction <add>, %9, %cst_6 [1] : vector<8x512xf32> to vector<8xf32>
    %11 = vector.shape_cast %10 : vector<8xf32> to vector<8x1xf32>
    %cst_7 = arith.constant 0.00195694715 : f32
    %12 = vector.broadcast %cst_7 : f32 to vector<8x1xf32>
    %13 = arith.mulf %11, %12 : vector<8x1xf32>
    %14 = math.sqrt %13 : vector<8x1xf32>
    %cst_8 = arith.constant 9.99999997E-7 : f32
    %15 = vector.broadcast %cst_8 : f32 to vector<8x1xf32>
    %16 = arith.addf %14, %15 : vector<8x1xf32>
    %17 = tpu.reciprocal %16 : vector<8x1xf32> -> vector<8x1xf32>
    %18 = vector.broadcast %1 : vector<1x512xf32> to vector<8x512xf32>
    %19 = arith.mulf %18, %8 : vector<8x512xf32>
    %20 = vector.broadcast %17 : vector<8x1xf32> to vector<8x512xf32>
    %21 = arith.mulf %19, %20 : vector<8x512xf32>
    %22 = vector.broadcast %2 : vector<1x512xf32> to vector<8x512xf32>
    %23 = arith.addf %21, %22 : vector<8x512xf32>
    %c0_9 = arith.constant 0 : index
    %c0_10 = arith.constant 0 : index
    %24 = vector.load %arg4[%c0_9, %c0_10] : memref<512x512xf32, #tpu.memory_space<vmem>>, vector<512x512xf32>
    %cst_11 = arith.constant dense<0.000000e+00> : vector<8x512xf32>
    %25 = tpu.matmul %23, %24, %cst_11 {dimension_numbers = #tpu.dot_dimension_numbers<[1], [0], [0], [1], [0, 0, 1, 1], [], []>} : vector<8x512xf32>, vector<512x512xf32>, vector<8x512xf32> -> vector<8x512xf32>
    %c0_12 = arith.constant 0 : index
    %c0_13 = arith.constant 0 : index
    %26 = vector.load %arg5[%c0_12, %c0_13] : memref<1x512xf32, #tpu.memory_space<vmem>>, vector<1x512xf32>
    %27 = vector.broadcast %26 : vector<1x512xf32> to vector<8x512xf32>
    %28 = arith.addf %25, %27 : vector<8x512xf32>
    %c0_14 = arith.constant 0 : index
    %c0_15 = arith.constant 0 : index
    %29 = vector.load %arg6[%c0_14, %c0_15] : memref<8x512xf32, #tpu.memory_space<vmem>>, vector<8x512xf32>
    tpu.vector_store %arg6[%c0_14, %c0_15], %28 {strides = array<i32>} : memref<8x512xf32, #tpu.memory_space<vmem>>, vector<8x512xf32>,
    return
  }
  func.func @transform_0(%arg0: i32) -> (i32, i32) {
    %c0_i32 = arith.constant 0 : i32
    %c0_i32_0 = arith.constant 0 : i32
    return %arg0, %c0_i32 : i32, i32
  }
  func.func @transform_1(%arg0: i32) -> (i32, i32) {
    %c0_i32 = arith.constant 0 : i32
    %c0_i32_0 = arith.constant 0 : i32
    %c0_i32_1 = arith.constant 0 : i32
    return %c0_i32, %c0_i32_0 : i32, i32
  }
  func.func @transform_2(%arg0: i32) -> (i32, i32) {
    %c0_i32 = arith.constant 0 : i32
    %c0_i32_0 = arith.constant 0 : i32
    %c0_i32_1 = arith.constant 0 : i32
    return %c0_i32, %c0_i32_0 : i32, i32
  }
  func.func @transform_3(%arg0: i32) -> (i32, i32) {
    %c0_i32 = arith.constant 0 : i32
    %c0_i32_0 = arith.constant 0 : i32
    %c0_i32_1 = arith.constant 0 : i32
    return %c0_i32, %c0_i32_0 : i32, i32
  }
  func.func @transform_4(%arg0: i32) -> (i32, i32) {
    %c0_i32 = arith.constant 0 : i32
    %c0_i32_0 = arith.constant 0 : i32
    %c0_i32_1 = arith.constant 0 : i32
    return %c0_i32, %c0_i32_0 : i32, i32
  }
  func.func @transform_5(%arg0: i32) -> (i32, i32) {
    %c0_i32 = arith.constant 0 : i32
    %c0_i32_0 = arith.constant 0 : i32
    return %arg0, %c0_i32 : i32, i32
  }
}

module attributes {stable_mosaic.version = 11 : i64} {
  func.func @_linear_kernel(%arg0: i32, %arg1: memref<8x512xf32, #tpu.memory_space<vmem>>, %arg2: memref<512x1024xf32, #tpu.memory_space<vmem>>, %arg3: memref<1x1024xf32, #tpu.memory_space<vmem>>, %arg4: memref<8x1024xf32, #tpu.memory_space<vmem>>) attributes {dimension_semantics = [#tpu.dimension_semantics<parallel>], iteration_bounds = array<i64: 1>, scalar_prefetch = 0 : i64, scratch_operands = 0 : i64, tpu.core_type = #tpu.core_type<tc>, window_params = [{transform_indices = @transform_0, window_bounds = array<i64: 8, 512>}, {pipeline_mode = #tpu.pipeline_mode<synchronous>, transform_indices = @transform_1, window_bounds = array<i64: 512, 1024>}, {pipeline_mode = #tpu.pipeline_mode<synchronous>, transform_indices = @transform_2, window_bounds = array<i64: 1, 1024>}, {transform_indices = @transform_3, window_bounds = array<i64: 8, 1024>}]} {
    %c0 = arith.constant 0 : index
    %c0_0 = arith.constant 0 : index
    %0 = vector.load %arg1[%c0, %c0_0] : memref<8x512xf32, #tpu.memory_space<vmem>>, vector<8x512xf32>
    %c0_1 = arith.constant 0 : index
    %c0_2 = arith.constant 0 : index
    %1 = vector.load %arg2[%c0_1, %c0_2] : memref<512x1024xf32, #tpu.memory_space<vmem>>, vector<512x1024xf32>
    %cst = arith.constant dense<0.000000e+00> : vector<8x1024xf32>
    %2 = tpu.matmul %0, %1, %cst {dimension_numbers = #tpu.dot_dimension_numbers<[1], [0], [0], [1], [0, 0, 1, 1], [], []>} : vector<8x512xf32>, vector<512x1024xf32>, vector<8x1024xf32> -> vector<8x1024xf32>
    %c0_3 = arith.constant 0 : index
    %c0_4 = arith.constant 0 : index
    %3 = vector.load %arg3[%c0_3, %c0_4] : memref<1x1024xf32, #tpu.memory_space<vmem>>, vector<1x1024xf32>
    %4 = vector.broadcast %3 : vector<1x1024xf32> to vector<8x1024xf32>
    %5 = arith.addf %2, %4 : vector<8x1024xf32>
    %c0_5 = arith.constant 0 : index
    %c0_6 = arith.constant 0 : index
    %6 = vector.load %arg4[%c0_5, %c0_6] : memref<8x1024xf32, #tpu.memory_space<vmem>>, vector<8x1024xf32>
    tpu.vector_store %arg4[%c0_5, %c0_6], %5 {strides = array<i32>} : memref<8x1024xf32, #tpu.memory_space<vmem>>, vector<8x1024xf32>,
    return
  }
  func.func @transform_0(%arg0: i32) -> (i32, i32) {
    %c0_i32 = arith.constant 0 : i32
    %c0_i32_0 = arith.constant 0 : i32
    return %arg0, %c0_i32 : i32, i32
  }
  func.func @transform_1(%arg0: i32) -> (i32, i32) {
    %c0_i32 = arith.constant 0 : i32
    %c0_i32_0 = arith.constant 0 : i32
    %c0_i32_1 = arith.constant 0 : i32
    return %c0_i32, %c0_i32_0 : i32, i32
  }
  func.func @transform_2(%arg0: i32) -> (i32, i32) {
    %c0_i32 = arith.constant 0 : i32
    %c0_i32_0 = arith.constant 0 : i32
    %c0_i32_1 = arith.constant 0 : i32
    return %c0_i32, %c0_i32_0 : i32, i32
  }
  func.func @transform_3(%arg0: i32) -> (i32, i32) {
    %c0_i32 = arith.constant 0 : i32
    %c0_i32_0 = arith.constant 0 : i32
    return %arg0, %c0_i32 : i32, i32
  }
}

module attributes {stable_mosaic.version = 11 : i64} {
  func.func @_norm_ffn_residual_kernel(%arg0: i32, %arg1: memref<8x512xf32, #tpu.memory_space<vmem>>, %arg2: memref<1x512xf32, #tpu.memory_space<vmem>>, %arg3: memref<1x512xf32, #tpu.memory_space<vmem>>, %arg4: memref<512x64xf32, #tpu.memory_space<vmem>>, %arg5: memref<1x64xf32, #tpu.memory_space<vmem>>, %arg6: memref<64x512xf32, #tpu.memory_space<vmem>>, %arg7: memref<1x512xf32, #tpu.memory_space<vmem>>, %arg8: memref<8x512xf32, #tpu.memory_space<vmem>>) attributes {dimension_semantics = [#tpu.dimension_semantics<parallel>], iteration_bounds = array<i64: 1>, scalar_prefetch = 0 : i64, scratch_operands = 0 : i64, tpu.core_type = #tpu.core_type<tc>, window_params = [{transform_indices = @transform_0, window_bounds = array<i64: 8, 512>}, {pipeline_mode = #tpu.pipeline_mode<synchronous>, transform_indices = @transform_1, window_bounds = array<i64: 1, 512>}, {pipeline_mode = #tpu.pipeline_mode<synchronous>, transform_indices = @transform_2, window_bounds = array<i64: 1, 512>}, {pipeline_mode = #tpu.pipeline_mode<synchronous>, transform_indices = @transform_3, window_bounds = array<i64: 512, 64>}, {pipeline_mode = #tpu.pipeline_mode<synchronous>, transform_indices = @transform_4, window_bounds = array<i64: 1, 64>}, {pipeline_mode = #tpu.pipeline_mode<synchronous>, transform_indices = @transform_5, window_bounds = array<i64: 64, 512>}, {pipeline_mode = #tpu.pipeline_mode<synchronous>, transform_indices = @transform_6, window_bounds = array<i64: 1, 512>}, {transform_indices = @transform_7, window_bounds = array<i64: 8, 512>}]} {
    %c0 = arith.constant 0 : index
    %c0_0 = arith.constant 0 : index
    %0 = vector.load %arg1[%c0, %c0_0] : memref<8x512xf32, #tpu.memory_space<vmem>>, vector<8x512xf32>
    %c0_1 = arith.constant 0 : index
    %c0_2 = arith.constant 0 : index
    %1 = vector.load %arg2[%c0_1, %c0_2] : memref<1x512xf32, #tpu.memory_space<vmem>>, vector<1x512xf32>
    %c0_3 = arith.constant 0 : index
    %c0_4 = arith.constant 0 : index
    %2 = vector.load %arg3[%c0_3, %c0_4] : memref<1x512xf32, #tpu.memory_space<vmem>>, vector<1x512xf32>
    %cst = arith.constant dense<0.000000e+00> : vector<8xf32>
    %3 = vector.multi_reduction <add>, %0, %cst [1] : vector<8x512xf32> to vector<8xf32>
    %4 = vector.shape_cast %3 : vector<8xf32> to vector<8x1xf32>
    %cst_5 = arith.constant 0.001953125 : f32
    %5 = vector.broadcast %cst_5 : f32 to vector<8x1xf32>
    %6 = arith.mulf %4, %5 : vector<8x1xf32>
    %7 = vector.broadcast %6 : vector<8x1xf32> to vector<8x512xf32>
    %8 = arith.subf %0, %7 : vector<8x512xf32>
    %9 = arith.mulf %8, %8 : vector<8x512xf32>
    %cst_6 = arith.constant dense<0.000000e+00> : vector<8xf32>
    %10 = vector.multi_reduction <add>, %9, %cst_6 [1] : vector<8x512xf32> to vector<8xf32>
    %11 = vector.shape_cast %10 : vector<8xf32> to vector<8x1xf32>
    %cst_7 = arith.constant 0.00195694715 : f32
    %12 = vector.broadcast %cst_7 : f32 to vector<8x1xf32>
    %13 = arith.mulf %11, %12 : vector<8x1xf32>
    %14 = math.sqrt %13 : vector<8x1xf32>
    %cst_8 = arith.constant 9.99999997E-7 : f32
    %15 = vector.broadcast %cst_8 : f32 to vector<8x1xf32>
    %16 = arith.addf %14, %15 : vector<8x1xf32>
    %17 = tpu.reciprocal %16 : vector<8x1xf32> -> vector<8x1xf32>
    %18 = vector.broadcast %1 : vector<1x512xf32> to vector<8x512xf32>
    %19 = arith.mulf %18, %8 : vector<8x512xf32>
    %20 = vector.broadcast %17 : vector<8x1xf32> to vector<8x512xf32>
    %21 = arith.mulf %19, %20 : vector<8x512xf32>
    %22 = vector.broadcast %2 : vector<1x512xf32> to vector<8x512xf32>
    %23 = arith.addf %21, %22 : vector<8x512xf32>
    %c0_9 = arith.constant 0 : index
    %c0_10 = arith.constant 0 : index
    %24 = vector.load %arg4[%c0_9, %c0_10] : memref<512x64xf32, #tpu.memory_space<vmem>>, vector<512x64xf32>
    %cst_11 = arith.constant dense<0.000000e+00> : vector<8x64xf32>
    %25 = tpu.matmul %23, %24, %cst_11 {dimension_numbers = #tpu.dot_dimension_numbers<[1], [0], [0], [1], [0, 0, 1, 1], [], []>} : vector<8x512xf32>, vector<512x64xf32>, vector<8x64xf32> -> vector<8x64xf32>
    %c0_12 = arith.constant 0 : index
    %c0_13 = arith.constant 0 : index
    %26 = vector.load %arg5[%c0_12, %c0_13] : memref<1x64xf32, #tpu.memory_space<vmem>>, vector<1x64xf32>
    %27 = vector.broadcast %26 : vector<1x64xf32> to vector<8x64xf32>
    %28 = arith.addf %25, %27 : vector<8x64xf32>
    %cst_14 = arith.constant 0.000000e+00 : f32
    %29 = vector.broadcast %cst_14 : f32 to vector<8x64xf32>
    %30 = arith.maximumf %28, %29 : vector<8x64xf32>
    %c0_15 = arith.constant 0 : index
    %c0_16 = arith.constant 0 : index
    %31 = vector.load %arg6[%c0_15, %c0_16] : memref<64x512xf32, #tpu.memory_space<vmem>>, vector<64x512xf32>
    %cst_17 = arith.constant dense<0.000000e+00> : vector<8x512xf32>
    %32 = tpu.matmul %30, %31, %cst_17 {dimension_numbers = #tpu.dot_dimension_numbers<[1], [0], [0], [1], [0, 0, 1, 1], [], []>} : vector<8x64xf32>, vector<64x512xf32>, vector<8x512xf32> -> vector<8x512xf32>
    %c0_18 = arith.constant 0 : index
    %c0_19 = arith.constant 0 : index
    %33 = vector.load %arg7[%c0_18, %c0_19] : memref<1x512xf32, #tpu.memory_space<vmem>>, vector<1x512xf32>
    %34 = vector.broadcast %33 : vector<1x512xf32> to vector<8x512xf32>
    %35 = arith.addf %32, %34 : vector<8x512xf32>
    %36 = arith.addf %0, %35 : vector<8x512xf32>
    %c0_20 = arith.constant 0 : index
    %c0_21 = arith.constant 0 : index
    %37 = vector.load %arg8[%c0_20, %c0_21] : memref<8x512xf32, #tpu.memory_space<vmem>>, vector<8x512xf32>
    tpu.vector_store %arg8[%c0_20, %c0_21], %36 {strides = array<i32>} : memref<8x512xf32, #tpu.memory_space<vmem>>, vector<8x512xf32>,
    return
  }
  func.func @transform_0(%arg0: i32) -> (i32, i32) {
    %c0_i32 = arith.constant 0 : i32
    %c0_i32_0 = arith.constant 0 : i32
    return %arg0, %c0_i32 : i32, i32
  }
  func.func @transform_1(%arg0: i32) -> (i32, i32) {
    %c0_i32 = arith.constant 0 : i32
    %c0_i32_0 = arith.constant 0 : i32
    %c0_i32_1 = arith.constant 0 : i32
    return %c0_i32, %c0_i32_0 : i32, i32
  }
  func.func @transform_2(%arg0: i32) -> (i32, i32) {
    %c0_i32 = arith.constant 0 : i32
    %c0_i32_0 = arith.constant 0 : i32
    %c0_i32_1 = arith.constant 0 : i32
    return %c0_i32, %c0_i32_0 : i32, i32
  }
  func.func @transform_3(%arg0: i32) -> (i32, i32) {
    %c0_i32 = arith.constant 0 : i32
    %c0_i32_0 = arith.constant 0 : i32
    %c0_i32_1 = arith.constant 0 : i32
    return %c0_i32, %c0_i32_0 : i32, i32
  }
  func.func @transform_4(%arg0: i32) -> (i32, i32) {
    %c0_i32 = arith.constant 0 : i32
    %c0_i32_0 = arith.constant 0 : i32
    %c0_i32_1 = arith.constant 0 : i32
    return %c0_i32, %c0_i32_0 : i32, i32
  }
  func.func @transform_5(%arg0: i32) -> (i32, i32) {
    %c0_i32 = arith.constant 0 : i32
    %c0_i32_0 = arith.constant 0 : i32
    %c0_i32_1 = arith.constant 0 : i32
    return %c0_i32, %c0_i32_0 : i32, i32
  }
  func.func @transform_6(%arg0: i32) -> (i32, i32) {
    %c0_i32 = arith.constant 0 : i32
    %c0_i32_0 = arith.constant 0 : i32
    %c0_i32_1 = arith.constant 0 : i32
    return %c0_i32, %c0_i32_0 : i32, i32
  }
  func.func @transform_7(%arg0: i32) -> (i32, i32) {
    %c0_i32 = arith.constant 0 : i32
    %c0_i32_0 = arith.constant 0 : i32
    return %arg0, %c0_i32 : i32, i32
  }
}

module attributes {stable_mosaic.version = 11 : i64} {
  func.func @_norm_ffn_residual_kernel(%arg0: i32, %arg1: memref<8x512xf32, #tpu.memory_space<vmem>>, %arg2: memref<1x512xf32, #tpu.memory_space<vmem>>, %arg3: memref<1x512xf32, #tpu.memory_space<vmem>>, %arg4: memref<512x64xf32, #tpu.memory_space<vmem>>, %arg5: memref<1x64xf32, #tpu.memory_space<vmem>>, %arg6: memref<64x512xf32, #tpu.memory_space<vmem>>, %arg7: memref<1x512xf32, #tpu.memory_space<vmem>>, %arg8: memref<8x512xf32, #tpu.memory_space<vmem>>) attributes {dimension_semantics = [#tpu.dimension_semantics<parallel>], iteration_bounds = array<i64: 1>, scalar_prefetch = 0 : i64, scratch_operands = 0 : i64, tpu.core_type = #tpu.core_type<tc>, window_params = [{transform_indices = @transform_0, window_bounds = array<i64: 8, 512>}, {pipeline_mode = #tpu.pipeline_mode<synchronous>, transform_indices = @transform_1, window_bounds = array<i64: 1, 512>}, {pipeline_mode = #tpu.pipeline_mode<synchronous>, transform_indices = @transform_2, window_bounds = array<i64: 1, 512>}, {pipeline_mode = #tpu.pipeline_mode<synchronous>, transform_indices = @transform_3, window_bounds = array<i64: 512, 64>}, {pipeline_mode = #tpu.pipeline_mode<synchronous>, transform_indices = @transform_4, window_bounds = array<i64: 1, 64>}, {pipeline_mode = #tpu.pipeline_mode<synchronous>, transform_indices = @transform_5, window_bounds = array<i64: 64, 512>}, {pipeline_mode = #tpu.pipeline_mode<synchronous>, transform_indices = @transform_6, window_bounds = array<i64: 1, 512>}, {transform_indices = @transform_7, window_bounds = array<i64: 8, 512>}]} {
    %c0 = arith.constant 0 : index
    %c0_0 = arith.constant 0 : index
    %0 = vector.load %arg1[%c0, %c0_0] : memref<8x512xf32, #tpu.memory_space<vmem>>, vector<8x512xf32>
    %c0_1 = arith.constant 0 : index
    %c0_2 = arith.constant 0 : index
    %1 = vector.load %arg2[%c0_1, %c0_2] : memref<1x512xf32, #tpu.memory_space<vmem>>, vector<1x512xf32>
    %c0_3 = arith.constant 0 : index
    %c0_4 = arith.constant 0 : index
    %2 = vector.load %arg3[%c0_3, %c0_4] : memref<1x512xf32, #tpu.memory_space<vmem>>, vector<1x512xf32>
    %cst = arith.constant dense<0.000000e+00> : vector<8xf32>
    %3 = vector.multi_reduction <add>, %0, %cst [1] : vector<8x512xf32> to vector<8xf32>
    %4 = vector.shape_cast %3 : vector<8xf32> to vector<8x1xf32>
    %cst_5 = arith.constant 0.001953125 : f32
    %5 = vector.broadcast %cst_5 : f32 to vector<8x1xf32>
    %6 = arith.mulf %4, %5 : vector<8x1xf32>
    %7 = vector.broadcast %6 : vector<8x1xf32> to vector<8x512xf32>
    %8 = arith.subf %0, %7 : vector<8x512xf32>
    %9 = arith.mulf %8, %8 : vector<8x512xf32>
    %cst_6 = arith.constant dense<0.000000e+00> : vector<8xf32>
    %10 = vector.multi_reduction <add>, %9, %cst_6 [1] : vector<8x512xf32> to vector<8xf32>
    %11 = vector.shape_cast %10 : vector<8xf32> to vector<8x1xf32>
    %cst_7 = arith.constant 0.00195694715 : f32
    %12 = vector.broadcast %cst_7 : f32 to vector<8x1xf32>
    %13 = arith.mulf %11, %12 : vector<8x1xf32>
    %14 = math.sqrt %13 : vector<8x1xf32>
    %cst_8 = arith.constant 9.99999997E-7 : f32
    %15 = vector.broadcast %cst_8 : f32 to vector<8x1xf32>
    %16 = arith.addf %14, %15 : vector<8x1xf32>
    %17 = tpu.reciprocal %16 : vector<8x1xf32> -> vector<8x1xf32>
    %18 = vector.broadcast %1 : vector<1x512xf32> to vector<8x512xf32>
    %19 = arith.mulf %18, %8 : vector<8x512xf32>
    %20 = vector.broadcast %17 : vector<8x1xf32> to vector<8x512xf32>
    %21 = arith.mulf %19, %20 : vector<8x512xf32>
    %22 = vector.broadcast %2 : vector<1x512xf32> to vector<8x512xf32>
    %23 = arith.addf %21, %22 : vector<8x512xf32>
    %c0_9 = arith.constant 0 : index
    %c0_10 = arith.constant 0 : index
    %24 = vector.load %arg4[%c0_9, %c0_10] : memref<512x64xf32, #tpu.memory_space<vmem>>, vector<512x64xf32>
    %cst_11 = arith.constant dense<0.000000e+00> : vector<8x64xf32>
    %25 = tpu.matmul %23, %24, %cst_11 {dimension_numbers = #tpu.dot_dimension_numbers<[1], [0], [0], [1], [0, 0, 1, 1], [], []>} : vector<8x512xf32>, vector<512x64xf32>, vector<8x64xf32> -> vector<8x64xf32>
    %c0_12 = arith.constant 0 : index
    %c0_13 = arith.constant 0 : index
    %26 = vector.load %arg5[%c0_12, %c0_13] : memref<1x64xf32, #tpu.memory_space<vmem>>, vector<1x64xf32>
    %27 = vector.broadcast %26 : vector<1x64xf32> to vector<8x64xf32>
    %28 = arith.addf %25, %27 : vector<8x64xf32>
    %cst_14 = arith.constant 0.000000e+00 : f32
    %29 = vector.broadcast %cst_14 : f32 to vector<8x64xf32>
    %30 = arith.maximumf %28, %29 : vector<8x64xf32>
    %c0_15 = arith.constant 0 : index
    %c0_16 = arith.constant 0 : index
    %31 = vector.load %arg6[%c0_15, %c0_16] : memref<64x512xf32, #tpu.memory_space<vmem>>, vector<64x512xf32>
    %cst_17 = arith.constant dense<0.000000e+00> : vector<8x512xf32>
    %32 = tpu.matmul %30, %31, %cst_17 {dimension_numbers = #tpu.dot_dimension_numbers<[1], [0], [0], [1], [0, 0, 1, 1], [], []>} : vector<8x64xf32>, vector<64x512xf32>, vector<8x512xf32> -> vector<8x512xf32>
    %c0_18 = arith.constant 0 : index
    %c0_19 = arith.constant 0 : index
    %33 = vector.load %arg7[%c0_18, %c0_19] : memref<1x512xf32, #tpu.memory_space<vmem>>, vector<1x512xf32>
    %34 = vector.broadcast %33 : vector<1x512xf32> to vector<8x512xf32>
    %35 = arith.addf %32, %34 : vector<8x512xf32>
    %36 = arith.addf %0, %35 : vector<8x512xf32>
    %c0_20 = arith.constant 0 : index
    %c0_21 = arith.constant 0 : index
    %37 = vector.load %arg8[%c0_20, %c0_21] : memref<8x512xf32, #tpu.memory_space<vmem>>, vector<8x512xf32>
    tpu.vector_store %arg8[%c0_20, %c0_21], %36 {strides = array<i32>} : memref<8x512xf32, #tpu.memory_space<vmem>>, vector<8x512xf32>,
    return
  }
  func.func @transform_0(%arg0: i32) -> (i32, i32) {
    %c0_i32 = arith.constant 0 : i32
    %c0_i32_0 = arith.constant 0 : i32
    return %arg0, %c0_i32 : i32, i32
  }
  func.func @transform_1(%arg0: i32) -> (i32, i32) {
    %c0_i32 = arith.constant 0 : i32
    %c0_i32_0 = arith.constant 0 : i32
    %c0_i32_1 = arith.constant 0 : i32
    return %c0_i32, %c0_i32_0 : i32, i32
  }
  func.func @transform_2(%arg0: i32) -> (i32, i32) {
    %c0_i32 = arith.constant 0 : i32
    %c0_i32_0 = arith.constant 0 : i32
    %c0_i32_1 = arith.constant 0 : i32
    return %c0_i32, %c0_i32_0 : i32, i32
  }
  func.func @transform_3(%arg0: i32) -> (i32, i32) {
    %c0_i32 = arith.constant 0 : i32
    %c0_i32_0 = arith.constant 0 : i32
    %c0_i32_1 = arith.constant 0 : i32
    return %c0_i32, %c0_i32_0 : i32, i32
  }
  func.func @transform_4(%arg0: i32) -> (i32, i32) {
    %c0_i32 = arith.constant 0 : i32
    %c0_i32_0 = arith.constant 0 : i32
    %c0_i32_1 = arith.constant 0 : i32
    return %c0_i32, %c0_i32_0 : i32, i32
  }
  func.func @transform_5(%arg0: i32) -> (i32, i32) {
    %c0_i32 = arith.constant 0 : i32
    %c0_i32_0 = arith.constant 0 : i32
    %c0_i32_1 = arith.constant 0 : i32
    return %c0_i32, %c0_i32_0 : i32, i32
  }
  func.func @transform_6(%arg0: i32) -> (i32, i32) {
    %c0_i32 = arith.constant 0 : i32
    %c0_i32_0 = arith.constant 0 : i32
    %c0_i32_1 = arith.constant 0 : i32
    return %c0_i32, %c0_i32_0 : i32, i32
  }
  func.func @transform_7(%arg0: i32) -> (i32, i32) {
    %c0_i32 = arith.constant 0 : i32
    %c0_i32_0 = arith.constant 0 : i32
    return %arg0, %c0_i32 : i32, i32
  }
}

module attributes {stable_mosaic.version = 11 : i64} {
  func.func @_layernorm_kernel(%arg0: i32, %arg1: memref<8x512xf32, #tpu.memory_space<vmem>>, %arg2: memref<1x512xf32, #tpu.memory_space<vmem>>, %arg3: memref<1x512xf32, #tpu.memory_space<vmem>>, %arg4: memref<8x512xf32, #tpu.memory_space<vmem>>) attributes {dimension_semantics = [#tpu.dimension_semantics<parallel>], iteration_bounds = array<i64: 1>, scalar_prefetch = 0 : i64, scratch_operands = 0 : i64, tpu.core_type = #tpu.core_type<tc>, window_params = [{transform_indices = @transform_0, window_bounds = array<i64: 8, 512>}, {pipeline_mode = #tpu.pipeline_mode<synchronous>, transform_indices = @transform_1, window_bounds = array<i64: 1, 512>}, {pipeline_mode = #tpu.pipeline_mode<synchronous>, transform_indices = @transform_2, window_bounds = array<i64: 1, 512>}, {transform_indices = @transform_3, window_bounds = array<i64: 8, 512>}]} {
    %c0 = arith.constant 0 : index
    %c0_0 = arith.constant 0 : index
    %0 = vector.load %arg1[%c0, %c0_0] : memref<8x512xf32, #tpu.memory_space<vmem>>, vector<8x512xf32>
    %c0_1 = arith.constant 0 : index
    %c0_2 = arith.constant 0 : index
    %1 = vector.load %arg2[%c0_1, %c0_2] : memref<1x512xf32, #tpu.memory_space<vmem>>, vector<1x512xf32>
    %c0_3 = arith.constant 0 : index
    %c0_4 = arith.constant 0 : index
    %2 = vector.load %arg3[%c0_3, %c0_4] : memref<1x512xf32, #tpu.memory_space<vmem>>, vector<1x512xf32>
    %cst = arith.constant dense<0.000000e+00> : vector<8xf32>
    %3 = vector.multi_reduction <add>, %0, %cst [1] : vector<8x512xf32> to vector<8xf32>
    %4 = vector.shape_cast %3 : vector<8xf32> to vector<8x1xf32>
    %cst_5 = arith.constant 0.001953125 : f32
    %5 = vector.broadcast %cst_5 : f32 to vector<8x1xf32>
    %6 = arith.mulf %4, %5 : vector<8x1xf32>
    %7 = vector.broadcast %6 : vector<8x1xf32> to vector<8x512xf32>
    %8 = arith.subf %0, %7 : vector<8x512xf32>
    %9 = arith.mulf %8, %8 : vector<8x512xf32>
    %cst_6 = arith.constant dense<0.000000e+00> : vector<8xf32>
    %10 = vector.multi_reduction <add>, %9, %cst_6 [1] : vector<8x512xf32> to vector<8xf32>
    %11 = vector.shape_cast %10 : vector<8xf32> to vector<8x1xf32>
    %cst_7 = arith.constant 0.00195694715 : f32
    %12 = vector.broadcast %cst_7 : f32 to vector<8x1xf32>
    %13 = arith.mulf %11, %12 : vector<8x1xf32>
    %14 = math.sqrt %13 : vector<8x1xf32>
    %cst_8 = arith.constant 9.99999997E-7 : f32
    %15 = vector.broadcast %cst_8 : f32 to vector<8x1xf32>
    %16 = arith.addf %14, %15 : vector<8x1xf32>
    %17 = tpu.reciprocal %16 : vector<8x1xf32> -> vector<8x1xf32>
    %18 = vector.broadcast %1 : vector<1x512xf32> to vector<8x512xf32>
    %19 = arith.mulf %18, %8 : vector<8x512xf32>
    %20 = vector.broadcast %17 : vector<8x1xf32> to vector<8x512xf32>
    %21 = arith.mulf %19, %20 : vector<8x512xf32>
    %22 = vector.broadcast %2 : vector<1x512xf32> to vector<8x512xf32>
    %23 = arith.addf %21, %22 : vector<8x512xf32>
    %c0_9 = arith.constant 0 : index
    %c0_10 = arith.constant 0 : index
    %24 = vector.load %arg4[%c0_9, %c0_10] : memref<8x512xf32, #tpu.memory_space<vmem>>, vector<8x512xf32>
    tpu.vector_store %arg4[%c0_9, %c0_10], %23 {strides = array<i32>} : memref<8x512xf32, #tpu.memory_space<vmem>>, vector<8x512xf32>,
    return
  }
  func.func @transform_0(%arg0: i32) -> (i32, i32) {
    %c0_i32 = arith.constant 0 : i32
    %c0_i32_0 = arith.constant 0 : i32
    return %arg0, %c0_i32 : i32, i32
  }
  func.func @transform_1(%arg0: i32) -> (i32, i32) {
    %c0_i32 = arith.constant 0 : i32
    %c0_i32_0 = arith.constant 0 : i32
    %c0_i32_1 = arith.constant 0 : i32
    return %c0_i32, %c0_i32_0 : i32, i32
  }
  func.func @transform_2(%arg0: i32) -> (i32, i32) {
    %c0_i32 = arith.constant 0 : i32
    %c0_i32_0 = arith.constant 0 : i32
    %c0_i32_1 = arith.constant 0 : i32
    return %c0_i32, %c0_i32_0 : i32, i32
  }
  func.func @transform_3(%arg0: i32) -> (i32, i32) {
    %c0_i32 = arith.constant 0 : i32
    %c0_i32_0 = arith.constant 0 : i32
    return %arg0, %c0_i32 : i32, i32
  }
}

</mosaic_0001>

<llo_original>
// kernel: decoder.18
$region0: #{decoder.18}
  #allocation0 [shape = 'u32[]', space=smem, size = 0x4, offset = 0x4, fixed_abs, tag = 'smem constant byte address 0x4 - core index']
  #allocation1 [shape = 'u32[72,128]{1,0:T(1,128)}', space=vmem, size = 0x9000, scoped, tag = 'internal scratch']
  %s0 = inlined_call_operand.vmem [shape: f32[2,4,512], index: 0, kind: input, shape index: {}]
  %s1 = inlined_call_operand.vmem [shape: f32[2,4,1024], index: 1, kind: input, shape index: {}]
  %s2 = inlined_call_operand.vmem [shape: f32[8,4,4], index: 2, kind: input, shape index: {}]
  %s3 = inlined_call_operand.vmem [shape: f32[2,4,512], index: 3, kind: output, shape index: {}]
  %s4 = sld [smem:[#allocation0]]
  $region45: #{decoder.18} parent=0
    _
  %s6 = ssub.s32 1, %s4
  %s7 = scalar_select 0, %s6, %s4
  loop: start=0, step=1, limit=4
  $region2: #{decoder.18} parent=0 // loop_pre_header
    _
  $region3: #{decoder.18} parent=0 // loop_header
    %s9 = sphi 0, %s13
    %p10 = scmp.ge.s32.totalorder %s9, 4
    %s19 = sphi 0, %s21
    %s22 = sphi 0, %s19
    %s23 = sphi 0, %s22
    %s39 = sphi 0, %s23
    %s45 = sphi 0, %s47
    %s48 = sphi 0, %s45
    %s49 = sphi 0, %s48
    %s65 = sphi 0, %s49
    %s69 = sphi 0, %s69
    %s71 = sphi 0, %s69
    %s72 = sphi 0, %s71
    %s86 = sphi 0, %s72
    %s92 = sphi 0, %s94
    %s95 = sphi 0, %s92
    %s96 = sphi 0, %s95
    %s112 = sphi 0, %s96
  $region4: #{decoder.18} parent=0 // loop_header_branch
    %12 = sbr.rel (%p10) target = $region8
  $region5: #{decoder.18} parent=0 // loop_body
    %s14 = ssub.s32 %s9, 1
    %s15 = ssub.s32 %s9, 2
    %s16 = sadd.s32 %s9, 1
    %s17 = ssub.s32 %s9, %s16
    %p18 = scmp.eq.s32.totalorder %s17, 0
    %s20 = sadd.s32 %s19, 1
    %s21 = scalar_select %p18, %s19, %s20
    %p24 = pneg %p18
    %p25 = scmp.eq.s32.totalorder %s9, 1
    %p26 = por %p24, %p25
    %p27 = scmp.ne.s32.totalorder %s19, %s22
    %p28 = scmp.eq.s32.totalorder %s9, 0
    %p29 = por %p27, %p28
    %p30 = scmp.ne.s32.totalorder %s19, %s22
    %p31 = scmp.eq.s32.totalorder %s14, 1
    %p32 = por %p30, %p31
    %p33 = scmp.ne.s32.totalorder %s22, %s23
    %p34 = scmp.eq.s32.totalorder %s14, 0
    %p35 = por %p33, %p34
    %p36 = scmp.ne.s32.totalorder %s22, %s23
    %p37 = scmp.eq.s32.totalorder %s15, 1
    %p38 = por %p36, %p37
    %p40 = scmp.ne.s32.totalorder %s23, %s39
    %p41 = scmp.eq.s32.totalorder %s15, 0
    %p42 = por %p40, %p41
    %s43 = ssub.s32 %s9, %s16
    %p44 = scmp.eq.s32.totalorder %s43, 0
    %s46 = sadd.s32 %s45, 1
    %s47 = scalar_select %p44, %s45, %s46
    %p50 = pneg %p44
    %p51 = scmp.eq.s32.totalorder %s9, 1
    %p52 = por %p50, %p51
    %p53 = scmp.ne.s32.totalorder %s45, %s48
    %p54 = scmp.eq.s32.totalorder %s9, 0
    %p55 = por %p53, %p54
    %p56 = scmp.ne.s32.totalorder %s45, %s48
    %p57 = scmp.eq.s32.totalorder %s14, 1
    %p58 = por %p56, %p57
    %p59 = scmp.ne.s32.totalorder %s48, %s49
    %p60 = scmp.eq.s32.totalorder %s14, 0
    %p61 = por %p59, %p60
    %p62 = scmp.ne.s32.totalorder %s48, %s49
    %p63 = scmp.eq.s32.totalorder %s15, 1
    %p64 = por %p62, %p63
    %p66 = scmp.ne.s32.totalorder %s49, %s65
    %p67 = scmp.eq.s32.totalorder %s15, 0
    %p68 = por %p66, %p67
    %s70 = sadd.s32 %s69, 1
    %p73 = scmp.eq.s32.totalorder %s9, 1
    %p74 = scmp.ne.s32.totalorder %s69, %s71
    %p75 = scmp.eq.s32.totalorder %s9, 0
    %p76 = por %p74, %p75
    %p77 = scmp.ne.s32.totalorder %s69, %s71
    %p78 = scmp.eq.s32.totalorder %s14, 1
    %p79 = por %p77, %p78
    %p80 = scmp.ne.s32.totalorder %s71, %s72
    %p81 = scmp.eq.s32.totalorder %s14, 0
    %p82 = por %p80, %p81
    %p83 = scmp.ne.s32.totalorder %s71, %s72
    %p84 = scmp.eq.s32.totalorder %s15, 1
    %p85 = por %p83, %p84
    %p87 = scmp.ne.s32.totalorder %s72, %s86
    %p88 = scmp.eq.s32.totalorder %s15, 0
    %p89 = por %p87, %p88
    %s90 = ssub.s32 %s9, %s16
    %p91 = scmp.eq.s32.totalorder %s90, 0
    %s93 = sadd.s32 %s92, 1
    %s94 = scalar_select %p91, %s92, %s93
    %p97 = pneg %p91
    %p98 = scmp.eq.s32.totalorder %s9, 1
    %p99 = por %p97, %p98
    %p100 = scmp.ne.s32.totalorder %s92, %s95
    %p101 = scmp.eq.s32.totalorder %s9, 0
    %p102 = por %p100, %p101
    %p103 = scmp.ne.s32.totalorder %s92, %s95
    %p104 = scmp.eq.s32.totalorder %s14, 1
    %p105 = por %p103, %p104
    %p106 = scmp.ne.s32.totalorder %s95, %s96
    %p107 = scmp.eq.s32.totalorder %s14, 0
    %p108 = por %p106, %p107
    %p109 = scmp.ne.s32.totalorder %s95, %s96
    %p110 = scmp.eq.s32.totalorder %s15, 1
    %p111 = por %p109, %p110
    %p113 = scmp.ne.s32.totalorder %s96, %s112
    %p114 = scmp.eq.s32.totalorder %s15, 0
    %p115 = por %p113, %p114
    %p116 = scmp.le.s32.totalorder 1, %s9
    %p117 = scmp.lt.s32.totalorder %s9, 3
    %p118 = pnand %p116, %p117
    %p119 = pneg %p118
    // Predicated region
    $region9: #{decoder.18} parent=5 // pred_check
      _
    $region10: #{decoder.18} parent=5 // pred_check_branch
      %121 = sbr.rel (%p118) target = $region12
    $region11: #{decoder.18} parent=5 // pred_region
      %s122 = ssub.s32 %s9, 1
      // Predicated region
      $region13: #{decoder.18} parent=11 // pred_check
        %p123 = pneg %p82
      $region14: #{decoder.18} parent=11 // pred_check_branch
        %125 = sbr.rel (%p123) target = $region16
      $region15: #{decoder.18} parent=11 // pred_region
        _
      $region16: #{decoder.18} parent=11 // pred_fallthru
        _
    $region12: #{decoder.18} parent=5 // pred_fallthru
      _
    %p126 = scmp.lt.s32.totalorder %s9, 2
    // Predicated region
    $region17: #{decoder.18} parent=5 // pred_check
      %p127 = pneg %p126
    $region18: #{decoder.18} parent=5 // pred_check_branch
      %129 = sbr.rel (%p127) target = $region20
    $region19: #{decoder.18} parent=5 // pred_region
      // Predicated region
      $region21: #{decoder.18} parent=19 // pred_check
        %p130 = pneg %p29
      $region22: #{decoder.18} parent=19 // pred_check_branch
        %132 = sbr.rel (%p130) target = $region24
      $region23: #{decoder.18} parent=19 // pred_region
        %p133 = scmp.lt.s32.totalorder %s9, 1
        %s134 = scalar_select %p133, %s9, 1
        %s135 = smul.addr %s134, 4
        %s136 = smul.addr %s135, 4
        %s137 = scalar_lea.vmem %s0, %s136
      $region24: #{decoder.18} parent=19 // pred_fallthru
        _
      // Predicated region
      $region25: #{decoder.18} parent=19 // pred_check
        %p138 = pneg %p55
      $region26: #{decoder.18} parent=19 // pred_check_branch
        %140 = sbr.rel (%p138) target = $region28
      $region27: #{decoder.18} parent=19 // pred_region
        %p141 = scmp.lt.s32.totalorder %s9, 1
        %s142 = scalar_select %p141, %s9, 1
        %s143 = smul.addr %s142, 8
        %s144 = smul.addr %s143, 4
        %s145 = scalar_lea.vmem %s1, %s144
      $region28: #{decoder.18} parent=19 // pred_fallthru
        _
    $region20: #{decoder.18} parent=5 // pred_fallthru
      _
    %p146 = scmp.le.s32.totalorder 1, %s9
    %p147 = scmp.lt.s32.totalorder %s9, 3
    %p148 = pnand %p146, %p147
    %p149 = pneg %p148
    // Predicated region
    $region29: #{decoder.18} parent=5 // pred_check
      _
    $region30: #{decoder.18} parent=5 // pred_check_branch
      %151 = sbr.rel (%p148) target = $region32
    $region31: #{decoder.18} parent=5 // pred_region
      %s152 = ssub.s32 %s9, 1
      %p153 = scmp.lt.s32.totalorder %s14, 1
      %s154 = scalar_select %p153, %s14, 1
      %s155 = smul.addr %s154, 4
      %s156 = smul.addr %s155, 4
      %s157 = scalar_lea.vmem %s0, %s156
      %p158 = pneg %p35
      %p159 = pneg %p32
      %p160 = scmp.lt.s32.totalorder %s14, 1
      %s161 = scalar_select %p160, %s14, 1
      %s162 = smul.addr %s161, 8
      %s163 = smul.addr %s162, 4
      %s164 = scalar_lea.vmem %s1, %s163
      %p165 = pneg %p61
      %p166 = pneg %p58
      %p167 = pneg %p82
      %p168 = pneg %p79
      %p169 = pneg %p108
      %p170 = pneg %p105
      %p171 = scmp.lt.s32.totalorder %s14, 1
      %s172 = scalar_select %p171, %s14, 1
      %s173 = smul.addr %s172, 4
      %s174 = smul.addr %s173, 4
      %s175 = scalar_lea.vmem %s3, %s174
      %p176 = scmp.lt.s32.totalorder %s14, 1
      %s177 = scalar_select %p176, %s14, 1
      %s178 = smul.addr %s177, 4
      %s179 = smul.addr %s178, 4
      %s180 = scalar_lea.vmem %s0, %s179
      %p181 = scmp.lt.s32.totalorder %s14, 1
      %s182 = scalar_select %p181, %s14, 1
      %s183 = smul.addr %s182, 8
      %s184 = smul.addr %s183, 4
      %s185 = scalar_lea.vmem %s1, %s184
      %p186 = scmp.lt.s32.totalorder %s14, 1
      %s187 = scalar_select %p186, %s14, 1
      %s188 = smul.addr %s187, 4
      %s189 = smul.addr %s188, 4
      %s190 = scalar_lea.vmem %s3, %s189
      %v191 = vld [vmem:[%s180] sm:$0xf]
      %v192 = vld [vmem:[%s185] sm:$0xf]
      %v193 = vld [vmem:[%s185 + $0x10] sm:$0xf]
      %vm194 = vcmask 523264
      %v196 = vsel %vm194, %v191, 0
      %v199 = vsel %vm194, %v192, 0
      %201 = vmatpush.xpose.msra.mxu0 0.0
      %202 = vmatpush.xpose.msra.mxu0 0.0
      %203 = vmatpush.xpose.msra.mxu0 0.0
      %204 = vmatpush.xpose.msra.mxu0 0.0
      %205 = vmatpush.xpose.msra.mxu0 0.0
      %206 = vmatpush.xpose.msra.mxu0 0.0
      %207 = vmatpush.xpose.msra.mxu0 0.0
      %208 = vmatpush.xpose.msra.mxu0 0.0
      %209 = vmatpush.xpose.msra.mxu0 0.0
      %210 = vmatpush.xpose.msra.mxu0 0.0
      %211 = vmatpush.xpose.msra.mxu0 0.0
      %212 = vmatpush.xpose.msra.mxu0 0.0
      %213 = vmatpush.xpose.msra.mxu0 0.0
      %214 = vmatpush.xpose.msra.mxu0 0.0
      %215 = vmatpush.xpose.msra.mxu0 0.0
      %216 = vmatpush.xpose.msra.mxu0 %v199
      %217 = vmatmul.f32.gmra.mxu0 %v196
      %v218 = vpop.f32.mrf.mxu0
      %v219 = vadd.f32 0.0, %v218
      %220 = vdwg.mxu0
      %v221 = vmul.f32 %v219, 0.125
      %v222 = vld [vmem:[%s2] sm:$0xf]
      %vm223 = vcmp.eq.f32.partialorder %v222, 0.0
      %v224 = vsel %vm223, -1e+09, %v221
      %vm225 = vcmask 27648
      %v226 = vsel %vm225, %v224, -inf
      %227 = vmax.xlane.f32.xlu0 %v226
      %v228 = vpop.xlane.xlu0 %227
      %v229 = vsub.f32 %v224, %v228
      %v230 = vmul.f32 %v229, 1.442695
      %v231 = vpow.pop %v230
      %v232 = vsel %vm225, %v231, 0.0
      %233 = vadd.xlane.f32.xlu0 %v232
      %v234 = vpop.xlane.xlu0 %233
      %v235 = vrcp.pop %v234
      %v236 = vmul.f32 %v231, %v235
      %vm237 = vcmask 31744
      %v239 = vsel %vm237, %v236, 0
      %vm241 = vcmask 1043456
      %v243 = vsel %vm241, %v193, 0
      %245 = vmatpush.msra.mxu0 0.0
      %246 = vmatpush.msra.mxu0 0.0
      %247 = vmatpush.msra.mxu0 0.0
      %248 = vmatpush.msra.mxu0 0.0
      %249 = vmatpush.msra.mxu0 0.0
      %250 = vmatpush.msra.mxu0 0.0
      %251 = vmatpush.msra.mxu0 0.0
      %252 = vmatpush.msra.mxu0 0.0
      %253 = vmatpush.msra.mxu0 0.0
      %254 = vmatpush.msra.mxu0 0.0
      %255 = vmatpush.msra.mxu0 0.0
      %256 = vmatpush.msra.mxu0 0.0
      %257 = vmatpush.msra.mxu0 0.0
      %258 = vmatpush.msra.mxu0 0.0
      %259 = vmatpush.msra.mxu0 0.0
      %260 = vmatpush.msra.mxu0 %v243
      %261 = vmatmul.f32.gmra.mxu0 %v239
      %v262 = vpop.f32.mrf.mxu0
      %v263 = vadd.f32 0.0, %v262
      %264 = vdwg.mxu0
      %vm265 = vcmask 519168
      %266 = vst.msk [vmem:[%s190] sm:$0xf] %vm265, %v263
      %v267 = vld [vmem:[%s180] sm:$0xf]
      %v268 = vld [vmem:[%s185] sm:$0xf]
      %v269 = vld [vmem:[%s185 + $0x10] sm:$0xf]
      %271 = vst [vmem:[#allocation1] ss:$2 sm:$0xff] %v267
      %v272 = vld.sshfl [vmem:[#allocation1] sm:$0xff pattern:$0x75316420]
      %273 = vrot.lane.b32.xlu0 %v272, 64
      %v274 = vpop.permute.xlu0 %273
      %276 = vst [vmem:[#allocation1] ss:$2 sm:$0xff] %v268
      %v277 = vld.sshfl [vmem:[#allocation1] sm:$0xff pattern:$0x75316420]
      %278 = vrot.lane.b32.xlu0 %v277, 64
      %v279 = vpop.permute.xlu0 %278
      %v280 = vsel %vm194, %v274, 0
      %v282 = vsel %vm194, %v279, 0
      %284 = vmatpush.xpose.msra.mxu0 0.0
      %285 = vmatpush.xpose.msra.mxu0 0.0
      %286 = vmatpush.xpose.msra.mxu0 0.0
      %287 = vmatpush.xpose.msra.mxu0 0.0
      %288 = vmatpush.xpose.msra.mxu0 0.0
      %289 = vmatpush.xpose.msra.mxu0 0.0
      %290 = vmatpush.xpose.msra.mxu0 0.0
      %291 = vmatpush.xpose.msra.mxu0 0.0
      %292 = vmatpush.xpose.msra.mxu0 0.0
      %293 = vmatpush.xpose.msra.mxu0 0.0
      %294 = vmatpush.xpose.msra.mxu0 0.0
      %295 = vmatpush.xpose.msra.mxu0 0.0
      %296 = vmatpush.xpose.msra.mxu0 0.0
      %297 = vmatpush.xpose.msra.mxu0 0.0
      %298 = vmatpush.xpose.msra.mxu0 0.0
      %299 = vmatpush.xpose.msra.mxu0 %v282
      %300 = vmatmul.f32.gmra.mxu0 %v280
      %v301 = vpop.f32.mrf.mxu0
      %v302 = vadd.f32 0.0, %v301
      %303 = vdwg.mxu0
      %v304 = vmul.f32 %v302, 0.125
      %s305 = scalar_lea.vmem %s2, 4
      %v306 = vld [vmem:[%s305] sm:$0xf]
      %vm307 = vcmp.eq.f32.partialorder %v306, 0.0
      %v308 = vsel %vm307, -1e+09, %v304
      %v309 = vsel %vm225, %v308, -inf
      %310 = vmax.xlane.f32.xlu0 %v309
      %v311 = vpop.xlane.xlu0 %310
      %v312 = vsub.f32 %v308, %v311
      %v313 = vmul.f32 %v312, 1.442695
      %v314 = vpow.pop %v313
      %v315 = vsel %vm225, %v314, 0.0
      %316 = vadd.xlane.f32.xlu0 %v315
      %v317 = vpop.xlane.xlu0 %316
      %v318 = vrcp.pop %v317
      %v319 = vmul.f32 %v314, %v318
      %321 = vst [vmem:[#allocation1] ss:$2 sm:$0xff] %v269
      %v322 = vld.sshfl [vmem:[#allocation1] sm:$0xff pattern:$0x75316420]
      %323 = vrot.lane.b32.xlu0 %v322, 64
      %v324 = vpop.permute.xlu0 %323
      %v326 = vsel %vm237, %v319, 0
      %v328 = vsel %vm241, %v324, 0
      %330 = vmatpush.msra.mxu0 0.0
      %331 = vmatpush.msra.mxu0 0.0
      %332 = vmatpush.msra.mxu0 0.0
      %333 = vmatpush.msra.mxu0 0.0
      %334 = vmatpush.msra.mxu0 0.0
      %335 = vmatpush.msra.mxu0 0.0
      %336 = vmatpush.msra.mxu0 0.0
      %337 = vmatpush.msra.mxu0 0.0
      %338 = vmatpush.msra.mxu0 0.0
      %339 = vmatpush.msra.mxu0 0.0
      %340 = vmatpush.msra.mxu0 0.0
      %341 = vmatpush.msra.mxu0 0.0
      %342 = vmatpush.msra.mxu0 0.0
      %343 = vmatpush.msra.mxu0 0.0
      %344 = vmatpush.msra.mxu0 0.0
      %345 = vmatpush.msra.mxu0 %v328
      %346 = vmatmul.f32.gmra.mxu0 %v326
      %v347 = vpop.f32.mrf.mxu0
      %v348 = vadd.f32 0.0, %v347
      %349 = vdwg.mxu0
      %351 = vrot.lane.b32.xlu0 %v348, 64
      %v352 = vpop.permute.xlu0 %351
      %vm354 = vcmask 1043968
      %355 = vst.msk [vmem:[%s190] sm:$0xf] %vm354, %v352
      %v356 = vld [vmem:[%s180 + $0x4] sm:$0xf]
      %v357 = vld [vmem:[%s185 + $0x4] sm:$0xf]
      %v358 = vld [vmem:[%s185 + $0x14] sm:$0xf]
      %v360 = vsel %vm194, %v356, 0
      %v363 = vsel %vm194, %v357, 0
      %365 = vmatpush.xpose.msra.mxu0 0.0
      %366 = vmatpush.xpose.msra.mxu0 0.0
      %367 = vmatpush.xpose.msra.mxu0 0.0
      %368 = vmatpush.xpose.msra.mxu0 0.0
      %369 = vmatpush.xpose.msra.mxu0 0.0
      %370 = vmatpush.xpose.msra.mxu0 0.0
      %371 = vmatpush.xpose.msra.mxu0 0.0
      %372 = vmatpush.xpose.msra.mxu0 0.0
      %373 = vmatpush.xpose.msra.mxu0 0.0
      %374 = vmatpush.xpose.msra.mxu0 0.0
      %375 = vmatpush.xpose.msra.mxu0 0.0
      %376 = vmatpush.xpose.msra.mxu0 0.0
      %377 = vmatpush.xpose.msra.mxu0 0.0
      %378 = vmatpush.xpose.msra.mxu0 0.0
      %379 = vmatpush.xpose.msra.mxu0 0.0
      %380 = vmatpush.xpose.msra.mxu0 %v363
      %381 = vmatmul.f32.gmra.mxu0 %v360
      %v382 = vpop.f32.mrf.mxu0
      %v383 = vadd.f32 0.0, %v382
      %384 = vdwg.mxu0
      %v385 = vmul.f32 %v383, 0.125
      %s386 = scalar_lea.vmem %s2, 8
      %v387 = vld [vmem:[%s386] sm:$0xf]
      %vm388 = vcmp.eq.f32.partialorder %v387, 0.0
      %v389 = vsel %vm388, -1e+09, %v385
      %v390 = vsel %vm225, %v389, -inf
      %391 = vmax.xlane.f32.xlu0 %v390
      %v392 = vpop.xlane.xlu0 %391
      %v393 = vsub.f32 %v389, %v392
      %v394 = vmul.f32 %v393, 1.442695
      %v395 = vpow.pop %v394
      %v396 = vsel %vm225, %v395, 0.0
      %397 = vadd.xlane.f32.xlu0 %v396
      %v398 = vpop.xlane.xlu0 %397
      %v399 = vrcp.pop %v398
      %v400 = vmul.f32 %v395, %v399
      %v402 = vsel %vm237, %v400, 0
      %v405 = vsel %vm241, %v358, 0
      %407 = vmatpush.msra.mxu0 0.0
      %408 = vmatpush.msra.mxu0 0.0
      %409 = vmatpush.msra.mxu0 0.0
      %410 = vmatpush.msra.mxu0 0.0
      %411 = vmatpush.msra.mxu0 0.0
      %412 = vmatpush.msra.mxu0 0.0
      %413 = vmatpush.msra.mxu0 0.0
      %414 = vmatpush.msra.mxu0 0.0
      %415 = vmatpush.msra.mxu0 0.0
      %416 = vmatpush.msra.mxu0 0.0
      %417 = vmatpush.msra.mxu0 0.0
      %418 = vmatpush.msra.mxu0 0.0
      %419 = vmatpush.msra.mxu0 0.0
      %420 = vmatpush.msra.mxu0 0.0
      %421 = vmatpush.msra.mxu0 0.0
      %422 = vmatpush.msra.mxu0 %v405
      %423 = vmatmul.f32.gmra.mxu0 %v402
      %v424 = vpop.f32.mrf.mxu0
      %v425 = vadd.f32 0.0, %v424
      %426 = vdwg.mxu0
      %427 = vst.msk [vmem:[%s190 + $0x4] sm:$0xf] %vm265, %v425
      %v428 = vld [vmem:[%s180 + $0x4] sm:$0xf]
      %v429 = vld [vmem:[%s185 + $0x4] sm:$0xf]
      %v430 = vld [vmem:[%s185 + $0x14] sm:$0xf]
      %432 = vst [vmem:[#allocation1] ss:$2 sm:$0xff] %v428
      %v433 = vld.sshfl [vmem:[#allocation1] sm:$0xff pattern:$0x75316420]
      %434 = vrot.lane.b32.xlu0 %v433, 64
      %v435 = vpop.permute.xlu0 %434
      %437 = vst [vmem:[#allocation1] ss:$2 sm:$0xff] %v429
      %v438 = vld.sshfl [vmem:[#allocation1] sm:$0xff pattern:$0x75316420]
      %439 = vrot.lane.b32.xlu0 %v438, 64
      %v440 = vpop.permute.xlu0 %439
      %v441 = vsel %vm194, %v435, 0
      %v443 = vsel %vm194, %v440, 0
      %445 = vmatpush.xpose.msra.mxu0 0.0
      %446 = vmatpush.xpose.msra.mxu0 0.0
      %447 = vmatpush.xpose.msra.mxu0 0.0
      %448 = vmatpush.xpose.msra.mxu0 0.0
      %449 = vmatpush.xpose.msra.mxu0 0.0
      %450 = vmatpush.xpose.msra.mxu0 0.0
      %451 = vmatpush.xpose.msra.mxu0 0.0
      %452 = vmatpush.xpose.msra.mxu0 0.0
      %453 = vmatpush.xpose.msra.mxu0 0.0
      %454 = vmatpush.xpose.msra.mxu0 0.0
      %455 = vmatpush.xpose.msra.mxu0 0.0
      %456 = vmatpush.xpose.msra.mxu0 0.0
      %457 = vmatpush.xpose.msra.mxu0 0.0
      %458 = vmatpush.xpose.msra.mxu0 0.0
      %459 = vmatpush.xpose.msra.mxu0 0.0
      %460 = vmatpush.xpose.msra.mxu0 %v443
      %461 = vmatmul.f32.gmra.mxu0 %v441
      %v462 = vpop.f32.mrf.mxu0
      %v463 = vadd.f32 0.0, %v462
      %464 = vdwg.mxu0
      %v465 = vmul.f32 %v463, 0.125
      %s466 = scalar_lea.vmem %s2, 12
      %v467 = vld [vmem:[%s466] sm:$0xf]
      %vm468 = vcmp.eq.f32.partialorder %v467, 0.0
      %v469 = vsel %vm468, -1e+09, %v465
      %v470 = vsel %vm225, %v469, -inf
      %471 = vmax.xlane.f32.xlu0 %v470
      %v472 = vpop.xlane.xlu0 %471
      %v473 = vsub.f32 %v469, %v472
      %v474 = vmul.f32 %v473, 1.442695
      %v475 = vpow.pop %v474
      %v476 = vsel %vm225, %v475, 0.0
      %477 = vadd.xlane.f32.xlu0 %v476
      %v478 = vpop.xlane.xlu0 %477
      %v479 = vrcp.pop %v478
      %v480 = vmul.f32 %v475, %v479
      %482 = vst [vmem:[#allocation1] ss:$2 sm:$0xff] %v430
      %v483 = vld.sshfl [vmem:[#allocation1] sm:$0xff pattern:$0x75316420]
      %484 = vrot.lane.b32.xlu0 %v483, 64
      %v485 = vpop.permute.xlu0 %484
      %v487 = vsel %vm237, %v480, 0
      %v489 = vsel %vm241, %v485, 0
      %491 = vmatpush.msra.mxu0 0.0
      %492 = vmatpush.msra.mxu0 0.0
      %493 = vmatpush.msra.mxu0 0.0
      %494 = vmatpush.msra.mxu0 0.0
      %495 = vmatpush.msra.mxu0 0.0
      %496 = vmatpush.msra.mxu0 0.0
      %497 = vmatpush.msra.mxu0 0.0
      %498 = vmatpush.msra.mxu0 0.0
      %499 = vmatpush.msra.mxu0 0.0
      %500 = vmatpush.msra.mxu0 0.0
      %501 = vmatpush.msra.mxu0 0.0
      %502 = vmatpush.msra.mxu0 0.0
      %503 = vmatpush.msra.mxu0 0.0
      %504 = vmatpush.msra.mxu0 0.0
      %505 = vmatpush.msra.mxu0 0.0
      %506 = vmatpush.msra.mxu0 %v489
      %507 = vmatmul.f32.gmra.mxu0 %v487
      %v508 = vpop.f32.mrf.mxu0
      %v509 = vadd.f32 0.0, %v508
      %510 = vdwg.mxu0
      %512 = vrot.lane.b32.xlu0 %v509, 64
      %v513 = vpop.permute.xlu0 %512
      %515 = vst.msk [vmem:[%s190 + $0x4] sm:$0xf] %vm354, %v513
      %v516 = vld [vmem:[%s180 + $0x8] sm:$0xf]
      %v517 = vld [vmem:[%s185 + $0x8] sm:$0xf]
      %v518 = vld [vmem:[%s185 + $0x18] sm:$0xf]
      %v520 = vsel %vm194, %v516, 0
      %v523 = vsel %vm194, %v517, 0
      %525 = vmatpush.xpose.msra.mxu0 0.0
      %526 = vmatpush.xpose.msra.mxu0 0.0
      %527 = vmatpush.xpose.msra.mxu0 0.0
      %528 = vmatpush.xpose.msra.mxu0 0.0
      %529 = vmatpush.xpose.msra.mxu0 0.0
      %530 = vmatpush.xpose.msra.mxu0 0.0
      %531 = vmatpush.xpose.msra.mxu0 0.0
      %532 = vmatpush.xpose.msra.mxu0 0.0
      %533 = vmatpush.xpose.msra.mxu0 0.0
      %534 = vmatpush.xpose.msra.mxu0 0.0
      %535 = vmatpush.xpose.msra.mxu0 0.0
      %536 = vmatpush.xpose.msra.mxu0 0.0
      %537 = vmatpush.xpose.msra.mxu0 0.0
      %538 = vmatpush.xpose.msra.mxu0 0.0
      %539 = vmatpush.xpose.msra.mxu0 0.0
      %540 = vmatpush.xpose.msra.mxu0 %v523
      %541 = vmatmul.f32.gmra.mxu0 %v520
      %v542 = vpop.f32.mrf.mxu0
      %v543 = vadd.f32 0.0, %v542
      %544 = vdwg.mxu0
      %v545 = vmul.f32 %v543, 0.125
      %s546 = scalar_lea.vmem %s2, 16
      %v547 = vld [vmem:[%s546] sm:$0xf]
      %vm548 = vcmp.eq.f32.partialorder %v547, 0.0
      %v549 = vsel %vm548, -1e+09, %v545
      %v550 = vsel %vm225, %v549, -inf
      %551 = vmax.xlane.f32.xlu0 %v550
      %v552 = vpop.xlane.xlu0 %551
      %v553 = vsub.f32 %v549, %v552
      %v554 = vmul.f32 %v553, 1.442695
      %v555 = vpow.pop %v554
      %v556 = vsel %vm225, %v555, 0.0
      %557 = vadd.xlane.f32.xlu0 %v556
      %v558 = vpop.xlane.xlu0 %557
      %v559 = vrcp.pop %v558
      %v560 = vmul.f32 %v555, %v559
      %v562 = vsel %vm237, %v560, 0
      %v565 = vsel %vm241, %v518, 0
      %567 = vmatpush.msra.mxu0 0.0
      %568 = vmatpush.msra.mxu0 0.0
      %569 = vmatpush.msra.mxu0 0.0
      %570 = vmatpush.msra.mxu0 0.0
      %571 = vmatpush.msra.mxu0 0.0
      %572 = vmatpush.msra.mxu0 0.0
      %573 = vmatpush.msra.mxu0 0.0
      %574 = vmatpush.msra.mxu0 0.0
      %575 = vmatpush.msra.mxu0 0.0
      %576 = vmatpush.msra.mxu0 0.0
      %577 = vmatpush.msra.mxu0 0.0
      %578 = vmatpush.msra.mxu0 0.0
      %579 = vmatpush.msra.mxu0 0.0
      %580 = vmatpush.msra.mxu0 0.0
      %581 = vmatpush.msra.mxu0 0.0
      %582 = vmatpush.msra.mxu0 %v565
      %583 = vmatmul.f32.gmra.mxu0 %v562
      %v584 = vpop.f32.mrf.mxu0
      %v585 = vadd.f32 0.0, %v584
      %586 = vdwg.mxu0
      %587 = vst.msk [vmem:[%s190 + $0x8] sm:$0xf] %vm265, %v585
      %v588 = vld [vmem:[%s180 + $0x8] sm:$0xf]
      %v589 = vld [vmem:[%s185 + $0x8] sm:$0xf]
      %v590 = vld [vmem:[%s185 + $0x18] sm:$0xf]
      %592 = vst [vmem:[#allocation1] ss:$2 sm:$0xff] %v588
      %v593 = vld.sshfl [vmem:[#allocation1] sm:$0xff pattern:$0x75316420]
      %594 = vrot.lane.b32.xlu0 %v593, 64
      %v595 = vpop.permute.xlu0 %594
      %597 = vst [vmem:[#allocation1] ss:$2 sm:$0xff] %v589
      %v598 = vld.sshfl [vmem:[#allocation1] sm:$0xff pattern:$0x75316420]
      %599 = vrot.lane.b32.xlu0 %v598, 64
      %v600 = vpop.permute.xlu0 %599
      %v601 = vsel %vm194, %v595, 0
      %v603 = vsel %vm194, %v600, 0
      %605 = vmatpush.xpose.msra.mxu0 0.0
      %606 = vmatpush.xpose.msra.mxu0 0.0
      %607 = vmatpush.xpose.msra.mxu0 0.0
      %608 = vmatpush.xpose.msra.mxu0 0.0
      %609 = vmatpush.xpose.msra.mxu0 0.0
      %610 = vmatpush.xpose.msra.mxu0 0.0
      %611 = vmatpush.xpose.msra.mxu0 0.0
      %612 = vmatpush.xpose.msra.mxu0 0.0
      %613 = vmatpush.xpose.msra.mxu0 0.0
      %614 = vmatpush.xpose.msra.mxu0 0.0
      %615 = vmatpush.xpose.msra.mxu0 0.0
      %616 = vmatpush.xpose.msra.mxu0 0.0
      %617 = vmatpush.xpose.msra.mxu0 0.0
      %618 = vmatpush.xpose.msra.mxu0 0.0
      %619 = vmatpush.xpose.msra.mxu0 0.0
      %620 = vmatpush.xpose.msra.mxu0 %v603
      %621 = vmatmul.f32.gmra.mxu0 %v601
      %v622 = vpop.f32.mrf.mxu0
      %v623 = vadd.f32 0.0, %v622
      %624 = vdwg.mxu0
      %v625 = vmul.f32 %v623, 0.125
      %s626 = scalar_lea.vmem %s2, 20
      %v627 = vld [vmem:[%s626] sm:$0xf]
      %vm628 = vcmp.eq.f32.partialorder %v627, 0.0
      %v629 = vsel %vm628, -1e+09, %v625
      %v630 = vsel %vm225, %v629, -inf
      %631 = vmax.xlane.f32.xlu0 %v630
      %v632 = vpop.xlane.xlu0 %631
      %v633 = vsub.f32 %v629, %v632
      %v634 = vmul.f32 %v633, 1.442695
      %v635 = vpow.pop %v634
      %v636 = vsel %vm225, %v635, 0.0
      %637 = vadd.xlane.f32.xlu0 %v636
      %v638 = vpop.xlane.xlu0 %637
      %v639 = vrcp.pop %v638
      %v640 = vmul.f32 %v635, %v639
      %642 = vst [vmem:[#allocation1] ss:$2 sm:$0xff] %v590
      %v643 = vld.sshfl [vmem:[#allocation1] sm:$0xff pattern:$0x75316420]
      %644 = vrot.lane.b32.xlu0 %v643, 64
      %v645 = vpop.permute.xlu0 %644
      %v647 = vsel %vm237, %v640, 0
      %v649 = vsel %vm241, %v645, 0
      %651 = vmatpush.msra.mxu0 0.0
      %652 = vmatpush.msra.mxu0 0.0
      %653 = vmatpush.msra.mxu0 0.0
      %654 = vmatpush.msra.mxu0 0.0
      %655 = vmatpush.msra.mxu0 0.0
      %656 = vmatpush.msra.mxu0 0.0
      %657 = vmatpush.msra.mxu0 0.0
      %658 = vmatpush.msra.mxu0 0.0
      %659 = vmatpush.msra.mxu0 0.0
      %660 = vmatpush.msra.mxu0 0.0
      %661 = vmatpush.msra.mxu0 0.0
      %662 = vmatpush.msra.mxu0 0.0
      %663 = vmatpush.msra.mxu0 0.0
      %664 = vmatpush.msra.mxu0 0.0
      %665 = vmatpush.msra.mxu0 0.0
      %666 = vmatpush.msra.mxu0 %v649
      %667 = vmatmul.f32.gmra.mxu0 %v647
      %v668 = vpop.f32.mrf.mxu0
      %v669 = vadd.f32 0.0, %v668
      %670 = vdwg.mxu0
      %672 = vrot.lane.b32.xlu0 %v669, 64
      %v673 = vpop.permute.xlu0 %672
      %675 = vst.msk [vmem:[%s190 + $0x8] sm:$0xf] %vm354, %v673
      %v676 = vld [vmem:[%s180 + $0xc] sm:$0xf]
      %v677 = vld [vmem:[%s185 + $0xc] sm:$0xf]
      %v678 = vld [vmem:[%s185 + $0x1c] sm:$0xf]
      %v680 = vsel %vm194, %v676, 0
      %v683 = vsel %vm194, %v677, 0
      %685 = vmatpush.xpose.msra.mxu0 0.0
      %686 = vmatpush.xpose.msra.mxu0 0.0
      %687 = vmatpush.xpose.msra.mxu0 0.0
      %688 = vmatpush.xpose.msra.mxu0 0.0
      %689 = vmatpush.xpose.msra.mxu0 0.0
      %690 = vmatpush.xpose.msra.mxu0 0.0
      %691 = vmatpush.xpose.msra.mxu0 0.0
      %692 = vmatpush.xpose.msra.mxu0 0.0
      %693 = vmatpush.xpose.msra.mxu0 0.0
      %694 = vmatpush.xpose.msra.mxu0 0.0
      %695 = vmatpush.xpose.msra.mxu0 0.0
      %696 = vmatpush.xpose.msra.mxu0 0.0
      %697 = vmatpush.xpose.msra.mxu0 0.0
      %698 = vmatpush.xpose.msra.mxu0 0.0
      %699 = vmatpush.xpose.msra.mxu0 0.0
      %700 = vmatpush.xpose.msra.mxu0 %v683
      %701 = vmatmul.f32.gmra.mxu0 %v680
      %v702 = vpop.f32.mrf.mxu0
      %v703 = vadd.f32 0.0, %v702
      %704 = vdwg.mxu0
      %v705 = vmul.f32 %v703, 0.125
      %s706 = scalar_lea.vmem %s2, 24
      %v707 = vld [vmem:[%s706] sm:$0xf]
      %vm708 = vcmp.eq.f32.partialorder %v707, 0.0
      %v709 = vsel %vm708, -1e+09, %v705
      %v710 = vsel %vm225, %v709, -inf
      %711 = vmax.xlane.f32.xlu0 %v710
      %v712 = vpop.xlane.xlu0 %711
      %v713 = vsub.f32 %v709, %v712
      %v714 = vmul.f32 %v713, 1.442695
      %v715 = vpow.pop %v714
      %v716 = vsel %vm225, %v715, 0.0
      %717 = vadd.xlane.f32.xlu0 %v716
      %v718 = vpop.xlane.xlu0 %717
      %v719 = vrcp.pop %v718
      %v720 = vmul.f32 %v715, %v719
      %v722 = vsel %vm237, %v720, 0
      %v725 = vsel %vm241, %v678, 0
      %727 = vmatpush.msra.mxu0 0.0
      %728 = vmatpush.msra.mxu0 0.0
      %729 = vmatpush.msra.mxu0 0.0
      %730 = vmatpush.msra.mxu0 0.0
      %731 = vmatpush.msra.mxu0 0.0
      %732 = vmatpush.msra.mxu0 0.0
      %733 = vmatpush.msra.mxu0 0.0
      %734 = vmatpush.msra.mxu0 0.0
      %735 = vmatpush.msra.mxu0 0.0
      %736 = vmatpush.msra.mxu0 0.0
      %737 = vmatpush.msra.mxu0 0.0
      %738 = vmatpush.msra.mxu0 0.0
      %739 = vmatpush.msra.mxu0 0.0
      %740 = vmatpush.msra.mxu0 0.0
      %741 = vmatpush.msra.mxu0 0.0
      %742 = vmatpush.msra.mxu0 %v725
      %743 = vmatmul.f32.gmra.mxu0 %v722
      %v744 = vpop.f32.mrf.mxu0
      %v745 = vadd.f32 0.0, %v744
      %746 = vdwg.mxu0
      %747 = vst.msk [vmem:[%s190 + $0xc] sm:$0xf] %vm265, %v745
      %v748 = vld [vmem:[%s180 + $0xc] sm:$0xf]
      %v749 = vld [vmem:[%s185 + $0xc] sm:$0xf]
      %v750 = vld [vmem:[%s185 + $0x1c] sm:$0xf]
      %752 = vst [vmem:[#allocation1] ss:$2 sm:$0xff] %v748
      %v753 = vld.sshfl [vmem:[#allocation1] sm:$0xff pattern:$0x75316420]
      %754 = vrot.lane.b32.xlu0 %v753, 64
      %v755 = vpop.permute.xlu0 %754
      %757 = vst [vmem:[#allocation1] ss:$2 sm:$0xff] %v749
      %v758 = vld.sshfl [vmem:[#allocation1] sm:$0xff pattern:$0x75316420]
      %759 = vrot.lane.b32.xlu0 %v758, 64
      %v760 = vpop.permute.xlu0 %759
      %v761 = vsel %vm194, %v755, 0
      %v763 = vsel %vm194, %v760, 0
      %765 = vmatpush.xpose.msra.mxu0 0.0
      %766 = vmatpush.xpose.msra.mxu0 0.0
      %767 = vmatpush.xpose.msra.mxu0 0.0
      %768 = vmatpush.xpose.msra.mxu0 0.0
      %769 = vmatpush.xpose.msra.mxu0 0.0
      %770 = vmatpush.xpose.msra.mxu0 0.0
      %771 = vmatpush.xpose.msra.mxu0 0.0
      %772 = vmatpush.xpose.msra.mxu0 0.0
      %773 = vmatpush.xpose.msra.mxu0 0.0
      %774 = vmatpush.xpose.msra.mxu0 0.0
      %775 = vmatpush.xpose.msra.mxu0 0.0
      %776 = vmatpush.xpose.msra.mxu0 0.0
      %777 = vmatpush.xpose.msra.mxu0 0.0
      %778 = vmatpush.xpose.msra.mxu0 0.0
      %779 = vmatpush.xpose.msra.mxu0 0.0
      %780 = vmatpush.xpose.msra.mxu0 %v763
      %781 = vmatmul.f32.gmra.mxu0 %v761
      %v782 = vpop.f32.mrf.mxu0
      %v783 = vadd.f32 0.0, %v782
      %784 = vdwg.mxu0
      %v785 = vmul.f32 %v783, 0.125
      %s786 = scalar_lea.vmem %s2, 28
      %v787 = vld [vmem:[%s786] sm:$0xf]
      %vm788 = vcmp.eq.f32.partialorder %v787, 0.0
      %v789 = vsel %vm788, -1e+09, %v785
      %v790 = vsel %vm225, %v789, -inf
      %791 = vmax.xlane.f32.xlu0 %v790
      %v792 = vpop.xlane.xlu0 %791
      %v793 = vsub.f32 %v789, %v792
      %v794 = vmul.f32 %v793, 1.442695
      %v795 = vpow.pop %v794
      %v796 = vsel %vm225, %v795, 0.0
      %797 = vadd.xlane.f32.xlu0 %v796
      %v798 = vpop.xlane.xlu0 %797
      %v799 = vrcp.pop %v798
      %v800 = vmul.f32 %v795, %v799
      %802 = vst [vmem:[#allocation1] ss:$2 sm:$0xff] %v750
      %v803 = vld.sshfl [vmem:[#allocation1] sm:$0xff pattern:$0x75316420]
      %804 = vrot.lane.b32.xlu0 %v803, 64
      %v805 = vpop.permute.xlu0 %804
      %v807 = vsel %vm237, %v800, 0
      %v809 = vsel %vm241, %v805, 0
      %811 = vmatpush.msra.mxu0 0.0
      %812 = vmatpush.msra.mxu0 0.0
      %813 = vmatpush.msra.mxu0 0.0
      %814 = vmatpush.msra.mxu0 0.0
      %815 = vmatpush.msra.mxu0 0.0
      %816 = vmatpush.msra.mxu0 0.0
      %817 = vmatpush.msra.mxu0 0.0
      %818 = vmatpush.msra.mxu0 0.0
      %819 = vmatpush.msra.mxu0 0.0
      %820 = vmatpush.msra.mxu0 0.0
      %821 = vmatpush.msra.mxu0 0.0
      %822 = vmatpush.msra.mxu0 0.0
      %823 = vmatpush.msra.mxu0 0.0
      %824 = vmatpush.msra.mxu0 0.0
      %825 = vmatpush.msra.mxu0 0.0
      %826 = vmatpush.msra.mxu0 %v809
      %827 = vmatmul.f32.gmra.mxu0 %v807
      %v828 = vpop.f32.mrf.mxu0
      %v829 = vadd.f32 0.0, %v828
      %830 = vdwg.mxu0
      %832 = vrot.lane.b32.xlu0 %v829, 64
      %v833 = vpop.permute.xlu0 %832
      %835 = vst.msk [vmem:[%s190 + $0xc] sm:$0xf] %vm354, %v833
      %p836 = scmp.lt.s32.totalorder %s14, 1
      %s837 = scalar_select %p836, %s14, 1
      %s838 = smul.addr %s837, 4
      %s839 = smul.addr %s838, 4
      %s840 = scalar_lea.vmem %s3, %s839
      // Predicated region
      $region33: #{decoder.18} parent=31 // pred_check
        %p841 = pneg %p105
      $region34: #{decoder.18} parent=31 // pred_check_branch
        %843 = sbr.rel (%p841) target = $region36
      $region35: #{decoder.18} parent=31 // pred_region
        _
      $region36: #{decoder.18} parent=31 // pred_fallthru
        _
    $region32: #{decoder.18} parent=5 // pred_fallthru
      _
    %p844 = scmp.le.s32.totalorder 2, %s9
    // Predicated region
    $region37: #{decoder.18} parent=5 // pred_check
      %p845 = pneg %p844
    $region38: #{decoder.18} parent=5 // pred_check_branch
      %847 = sbr.rel (%p845) target = $region40
    $region39: #{decoder.18} parent=5 // pred_region
      %s848 = ssub.s32 %s9, 2
      // Predicated region
      $region41: #{decoder.18} parent=39 // pred_check
        %p849 = pneg %p111
      $region42: #{decoder.18} parent=39 // pred_check_branch
        %851 = sbr.rel (%p849) target = $region44
      $region43: #{decoder.18} parent=39 // pred_region
        %p852 = scmp.lt.s32.totalorder %s15, 1
        %s853 = scalar_select %p852, %s15, 1
        %s854 = smul.addr %s853, 4
        %s855 = smul.addr %s854, 4
        %s856 = scalar_lea.vmem %s3, %s855
      $region44: #{decoder.18} parent=39 // pred_fallthru
        _
    $region40: #{decoder.18} parent=5 // pred_fallthru
      _
  $region6: #{decoder.18} parent=0 // loop_footer
    %s13 = sadd.s32 1, %s9
  $region7: #{decoder.18} parent=0 // loop_footer_branch
    %8 = sbr.rel target = $region3
  $region8: #{decoder.18} parent=0 // loop_exit
    _

// kernel: decoder.19
$region0: #{decoder.19}
  #allocation0 [shape = 'u32[]', space=smem, size = 0x4, offset = 0x4, fixed_abs, tag = 'smem constant byte address 0x4 - core index']
  #allocation1 [shape = 'u32[72,128]{1,0:T(1,128)}', space=vmem, size = 0x9000, scoped, tag = 'internal scratch']
  %s0 = inlined_call_operand.vmem [shape: f32[8,512], index: 0, kind: input, shape index: {}]
  %s1 = inlined_call_operand.vmem [shape: f32[8,512], index: 1, kind: input, shape index: {}]
  %s2 = inlined_call_operand.vmem [shape: f32[512,512], index: 2, kind: input, shape index: {}]
  %s3 = inlined_call_operand.vmem [shape: f32[1,512], index: 3, kind: input, shape index: {}]
  %s4 = inlined_call_operand.vmem [shape: f32[8,512], index: 4, kind: output, shape index: {}]
  %s5 = sld [smem:[#allocation0]]
  $region26: #{decoder.19} parent=0
    _
  %s7 = ssub.s32 1, %s5
  %s8 = scalar_select 0, %s7, %s5
  // Predicated region
  $region2: #{decoder.19} parent=0 // pred_check
    _
  $region3: #{decoder.19} parent=0 // pred_check_branch
    %10 = sbr.rel (0) target = $region5
  $region4: #{decoder.19} parent=0 // pred_region
    _
  $region5: #{decoder.19} parent=0 // pred_fallthru
    _
  // Predicated region
  $region6: #{decoder.19} parent=0 // pred_check
    _
  $region7: #{decoder.19} parent=0 // pred_check_branch
    %12 = sbr.rel (0) target = $region9
  $region8: #{decoder.19} parent=0 // pred_region
    _
  $region9: #{decoder.19} parent=0 // pred_fallthru
    _
  // Predicated region
  $region10: #{decoder.19} parent=0 // pred_check
    _
  $region11: #{decoder.19} parent=0 // pred_check_branch
    %14 = sbr.rel (0) target = $region13
  $region12: #{decoder.19} parent=0 // pred_region
    _
  $region13: #{decoder.19} parent=0 // pred_fallthru
    _
  // Predicated region
  $region14: #{decoder.19} parent=0 // pred_check
    _
  $region15: #{decoder.19} parent=0 // pred_check_branch
    %16 = sbr.rel (0) target = $region17
  $region16: #{decoder.19} parent=0 // pred_region
    _
  $region17: #{decoder.19} parent=0 // pred_fallthru
    _
  %v17 = vld [vmem:[%s1] sm:$0xff]
  %v18 = vld [vmem:[%s1 + $0x8] sm:$0xff]
  %v19 = vld [vmem:[%s1 + $0x10] sm:$0xff]
  %v20 = vld [vmem:[%s1 + $0x18] sm:$0xff]
  %v21 = vld [vmem:[%s2] sm:$0xff]
  %v22 = vld [vmem:[%s2 + $0x8] sm:$0xff]
  %v23 = vld [vmem:[%s2 + $0x10] sm:$0xff]
  %v24 = vld [vmem:[%s2 + $0x18] sm:$0xff]
  %v25 = vld [vmem:[%s2 + $0x20] sm:$0xff]
  %v26 = vld [vmem:[%s2 + $0x28] sm:$0xff]
  %v27 = vld [vmem:[%s2 + $0x30] sm:$0xff]
  %v28 = vld [vmem:[%s2 + $0x38] sm:$0xff]
  %v29 = vld [vmem:[%s2 + $0x40] sm:$0xff]
  %v30 = vld [vmem:[%s2 + $0x48] sm:$0xff]
  %v31 = vld [vmem:[%s2 + $0x50] sm:$0xff]
  %v32 = vld [vmem:[%s2 + $0x58] sm:$0xff]
  %v33 = vld [vmem:[%s2 + $0x60] sm:$0xff]
  %v34 = vld [vmem:[%s2 + $0x68] sm:$0xff]
  %v35 = vld [vmem:[%s2 + $0x70] sm:$0xff]
  %v36 = vld [vmem:[%s2 + $0x78] sm:$0xff]
  %v37 = vld [vmem:[%s2 + $0x80] sm:$0xff]
  %v38 = vld [vmem:[%s2 + $0x88] sm:$0xff]
  %v39 = vld [vmem:[%s2 + $0x90] sm:$0xff]
  %v40 = vld [vmem:[%s2 + $0x98] sm:$0xff]
  %v41 = vld [vmem:[%s2 + $0xa0] sm:$0xff]
  %v42 = vld [vmem:[%s2 + $0xa8] sm:$0xff]
  %v43 = vld [vmem:[%s2 + $0xb0] sm:$0xff]
  %v44 = vld [vmem:[%s2 + $0xb8] sm:$0xff]
  %v45 = vld [vmem:[%s2 + $0xc0] sm:$0xff]
  %v46 = vld [vmem:[%s2 + $0xc8] sm:$0xff]
  %v47 = vld [vmem:[%s2 + $0xd0] sm:$0xff]
  %v48 = vld [vmem:[%s2 + $0xd8] sm:$0xff]
  %v49 = vld [vmem:[%s2 + $0xe0] sm:$0xff]
  %v50 = vld [vmem:[%s2 + $0xe8] sm:$0xff]
  %v51 = vld [vmem:[%s2 + $0xf0] sm:$0xff]
  %v52 = vld [vmem:[%s2 + $0xf8] sm:$0xff]
  %v53 = vld [vmem:[%s2 + $0x100] sm:$0xff]
  %v54 = vld [vmem:[%s2 + $0x108] sm:$0xff]
  %v55 = vld [vmem:[%s2 + $0x110] sm:$0xff]
  %v56 = vld [vmem:[%s2 + $0x118] sm:$0xff]
  %v57 = vld [vmem:[%s2 + $0x120] sm:$0xff]
  %v58 = vld [vmem:[%s2 + $0x128] sm:$0xff]
  %v59 = vld [vmem:[%s2 + $0x130] sm:$0xff]
  %v60 = vld [vmem:[%s2 + $0x138] sm:$0xff]
  %v61 = vld [vmem:[%s2 + $0x140] sm:$0xff]
  %v62 = vld [vmem:[%s2 + $0x148] sm:$0xff]
  %v63 = vld [vmem:[%s2 + $0x150] sm:$0xff]
  %v64 = vld [vmem:[%s2 + $0x158] sm:$0xff]
  %v65 = vld [vmem:[%s2 + $0x160] sm:$0xff]
  %v66 = vld [vmem:[%s2 + $0x168] sm:$0xff]
  %v67 = vld [vmem:[%s2 + $0x170] sm:$0xff]
  %v68 = vld [vmem:[%s2 + $0x178] sm:$0xff]
  %v69 = vld [vmem:[%s2 + $0x180] sm:$0xff]
  %v70 = vld [vmem:[%s2 + $0x188] sm:$0xff]
  %v71 = vld [vmem:[%s2 + $0x190] sm:$0xff]
  %v72 = vld [vmem:[%s2 + $0x198] sm:$0xff]
  %v73 = vld [vmem:[%s2 + $0x1a0] sm:$0xff]
  %v74 = vld [vmem:[%s2 + $0x1a8] sm:$0xff]
  %v75 = vld [vmem:[%s2 + $0x1b0] sm:$0xff]
  %v76 = vld [vmem:[%s2 + $0x1b8] sm:$0xff]
  %v77 = vld [vmem:[%s2 + $0x1c0] sm:$0xff]
  %v78 = vld [vmem:[%s2 + $0x1c8] sm:$0xff]
  %v79 = vld [vmem:[%s2 + $0x1d0] sm:$0xff]
  %v80 = vld [vmem:[%s2 + $0x1d8] sm:$0xff]
  %v81 = vld [vmem:[%s2 + $0x1e0] sm:$0xff]
  %v82 = vld [vmem:[%s2 + $0x1e8] sm:$0xff]
  %v83 = vld [vmem:[%s2 + $0x1f0] sm:$0xff]
  %v84 = vld [vmem:[%s2 + $0x1f8] sm:$0xff]
  %v85 = vld [vmem:[%s2 + $0x200] sm:$0xff]
  %v86 = vld [vmem:[%s2 + $0x208] sm:$0xff]
  %v87 = vld [vmem:[%s2 + $0x210] sm:$0xff]
  %v88 = vld [vmem:[%s2 + $0x218] sm:$0xff]
  %v89 = vld [vmem:[%s2 + $0x220] sm:$0xff]
  %v90 = vld [vmem:[%s2 + $0x228] sm:$0xff]
  %v91 = vld [vmem:[%s2 + $0x230] sm:$0xff]
  %v92 = vld [vmem:[%s2 + $0x238] sm:$0xff]
  %v93 = vld [vmem:[%s2 + $0x240] sm:$0xff]
  %v94 = vld [vmem:[%s2 + $0x248] sm:$0xff]
  %v95 = vld [vmem:[%s2 + $0x250] sm:$0xff]
  %v96 = vld [vmem:[%s2 + $0x258] sm:$0xff]
  %v97 = vld [vmem:[%s2 + $0x260] sm:$0xff]
  %v98 = vld [vmem:[%s2 + $0x268] sm:$0xff]
  %v99 = vld [vmem:[%s2 + $0x270] sm:$0xff]
  %v100 = vld [vmem:[%s2 + $0x278] sm:$0xff]
  %v101 = vld [vmem:[%s2 + $0x280] sm:$0xff]
  %v102 = vld [vmem:[%s2 + $0x288] sm:$0xff]
  %v103 = vld [vmem:[%s2 + $0x290] sm:$0xff]
  %v104 = vld [vmem:[%s2 + $0x298] sm:$0xff]
  %v105 = vld [vmem:[%s2 + $0x2a0] sm:$0xff]
  %v106 = vld [vmem:[%s2 + $0x2a8] sm:$0xff]
  %v107 = vld [vmem:[%s2 + $0x2b0] sm:$0xff]
  %v108 = vld [vmem:[%s2 + $0x2b8] sm:$0xff]
  %v109 = vld [vmem:[%s2 + $0x2c0] sm:$0xff]
  %v110 = vld [vmem:[%s2 + $0x2c8] sm:$0xff]
  %v111 = vld [vmem:[%s2 + $0x2d0] sm:$0xff]
  %v112 = vld [vmem:[%s2 + $0x2d8] sm:$0xff]
  %v113 = vld [vmem:[%s2 + $0x2e0] sm:$0xff]
  %v114 = vld [vmem:[%s2 + $0x2e8] sm:$0xff]
  %v115 = vld [vmem:[%s2 + $0x2f0] sm:$0xff]
  %v116 = vld [vmem:[%s2 + $0x2f8] sm:$0xff]
  %v117 = vld [vmem:[%s2 + $0x300] sm:$0xff]
  %v118 = vld [vmem:[%s2 + $0x308] sm:$0xff]
  %v119 = vld [vmem:[%s2 + $0x310] sm:$0xff]
  %v120 = vld [vmem:[%s2 + $0x318] sm:$0xff]
  %v121 = vld [vmem:[%s2 + $0x320] sm:$0xff]
  %v122 = vld [vmem:[%s2 + $0x328] sm:$0xff]
  %v123 = vld [vmem:[%s2 + $0x330] sm:$0xff]
  %v124 = vld [vmem:[%s2 + $0x338] sm:$0xff]
  %v125 = vld [vmem:[%s2 + $0x340] sm:$0xff]
  %v126 = vld [vmem:[%s2 + $0x348] sm:$0xff]
  %v127 = vld [vmem:[%s2 + $0x350] sm:$0xff]
  %v128 = vld [vmem:[%s2 + $0x358] sm:$0xff]
  %v129 = vld [vmem:[%s2 + $0x360] sm:$0xff]
  %v130 = vld [vmem:[%s2 + $0x368] sm:$0xff]
  %v131 = vld [vmem:[%s2 + $0x370] sm:$0xff]
  %v132 = vld [vmem:[%s2 + $0x378] sm:$0xff]
  %v133 = vld [vmem:[%s2 + $0x380] sm:$0xff]
  %v134 = vld [vmem:[%s2 + $0x388] sm:$0xff]
  %v135 = vld [vmem:[%s2 + $0x390] sm:$0xff]
  %v136 = vld [vmem:[%s2 + $0x398] sm:$0xff]
  %v137 = vld [vmem:[%s2 + $0x3a0] sm:$0xff]
  %v138 = vld [vmem:[%s2 + $0x3a8] sm:$0xff]
  %v139 = vld [vmem:[%s2 + $0x3b0] sm:$0xff]
  %v140 = vld [vmem:[%s2 + $0x3b8] sm:$0xff]
  %v141 = vld [vmem:[%s2 + $0x3c0] sm:$0xff]
  %v142 = vld [vmem:[%s2 + $0x3c8] sm:$0xff]
  %v143 = vld [vmem:[%s2 + $0x3d0] sm:$0xff]
  %v144 = vld [vmem:[%s2 + $0x3d8] sm:$0xff]
  %v145 = vld [vmem:[%s2 + $0x3e0] sm:$0xff]
  %v146 = vld [vmem:[%s2 + $0x3e8] sm:$0xff]
  %v147 = vld [vmem:[%s2 + $0x3f0] sm:$0xff]
  %v148 = vld [vmem:[%s2 + $0x3f8] sm:$0xff]
  %v149 = vld [vmem:[%s2 + $0x400] sm:$0xff]
  %v150 = vld [vmem:[%s2 + $0x408] sm:$0xff]
  %v151 = vld [vmem:[%s2 + $0x410] sm:$0xff]
  %v152 = vld [vmem:[%s2 + $0x418] sm:$0xff]
  %v153 = vld [vmem:[%s2 + $0x420] sm:$0xff]
  %v154 = vld [vmem:[%s2 + $0x428] sm:$0xff]
  %v155 = vld [vmem:[%s2 + $0x430] sm:$0xff]
  %v156 = vld [vmem:[%s2 + $0x438] sm:$0xff]
  %v157 = vld [vmem:[%s2 + $0x440] sm:$0xff]
  %v158 = vld [vmem:[%s2 + $0x448] sm:$0xff]
  %v159 = vld [vmem:[%s2 + $0x450] sm:$0xff]
  %v160 = vld [vmem:[%s2 + $0x458] sm:$0xff]
  %v161 = vld [vmem:[%s2 + $0x460] sm:$0xff]
  %v162 = vld [vmem:[%s2 + $0x468] sm:$0xff]
  %v163 = vld [vmem:[%s2 + $0x470] sm:$0xff]
  %v164 = vld [vmem:[%s2 + $0x478] sm:$0xff]
  %v165 = vld [vmem:[%s2 + $0x480] sm:$0xff]
  %v166 = vld [vmem:[%s2 + $0x488] sm:$0xff]
  %v167 = vld [vmem:[%s2 + $0x490] sm:$0xff]
  %v168 = vld [vmem:[%s2 + $0x498] sm:$0xff]
  %v169 = vld [vmem:[%s2 + $0x4a0] sm:$0xff]
  %v170 = vld [vmem:[%s2 + $0x4a8] sm:$0xff]
  %v171 = vld [vmem:[%s2 + $0x4b0] sm:$0xff]
  %v172 = vld [vmem:[%s2 + $0x4b8] sm:$0xff]
  %v173 = vld [vmem:[%s2 + $0x4c0] sm:$0xff]
  %v174 = vld [vmem:[%s2 + $0x4c8] sm:$0xff]
  %v175 = vld [vmem:[%s2 + $0x4d0] sm:$0xff]
  %v176 = vld [vmem:[%s2 + $0x4d8] sm:$0xff]
  %v177 = vld [vmem:[%s2 + $0x4e0] sm:$0xff]
  %v178 = vld [vmem:[%s2 + $0x4e8] sm:$0xff]
  %v179 = vld [vmem:[%s2 + $0x4f0] sm:$0xff]
  %v180 = vld [vmem:[%s2 + $0x4f8] sm:$0xff]
  %v181 = vld [vmem:[%s2 + $0x500] sm:$0xff]
  %v182 = vld [vmem:[%s2 + $0x508] sm:$0xff]
  %v183 = vld [vmem:[%s2 + $0x510] sm:$0xff]
  %v184 = vld [vmem:[%s2 + $0x518] sm:$0xff]
  %v185 = vld [vmem:[%s2 + $0x520] sm:$0xff]
  %v186 = vld [vmem:[%s2 + $0x528] sm:$0xff]
  %v187 = vld [vmem:[%s2 + $0x530] sm:$0xff]
  %v188 = vld [vmem:[%s2 + $0x538] sm:$0xff]
  %v189 = vld [vmem:[%s2 + $0x540] sm:$0xff]
  %v190 = vld [vmem:[%s2 + $0x548] sm:$0xff]
  %v191 = vld [vmem:[%s2 + $0x550] sm:$0xff]
  %v192 = vld [vmem:[%s2 + $0x558] sm:$0xff]
  %v193 = vld [vmem:[%s2 + $0x560] sm:$0xff]
  %v194 = vld [vmem:[%s2 + $0x568] sm:$0xff]
  %v195 = vld [vmem:[%s2 + $0x570] sm:$0xff]
  %v196 = vld [vmem:[%s2 + $0x578] sm:$0xff]
  %v197 = vld [vmem:[%s2 + $0x580] sm:$0xff]
  %v198 = vld [vmem:[%s2 + $0x588] sm:$0xff]
  %v199 = vld [vmem:[%s2 + $0x590] sm:$0xff]
  %v200 = vld [vmem:[%s2 + $0x598] sm:$0xff]
  %v201 = vld [vmem:[%s2 + $0x5a0] sm:$0xff]
  %v202 = vld [vmem:[%s2 + $0x5a8] sm:$0xff]
  %v203 = vld [vmem:[%s2 + $0x5b0] sm:$0xff]
  %v204 = vld [vmem:[%s2 + $0x5b8] sm:$0xff]
  %v205 = vld [vmem:[%s2 + $0x5c0] sm:$0xff]
  %v206 = vld [vmem:[%s2 + $0x5c8] sm:$0xff]
  %v207 = vld [vmem:[%s2 + $0x5d0] sm:$0xff]
  %v208 = vld [vmem:[%s2 + $0x5d8] sm:$0xff]
  %v209 = vld [vmem:[%s2 + $0x5e0] sm:$0xff]
  %v210 = vld [vmem:[%s2 + $0x5e8] sm:$0xff]
  %v211 = vld [vmem:[%s2 + $0x5f0] sm:$0xff]
  %v212 = vld [vmem:[%s2 + $0x5f8] sm:$0xff]
  %v213 = vld [vmem:[%s2 + $0x600] sm:$0xff]
  %v214 = vld [vmem:[%s2 + $0x608] sm:$0xff]
  %v215 = vld [vmem:[%s2 + $0x610] sm:$0xff]
  %v216 = vld [vmem:[%s2 + $0x618] sm:$0xff]
  %v217 = vld [vmem:[%s2 + $0x620] sm:$0xff]
  %v218 = vld [vmem:[%s2 + $0x628] sm:$0xff]
  %v219 = vld [vmem:[%s2 + $0x630] sm:$0xff]
  %v220 = vld [vmem:[%s2 + $0x638] sm:$0xff]
  %v221 = vld [vmem:[%s2 + $0x640] sm:$0xff]
  %v222 = vld [vmem:[%s2 + $0x648] sm:$0xff]
  %v223 = vld [vmem:[%s2 + $0x650] sm:$0xff]
  %v224 = vld [vmem:[%s2 + $0x658] sm:$0xff]
  %v225 = vld [vmem:[%s2 + $0x660] sm:$0xff]
  %v226 = vld [vmem:[%s2 + $0x668] sm:$0xff]
  %v227 = vld [vmem:[%s2 + $0x670] sm:$0xff]
  %v228 = vld [vmem:[%s2 + $0x678] sm:$0xff]
  %v229 = vld [vmem:[%s2 + $0x680] sm:$0xff]
  %v230 = vld [vmem:[%s2 + $0x688] sm:$0xff]
  %v231 = vld [vmem:[%s2 + $0x690] sm:$0xff]
  %v232 = vld [vmem:[%s2 + $0x698] sm:$0xff]
  %v233 = vld [vmem:[%s2 + $0x6a0] sm:$0xff]
  %v234 = vld [vmem:[%s2 + $0x6a8] sm:$0xff]
  %v235 = vld [vmem:[%s2 + $0x6b0] sm:$0xff]
  %v236 = vld [vmem:[%s2 + $0x6b8] sm:$0xff]
  %v237 = vld [vmem:[%s2 + $0x6c0] sm:$0xff]
  %v238 = vld [vmem:[%s2 + $0x6c8] sm:$0xff]
  %v239 = vld [vmem:[%s2 + $0x6d0] sm:$0xff]
  %v240 = vld [vmem:[%s2 + $0x6d8] sm:$0xff]
  %v241 = vld [vmem:[%s2 + $0x6e0] sm:$0xff]
  %v242 = vld [vmem:[%s2 + $0x6e8] sm:$0xff]
  %v243 = vld [vmem:[%s2 + $0x6f0] sm:$0xff]
  %v244 = vld [vmem:[%s2 + $0x6f8] sm:$0xff]
  %v245 = vld [vmem:[%s2 + $0x700] sm:$0xff]
  %v246 = vld [vmem:[%s2 + $0x708] sm:$0xff]
  %v247 = vld [vmem:[%s2 + $0x710] sm:$0xff]
  %v248 = vld [vmem:[%s2 + $0x718] sm:$0xff]
  %v249 = vld [vmem:[%s2 + $0x720] sm:$0xff]
  %v250 = vld [vmem:[%s2 + $0x728] sm:$0xff]
  %v251 = vld [vmem:[%s2 + $0x730] sm:$0xff]
  %v252 = vld [vmem:[%s2 + $0x738] sm:$0xff]
  %v253 = vld [vmem:[%s2 + $0x740] sm:$0xff]
  %v254 = vld [vmem:[%s2 + $0x748] sm:$0xff]
  %v255 = vld [vmem:[%s2 + $0x750] sm:$0xff]
  %v256 = vld [vmem:[%s2 + $0x758] sm:$0xff]
  %v257 = vld [vmem:[%s2 + $0x760] sm:$0xff]
  %v258 = vld [vmem:[%s2 + $0x768] sm:$0xff]
  %v259 = vld [vmem:[%s2 + $0x770] sm:$0xff]
  %v260 = vld [vmem:[%s2 + $0x778] sm:$0xff]
  %v261 = vld [vmem:[%s2 + $0x780] sm:$0xff]
  %v262 = vld [vmem:[%s2 + $0x788] sm:$0xff]
  %v263 = vld [vmem:[%s2 + $0x790] sm:$0xff]
  %v264 = vld [vmem:[%s2 + $0x798] sm:$0xff]
  %v265 = vld [vmem:[%s2 + $0x7a0] sm:$0xff]
  %v266 = vld [vmem:[%s2 + $0x7a8] sm:$0xff]
  %v267 = vld [vmem:[%s2 + $0x7b0] sm:$0xff]
  %v268 = vld [vmem:[%s2 + $0x7b8] sm:$0xff]
  %v269 = vld [vmem:[%s2 + $0x7c0] sm:$0xff]
  %v270 = vld [vmem:[%s2 + $0x7c8] sm:$0xff]
  %v271 = vld [vmem:[%s2 + $0x7d0] sm:$0xff]
  %v272 = vld [vmem:[%s2 + $0x7d8] sm:$0xff]
  %v273 = vld [vmem:[%s2 + $0x7e0] sm:$0xff]
  %v274 = vld [vmem:[%s2 + $0x7e8] sm:$0xff]
  %v275 = vld [vmem:[%s2 + $0x7f0] sm:$0xff]
  %v276 = vld [vmem:[%s2 + $0x7f8] sm:$0xff]
  %v277 = vld [vmem:[%s3] sm:$0xf]
  %v279 = vperm.slane %v277, 0
  %v280 = vperm.slane %v277, 1
  %v281 = vperm.slane %v277, 2
  %v282 = vperm.slane %v277, 3
  %287 = vmatpush.msra.mxu0 %v81
  %288 = vmatpush.msra.mxu0 %v77
  %289 = vmatpush.msra.mxu0 %v73
  %290 = vmatpush.msra.mxu0 %v69
  %291 = vmatpush.msra.mxu0 %v65
  %292 = vmatpush.msra.mxu0 %v61
  %293 = vmatpush.msra.mxu0 %v57
  %294 = vmatpush.msra.mxu0 %v53
  %295 = vmatpush.msra.mxu0 %v49
  %296 = vmatpush.msra.mxu0 %v45
  %297 = vmatpush.msra.mxu0 %v41
  %298 = vmatpush.msra.mxu0 %v37
  %299 = vmatpush.msra.mxu0 %v33
  %300 = vmatpush.msra.mxu0 %v29
  %301 = vmatpush.msra.mxu0 %v25
  %302 = vmatpush.msra.mxu0 %v21
  %303 = vmatmul.f32.gmra.mxu0 %v17
  %v304 = vpop.f32.mrf.mxu0
  %v305 = vadd.f32 %v279, %v304
  %306 = vdwg.mxu0
  %307 = vmatpush.msra.mxu0 %v145
  %308 = vmatpush.msra.mxu0 %v141
  %309 = vmatpush.msra.mxu0 %v137
  %310 = vmatpush.msra.mxu0 %v133
  %311 = vmatpush.msra.mxu0 %v129
  %312 = vmatpush.msra.mxu0 %v125
  %313 = vmatpush.msra.mxu0 %v121
  %314 = vmatpush.msra.mxu0 %v117
  %315 = vmatpush.msra.mxu0 %v113
  %316 = vmatpush.msra.mxu0 %v109
  %317 = vmatpush.msra.mxu0 %v105
  %318 = vmatpush.msra.mxu0 %v101
  %319 = vmatpush.msra.mxu0 %v97
  %320 = vmatpush.msra.mxu0 %v93
  %321 = vmatpush.msra.mxu0 %v89
  %322 = vmatpush.msra.mxu0 %v85
  %323 = vmatmul.f32.gmra.mxu0 %v18
  %v324 = vpop.f32.mrf.mxu0
  %v325 = vadd.f32 %v305, %v324
  %326 = vdwg.mxu0
  %327 = vmatpush.msra.mxu0 %v209
  %328 = vmatpush.msra.mxu0 %v205
  %329 = vmatpush.msra.mxu0 %v201
  %330 = vmatpush.msra.mxu0 %v197
  %331 = vmatpush.msra.mxu0 %v193
  %332 = vmatpush.msra.mxu0 %v189
  %333 = vmatpush.msra.mxu0 %v185
  %334 = vmatpush.msra.mxu0 %v181
  %335 = vmatpush.msra.mxu0 %v177
  %336 = vmatpush.msra.mxu0 %v173
  %337 = vmatpush.msra.mxu0 %v169
  %338 = vmatpush.msra.mxu0 %v165
  %339 = vmatpush.msra.mxu0 %v161
  %340 = vmatpush.msra.mxu0 %v157
  %341 = vmatpush.msra.mxu0 %v153
  %342 = vmatpush.msra.mxu0 %v149
  %343 = vmatmul.f32.gmra.mxu0 %v19
  %v344 = vpop.f32.mrf.mxu0
  %v345 = vadd.f32 %v325, %v344
  %346 = vdwg.mxu0
  %347 = vmatpush.msra.mxu0 %v273
  %348 = vmatpush.msra.mxu0 %v269
  %349 = vmatpush.msra.mxu0 %v265
  %350 = vmatpush.msra.mxu0 %v261
  %351 = vmatpush.msra.mxu0 %v257
  %352 = vmatpush.msra.mxu0 %v253
  %353 = vmatpush.msra.mxu0 %v249
  %354 = vmatpush.msra.mxu0 %v245
  %355 = vmatpush.msra.mxu0 %v241
  %356 = vmatpush.msra.mxu0 %v237
  %357 = vmatpush.msra.mxu0 %v233
  %358 = vmatpush.msra.mxu0 %v229
  %359 = vmatpush.msra.mxu0 %v225
  %360 = vmatpush.msra.mxu0 %v221
  %361 = vmatpush.msra.mxu0 %v217
  %362 = vmatpush.msra.mxu0 %v213
  %363 = vmatmul.f32.gmra.mxu0 %v20
  %v364 = vpop.f32.mrf.mxu0
  %v365 = vadd.f32 %v345, %v364
  %366 = vdwg.mxu0
  %367 = vmatpush.msra.mxu0 %v82
  %368 = vmatpush.msra.mxu0 %v78
  %369 = vmatpush.msra.mxu0 %v74
  %370 = vmatpush.msra.mxu0 %v70
  %371 = vmatpush.msra.mxu0 %v66
  %372 = vmatpush.msra.mxu0 %v62
  %373 = vmatpush.msra.mxu0 %v58
  %374 = vmatpush.msra.mxu0 %v54
  %375 = vmatpush.msra.mxu0 %v50
  %376 = vmatpush.msra.mxu0 %v46
  %377 = vmatpush.msra.mxu0 %v42
  %378 = vmatpush.msra.mxu0 %v38
  %379 = vmatpush.msra.mxu0 %v34
  %380 = vmatpush.msra.mxu0 %v30
  %381 = vmatpush.msra.mxu0 %v26
  %382 = vmatpush.msra.mxu0 %v22
  %383 = vmatmul.f32.gmra.mxu0 %v17
  %v384 = vpop.f32.mrf.mxu0
  %v385 = vadd.f32 %v280, %v384
  %386 = vdwg.mxu0
  %387 = vmatpush.msra.mxu0 %v146
  %388 = vmatpush.msra.mxu0 %v142
  %389 = vmatpush.msra.mxu0 %v138
  %390 = vmatpush.msra.mxu0 %v134
  %391 = vmatpush.msra.mxu0 %v130
  %392 = vmatpush.msra.mxu0 %v126
  %393 = vmatpush.msra.mxu0 %v122
  %394 = vmatpush.msra.mxu0 %v118
  %395 = vmatpush.msra.mxu0 %v114
  %396 = vmatpush.msra.mxu0 %v110
  %397 = vmatpush.msra.mxu0 %v106
  %398 = vmatpush.msra.mxu0 %v102
  %399 = vmatpush.msra.mxu0 %v98
  %400 = vmatpush.msra.mxu0 %v94
  %401 = vmatpush.msra.mxu0 %v90
  %402 = vmatpush.msra.mxu0 %v86
  %403 = vmatmul.f32.gmra.mxu0 %v18
  %v404 = vpop.f32.mrf.mxu0
  %v405 = vadd.f32 %v385, %v404
  %406 = vdwg.mxu0
  %407 = vmatpush.msra.mxu0 %v210
  %408 = vmatpush.msra.mxu0 %v206
  %409 = vmatpush.msra.mxu0 %v202
  %410 = vmatpush.msra.mxu0 %v198
  %411 = vmatpush.msra.mxu0 %v194
  %412 = vmatpush.msra.mxu0 %v190
  %413 = vmatpush.msra.mxu0 %v186
  %414 = vmatpush.msra.mxu0 %v182
  %415 = vmatpush.msra.mxu0 %v178
  %416 = vmatpush.msra.mxu0 %v174
  %417 = vmatpush.msra.mxu0 %v170
  %418 = vmatpush.msra.mxu0 %v166
  %419 = vmatpush.msra.mxu0 %v162
  %420 = vmatpush.msra.mxu0 %v158
  %421 = vmatpush.msra.mxu0 %v154
  %422 = vmatpush.msra.mxu0 %v150
  %423 = vmatmul.f32.gmra.mxu0 %v19
  %v424 = vpop.f32.mrf.mxu0
  %v425 = vadd.f32 %v405, %v424
  %426 = vdwg.mxu0
  %427 = vmatpush.msra.mxu0 %v274
  %428 = vmatpush.msra.mxu0 %v270
  %429 = vmatpush.msra.mxu0 %v266
  %430 = vmatpush.msra.mxu0 %v262
  %431 = vmatpush.msra.mxu0 %v258
  %432 = vmatpush.msra.mxu0 %v254
  %433 = vmatpush.msra.mxu0 %v250
  %434 = vmatpush.msra.mxu0 %v246
  %435 = vmatpush.msra.mxu0 %v242
  %436 = vmatpush.msra.mxu0 %v238
  %437 = vmatpush.msra.mxu0 %v234
  %438 = vmatpush.msra.mxu0 %v230
  %439 = vmatpush.msra.mxu0 %v226
  %440 = vmatpush.msra.mxu0 %v222
  %441 = vmatpush.msra.mxu0 %v218
  %442 = vmatpush.msra.mxu0 %v214
  %443 = vmatmul.f32.gmra.mxu0 %v20
  %v444 = vpop.f32.mrf.mxu0
  %v445 = vadd.f32 %v425, %v444
  %446 = vdwg.mxu0
  %447 = vmatpush.msra.mxu0 %v83
  %448 = vmatpush.msra.mxu0 %v79
  %449 = vmatpush.msra.mxu0 %v75
  %450 = vmatpush.msra.mxu0 %v71
  %451 = vmatpush.msra.mxu0 %v67
  %452 = vmatpush.msra.mxu0 %v63
  %453 = vmatpush.msra.mxu0 %v59
  %454 = vmatpush.msra.mxu0 %v55
  %455 = vmatpush.msra.mxu0 %v51
  %456 = vmatpush.msra.mxu0 %v47
  %457 = vmatpush.msra.mxu0 %v43
  %458 = vmatpush.msra.mxu0 %v39
  %459 = vmatpush.msra.mxu0 %v35
  %460 = vmatpush.msra.mxu0 %v31
  %461 = vmatpush.msra.mxu0 %v27
  %462 = vmatpush.msra.mxu0 %v23
  %463 = vmatmul.f32.gmra.mxu0 %v17
  %v464 = vpop.f32.mrf.mxu0
  %v465 = vadd.f32 %v281, %v464
  %466 = vdwg.mxu0
  %467 = vmatpush.msra.mxu0 %v147
  %468 = vmatpush.msra.mxu0 %v143
  %469 = vmatpush.msra.mxu0 %v139
  %470 = vmatpush.msra.mxu0 %v135
  %471 = vmatpush.msra.mxu0 %v131
  %472 = vmatpush.msra.mxu0 %v127
  %473 = vmatpush.msra.mxu0 %v123
  %474 = vmatpush.msra.mxu0 %v119
  %475 = vmatpush.msra.mxu0 %v115
  %476 = vmatpush.msra.mxu0 %v111
  %477 = vmatpush.msra.mxu0 %v107
  %478 = vmatpush.msra.mxu0 %v103
  %479 = vmatpush.msra.mxu0 %v99
  %480 = vmatpush.msra.mxu0 %v95
  %481 = vmatpush.msra.mxu0 %v91
  %482 = vmatpush.msra.mxu0 %v87
  %483 = vmatmul.f32.gmra.mxu0 %v18
  %v484 = vpop.f32.mrf.mxu0
  %v485 = vadd.f32 %v465, %v484
  %486 = vdwg.mxu0
  %487 = vmatpush.msra.mxu0 %v211
  %488 = vmatpush.msra.mxu0 %v207
  %489 = vmatpush.msra.mxu0 %v203
  %490 = vmatpush.msra.mxu0 %v199
  %491 = vmatpush.msra.mxu0 %v195
  %492 = vmatpush.msra.mxu0 %v191
  %493 = vmatpush.msra.mxu0 %v187
  %494 = vmatpush.msra.mxu0 %v183
  %495 = vmatpush.msra.mxu0 %v179
  %496 = vmatpush.msra.mxu0 %v175
  %497 = vmatpush.msra.mxu0 %v171
  %498 = vmatpush.msra.mxu0 %v167
  %499 = vmatpush.msra.mxu0 %v163
  %500 = vmatpush.msra.mxu0 %v159
  %501 = vmatpush.msra.mxu0 %v155
  %502 = vmatpush.msra.mxu0 %v151
  %503 = vmatmul.f32.gmra.mxu0 %v19
  %v504 = vpop.f32.mrf.mxu0
  %v505 = vadd.f32 %v485, %v504
  %506 = vdwg.mxu0
  %507 = vmatpush.msra.mxu0 %v275
  %508 = vmatpush.msra.mxu0 %v271
  %509 = vmatpush.msra.mxu0 %v267
  %510 = vmatpush.msra.mxu0 %v263
  %511 = vmatpush.msra.mxu0 %v259
  %512 = vmatpush.msra.mxu0 %v255
  %513 = vmatpush.msra.mxu0 %v251
  %514 = vmatpush.msra.mxu0 %v247
  %515 = vmatpush.msra.mxu0 %v243
  %516 = vmatpush.msra.mxu0 %v239
  %517 = vmatpush.msra.mxu0 %v235
  %518 = vmatpush.msra.mxu0 %v231
  %519 = vmatpush.msra.mxu0 %v227
  %520 = vmatpush.msra.mxu0 %v223
  %521 = vmatpush.msra.mxu0 %v219
  %522 = vmatpush.msra.mxu0 %v215
  %523 = vmatmul.f32.gmra.mxu0 %v20
  %v524 = vpop.f32.mrf.mxu0
  %v525 = vadd.f32 %v505, %v524
  %526 = vdwg.mxu0
  %527 = vmatpush.msra.mxu0 %v84
  %528 = vmatpush.msra.mxu0 %v80
  %529 = vmatpush.msra.mxu0 %v76
  %530 = vmatpush.msra.mxu0 %v72
  %531 = vmatpush.msra.mxu0 %v68
  %532 = vmatpush.msra.mxu0 %v64
  %533 = vmatpush.msra.mxu0 %v60
  %534 = vmatpush.msra.mxu0 %v56
  %535 = vmatpush.msra.mxu0 %v52
  %536 = vmatpush.msra.mxu0 %v48
  %537 = vmatpush.msra.mxu0 %v44
  %538 = vmatpush.msra.mxu0 %v40
  %539 = vmatpush.msra.mxu0 %v36
  %540 = vmatpush.msra.mxu0 %v32
  %541 = vmatpush.msra.mxu0 %v28
  %542 = vmatpush.msra.mxu0 %v24
  %543 = vmatmul.f32.gmra.mxu0 %v17
  %v544 = vpop.f32.mrf.mxu0
  %v545 = vadd.f32 %v282, %v544
  %546 = vdwg.mxu0
  %547 = vmatpush.msra.mxu0 %v148
  %548 = vmatpush.msra.mxu0 %v144
  %549 = vmatpush.msra.mxu0 %v140
  %550 = vmatpush.msra.mxu0 %v136
  %551 = vmatpush.msra.mxu0 %v132
  %552 = vmatpush.msra.mxu0 %v128
  %553 = vmatpush.msra.mxu0 %v124
  %554 = vmatpush.msra.mxu0 %v120
  %555 = vmatpush.msra.mxu0 %v116
  %556 = vmatpush.msra.mxu0 %v112
  %557 = vmatpush.msra.mxu0 %v108
  %558 = vmatpush.msra.mxu0 %v104
  %559 = vmatpush.msra.mxu0 %v100
  %560 = vmatpush.msra.mxu0 %v96
  %561 = vmatpush.msra.mxu0 %v92
  %562 = vmatpush.msra.mxu0 %v88
  %563 = vmatmul.f32.gmra.mxu0 %v18
  %v564 = vpop.f32.mrf.mxu0
  %v565 = vadd.f32 %v545, %v564
  %566 = vdwg.mxu0
  %567 = vmatpush.msra.mxu0 %v212
  %568 = vmatpush.msra.mxu0 %v208
  %569 = vmatpush.msra.mxu0 %v204
  %570 = vmatpush.msra.mxu0 %v200
  %571 = vmatpush.msra.mxu0 %v196
  %572 = vmatpush.msra.mxu0 %v192
  %573 = vmatpush.msra.mxu0 %v188
  %574 = vmatpush.msra.mxu0 %v184
  %575 = vmatpush.msra.mxu0 %v180
  %576 = vmatpush.msra.mxu0 %v176
  %577 = vmatpush.msra.mxu0 %v172
  %578 = vmatpush.msra.mxu0 %v168
  %579 = vmatpush.msra.mxu0 %v164
  %580 = vmatpush.msra.mxu0 %v160
  %581 = vmatpush.msra.mxu0 %v156
  %582 = vmatpush.msra.mxu0 %v152
  %583 = vmatmul.f32.gmra.mxu0 %v19
  %v584 = vpop.f32.mrf.mxu0
  %v585 = vadd.f32 %v565, %v584
  %586 = vdwg.mxu0
  %587 = vmatpush.msra.mxu0 %v276
  %588 = vmatpush.msra.mxu0 %v272
  %589 = vmatpush.msra.mxu0 %v268
  %590 = vmatpush.msra.mxu0 %v264
  %591 = vmatpush.msra.mxu0 %v260
  %592 = vmatpush.msra.mxu0 %v256
  %593 = vmatpush.msra.mxu0 %v252
  %594 = vmatpush.msra.mxu0 %v248
  %595 = vmatpush.msra.mxu0 %v244
  %596 = vmatpush.msra.mxu0 %v240
  %597 = vmatpush.msra.mxu0 %v236
  %598 = vmatpush.msra.mxu0 %v232
  %599 = vmatpush.msra.mxu0 %v228
  %600 = vmatpush.msra.mxu0 %v224
  %601 = vmatpush.msra.mxu0 %v220
  %602 = vmatpush.msra.mxu0 %v216
  %603 = vmatmul.f32.gmra.mxu0 %v20
  %v604 = vpop.f32.mrf.mxu0
  %v605 = vadd.f32 %v585, %v604
  %606 = vdwg.mxu0
  %v607 = vld [vmem:[%s0] sm:$0xff]
  %v608 = vld [vmem:[%s0 + $0x8] sm:$0xff]
  %v609 = vld [vmem:[%s0 + $0x10] sm:$0xff]
  %v610 = vld [vmem:[%s0 + $0x18] sm:$0xff]
  %v611 = vadd.f32 %v607, %v365
  %v612 = vadd.f32 %v608, %v445
  %v613 = vadd.f32 %v609, %v525
  %v614 = vadd.f32 %v610, %v605
  %615 = vst [vmem:[%s4] sm:$0xff] %v611
  %616 = vst [vmem:[%s4 + $0x8] sm:$0xff] %v612
  %617 = vst [vmem:[%s4 + $0x10] sm:$0xff] %v613
  %618 = vst [vmem:[%s4 + $0x18] sm:$0xff] %v614
  // Predicated region
  $region18: #{decoder.19} parent=0 // pred_check
    _
  $region19: #{decoder.19} parent=0 // pred_check_branch
    %620 = sbr.rel (0) target = $region21
  $region20: #{decoder.19} parent=0 // pred_region
    _
  $region21: #{decoder.19} parent=0 // pred_fallthru
    _
  // Predicated region
  $region22: #{decoder.19} parent=0 // pred_check
    _
  $region23: #{decoder.19} parent=0 // pred_check_branch
    %622 = sbr.rel (0) target = $region25
  $region24: #{decoder.19} parent=0 // pred_region
    _
  $region25: #{decoder.19} parent=0 // pred_fallthru
    _

// kernel: decoder.17
$region0: #{decoder.17}
  #allocation0 [shape = 'u32[]', space=smem, size = 0x4, offset = 0x4, fixed_abs, tag = 'smem constant byte address 0x4 - core index']
  #allocation1 [shape = 'u32[72,128]{1,0:T(1,128)}', space=vmem, size = 0x9000, scoped, tag = 'internal scratch']
  %s0 = inlined_call_operand.vmem [shape: f32[8,512], index: 0, kind: input, shape index: {}]
  %s1 = inlined_call_operand.vmem [shape: f32[1,512], index: 1, kind: input, shape index: {}]
  %s2 = inlined_call_operand.vmem [shape: f32[1,512], index: 2, kind: input, shape index: {}]
  %s3 = inlined_call_operand.vmem [shape: f32[512,512], index: 3, kind: input, shape index: {}]
  %s4 = inlined_call_operand.vmem [shape: f32[1,512], index: 4, kind: input, shape index: {}]
  %s5 = inlined_call_operand.vmem [shape: f32[512,1024], index: 5, kind: input, shape index: {}]
  %s6 = inlined_call_operand.vmem [shape: f32[1,1024], index: 6, kind: input, shape index: {}]
  %s7 = inlined_call_operand.vmem [shape: f32[8,512], index: 7, kind: output, shape index: {0}]
  %s8 = inlined_call_operand.vmem [shape: f32[8,1024], index: 8, kind: output, shape index: {1}]
  %9 = xla_tuple %s7, %s8
  %s10 = sld [smem:[#allocation0]]
  $region46: #{decoder.17} parent=0
    _
  %s12 = ssub.s32 1, %s10
  %s13 = scalar_select 0, %s12, %s10
  // Predicated region
  $region2: #{decoder.17} parent=0 // pred_check
    _
  $region3: #{decoder.17} parent=0 // pred_check_branch
    %15 = sbr.rel (0) target = $region5
  $region4: #{decoder.17} parent=0 // pred_region
    _
  $region5: #{decoder.17} parent=0 // pred_fallthru
    _
  // Predicated region
  $region6: #{decoder.17} parent=0 // pred_check
    _
  $region7: #{decoder.17} parent=0 // pred_check_branch
    %17 = sbr.rel (0) target = $region9
  $region8: #{decoder.17} parent=0 // pred_region
    _
  $region9: #{decoder.17} parent=0 // pred_fallthru
    _
  // Predicated region
  $region10: #{decoder.17} parent=0 // pred_check
    _
  $region11: #{decoder.17} parent=0 // pred_check_branch
    %19 = sbr.rel (0) target = $region13
  $region12: #{decoder.17} parent=0 // pred_region
    _
  $region13: #{decoder.17} parent=0 // pred_fallthru
    _
  // Predicated region
  $region14: #{decoder.17} parent=0 // pred_check
    _
  $region15: #{decoder.17} parent=0 // pred_check_branch
    %21 = sbr.rel (0) target = $region17
  $region16: #{decoder.17} parent=0 // pred_region
    _
  $region17: #{decoder.17} parent=0 // pred_fallthru
    _
  // Predicated region
  $region18: #{decoder.17} parent=0 // pred_check
    _
  $region19: #{decoder.17} parent=0 // pred_check_branch
    %23 = sbr.rel (0) target = $region21
  $region20: #{decoder.17} parent=0 // pred_region
    _
  $region21: #{decoder.17} parent=0 // pred_fallthru
    _
  // Predicated region
  $region22: #{decoder.17} parent=0 // pred_check
    _
  $region23: #{decoder.17} parent=0 // pred_check_branch
    %25 = sbr.rel (0) target = $region25
  $region24: #{decoder.17} parent=0 // pred_region
    _
  $region25: #{decoder.17} parent=0 // pred_fallthru
    _
  // Predicated region
  $region26: #{decoder.17} parent=0 // pred_check
    _
  $region27: #{decoder.17} parent=0 // pred_check_branch
    %27 = sbr.rel (0) target = $region29
  $region28: #{decoder.17} parent=0 // pred_region
    _
  $region29: #{decoder.17} parent=0 // pred_fallthru
    _
  %v28 = vld [vmem:[%s0] sm:$0xff]
  %v29 = vld [vmem:[%s0 + $0x8] sm:$0xff]
  %v30 = vld [vmem:[%s0 + $0x10] sm:$0xff]
  %v31 = vld [vmem:[%s0 + $0x18] sm:$0xff]
  %v32 = vld [vmem:[%s1] sm:$0xf]
  %v33 = vld [vmem:[%s2] sm:$0xf]
  %v34 = vadd.f32 %v28, %v29
  %v35 = vadd.f32 %v34, %v30
  %v36 = vadd.f32 %v35, %v31
  %37 = vadd.xlane.f32.xlu0 %v36
  %v38 = vpop.xlane.xlu0 %37
  %v39 = vmul.f32 %v38, 0.001953125
  %v40 = vsub.f32 %v28, %v39
  %v41 = vsub.f32 %v29, %v39
  %v42 = vsub.f32 %v30, %v39
  %v43 = vsub.f32 %v31, %v39
  %v44 = vmul.f32 %v40, %v40
  %v45 = vmul.f32 %v41, %v41
  %v46 = vmul.f32 %v42, %v42
  %v47 = vmul.f32 %v43, %v43
  %v48 = vadd.f32 %v44, %v45
  %v49 = vadd.f32 %v48, %v46
  %v50 = vadd.f32 %v49, %v47
  %51 = vadd.xlane.f32.xlu0 %v50
  %v52 = vpop.xlane.xlu0 %51
  %v53 = vmul.f32 %v52, 0.0019569471
  %v54 = vrsqrt.pop %v53
  %v55 = vmul.f32 %v54, %v53
  %v56 = vmul.f32 %v55, %v54
  %v57 = vmul.f32 0.5, %v56
  %v58 = vsub.f32 1.5, %v57
  %v59 = vmul.f32 %v54, %v58
  %v60 = vmul.f32 %v53, %v59
  %vm61 = vcmp.eq.f32.partialorder %v53, inf
  %v62 = vsel %vm61, %v53, %v60
  %vm63 = vcmp.eq.f32.partialorder %v53, 0.0
  %v64 = vand.u32 %v53, 2147483648
  %v65 = vsel %vm63, %v64, %v62
  %v66 = vadd.f32 %v65, 1e-06
  %v67 = vrcp.pop %v66
  %v68 = vmul.f32 %v66, %v67
  %v69 = vsub.f32 1.0, %v68
  %v70 = vmul.f32 %v67, %v69
  %v71 = vadd.f32 %v67, %v70
  %vm72 = vweird.f32 %v66
  %vm73 = vweird.f32 %v67
  %vm74 = vmor %vm72, %vm73
  %v75 = vsel %vm74, %v67, %v71
  %v76 = vand.u32 2147483647, %v66
  %vm77 = vcmp.eq.f32.partialorder %v76, 8.507059e+37
  %v78 = vand.u32 %v66, 2147483648
  %v79 = vor.u32 1.1754944e-38, %v78
  %v80 = vsel %vm77, %v79, %v75
  %v82 = vperm.slane %v32, 0
  %v83 = vperm.slane %v32, 1
  %v84 = vperm.slane %v32, 2
  %v85 = vperm.slane %v32, 3
  %v90 = vmul.f32 %v82, %v40
  %v91 = vmul.f32 %v83, %v41
  %v92 = vmul.f32 %v84, %v42
  %v93 = vmul.f32 %v85, %v43
  %v94 = vmul.f32 %v90, %v80
  %v95 = vmul.f32 %v91, %v80
  %v96 = vmul.f32 %v92, %v80
  %v97 = vmul.f32 %v93, %v80
  %v99 = vperm.slane %v33, 0
  %v100 = vperm.slane %v33, 1
  %v101 = vperm.slane %v33, 2
  %v102 = vperm.slane %v33, 3
  %v107 = vadd.f32 %v94, %v99
  %v108 = vadd.f32 %v95, %v100
  %v109 = vadd.f32 %v96, %v101
  %v110 = vadd.f32 %v97, %v102
  %v111 = vld [vmem:[%s3] sm:$0xff]
  %v112 = vld [vmem:[%s3 + $0x8] sm:$0xff]
  %v113 = vld [vmem:[%s3 + $0x10] sm:$0xff]
  %v114 = vld [vmem:[%s3 + $0x18] sm:$0xff]
  %v115 = vld [vmem:[%s3 + $0x20] sm:$0xff]
  %v116 = vld [vmem:[%s3 + $0x28] sm:$0xff]
  %v117 = vld [vmem:[%s3 + $0x30] sm:$0xff]
  %v118 = vld [vmem:[%s3 + $0x38] sm:$0xff]
  %v119 = vld [vmem:[%s3 + $0x40] sm:$0xff]
  %v120 = vld [vmem:[%s3 + $0x48] sm:$0xff]
  %v121 = vld [vmem:[%s3 + $0x50] sm:$0xff]
  %v122 = vld [vmem:[%s3 + $0x58] sm:$0xff]
  %v123 = vld [vmem:[%s3 + $0x60] sm:$0xff]
  %v124 = vld [vmem:[%s3 + $0x68] sm:$0xff]
  %v125 = vld [vmem:[%s3 + $0x70] sm:$0xff]
  %v126 = vld [vmem:[%s3 + $0x78] sm:$0xff]
  %v127 = vld [vmem:[%s3 + $0x80] sm:$0xff]
  %v128 = vld [vmem:[%s3 + $0x88] sm:$0xff]
  %v129 = vld [vmem:[%s3 + $0x90] sm:$0xff]
  %v130 = vld [vmem:[%s3 + $0x98] sm:$0xff]
  %v131 = vld [vmem:[%s3 + $0xa0] sm:$0xff]
  %v132 = vld [vmem:[%s3 + $0xa8] sm:$0xff]
  %v133 = vld [vmem:[%s3 + $0xb0] sm:$0xff]
  %v134 = vld [vmem:[%s3 + $0xb8] sm:$0xff]
  %v135 = vld [vmem:[%s3 + $0xc0] sm:$0xff]
  %v136 = vld [vmem:[%s3 + $0xc8] sm:$0xff]
  %v137 = vld [vmem:[%s3 + $0xd0] sm:$0xff]
  %v138 = vld [vmem:[%s3 + $0xd8] sm:$0xff]
  %v139 = vld [vmem:[%s3 + $0xe0] sm:$0xff]
  %v140 = vld [vmem:[%s3 + $0xe8] sm:$0xff]
  %v141 = vld [vmem:[%s3 + $0xf0] sm:$0xff]
  %v142 = vld [vmem:[%s3 + $0xf8] sm:$0xff]
  %v143 = vld [vmem:[%s3 + $0x100] sm:$0xff]
  %v144 = vld [vmem:[%s3 + $0x108] sm:$0xff]
  %v145 = vld [vmem:[%s3 + $0x110] sm:$0xff]
  %v146 = vld [vmem:[%s3 + $0x118] sm:$0xff]
  %v147 = vld [vmem:[%s3 + $0x120] sm:$0xff]
  %v148 = vld [vmem:[%s3 + $0x128] sm:$0xff]
  %v149 = vld [vmem:[%s3 + $0x130] sm:$0xff]
  %v150 = vld [vmem:[%s3 + $0x138] sm:$0xff]
  %v151 = vld [vmem:[%s3 + $0x140] sm:$0xff]
  %v152 = vld [vmem:[%s3 + $0x148] sm:$0xff]
  %v153 = vld [vmem:[%s3 + $0x150] sm:$0xff]
  %v154 = vld [vmem:[%s3 + $0x158] sm:$0xff]
  %v155 = vld [vmem:[%s3 + $0x160] sm:$0xff]
  %v156 = vld [vmem:[%s3 + $0x168] sm:$0xff]
  %v157 = vld [vmem:[%s3 + $0x170] sm:$0xff]
  %v158 = vld [vmem:[%s3 + $0x178] sm:$0xff]
  %v159 = vld [vmem:[%s3 + $0x180] sm:$0xff]
  %v160 = vld [vmem:[%s3 + $0x188] sm:$0xff]
  %v161 = vld [vmem:[%s3 + $0x190] sm:$0xff]
  %v162 = vld [vmem:[%s3 + $0x198] sm:$0xff]
  %v163 = vld [vmem:[%s3 + $0x1a0] sm:$0xff]
  %v164 = vld [vmem:[%s3 + $0x1a8] sm:$0xff]
  %v165 = vld [vmem:[%s3 + $0x1b0] sm:$0xff]
  %v166 = vld [vmem:[%s3 + $0x1b8] sm:$0xff]
  %v167 = vld [vmem:[%s3 + $0x1c0] sm:$0xff]
  %v168 = vld [vmem:[%s3 + $0x1c8] sm:$0xff]
  %v169 = vld [vmem:[%s3 + $0x1d0] sm:$0xff]
  %v170 = vld [vmem:[%s3 + $0x1d8] sm:$0xff]
  %v171 = vld [vmem:[%s3 + $0x1e0] sm:$0xff]
  %v172 = vld [vmem:[%s3 + $0x1e8] sm:$0xff]
  %v173 = vld [vmem:[%s3 + $0x1f0] sm:$0xff]
  %v174 = vld [vmem:[%s3 + $0x1f8] sm:$0xff]
  %v175 = vld [vmem:[%s3 + $0x200] sm:$0xff]
  %v176 = vld [vmem:[%s3 + $0x208] sm:$0xff]
  %v177 = vld [vmem:[%s3 + $0x210] sm:$0xff]
  %v178 = vld [vmem:[%s3 + $0x218] sm:$0xff]
  %v179 = vld [vmem:[%s3 + $0x220] sm:$0xff]
  %v180 = vld [vmem:[%s3 + $0x228] sm:$0xff]
  %v181 = vld [vmem:[%s3 + $0x230] sm:$0xff]
  %v182 = vld [vmem:[%s3 + $0x238] sm:$0xff]
  %v183 = vld [vmem:[%s3 + $0x240] sm:$0xff]
  %v184 = vld [vmem:[%s3 + $0x248] sm:$0xff]
  %v185 = vld [vmem:[%s3 + $0x250] sm:$0xff]
  %v186 = vld [vmem:[%s3 + $0x258] sm:$0xff]
  %v187 = vld [vmem:[%s3 + $0x260] sm:$0xff]
  %v188 = vld [vmem:[%s3 + $0x268] sm:$0xff]
  %v189 = vld [vmem:[%s3 + $0x270] sm:$0xff]
  %v190 = vld [vmem:[%s3 + $0x278] sm:$0xff]
  %v191 = vld [vmem:[%s3 + $0x280] sm:$0xff]
  %v192 = vld [vmem:[%s3 + $0x288] sm:$0xff]
  %v193 = vld [vmem:[%s3 + $0x290] sm:$0xff]
  %v194 = vld [vmem:[%s3 + $0x298] sm:$0xff]
  %v195 = vld [vmem:[%s3 + $0x2a0] sm:$0xff]
  %v196 = vld [vmem:[%s3 + $0x2a8] sm:$0xff]
  %v197 = vld [vmem:[%s3 + $0x2b0] sm:$0xff]
  %v198 = vld [vmem:[%s3 + $0x2b8] sm:$0xff]
  %v199 = vld [vmem:[%s3 + $0x2c0] sm:$0xff]
  %v200 = vld [vmem:[%s3 + $0x2c8] sm:$0xff]
  %v201 = vld [vmem:[%s3 + $0x2d0] sm:$0xff]
  %v202 = vld [vmem:[%s3 + $0x2d8] sm:$0xff]
  %v203 = vld [vmem:[%s3 + $0x2e0] sm:$0xff]
  %v204 = vld [vmem:[%s3 + $0x2e8] sm:$0xff]
  %v205 = vld [vmem:[%s3 + $0x2f0] sm:$0xff]
  %v206 = vld [vmem:[%s3 + $0x2f8] sm:$0xff]
  %v207 = vld [vmem:[%s3 + $0x300] sm:$0xff]
  %v208 = vld [vmem:[%s3 + $0x308] sm:$0xff]
  %v209 = vld [vmem:[%s3 + $0x310] sm:$0xff]
  %v210 = vld [vmem:[%s3 + $0x318] sm:$0xff]
  %v211 = vld [vmem:[%s3 + $0x320] sm:$0xff]
  %v212 = vld [vmem:[%s3 + $0x328] sm:$0xff]
  %v213 = vld [vmem:[%s3 + $0x330] sm:$0xff]
  %v214 = vld [vmem:[%s3 + $0x338] sm:$0xff]
  %v215 = vld [vmem:[%s3 + $0x340] sm:$0xff]
  %v216 = vld [vmem:[%s3 + $0x348] sm:$0xff]
  %v217 = vld [vmem:[%s3 + $0x350] sm:$0xff]
  %v218 = vld [vmem:[%s3 + $0x358] sm:$0xff]
  %v219 = vld [vmem:[%s3 + $0x360] sm:$0xff]
  %v220 = vld [vmem:[%s3 + $0x368] sm:$0xff]
  %v221 = vld [vmem:[%s3 + $0x370] sm:$0xff]
  %v222 = vld [vmem:[%s3 + $0x378] sm:$0xff]
  %v223 = vld [vmem:[%s3 + $0x380] sm:$0xff]
  %v224 = vld [vmem:[%s3 + $0x388] sm:$0xff]
  %v225 = vld [vmem:[%s3 + $0x390] sm:$0xff]
  %v226 = vld [vmem:[%s3 + $0x398] sm:$0xff]
  %v227 = vld [vmem:[%s3 + $0x3a0] sm:$0xff]
  %v228 = vld [vmem:[%s3 + $0x3a8] sm:$0xff]
  %v229 = vld [vmem:[%s3 + $0x3b0] sm:$0xff]
  %v230 = vld [vmem:[%s3 + $0x3b8] sm:$0xff]
  %v231 = vld [vmem:[%s3 + $0x3c0] sm:$0xff]
  %v232 = vld [vmem:[%s3 + $0x3c8] sm:$0xff]
  %v233 = vld [vmem:[%s3 + $0x3d0] sm:$0xff]
  %v234 = vld [vmem:[%s3 + $0x3d8] sm:$0xff]
  %v235 = vld [vmem:[%s3 + $0x3e0] sm:$0xff]
  %v236 = vld [vmem:[%s3 + $0x3e8] sm:$0xff]
  %v237 = vld [vmem:[%s3 + $0x3f0] sm:$0xff]
  %v238 = vld [vmem:[%s3 + $0x3f8] sm:$0xff]
  %v239 = vld [vmem:[%s3 + $0x400] sm:$0xff]
  %v240 = vld [vmem:[%s3 + $0x408] sm:$0xff]
  %v241 = vld [vmem:[%s3 + $0x410] sm:$0xff]
  %v242 = vld [vmem:[%s3 + $0x418] sm:$0xff]
  %v243 = vld [vmem:[%s3 + $0x420] sm:$0xff]
  %v244 = vld [vmem:[%s3 + $0x428] sm:$0xff]
  %v245 = vld [vmem:[%s3 + $0x430] sm:$0xff]
  %v246 = vld [vmem:[%s3 + $0x438] sm:$0xff]
  %v247 = vld [vmem:[%s3 + $0x440] sm:$0xff]
  %v248 = vld [vmem:[%s3 + $0x448] sm:$0xff]
  %v249 = vld [vmem:[%s3 + $0x450] sm:$0xff]
  %v250 = vld [vmem:[%s3 + $0x458] sm:$0xff]
  %v251 = vld [vmem:[%s3 + $0x460] sm:$0xff]
  %v252 = vld [vmem:[%s3 + $0x468] sm:$0xff]
  %v253 = vld [vmem:[%s3 + $0x470] sm:$0xff]
  %v254 = vld [vmem:[%s3 + $0x478] sm:$0xff]
  %v255 = vld [vmem:[%s3 + $0x480] sm:$0xff]
  %v256 = vld [vmem:[%s3 + $0x488] sm:$0xff]
  %v257 = vld [vmem:[%s3 + $0x490] sm:$0xff]
  %v258 = vld [vmem:[%s3 + $0x498] sm:$0xff]
  %v259 = vld [vmem:[%s3 + $0x4a0] sm:$0xff]
  %v260 = vld [vmem:[%s3 + $0x4a8] sm:$0xff]
  %v261 = vld [vmem:[%s3 + $0x4b0] sm:$0xff]
  %v262 = vld [vmem:[%s3 + $0x4b8] sm:$0xff]
  %v263 = vld [vmem:[%s3 + $0x4c0] sm:$0xff]
  %v264 = vld [vmem:[%s3 + $0x4c8] sm:$0xff]
  %v265 = vld [vmem:[%s3 + $0x4d0] sm:$0xff]
  %v266 = vld [vmem:[%s3 + $0x4d8] sm:$0xff]
  %v267 = vld [vmem:[%s3 + $0x4e0] sm:$0xff]
  %v268 = vld [vmem:[%s3 + $0x4e8] sm:$0xff]
  %v269 = vld [vmem:[%s3 + $0x4f0] sm:$0xff]
  %v270 = vld [vmem:[%s3 + $0x4f8] sm:$0xff]
  %v271 = vld [vmem:[%s3 + $0x500] sm:$0xff]
  %v272 = vld [vmem:[%s3 + $0x508] sm:$0xff]
  %v273 = vld [vmem:[%s3 + $0x510] sm:$0xff]
  %v274 = vld [vmem:[%s3 + $0x518] sm:$0xff]
  %v275 = vld [vmem:[%s3 + $0x520] sm:$0xff]
  %v276 = vld [vmem:[%s3 + $0x528] sm:$0xff]
  %v277 = vld [vmem:[%s3 + $0x530] sm:$0xff]
  %v278 = vld [vmem:[%s3 + $0x538] sm:$0xff]
  %v279 = vld [vmem:[%s3 + $0x540] sm:$0xff]
  %v280 = vld [vmem:[%s3 + $0x548] sm:$0xff]
  %v281 = vld [vmem:[%s3 + $0x550] sm:$0xff]
  %v282 = vld [vmem:[%s3 + $0x558] sm:$0xff]
  %v283 = vld [vmem:[%s3 + $0x560] sm:$0xff]
  %v284 = vld [vmem:[%s3 + $0x568] sm:$0xff]
  %v285 = vld [vmem:[%s3 + $0x570] sm:$0xff]
  %v286 = vld [vmem:[%s3 + $0x578] sm:$0xff]
  %v287 = vld [vmem:[%s3 + $0x580] sm:$0xff]
  %v288 = vld [vmem:[%s3 + $0x588] sm:$0xff]
  %v289 = vld [vmem:[%s3 + $0x590] sm:$0xff]
  %v290 = vld [vmem:[%s3 + $0x598] sm:$0xff]
  %v291 = vld [vmem:[%s3 + $0x5a0] sm:$0xff]
  %v292 = vld [vmem:[%s3 + $0x5a8] sm:$0xff]
  %v293 = vld [vmem:[%s3 + $0x5b0] sm:$0xff]
  %v294 = vld [vmem:[%s3 + $0x5b8] sm:$0xff]
  %v295 = vld [vmem:[%s3 + $0x5c0] sm:$0xff]
  %v296 = vld [vmem:[%s3 + $0x5c8] sm:$0xff]
  %v297 = vld [vmem:[%s3 + $0x5d0] sm:$0xff]
  %v298 = vld [vmem:[%s3 + $0x5d8] sm:$0xff]
  %v299 = vld [vmem:[%s3 + $0x5e0] sm:$0xff]
  %v300 = vld [vmem:[%s3 + $0x5e8] sm:$0xff]
  %v301 = vld [vmem:[%s3 + $0x5f0] sm:$0xff]
  %v302 = vld [vmem:[%s3 + $0x5f8] sm:$0xff]
  %v303 = vld [vmem:[%s3 + $0x600] sm:$0xff]
  %v304 = vld [vmem:[%s3 + $0x608] sm:$0xff]
  %v305 = vld [vmem:[%s3 + $0x610] sm:$0xff]
  %v306 = vld [vmem:[%s3 + $0x618] sm:$0xff]
  %v307 = vld [vmem:[%s3 + $0x620] sm:$0xff]
  %v308 = vld [vmem:[%s3 + $0x628] sm:$0xff]
  %v309 = vld [vmem:[%s3 + $0x630] sm:$0xff]
  %v310 = vld [vmem:[%s3 + $0x638] sm:$0xff]
  %v311 = vld [vmem:[%s3 + $0x640] sm:$0xff]
  %v312 = vld [vmem:[%s3 + $0x648] sm:$0xff]
  %v313 = vld [vmem:[%s3 + $0x650] sm:$0xff]
  %v314 = vld [vmem:[%s3 + $0x658] sm:$0xff]
  %v315 = vld [vmem:[%s3 + $0x660] sm:$0xff]
  %v316 = vld [vmem:[%s3 + $0x668] sm:$0xff]
  %v317 = vld [vmem:[%s3 + $0x670] sm:$0xff]
  %v318 = vld [vmem:[%s3 + $0x678] sm:$0xff]
  %v319 = vld [vmem:[%s3 + $0x680] sm:$0xff]
  %v320 = vld [vmem:[%s3 + $0x688] sm:$0xff]
  %v321 = vld [vmem:[%s3 + $0x690] sm:$0xff]
  %v322 = vld [vmem:[%s3 + $0x698] sm:$0xff]
  %v323 = vld [vmem:[%s3 + $0x6a0] sm:$0xff]
  %v324 = vld [vmem:[%s3 + $0x6a8] sm:$0xff]
  %v325 = vld [vmem:[%s3 + $0x6b0] sm:$0xff]
  %v326 = vld [vmem:[%s3 + $0x6b8] sm:$0xff]
  %v327 = vld [vmem:[%s3 + $0x6c0] sm:$0xff]
  %v328 = vld [vmem:[%s3 + $0x6c8] sm:$0xff]
  %v329 = vld [vmem:[%s3 + $0x6d0] sm:$0xff]
  %v330 = vld [vmem:[%s3 + $0x6d8] sm:$0xff]
  %v331 = vld [vmem:[%s3 + $0x6e0] sm:$0xff]
  %v332 = vld [vmem:[%s3 + $0x6e8] sm:$0xff]
  %v333 = vld [vmem:[%s3 + $0x6f0] sm:$0xff]
  %v334 = vld [vmem:[%s3 + $0x6f8] sm:$0xff]
  %v335 = vld [vmem:[%s3 + $0x700] sm:$0xff]
  %v336 = vld [vmem:[%s3 + $0x708] sm:$0xff]
  %v337 = vld [vmem:[%s3 + $0x710] sm:$0xff]
  %v338 = vld [vmem:[%s3 + $0x718] sm:$0xff]
  %v339 = vld [vmem:[%s3 + $0x720] sm:$0xff]
  %v340 = vld [vmem:[%s3 + $0x728] sm:$0xff]
  %v341 = vld [vmem:[%s3 + $0x730] sm:$0xff]
  %v342 = vld [vmem:[%s3 + $0x738] sm:$0xff]
  %v343 = vld [vmem:[%s3 + $0x740] sm:$0xff]
  %v344 = vld [vmem:[%s3 + $0x748] sm:$0xff]
  %v345 = vld [vmem:[%s3 + $0x750] sm:$0xff]
  %v346 = vld [vmem:[%s3 + $0x758] sm:$0xff]
  %v347 = vld [vmem:[%s3 + $0x760] sm:$0xff]
  %v348 = vld [vmem:[%s3 + $0x768] sm:$0xff]
  %v349 = vld [vmem:[%s3 + $0x770] sm:$0xff]
  %v350 = vld [vmem:[%s3 + $0x778] sm:$0xff]
  %v351 = vld [vmem:[%s3 + $0x780] sm:$0xff]
  %v352 = vld [vmem:[%s3 + $0x788] sm:$0xff]
  %v353 = vld [vmem:[%s3 + $0x790] sm:$0xff]
  %v354 = vld [vmem:[%s3 + $0x798] sm:$0xff]
  %v355 = vld [vmem:[%s3 + $0x7a0] sm:$0xff]
  %v356 = vld [vmem:[%s3 + $0x7a8] sm:$0xff]
  %v357 = vld [vmem:[%s3 + $0x7b0] sm:$0xff]
  %v358 = vld [vmem:[%s3 + $0x7b8] sm:$0xff]
  %v359 = vld [vmem:[%s3 + $0x7c0] sm:$0xff]
  %v360 = vld [vmem:[%s3 + $0x7c8] sm:$0xff]
  %v361 = vld [vmem:[%s3 + $0x7d0] sm:$0xff]
  %v362 = vld [vmem:[%s3 + $0x7d8] sm:$0xff]
  %v363 = vld [vmem:[%s3 + $0x7e0] sm:$0xff]
  %v364 = vld [vmem:[%s3 + $0x7e8] sm:$0xff]
  %v365 = vld [vmem:[%s3 + $0x7f0] sm:$0xff]
  %v366 = vld [vmem:[%s3 + $0x7f8] sm:$0xff]
  %v367 = vld [vmem:[%s4] sm:$0xf]
  %v369 = vperm.slane %v367, 0
  %v370 = vperm.slane %v367, 1
  %v371 = vperm.slane %v367, 2
  %v372 = vperm.slane %v367, 3
  %377 = vmatpush.msra.mxu0 %v171
  %378 = vmatpush.msra.mxu0 %v167
  %379 = vmatpush.msra.mxu0 %v163
  %380 = vmatpush.msra.mxu0 %v159
  %381 = vmatpush.msra.mxu0 %v155
  %382 = vmatpush.msra.mxu0 %v151
  %383 = vmatpush.msra.mxu0 %v147
  %384 = vmatpush.msra.mxu0 %v143
  %385 = vmatpush.msra.mxu0 %v139
  %386 = vmatpush.msra.mxu0 %v135
  %387 = vmatpush.msra.mxu0 %v131
  %388 = vmatpush.msra.mxu0 %v127
  %389 = vmatpush.msra.mxu0 %v123
  %390 = vmatpush.msra.mxu0 %v119
  %391 = vmatpush.msra.mxu0 %v115
  %392 = vmatpush.msra.mxu0 %v111
  %393 = vmatmul.f32.gmra.mxu0 %v107
  %v394 = vpop.f32.mrf.mxu0
  %v395 = vadd.f32 %v369, %v394
  %396 = vdwg.mxu0
  %397 = vmatpush.msra.mxu0 %v235
  %398 = vmatpush.msra.mxu0 %v231
  %399 = vmatpush.msra.mxu0 %v227
  %400 = vmatpush.msra.mxu0 %v223
  %401 = vmatpush.msra.mxu0 %v219
  %402 = vmatpush.msra.mxu0 %v215
  %403 = vmatpush.msra.mxu0 %v211
  %404 = vmatpush.msra.mxu0 %v207
  %405 = vmatpush.msra.mxu0 %v203
  %406 = vmatpush.msra.mxu0 %v199
  %407 = vmatpush.msra.mxu0 %v195
  %408 = vmatpush.msra.mxu0 %v191
  %409 = vmatpush.msra.mxu0 %v187
  %410 = vmatpush.msra.mxu0 %v183
  %411 = vmatpush.msra.mxu0 %v179
  %412 = vmatpush.msra.mxu0 %v175
  %413 = vmatmul.f32.gmra.mxu0 %v108
  %v414 = vpop.f32.mrf.mxu0
  %v415 = vadd.f32 %v395, %v414
  %416 = vdwg.mxu0
  %417 = vmatpush.msra.mxu0 %v299
  %418 = vmatpush.msra.mxu0 %v295
  %419 = vmatpush.msra.mxu0 %v291
  %420 = vmatpush.msra.mxu0 %v287
  %421 = vmatpush.msra.mxu0 %v283
  %422 = vmatpush.msra.mxu0 %v279
  %423 = vmatpush.msra.mxu0 %v275
  %424 = vmatpush.msra.mxu0 %v271
  %425 = vmatpush.msra.mxu0 %v267
  %426 = vmatpush.msra.mxu0 %v263
  %427 = vmatpush.msra.mxu0 %v259
  %428 = vmatpush.msra.mxu0 %v255
  %429 = vmatpush.msra.mxu0 %v251
  %430 = vmatpush.msra.mxu0 %v247
  %431 = vmatpush.msra.mxu0 %v243
  %432 = vmatpush.msra.mxu0 %v239
  %433 = vmatmul.f32.gmra.mxu0 %v109
  %v434 = vpop.f32.mrf.mxu0
  %v435 = vadd.f32 %v415, %v434
  %436 = vdwg.mxu0
  %437 = vmatpush.msra.mxu0 %v363
  %438 = vmatpush.msra.mxu0 %v359
  %439 = vmatpush.msra.mxu0 %v355
  %440 = vmatpush.msra.mxu0 %v351
  %441 = vmatpush.msra.mxu0 %v347
  %442 = vmatpush.msra.mxu0 %v343
  %443 = vmatpush.msra.mxu0 %v339
  %444 = vmatpush.msra.mxu0 %v335
  %445 = vmatpush.msra.mxu0 %v331
  %446 = vmatpush.msra.mxu0 %v327
  %447 = vmatpush.msra.mxu0 %v323
  %448 = vmatpush.msra.mxu0 %v319
  %449 = vmatpush.msra.mxu0 %v315
  %450 = vmatpush.msra.mxu0 %v311
  %451 = vmatpush.msra.mxu0 %v307
  %452 = vmatpush.msra.mxu0 %v303
  %453 = vmatmul.f32.gmra.mxu0 %v110
  %v454 = vpop.f32.mrf.mxu0
  %v455 = vadd.f32 %v435, %v454
  %456 = vdwg.mxu0
  %457 = vmatpush.msra.mxu0 %v172
  %458 = vmatpush.msra.mxu0 %v168
  %459 = vmatpush.msra.mxu0 %v164
  %460 = vmatpush.msra.mxu0 %v160
  %461 = vmatpush.msra.mxu0 %v156
  %462 = vmatpush.msra.mxu0 %v152
  %463 = vmatpush.msra.mxu0 %v148
  %464 = vmatpush.msra.mxu0 %v144
  %465 = vmatpush.msra.mxu0 %v140
  %466 = vmatpush.msra.mxu0 %v136
  %467 = vmatpush.msra.mxu0 %v132
  %468 = vmatpush.msra.mxu0 %v128
  %469 = vmatpush.msra.mxu0 %v124
  %470 = vmatpush.msra.mxu0 %v120
  %471 = vmatpush.msra.mxu0 %v116
  %472 = vmatpush.msra.mxu0 %v112
  %473 = vmatmul.f32.gmra.mxu0 %v107
  %v474 = vpop.f32.mrf.mxu0
  %v475 = vadd.f32 %v370, %v474
  %476 = vdwg.mxu0
  %477 = vmatpush.msra.mxu0 %v236
  %478 = vmatpush.msra.mxu0 %v232
  %479 = vmatpush.msra.mxu0 %v228
  %480 = vmatpush.msra.mxu0 %v224
  %481 = vmatpush.msra.mxu0 %v220
  %482 = vmatpush.msra.mxu0 %v216
  %483 = vmatpush.msra.mxu0 %v212
  %484 = vmatpush.msra.mxu0 %v208
  %485 = vmatpush.msra.mxu0 %v204
  %486 = vmatpush.msra.mxu0 %v200
  %487 = vmatpush.msra.mxu0 %v196
  %488 = vmatpush.msra.mxu0 %v192
  %489 = vmatpush.msra.mxu0 %v188
  %490 = vmatpush.msra.mxu0 %v184
  %491 = vmatpush.msra.mxu0 %v180
  %492 = vmatpush.msra.mxu0 %v176
  %493 = vmatmul.f32.gmra.mxu0 %v108
  %v494 = vpop.f32.mrf.mxu0
  %v495 = vadd.f32 %v475, %v494
  %496 = vdwg.mxu0
  %497 = vmatpush.msra.mxu0 %v300
  %498 = vmatpush.msra.mxu0 %v296
  %499 = vmatpush.msra.mxu0 %v292
  %500 = vmatpush.msra.mxu0 %v288
  %501 = vmatpush.msra.mxu0 %v284
  %502 = vmatpush.msra.mxu0 %v280
  %503 = vmatpush.msra.mxu0 %v276
  %504 = vmatpush.msra.mxu0 %v272
  %505 = vmatpush.msra.mxu0 %v268
  %506 = vmatpush.msra.mxu0 %v264
  %507 = vmatpush.msra.mxu0 %v260
  %508 = vmatpush.msra.mxu0 %v256
  %509 = vmatpush.msra.mxu0 %v252
  %510 = vmatpush.msra.mxu0 %v248
  %511 = vmatpush.msra.mxu0 %v244
  %512 = vmatpush.msra.mxu0 %v240
  %513 = vmatmul.f32.gmra.mxu0 %v109
  %v514 = vpop.f32.mrf.mxu0
  %v515 = vadd.f32 %v495, %v514
  %516 = vdwg.mxu0
  %517 = vmatpush.msra.mxu0 %v364
  %518 = vmatpush.msra.mxu0 %v360
  %519 = vmatpush.msra.mxu0 %v356
  %520 = vmatpush.msra.mxu0 %v352
  %521 = vmatpush.msra.mxu0 %v348
  %522 = vmatpush.msra.mxu0 %v344
  %523 = vmatpush.msra.mxu0 %v340
  %524 = vmatpush.msra.mxu0 %v336
  %525 = vmatpush.msra.mxu0 %v332
  %526 = vmatpush.msra.mxu0 %v328
  %527 = vmatpush.msra.mxu0 %v324
  %528 = vmatpush.msra.mxu0 %v320
  %529 = vmatpush.msra.mxu0 %v316
  %530 = vmatpush.msra.mxu0 %v312
  %531 = vmatpush.msra.mxu0 %v308
  %532 = vmatpush.msra.mxu0 %v304
  %533 = vmatmul.f32.gmra.mxu0 %v110
  %v534 = vpop.f32.mrf.mxu0
  %v535 = vadd.f32 %v515, %v534
  %536 = vdwg.mxu0
  %537 = vmatpush.msra.mxu0 %v173
  %538 = vmatpush.msra.mxu0 %v169
  %539 = vmatpush.msra.mxu0 %v165
  %540 = vmatpush.msra.mxu0 %v161
  %541 = vmatpush.msra.mxu0 %v157
  %542 = vmatpush.msra.mxu0 %v153
  %543 = vmatpush.msra.mxu0 %v149
  %544 = vmatpush.msra.mxu0 %v145
  %545 = vmatpush.msra.mxu0 %v141
  %546 = vmatpush.msra.mxu0 %v137
  %547 = vmatpush.msra.mxu0 %v133
  %548 = vmatpush.msra.mxu0 %v129
  %549 = vmatpush.msra.mxu0 %v125
  %550 = vmatpush.msra.mxu0 %v121
  %551 = vmatpush.msra.mxu0 %v117
  %552 = vmatpush.msra.mxu0 %v113
  %553 = vmatmul.f32.gmra.mxu0 %v107
  %v554 = vpop.f32.mrf.mxu0
  %v555 = vadd.f32 %v371, %v554
  %556 = vdwg.mxu0
  %557 = vmatpush.msra.mxu0 %v237
  %558 = vmatpush.msra.mxu0 %v233
  %559 = vmatpush.msra.mxu0 %v229
  %560 = vmatpush.msra.mxu0 %v225
  %561 = vmatpush.msra.mxu0 %v221
  %562 = vmatpush.msra.mxu0 %v217
  %563 = vmatpush.msra.mxu0 %v213
  %564 = vmatpush.msra.mxu0 %v209
  %565 = vmatpush.msra.mxu0 %v205
  %566 = vmatpush.msra.mxu0 %v201
  %567 = vmatpush.msra.mxu0 %v197
  %568 = vmatpush.msra.mxu0 %v193
  %569 = vmatpush.msra.mxu0 %v189
  %570 = vmatpush.msra.mxu0 %v185
  %571 = vmatpush.msra.mxu0 %v181
  %572 = vmatpush.msra.mxu0 %v177
  %573 = vmatmul.f32.gmra.mxu0 %v108
  %v574 = vpop.f32.mrf.mxu0
  %v575 = vadd.f32 %v555, %v574
  %576 = vdwg.mxu0
  %577 = vmatpush.msra.mxu0 %v301
  %578 = vmatpush.msra.mxu0 %v297
  %579 = vmatpush.msra.mxu0 %v293
  %580 = vmatpush.msra.mxu0 %v289
  %581 = vmatpush.msra.mxu0 %v285
  %582 = vmatpush.msra.mxu0 %v281
  %583 = vmatpush.msra.mxu0 %v277
  %584 = vmatpush.msra.mxu0 %v273
  %585 = vmatpush.msra.mxu0 %v269
  %586 = vmatpush.msra.mxu0 %v265
  %587 = vmatpush.msra.mxu0 %v261
  %588 = vmatpush.msra.mxu0 %v257
  %589 = vmatpush.msra.mxu0 %v253
  %590 = vmatpush.msra.mxu0 %v249
  %591 = vmatpush.msra.mxu0 %v245
  %592 = vmatpush.msra.mxu0 %v241
  %593 = vmatmul.f32.gmra.mxu0 %v109
  %v594 = vpop.f32.mrf.mxu0
  %v595 = vadd.f32 %v575, %v594
  %596 = vdwg.mxu0
  %597 = vmatpush.msra.mxu0 %v365
  %598 = vmatpush.msra.mxu0 %v361
  %599 = vmatpush.msra.mxu0 %v357
  %600 = vmatpush.msra.mxu0 %v353
  %601 = vmatpush.msra.mxu0 %v349
  %602 = vmatpush.msra.mxu0 %v345
  %603 = vmatpush.msra.mxu0 %v341
  %604 = vmatpush.msra.mxu0 %v337
  %605 = vmatpush.msra.mxu0 %v333
  %606 = vmatpush.msra.mxu0 %v329
  %607 = vmatpush.msra.mxu0 %v325
  %608 = vmatpush.msra.mxu0 %v321
  %609 = vmatpush.msra.mxu0 %v317
  %610 = vmatpush.msra.mxu0 %v313
  %611 = vmatpush.msra.mxu0 %v309
  %612 = vmatpush.msra.mxu0 %v305
  %613 = vmatmul.f32.gmra.mxu0 %v110
  %v614 = vpop.f32.mrf.mxu0
  %v615 = vadd.f32 %v595, %v614
  %616 = vdwg.mxu0
  %617 = vmatpush.msra.mxu0 %v174
  %618 = vmatpush.msra.mxu0 %v170
  %619 = vmatpush.msra.mxu0 %v166
  %620 = vmatpush.msra.mxu0 %v162
  %621 = vmatpush.msra.mxu0 %v158
  %622 = vmatpush.msra.mxu0 %v154
  %623 = vmatpush.msra.mxu0 %v150
  %624 = vmatpush.msra.mxu0 %v146
  %625 = vmatpush.msra.mxu0 %v142
  %626 = vmatpush.msra.mxu0 %v138
  %627 = vmatpush.msra.mxu0 %v134
  %628 = vmatpush.msra.mxu0 %v130
  %629 = vmatpush.msra.mxu0 %v126
  %630 = vmatpush.msra.mxu0 %v122
  %631 = vmatpush.msra.mxu0 %v118
  %632 = vmatpush.msra.mxu0 %v114
  %633 = vmatmul.f32.gmra.mxu0 %v107
  %v634 = vpop.f32.mrf.mxu0
  %v635 = vadd.f32 %v372, %v634
  %636 = vdwg.mxu0
  %637 = vmatpush.msra.mxu0 %v238
  %638 = vmatpush.msra.mxu0 %v234
  %639 = vmatpush.msra.mxu0 %v230
  %640 = vmatpush.msra.mxu0 %v226
  %641 = vmatpush.msra.mxu0 %v222
  %642 = vmatpush.msra.mxu0 %v218
  %643 = vmatpush.msra.mxu0 %v214
  %644 = vmatpush.msra.mxu0 %v210
  %645 = vmatpush.msra.mxu0 %v206
  %646 = vmatpush.msra.mxu0 %v202
  %647 = vmatpush.msra.mxu0 %v198
  %648 = vmatpush.msra.mxu0 %v194
  %649 = vmatpush.msra.mxu0 %v190
  %650 = vmatpush.msra.mxu0 %v186
  %651 = vmatpush.msra.mxu0 %v182
  %652 = vmatpush.msra.mxu0 %v178
  %653 = vmatmul.f32.gmra.mxu0 %v108
  %v654 = vpop.f32.mrf.mxu0
  %v655 = vadd.f32 %v635, %v654
  %656 = vdwg.mxu0
  %657 = vmatpush.msra.mxu0 %v302
  %658 = vmatpush.msra.mxu0 %v298
  %659 = vmatpush.msra.mxu0 %v294
  %660 = vmatpush.msra.mxu0 %v290
  %661 = vmatpush.msra.mxu0 %v286
  %662 = vmatpush.msra.mxu0 %v282
  %663 = vmatpush.msra.mxu0 %v278
  %664 = vmatpush.msra.mxu0 %v274
  %665 = vmatpush.msra.mxu0 %v270
  %666 = vmatpush.msra.mxu0 %v266
  %667 = vmatpush.msra.mxu0 %v262
  %668 = vmatpush.msra.mxu0 %v258
  %669 = vmatpush.msra.mxu0 %v254
  %670 = vmatpush.msra.mxu0 %v250
  %671 = vmatpush.msra.mxu0 %v246
  %672 = vmatpush.msra.mxu0 %v242
  %673 = vmatmul.f32.gmra.mxu0 %v109
  %v674 = vpop.f32.mrf.mxu0
  %v675 = vadd.f32 %v655, %v674
  %676 = vdwg.mxu0
  %677 = vmatpush.msra.mxu0 %v366
  %678 = vmatpush.msra.mxu0 %v362
  %679 = vmatpush.msra.mxu0 %v358
  %680 = vmatpush.msra.mxu0 %v354
  %681 = vmatpush.msra.mxu0 %v350
  %682 = vmatpush.msra.mxu0 %v346
  %683 = vmatpush.msra.mxu0 %v342
  %684 = vmatpush.msra.mxu0 %v338
  %685 = vmatpush.msra.mxu0 %v334
  %686 = vmatpush.msra.mxu0 %v330
  %687 = vmatpush.msra.mxu0 %v326
  %688 = vmatpush.msra.mxu0 %v322
  %689 = vmatpush.msra.mxu0 %v318
  %690 = vmatpush.msra.mxu0 %v314
  %691 = vmatpush.msra.mxu0 %v310
  %692 = vmatpush.msra.mxu0 %v306
  %693 = vmatmul.f32.gmra.mxu0 %v110
  %v694 = vpop.f32.mrf.mxu0
  %v695 = vadd.f32 %v675, %v694
  %696 = vdwg.mxu0
  %v697 = vld [vmem:[%s5] sm:$0xff]
  %v698 = vld [vmem:[%s5 + $0x8] sm:$0xff]
  %v699 = vld [vmem:[%s5 + $0x10] sm:$0xff]
  %v700 = vld [vmem:[%s5 + $0x18] sm:$0xff]
  %v701 = vld [vmem:[%s5 + $0x20] sm:$0xff]
  %v702 = vld [vmem:[%s5 + $0x28] sm:$0xff]
  %v703 = vld [vmem:[%s5 + $0x30] sm:$0xff]
  %v704 = vld [vmem:[%s5 + $0x38] sm:$0xff]
  %v705 = vld [vmem:[%s5 + $0x40] sm:$0xff]
  %v706 = vld [vmem:[%s5 + $0x48] sm:$0xff]
  %v707 = vld [vmem:[%s5 + $0x50] sm:$0xff]
  %v708 = vld [vmem:[%s5 + $0x58] sm:$0xff]
  %v709 = vld [vmem:[%s5 + $0x60] sm:$0xff]
  %v710 = vld [vmem:[%s5 + $0x68] sm:$0xff]
  %v711 = vld [vmem:[%s5 + $0x70] sm:$0xff]
  %v712 = vld [vmem:[%s5 + $0x78] sm:$0xff]
  %v713 = vld [vmem:[%s5 + $0x80] sm:$0xff]
  %v714 = vld [vmem:[%s5 + $0x88] sm:$0xff]
  %v715 = vld [vmem:[%s5 + $0x90] sm:$0xff]
  %v716 = vld [vmem:[%s5 + $0x98] sm:$0xff]
  %v717 = vld [vmem:[%s5 + $0xa0] sm:$0xff]
  %v718 = vld [vmem:[%s5 + $0xa8] sm:$0xff]
  %v719 = vld [vmem:[%s5 + $0xb0] sm:$0xff]
  %v720 = vld [vmem:[%s5 + $0xb8] sm:$0xff]
  %v721 = vld [vmem:[%s5 + $0xc0] sm:$0xff]
  %v722 = vld [vmem:[%s5 + $0xc8] sm:$0xff]
  %v723 = vld [vmem:[%s5 + $0xd0] sm:$0xff]
  %v724 = vld [vmem:[%s5 + $0xd8] sm:$0xff]
  %v725 = vld [vmem:[%s5 + $0xe0] sm:$0xff]
  %v726 = vld [vmem:[%s5 + $0xe8] sm:$0xff]
  %v727 = vld [vmem:[%s5 + $0xf0] sm:$0xff]
  %v728 = vld [vmem:[%s5 + $0xf8] sm:$0xff]
  %v729 = vld [vmem:[%s5 + $0x100] sm:$0xff]
  %v730 = vld [vmem:[%s5 + $0x108] sm:$0xff]
  %v731 = vld [vmem:[%s5 + $0x110] sm:$0xff]
  %v732 = vld [vmem:[%s5 + $0x118] sm:$0xff]
  %v733 = vld [vmem:[%s5 + $0x120] sm:$0xff]
  %v734 = vld [vmem:[%s5 + $0x128] sm:$0xff]
  %v735 = vld [vmem:[%s5 + $0x130] sm:$0xff]
  %v736 = vld [vmem:[%s5 + $0x138] sm:$0xff]
  %v737 = vld [vmem:[%s5 + $0x140] sm:$0xff]
  %v738 = vld [vmem:[%s5 + $0x148] sm:$0xff]
  %v739 = vld [vmem:[%s5 + $0x150] sm:$0xff]
  %v740 = vld [vmem:[%s5 + $0x158] sm:$0xff]
  %v741 = vld [vmem:[%s5 + $0x160] sm:$0xff]
  %v742 = vld [vmem:[%s5 + $0x168] sm:$0xff]
  %v743 = vld [vmem:[%s5 + $0x170] sm:$0xff]
  %v744 = vld [vmem:[%s5 + $0x178] sm:$0xff]
  %v745 = vld [vmem:[%s5 + $0x180] sm:$0xff]
  %v746 = vld [vmem:[%s5 + $0x188] sm:$0xff]
  %v747 = vld [vmem:[%s5 + $0x190] sm:$0xff]
  %v748 = vld [vmem:[%s5 + $0x198] sm:$0xff]
  %v749 = vld [vmem:[%s5 + $0x1a0] sm:$0xff]
  %v750 = vld [vmem:[%s5 + $0x1a8] sm:$0xff]
  %v751 = vld [vmem:[%s5 + $0x1b0] sm:$0xff]
  %v752 = vld [vmem:[%s5 + $0x1b8] sm:$0xff]
  %v753 = vld [vmem:[%s5 + $0x1c0] sm:$0xff]
  %v754 = vld [vmem:[%s5 + $0x1c8] sm:$0xff]
  %v755 = vld [vmem:[%s5 + $0x1d0] sm:$0xff]
  %v756 = vld [vmem:[%s5 + $0x1d8] sm:$0xff]
  %v757 = vld [vmem:[%s5 + $0x1e0] sm:$0xff]
  %v758 = vld [vmem:[%s5 + $0x1e8] sm:$0xff]
  %v759 = vld [vmem:[%s5 + $0x1f0] sm:$0xff]
  %v760 = vld [vmem:[%s5 + $0x1f8] sm:$0xff]
  %v761 = vld [vmem:[%s5 + $0x200] sm:$0xff]
  %v762 = vld [vmem:[%s5 + $0x208] sm:$0xff]
  %v763 = vld [vmem:[%s5 + $0x210] sm:$0xff]
  %v764 = vld [vmem:[%s5 + $0x218] sm:$0xff]
  %v765 = vld [vmem:[%s5 + $0x220] sm:$0xff]
  %v766 = vld [vmem:[%s5 + $0x228] sm:$0xff]
  %v767 = vld [vmem:[%s5 + $0x230] sm:$0xff]
  %v768 = vld [vmem:[%s5 + $0x238] sm:$0xff]
  %v769 = vld [vmem:[%s5 + $0x240] sm:$0xff]
  %v770 = vld [vmem:[%s5 + $0x248] sm:$0xff]
  %v771 = vld [vmem:[%s5 + $0x250] sm:$0xff]
  %v772 = vld [vmem:[%s5 + $0x258] sm:$0xff]
  %v773 = vld [vmem:[%s5 + $0x260] sm:$0xff]
  %v774 = vld [vmem:[%s5 + $0x268] sm:$0xff]
  %v775 = vld [vmem:[%s5 + $0x270] sm:$0xff]
  %v776 = vld [vmem:[%s5 + $0x278] sm:$0xff]
  %v777 = vld [vmem:[%s5 + $0x280] sm:$0xff]
  %v778 = vld [vmem:[%s5 + $0x288] sm:$0xff]
  %v779 = vld [vmem:[%s5 + $0x290] sm:$0xff]
  %v780 = vld [vmem:[%s5 + $0x298] sm:$0xff]
  %v781 = vld [vmem:[%s5 + $0x2a0] sm:$0xff]
  %v782 = vld [vmem:[%s5 + $0x2a8] sm:$0xff]
  %v783 = vld [vmem:[%s5 + $0x2b0] sm:$0xff]
  %v784 = vld [vmem:[%s5 + $0x2b8] sm:$0xff]
  %v785 = vld [vmem:[%s5 + $0x2c0] sm:$0xff]
  %v786 = vld [vmem:[%s5 + $0x2c8] sm:$0xff]
  %v787 = vld [vmem:[%s5 + $0x2d0] sm:$0xff]
  %v788 = vld [vmem:[%s5 + $0x2d8] sm:$0xff]
  %v789 = vld [vmem:[%s5 + $0x2e0] sm:$0xff]
  %v790 = vld [vmem:[%s5 + $0x2e8] sm:$0xff]
  %v791 = vld [vmem:[%s5 + $0x2f0] sm:$0xff]
  %v792 = vld [vmem:[%s5 + $0x2f8] sm:$0xff]
  %v793 = vld [vmem:[%s5 + $0x300] sm:$0xff]
  %v794 = vld [vmem:[%s5 + $0x308] sm:$0xff]
  %v795 = vld [vmem:[%s5 + $0x310] sm:$0xff]
  %v796 = vld [vmem:[%s5 + $0x318] sm:$0xff]
  %v797 = vld [vmem:[%s5 + $0x320] sm:$0xff]
  %v798 = vld [vmem:[%s5 + $0x328] sm:$0xff]
  %v799 = vld [vmem:[%s5 + $0x330] sm:$0xff]
  %v800 = vld [vmem:[%s5 + $0x338] sm:$0xff]
  %v801 = vld [vmem:[%s5 + $0x340] sm:$0xff]
  %v802 = vld [vmem:[%s5 + $0x348] sm:$0xff]
  %v803 = vld [vmem:[%s5 + $0x350] sm:$0xff]
  %v804 = vld [vmem:[%s5 + $0x358] sm:$0xff]
  %v805 = vld [vmem:[%s5 + $0x360] sm:$0xff]
  %v806 = vld [vmem:[%s5 + $0x368] sm:$0xff]
  %v807 = vld [vmem:[%s5 + $0x370] sm:$0xff]
  %v808 = vld [vmem:[%s5 + $0x378] sm:$0xff]
  %v809 = vld [vmem:[%s5 + $0x380] sm:$0xff]
  %v810 = vld [vmem:[%s5 + $0x388] sm:$0xff]
  %v811 = vld [vmem:[%s5 + $0x390] sm:$0xff]
  %v812 = vld [vmem:[%s5 + $0x398] sm:$0xff]
  %v813 = vld [vmem:[%s5 + $0x3a0] sm:$0xff]
  %v814 = vld [vmem:[%s5 + $0x3a8] sm:$0xff]
  %v815 = vld [vmem:[%s5 + $0x3b0] sm:$0xff]
  %v816 = vld [vmem:[%s5 + $0x3b8] sm:$0xff]
  %v817 = vld [vmem:[%s5 + $0x3c0] sm:$0xff]
  %v818 = vld [vmem:[%s5 + $0x3c8] sm:$0xff]
  %v819 = vld [vmem:[%s5 + $0x3d0] sm:$0xff]
  %v820 = vld [vmem:[%s5 + $0x3d8] sm:$0xff]
  %v821 = vld [vmem:[%s5 + $0x3e0] sm:$0xff]
  %v822 = vld [vmem:[%s5 + $0x3e8] sm:$0xff]
  %v823 = vld [vmem:[%s5 + $0x3f0] sm:$0xff]
  %v824 = vld [vmem:[%s5 + $0x3f8] sm:$0xff]
  %v825 = vld [vmem:[%s5 + $0x400] sm:$0xff]
  %v826 = vld [vmem:[%s5 + $0x408] sm:$0xff]
  %v827 = vld [vmem:[%s5 + $0x410] sm:$0xff]
  %v828 = vld [vmem:[%s5 + $0x418] sm:$0xff]
  %v829 = vld [vmem:[%s5 + $0x420] sm:$0xff]
  %v830 = vld [vmem:[%s5 + $0x428] sm:$0xff]
  %v831 = vld [vmem:[%s5 + $0x430] sm:$0xff]
  %v832 = vld [vmem:[%s5 + $0x438] sm:$0xff]
  %v833 = vld [vmem:[%s5 + $0x440] sm:$0xff]
  %v834 = vld [vmem:[%s5 + $0x448] sm:$0xff]
  %v835 = vld [vmem:[%s5 + $0x450] sm:$0xff]
  %v836 = vld [vmem:[%s5 + $0x458] sm:$0xff]
  %v837 = vld [vmem:[%s5 + $0x460] sm:$0xff]
  %v838 = vld [vmem:[%s5 + $0x468] sm:$0xff]
  %v839 = vld [vmem:[%s5 + $0x470] sm:$0xff]
  %v840 = vld [vmem:[%s5 + $0x478] sm:$0xff]
  %v841 = vld [vmem:[%s5 + $0x480] sm:$0xff]
  %v842 = vld [vmem:[%s5 + $0x488] sm:$0xff]
  %v843 = vld [vmem:[%s5 + $0x490] sm:$0xff]
  %v844 = vld [vmem:[%s5 + $0x498] sm:$0xff]
  %v845 = vld [vmem:[%s5 + $0x4a0] sm:$0xff]
  %v846 = vld [vmem:[%s5 + $0x4a8] sm:$0xff]
  %v847 = vld [vmem:[%s5 + $0x4b0] sm:$0xff]
  %v848 = vld [vmem:[%s5 + $0x4b8] sm:$0xff]
  %v849 = vld [vmem:[%s5 + $0x4c0] sm:$0xff]
  %v850 = vld [vmem:[%s5 + $0x4c8] sm:$0xff]
  %v851 = vld [vmem:[%s5 + $0x4d0] sm:$0xff]
  %v852 = vld [vmem:[%s5 + $0x4d8] sm:$0xff]
  %v853 = vld [vmem:[%s5 + $0x4e0] sm:$0xff]
  %v854 = vld [vmem:[%s5 + $0x4e8] sm:$0xff]
  %v855 = vld [vmem:[%s5 + $0x4f0] sm:$0xff]
  %v856 = vld [vmem:[%s5 + $0x4f8] sm:$0xff]
  %v857 = vld [vmem:[%s5 + $0x500] sm:$0xff]
  %v858 = vld [vmem:[%s5 + $0x508] sm:$0xff]
  %v859 = vld [vmem:[%s5 + $0x510] sm:$0xff]
  %v860 = vld [vmem:[%s5 + $0x518] sm:$0xff]
  %v861 = vld [vmem:[%s5 + $0x520] sm:$0xff]
  %v862 = vld [vmem:[%s5 + $0x528] sm:$0xff]
  %v863 = vld [vmem:[%s5 + $0x530] sm:$0xff]
  %v864 = vld [vmem:[%s5 + $0x538] sm:$0xff]
  %v865 = vld [vmem:[%s5 + $0x540] sm:$0xff]
  %v866 = vld [vmem:[%s5 + $0x548] sm:$0xff]
  %v867 = vld [vmem:[%s5 + $0x550] sm:$0xff]
  %v868 = vld [vmem:[%s5 + $0x558] sm:$0xff]
  %v869 = vld [vmem:[%s5 + $0x560] sm:$0xff]
  %v870 = vld [vmem:[%s5 + $0x568] sm:$0xff]
  %v871 = vld [vmem:[%s5 + $0x570] sm:$0xff]
  %v872 = vld [vmem:[%s5 + $0x578] sm:$0xff]
  %v873 = vld [vmem:[%s5 + $0x580] sm:$0xff]
  %v874 = vld [vmem:[%s5 + $0x588] sm:$0xff]
  %v875 = vld [vmem:[%s5 + $0x590] sm:$0xff]
  %v876 = vld [vmem:[%s5 + $0x598] sm:$0xff]
  %v877 = vld [vmem:[%s5 + $0x5a0] sm:$0xff]
  %v878 = vld [vmem:[%s5 + $0x5a8] sm:$0xff]
  %v879 = vld [vmem:[%s5 + $0x5b0] sm:$0xff]
  %v880 = vld [vmem:[%s5 + $0x5b8] sm:$0xff]
  %v881 = vld [vmem:[%s5 + $0x5c0] sm:$0xff]
  %v882 = vld [vmem:[%s5 + $0x5c8] sm:$0xff]
  %v883 = vld [vmem:[%s5 + $0x5d0] sm:$0xff]
  %v884 = vld [vmem:[%s5 + $0x5d8] sm:$0xff]
  %v885 = vld [vmem:[%s5 + $0x5e0] sm:$0xff]
  %v886 = vld [vmem:[%s5 + $0x5e8] sm:$0xff]
  %v887 = vld [vmem:[%s5 + $0x5f0] sm:$0xff]
  %v888 = vld [vmem:[%s5 + $0x5f8] sm:$0xff]
  %v889 = vld [vmem:[%s5 + $0x600] sm:$0xff]
  %v890 = vld [vmem:[%s5 + $0x608] sm:$0xff]
  %v891 = vld [vmem:[%s5 + $0x610] sm:$0xff]
  %v892 = vld [vmem:[%s5 + $0x618] sm:$0xff]
  %v893 = vld [vmem:[%s5 + $0x620] sm:$0xff]
  %v894 = vld [vmem:[%s5 + $0x628] sm:$0xff]
  %v895 = vld [vmem:[%s5 + $0x630] sm:$0xff]
  %v896 = vld [vmem:[%s5 + $0x638] sm:$0xff]
  %v897 = vld [vmem:[%s5 + $0x640] sm:$0xff]
  %v898 = vld [vmem:[%s5 + $0x648] sm:$0xff]
  %v899 = vld [vmem:[%s5 + $0x650] sm:$0xff]
  %v900 = vld [vmem:[%s5 + $0x658] sm:$0xff]
  %v901 = vld [vmem:[%s5 + $0x660] sm:$0xff]
  %v902 = vld [vmem:[%s5 + $0x668] sm:$0xff]
  %v903 = vld [vmem:[%s5 + $0x670] sm:$0xff]
  %v904 = vld [vmem:[%s5 + $0x678] sm:$0xff]
  %v905 = vld [vmem:[%s5 + $0x680] sm:$0xff]
  %v906 = vld [vmem:[%s5 + $0x688] sm:$0xff]
  %v907 = vld [vmem:[%s5 + $0x690] sm:$0xff]
  %v908 = vld [vmem:[%s5 + $0x698] sm:$0xff]
  %v909 = vld [vmem:[%s5 + $0x6a0] sm:$0xff]
  %v910 = vld [vmem:[%s5 + $0x6a8] sm:$0xff]
  %v911 = vld [vmem:[%s5 + $0x6b0] sm:$0xff]
  %v912 = vld [vmem:[%s5 + $0x6b8] sm:$0xff]
  %v913 = vld [vmem:[%s5 + $0x6c0] sm:$0xff]
  %v914 = vld [vmem:[%s5 + $0x6c8] sm:$0xff]
  %v915 = vld [vmem:[%s5 + $0x6d0] sm:$0xff]
  %v916 = vld [vmem:[%s5 + $0x6d8] sm:$0xff]
  %v917 = vld [vmem:[%s5 + $0x6e0] sm:$0xff]
  %v918 = vld [vmem:[%s5 + $0x6e8] sm:$0xff]
  %v919 = vld [vmem:[%s5 + $0x6f0] sm:$0xff]
  %v920 = vld [vmem:[%s5 + $0x6f8] sm:$0xff]
  %v921 = vld [vmem:[%s5 + $0x700] sm:$0xff]
  %v922 = vld [vmem:[%s5 + $0x708] sm:$0xff]
  %v923 = vld [vmem:[%s5 + $0x710] sm:$0xff]
  %v924 = vld [vmem:[%s5 + $0x718] sm:$0xff]
  %v925 = vld [vmem:[%s5 + $0x720] sm:$0xff]
  %v926 = vld [vmem:[%s5 + $0x728] sm:$0xff]
  %v927 = vld [vmem:[%s5 + $0x730] sm:$0xff]
  %v928 = vld [vmem:[%s5 + $0x738] sm:$0xff]
  %v929 = vld [vmem:[%s5 + $0x740] sm:$0xff]
  %v930 = vld [vmem:[%s5 + $0x748] sm:$0xff]
  %v931 = vld [vmem:[%s5 + $0x750] sm:$0xff]
  %v932 = vld [vmem:[%s5 + $0x758] sm:$0xff]
  %v933 = vld [vmem:[%s5 + $0x760] sm:$0xff]
  %v934 = vld [vmem:[%s5 + $0x768] sm:$0xff]
  %v935 = vld [vmem:[%s5 + $0x770] sm:$0xff]
  %v936 = vld [vmem:[%s5 + $0x778] sm:$0xff]
  %v937 = vld [vmem:[%s5 + $0x780] sm:$0xff]
  %v938 = vld [vmem:[%s5 + $0x788] sm:$0xff]
  %v939 = vld [vmem:[%s5 + $0x790] sm:$0xff]
  %v940 = vld [vmem:[%s5 + $0x798] sm:$0xff]
  %v941 = vld [vmem:[%s5 + $0x7a0] sm:$0xff]
  %v942 = vld [vmem:[%s5 + $0x7a8] sm:$0xff]
  %v943 = vld [vmem:[%s5 + $0x7b0] sm:$0xff]
  %v944 = vld [vmem:[%s5 + $0x7b8] sm:$0xff]
  %v945 = vld [vmem:[%s5 + $0x7c0] sm:$0xff]
  %v946 = vld [vmem:[%s5 + $0x7c8] sm:$0xff]
  %v947 = vld [vmem:[%s5 + $0x7d0] sm:$0xff]
  %v948 = vld [vmem:[%s5 + $0x7d8] sm:$0xff]
  %v949 = vld [vmem:[%s5 + $0x7e0] sm:$0xff]
  %v950 = vld [vmem:[%s5 + $0x7e8] sm:$0xff]
  %v951 = vld [vmem:[%s5 + $0x7f0] sm:$0xff]
  %v952 = vld [vmem:[%s5 + $0x7f8] sm:$0xff]
  %v953 = vld [vmem:[%s5 + $0x800] sm:$0xff]
  %v954 = vld [vmem:[%s5 + $0x808] sm:$0xff]
  %v955 = vld [vmem:[%s5 + $0x810] sm:$0xff]
  %v956 = vld [vmem:[%s5 + $0x818] sm:$0xff]
  %v957 = vld [vmem:[%s5 + $0x820] sm:$0xff]
  %v958 = vld [vmem:[%s5 + $0x828] sm:$0xff]
  %v959 = vld [vmem:[%s5 + $0x830] sm:$0xff]
  %v960 = vld [vmem:[%s5 + $0x838] sm:$0xff]
  %v961 = vld [vmem:[%s5 + $0x840] sm:$0xff]
  %v962 = vld [vmem:[%s5 + $0x848] sm:$0xff]
  %v963 = vld [vmem:[%s5 + $0x850] sm:$0xff]
  %v964 = vld [vmem:[%s5 + $0x858] sm:$0xff]
  %v965 = vld [vmem:[%s5 + $0x860] sm:$0xff]
  %v966 = vld [vmem:[%s5 + $0x868] sm:$0xff]
  %v967 = vld [vmem:[%s5 + $0x870] sm:$0xff]
  %v968 = vld [vmem:[%s5 + $0x878] sm:$0xff]
  %v969 = vld [vmem:[%s5 + $0x880] sm:$0xff]
  %v970 = vld [vmem:[%s5 + $0x888] sm:$0xff]
  %v971 = vld [vmem:[%s5 + $0x890] sm:$0xff]
  %v972 = vld [vmem:[%s5 + $0x898] sm:$0xff]
  %v973 = vld [vmem:[%s5 + $0x8a0] sm:$0xff]
  %v974 = vld [vmem:[%s5 + $0x8a8] sm:$0xff]
  %v975 = vld [vmem:[%s5 + $0x8b0] sm:$0xff]
  %v976 = vld [vmem:[%s5 + $0x8b8] sm:$0xff]
  %v977 = vld [vmem:[%s5 + $0x8c0] sm:$0xff]
  %v978 = vld [vmem:[%s5 + $0x8c8] sm:$0xff]
  %v979 = vld [vmem:[%s5 + $0x8d0] sm:$0xff]
  %v980 = vld [vmem:[%s5 + $0x8d8] sm:$0xff]
  %v981 = vld [vmem:[%s5 + $0x8e0] sm:$0xff]
  %v982 = vld [vmem:[%s5 + $0x8e8] sm:$0xff]
  %v983 = vld [vmem:[%s5 + $0x8f0] sm:$0xff]
  %v984 = vld [vmem:[%s5 + $0x8f8] sm:$0xff]
  %v985 = vld [vmem:[%s5 + $0x900] sm:$0xff]
  %v986 = vld [vmem:[%s5 + $0x908] sm:$0xff]
  %v987 = vld [vmem:[%s5 + $0x910] sm:$0xff]
  %v988 = vld [vmem:[%s5 + $0x918] sm:$0xff]
  %v989 = vld [vmem:[%s5 + $0x920] sm:$0xff]
  %v990 = vld [vmem:[%s5 + $0x928] sm:$0xff]
  %v991 = vld [vmem:[%s5 + $0x930] sm:$0xff]
  %v992 = vld [vmem:[%s5 + $0x938] sm:$0xff]
  %v993 = vld [vmem:[%s5 + $0x940] sm:$0xff]
  %v994 = vld [vmem:[%s5 + $0x948] sm:$0xff]
  %v995 = vld [vmem:[%s5 + $0x950] sm:$0xff]
  %v996 = vld [vmem:[%s5 + $0x958] sm:$0xff]
  %v997 = vld [vmem:[%s5 + $0x960] sm:$0xff]
  %v998 = vld [vmem:[%s5 + $0x968] sm:$0xff]
  %v999 = vld [vmem:[%s5 + $0x970] sm:$0xff]
  %v1000 = vld [vmem:[%s5 + $0x978] sm:$0xff]
  %v1001 = vld [vmem:[%s5 + $0x980] sm:$0xff]
  %v1002 = vld [vmem:[%s5 + $0x988] sm:$0xff]
  %v1003 = vld [vmem:[%s5 + $0x990] sm:$0xff]
  %v1004 = vld [vmem:[%s5 + $0x998] sm:$0xff]
  %v1005 = vld [vmem:[%s5 + $0x9a0] sm:$0xff]
  %v1006 = vld [vmem:[%s5 + $0x9a8] sm:$0xff]
  %v1007 = vld [vmem:[%s5 + $0x9b0] sm:$0xff]
  %v1008 = vld [vmem:[%s5 + $0x9b8] sm:$0xff]
  %v1009 = vld [vmem:[%s5 + $0x9c0] sm:$0xff]
  %v1010 = vld [vmem:[%s5 + $0x9c8] sm:$0xff]
  %v1011 = vld [vmem:[%s5 + $0x9d0] sm:$0xff]
  %v1012 = vld [vmem:[%s5 + $0x9d8] sm:$0xff]
  %v1013 = vld [vmem:[%s5 + $0x9e0] sm:$0xff]
  %v1014 = vld [vmem:[%s5 + $0x9e8] sm:$0xff]
  %v1015 = vld [vmem:[%s5 + $0x9f0] sm:$0xff]
  %v1016 = vld [vmem:[%s5 + $0x9f8] sm:$0xff]
  %v1017 = vld [vmem:[%s5 + $0xa00] sm:$0xff]
  %v1018 = vld [vmem:[%s5 + $0xa08] sm:$0xff]
  %v1019 = vld [vmem:[%s5 + $0xa10] sm:$0xff]
  %v1020 = vld [vmem:[%s5 + $0xa18] sm:$0xff]
  %v1021 = vld [vmem:[%s5 + $0xa20] sm:$0xff]
  %v1022 = vld [vmem:[%s5 + $0xa28] sm:$0xff]
  %v1023 = vld [vmem:[%s5 + $0xa30] sm:$0xff]
  %v1024 = vld [vmem:[%s5 + $0xa38] sm:$0xff]
  %v1025 = vld [vmem:[%s5 + $0xa40] sm:$0xff]
  %v1026 = vld [vmem:[%s5 + $0xa48] sm:$0xff]
  %v1027 = vld [vmem:[%s5 + $0xa50] sm:$0xff]
  %v1028 = vld [vmem:[%s5 + $0xa58] sm:$0xff]
  %v1029 = vld [vmem:[%s5 + $0xa60] sm:$0xff]
  %v1030 = vld [vmem:[%s5 + $0xa68] sm:$0xff]
  %v1031 = vld [vmem:[%s5 + $0xa70] sm:$0xff]
  %v1032 = vld [vmem:[%s5 + $0xa78] sm:$0xff]
  %v1033 = vld [vmem:[%s5 + $0xa80] sm:$0xff]
  %v1034 = vld [vmem:[%s5 + $0xa88] sm:$0xff]
  %v1035 = vld [vmem:[%s5 + $0xa90] sm:$0xff]
  %v1036 = vld [vmem:[%s5 + $0xa98] sm:$0xff]
  %v1037 = vld [vmem:[%s5 + $0xaa0] sm:$0xff]
  %v1038 = vld [vmem:[%s5 + $0xaa8] sm:$0xff]
  %v1039 = vld [vmem:[%s5 + $0xab0] sm:$0xff]
  %v1040 = vld [vmem:[%s5 + $0xab8] sm:$0xff]
  %v1041 = vld [vmem:[%s5 + $0xac0] sm:$0xff]
  %v1042 = vld [vmem:[%s5 + $0xac8] sm:$0xff]
  %v1043 = vld [vmem:[%s5 + $0xad0] sm:$0xff]
  %v1044 = vld [vmem:[%s5 + $0xad8] sm:$0xff]
  %v1045 = vld [vmem:[%s5 + $0xae0] sm:$0xff]
  %v1046 = vld [vmem:[%s5 + $0xae8] sm:$0xff]
  %v1047 = vld [vmem:[%s5 + $0xaf0] sm:$0xff]
  %v1048 = vld [vmem:[%s5 + $0xaf8] sm:$0xff]
  %v1049 = vld [vmem:[%s5 + $0xb00] sm:$0xff]
  %v1050 = vld [vmem:[%s5 + $0xb08] sm:$0xff]
  %v1051 = vld [vmem:[%s5 + $0xb10] sm:$0xff]
  %v1052 = vld [vmem:[%s5 + $0xb18] sm:$0xff]
  %v1053 = vld [vmem:[%s5 + $0xb20] sm:$0xff]
  %v1054 = vld [vmem:[%s5 + $0xb28] sm:$0xff]
  %v1055 = vld [vmem:[%s5 + $0xb30] sm:$0xff]
  %v1056 = vld [vmem:[%s5 + $0xb38] sm:$0xff]
  %v1057 = vld [vmem:[%s5 + $0xb40] sm:$0xff]
  %v1058 = vld [vmem:[%s5 + $0xb48] sm:$0xff]
  %v1059 = vld [vmem:[%s5 + $0xb50] sm:$0xff]
  %v1060 = vld [vmem:[%s5 + $0xb58] sm:$0xff]
  %v1061 = vld [vmem:[%s5 + $0xb60] sm:$0xff]
  %v1062 = vld [vmem:[%s5 + $0xb68] sm:$0xff]
  %v1063 = vld [vmem:[%s5 + $0xb70] sm:$0xff]
  %v1064 = vld [vmem:[%s5 + $0xb78] sm:$0xff]
  %v1065 = vld [vmem:[%s5 + $0xb80] sm:$0xff]
  %v1066 = vld [vmem:[%s5 + $0xb88] sm:$0xff]
  %v1067 = vld [vmem:[%s5 + $0xb90] sm:$0xff]
  %v1068 = vld [vmem:[%s5 + $0xb98] sm:$0xff]
  %v1069 = vld [vmem:[%s5 + $0xba0] sm:$0xff]
  %v1070 = vld [vmem:[%s5 + $0xba8] sm:$0xff]
  %v1071 = vld [vmem:[%s5 + $0xbb0] sm:$0xff]
  %v1072 = vld [vmem:[%s5 + $0xbb8] sm:$0xff]
  %v1073 = vld [vmem:[%s5 + $0xbc0] sm:$0xff]
  %v1074 = vld [vmem:[%s5 + $0xbc8] sm:$0xff]
  %v1075 = vld [vmem:[%s5 + $0xbd0] sm:$0xff]
  %v1076 = vld [vmem:[%s5 + $0xbd8] sm:$0xff]
  %v1077 = vld [vmem:[%s5 + $0xbe0] sm:$0xff]
  %v1078 = vld [vmem:[%s5 + $0xbe8] sm:$0xff]
  %v1079 = vld [vmem:[%s5 + $0xbf0] sm:$0xff]
  %v1080 = vld [vmem:[%s5 + $0xbf8] sm:$0xff]
  %v1081 = vld [vmem:[%s5 + $0xc00] sm:$0xff]
  %v1082 = vld [vmem:[%s5 + $0xc08] sm:$0xff]
  %v1083 = vld [vmem:[%s5 + $0xc10] sm:$0xff]
  %v1084 = vld [vmem:[%s5 + $0xc18] sm:$0xff]
  %v1085 = vld [vmem:[%s5 + $0xc20] sm:$0xff]
  %v1086 = vld [vmem:[%s5 + $0xc28] sm:$0xff]
  %v1087 = vld [vmem:[%s5 + $0xc30] sm:$0xff]
  %v1088 = vld [vmem:[%s5 + $0xc38] sm:$0xff]
  %v1089 = vld [vmem:[%s5 + $0xc40] sm:$0xff]
  %v1090 = vld [vmem:[%s5 + $0xc48] sm:$0xff]
  %v1091 = vld [vmem:[%s5 + $0xc50] sm:$0xff]
  %v1092 = vld [vmem:[%s5 + $0xc58] sm:$0xff]
  %v1093 = vld [vmem:[%s5 + $0xc60] sm:$0xff]
  %v1094 = vld [vmem:[%s5 + $0xc68] sm:$0xff]
  %v1095 = vld [vmem:[%s5 + $0xc70] sm:$0xff]
  %v1096 = vld [vmem:[%s5 + $0xc78] sm:$0xff]
  %v1097 = vld [vmem:[%s5 + $0xc80] sm:$0xff]
  %v1098 = vld [vmem:[%s5 + $0xc88] sm:$0xff]
  %v1099 = vld [vmem:[%s5 + $0xc90] sm:$0xff]
  %v1100 = vld [vmem:[%s5 + $0xc98] sm:$0xff]
  %v1101 = vld [vmem:[%s5 + $0xca0] sm:$0xff]
  %v1102 = vld [vmem:[%s5 + $0xca8] sm:$0xff]
  %v1103 = vld [vmem:[%s5 + $0xcb0] sm:$0xff]
  %v1104 = vld [vmem:[%s5 + $0xcb8] sm:$0xff]
  %v1105 = vld [vmem:[%s5 + $0xcc0] sm:$0xff]
  %v1106 = vld [vmem:[%s5 + $0xcc8] sm:$0xff]
  %v1107 = vld [vmem:[%s5 + $0xcd0] sm:$0xff]
  %v1108 = vld [vmem:[%s5 + $0xcd8] sm:$0xff]
  %v1109 = vld [vmem:[%s5 + $0xce0] sm:$0xff]
  %v1110 = vld [vmem:[%s5 + $0xce8] sm:$0xff]
  %v1111 = vld [vmem:[%s5 + $0xcf0] sm:$0xff]
  %v1112 = vld [vmem:[%s5 + $0xcf8] sm:$0xff]
  %v1113 = vld [vmem:[%s5 + $0xd00] sm:$0xff]
  %v1114 = vld [vmem:[%s5 + $0xd08] sm:$0xff]
  %v1115 = vld [vmem:[%s5 + $0xd10] sm:$0xff]
  %v1116 = vld [vmem:[%s5 + $0xd18] sm:$0xff]
  %v1117 = vld [vmem:[%s5 + $0xd20] sm:$0xff]
  %v1118 = vld [vmem:[%s5 + $0xd28] sm:$0xff]
  %v1119 = vld [vmem:[%s5 + $0xd30] sm:$0xff]
  %v1120 = vld [vmem:[%s5 + $0xd38] sm:$0xff]
  %v1121 = vld [vmem:[%s5 + $0xd40] sm:$0xff]
  %v1122 = vld [vmem:[%s5 + $0xd48] sm:$0xff]
  %v1123 = vld [vmem:[%s5 + $0xd50] sm:$0xff]
  %v1124 = vld [vmem:[%s5 + $0xd58] sm:$0xff]
  %v1125 = vld [vmem:[%s5 + $0xd60] sm:$0xff]
  %v1126 = vld [vmem:[%s5 + $0xd68] sm:$0xff]
  %v1127 = vld [vmem:[%s5 + $0xd70] sm:$0xff]
  %v1128 = vld [vmem:[%s5 + $0xd78] sm:$0xff]
  %v1129 = vld [vmem:[%s5 + $0xd80] sm:$0xff]
  %v1130 = vld [vmem:[%s5 + $0xd88] sm:$0xff]
  %v1131 = vld [vmem:[%s5 + $0xd90] sm:$0xff]
  %v1132 = vld [vmem:[%s5 + $0xd98] sm:$0xff]
  %v1133 = vld [vmem:[%s5 + $0xda0] sm:$0xff]
  %v1134 = vld [vmem:[%s5 + $0xda8] sm:$0xff]
  %v1135 = vld [vmem:[%s5 + $0xdb0] sm:$0xff]
  %v1136 = vld [vmem:[%s5 + $0xdb8] sm:$0xff]
  %v1137 = vld [vmem:[%s5 + $0xdc0] sm:$0xff]
  %v1138 = vld [vmem:[%s5 + $0xdc8] sm:$0xff]
  %v1139 = vld [vmem:[%s5 + $0xdd0] sm:$0xff]
  %v1140 = vld [vmem:[%s5 + $0xdd8] sm:$0xff]
  %v1141 = vld [vmem:[%s5 + $0xde0] sm:$0xff]
  %v1142 = vld [vmem:[%s5 + $0xde8] sm:$0xff]
  %v1143 = vld [vmem:[%s5 + $0xdf0] sm:$0xff]
  %v1144 = vld [vmem:[%s5 + $0xdf8] sm:$0xff]
  %v1145 = vld [vmem:[%s5 + $0xe00] sm:$0xff]
  %v1146 = vld [vmem:[%s5 + $0xe08] sm:$0xff]
  %v1147 = vld [vmem:[%s5 + $0xe10] sm:$0xff]
  %v1148 = vld [vmem:[%s5 + $0xe18] sm:$0xff]
  %v1149 = vld [vmem:[%s5 + $0xe20] sm:$0xff]
  %v1150 = vld [vmem:[%s5 + $0xe28] sm:$0xff]
  %v1151 = vld [vmem:[%s5 + $0xe30] sm:$0xff]
  %v1152 = vld [vmem:[%s5 + $0xe38] sm:$0xff]
  %v1153 = vld [vmem:[%s5 + $0xe40] sm:$0xff]
  %v1154 = vld [vmem:[%s5 + $0xe48] sm:$0xff]
  %v1155 = vld [vmem:[%s5 + $0xe50] sm:$0xff]
  %v1156 = vld [vmem:[%s5 + $0xe58] sm:$0xff]
  %v1157 = vld [vmem:[%s5 + $0xe60] sm:$0xff]
  %v1158 = vld [vmem:[%s5 + $0xe68] sm:$0xff]
  %v1159 = vld [vmem:[%s5 + $0xe70] sm:$0xff]
  %v1160 = vld [vmem:[%s5 + $0xe78] sm:$0xff]
  %v1161 = vld [vmem:[%s5 + $0xe80] sm:$0xff]
  %v1162 = vld [vmem:[%s5 + $0xe88] sm:$0xff]
  %v1163 = vld [vmem:[%s5 + $0xe90] sm:$0xff]
  %v1164 = vld [vmem:[%s5 + $0xe98] sm:$0xff]
  %v1165 = vld [vmem:[%s5 + $0xea0] sm:$0xff]
  %v1166 = vld [vmem:[%s5 + $0xea8] sm:$0xff]
  %v1167 = vld [vmem:[%s5 + $0xeb0] sm:$0xff]
  %v1168 = vld [vmem:[%s5 + $0xeb8] sm:$0xff]
  %v1169 = vld [vmem:[%s5 + $0xec0] sm:$0xff]
  %v1170 = vld [vmem:[%s5 + $0xec8] sm:$0xff]
  %v1171 = vld [vmem:[%s5 + $0xed0] sm:$0xff]
  %v1172 = vld [vmem:[%s5 + $0xed8] sm:$0xff]
  %v1173 = vld [vmem:[%s5 + $0xee0] sm:$0xff]
  %v1174 = vld [vmem:[%s5 + $0xee8] sm:$0xff]
  %v1175 = vld [vmem:[%s5 + $0xef0] sm:$0xff]
  %v1176 = vld [vmem:[%s5 + $0xef8] sm:$0xff]
  %v1177 = vld [vmem:[%s5 + $0xf00] sm:$0xff]
  %v1178 = vld [vmem:[%s5 + $0xf08] sm:$0xff]
  %v1179 = vld [vmem:[%s5 + $0xf10] sm:$0xff]
  %v1180 = vld [vmem:[%s5 + $0xf18] sm:$0xff]
  %v1181 = vld [vmem:[%s5 + $0xf20] sm:$0xff]
  %v1182 = vld [vmem:[%s5 + $0xf28] sm:$0xff]
  %v1183 = vld [vmem:[%s5 + $0xf30] sm:$0xff]
  %v1184 = vld [vmem:[%s5 + $0xf38] sm:$0xff]
  %v1185 = vld [vmem:[%s5 + $0xf40] sm:$0xff]
  %v1186 = vld [vmem:[%s5 + $0xf48] sm:$0xff]
  %v1187 = vld [vmem:[%s5 + $0xf50] sm:$0xff]
  %v1188 = vld [vmem:[%s5 + $0xf58] sm:$0xff]
  %v1189 = vld [vmem:[%s5 + $0xf60] sm:$0xff]
  %v1190 = vld [vmem:[%s5 + $0xf68] sm:$0xff]
  %v1191 = vld [vmem:[%s5 + $0xf70] sm:$0xff]
  %v1192 = vld [vmem:[%s5 + $0xf78] sm:$0xff]
  %v1193 = vld [vmem:[%s5 + $0xf80] sm:$0xff]
  %v1194 = vld [vmem:[%s5 + $0xf88] sm:$0xff]
  %v1195 = vld [vmem:[%s5 + $0xf90] sm:$0xff]
  %v1196 = vld [vmem:[%s5 + $0xf98] sm:$0xff]
  %v1197 = vld [vmem:[%s5 + $0xfa0] sm:$0xff]
  %v1198 = vld [vmem:[%s5 + $0xfa8] sm:$0xff]
  %v1199 = vld [vmem:[%s5 + $0xfb0] sm:$0xff]
  %v1200 = vld [vmem:[%s5 + $0xfb8] sm:$0xff]
  %v1201 = vld [vmem:[%s5 + $0xfc0] sm:$0xff]
  %v1202 = vld [vmem:[%s5 + $0xfc8] sm:$0xff]
  %v1203 = vld [vmem:[%s5 + $0xfd0] sm:$0xff]
  %v1204 = vld [vmem:[%s5 + $0xfd8] sm:$0xff]
  %v1205 = vld [vmem:[%s5 + $0xfe0] sm:$0xff]
  %v1206 = vld [vmem:[%s5 + $0xfe8] sm:$0xff]
  %v1207 = vld [vmem:[%s5 + $0xff0] sm:$0xff]
  %v1208 = vld [vmem:[%s5 + $0xff8] sm:$0xff]
  %v1209 = vld [vmem:[%s6] sm:$0xff]
  %v1211 = vperm.slane %v1209, 0
  %v1212 = vperm.slane %v1209, 1
  %v1213 = vperm.slane %v1209, 2
  %v1214 = vperm.slane %v1209, 3
  %v1215 = vperm.slane %v1209, 4
  %v1216 = vperm.slane %v1209, 5
  %v1217 = vperm.slane %v1209, 6
  %v1218 = vperm.slane %v1209, 7
  %1227 = vmatpush.msra.mxu0 %v817
  %1228 = vmatpush.msra.mxu0 %v809
  %1229 = vmatpush.msra.mxu0 %v801
  %1230 = vmatpush.msra.mxu0 %v793
  %1231 = vmatpush.msra.mxu0 %v785
  %1232 = vmatpush.msra.mxu0 %v777
  %1233 = vmatpush.msra.mxu0 %v769
  %1234 = vmatpush.msra.mxu0 %v761
  %1235 = vmatpush.msra.mxu0 %v753
  %1236 = vmatpush.msra.mxu0 %v745
  %1237 = vmatpush.msra.mxu0 %v737
  %1238 = vmatpush.msra.mxu0 %v729
  %1239 = vmatpush.msra.mxu0 %v721
  %1240 = vmatpush.msra.mxu0 %v713
  %1241 = vmatpush.msra.mxu0 %v705
  %1242 = vmatpush.msra.mxu0 %v697
  %1243 = vmatmul.f32.gmra.mxu0 %v107
  %v1244 = vpop.f32.mrf.mxu0
  %v1245 = vadd.f32 %v1211, %v1244
  %1246 = vdwg.mxu0
  %1247 = vmatpush.msra.mxu0 %v945
  %1248 = vmatpush.msra.mxu0 %v937
  %1249 = vmatpush.msra.mxu0 %v929
  %1250 = vmatpush.msra.mxu0 %v921
  %1251 = vmatpush.msra.mxu0 %v913
  %1252 = vmatpush.msra.mxu0 %v905
  %1253 = vmatpush.msra.mxu0 %v897
  %1254 = vmatpush.msra.mxu0 %v889
  %1255 = vmatpush.msra.mxu0 %v881
  %1256 = vmatpush.msra.mxu0 %v873
  %1257 = vmatpush.msra.mxu0 %v865
  %1258 = vmatpush.msra.mxu0 %v857
  %1259 = vmatpush.msra.mxu0 %v849
  %1260 = vmatpush.msra.mxu0 %v841
  %1261 = vmatpush.msra.mxu0 %v833
  %1262 = vmatpush.msra.mxu0 %v825
  %1263 = vmatmul.f32.gmra.mxu0 %v108
  %v1264 = vpop.f32.mrf.mxu0
  %v1265 = vadd.f32 %v1245, %v1264
  %1266 = vdwg.mxu0
  %1267 = vmatpush.msra.mxu0 %v1073
  %1268 = vmatpush.msra.mxu0 %v1065
  %1269 = vmatpush.msra.mxu0 %v1057
  %1270 = vmatpush.msra.mxu0 %v1049
  %1271 = vmatpush.msra.mxu0 %v1041
  %1272 = vmatpush.msra.mxu0 %v1033
  %1273 = vmatpush.msra.mxu0 %v1025
  %1274 = vmatpush.msra.mxu0 %v1017
  %1275 = vmatpush.msra.mxu0 %v1009
  %1276 = vmatpush.msra.mxu0 %v1001
  %1277 = vmatpush.msra.mxu0 %v993
  %1278 = vmatpush.msra.mxu0 %v985
  %1279 = vmatpush.msra.mxu0 %v977
  %1280 = vmatpush.msra.mxu0 %v969
  %1281 = vmatpush.msra.mxu0 %v961
  %1282 = vmatpush.msra.mxu0 %v953
  %1283 = vmatmul.f32.gmra.mxu0 %v109
  %v1284 = vpop.f32.mrf.mxu0
  %v1285 = vadd.f32 %v1265, %v1284
  %1286 = vdwg.mxu0
  %1287 = vmatpush.msra.mxu0 %v1201
  %1288 = vmatpush.msra.mxu0 %v1193
  %1289 = vmatpush.msra.mxu0 %v1185
  %1290 = vmatpush.msra.mxu0 %v1177
  %1291 = vmatpush.msra.mxu0 %v1169
  %1292 = vmatpush.msra.mxu0 %v1161
  %1293 = vmatpush.msra.mxu0 %v1153
  %1294 = vmatpush.msra.mxu0 %v1145
  %1295 = vmatpush.msra.mxu0 %v1137
  %1296 = vmatpush.msra.mxu0 %v1129
  %1297 = vmatpush.msra.mxu0 %v1121
  %1298 = vmatpush.msra.mxu0 %v1113
  %1299 = vmatpush.msra.mxu0 %v1105
  %1300 = vmatpush.msra.mxu0 %v1097
  %1301 = vmatpush.msra.mxu0 %v1089
  %1302 = vmatpush.msra.mxu0 %v1081
  %1303 = vmatmul.f32.gmra.mxu0 %v110
  %v1304 = vpop.f32.mrf.mxu0
  %v1305 = vadd.f32 %v1285, %v1304
  %1306 = vdwg.mxu0
  %1307 = vmatpush.msra.mxu0 %v818
  %1308 = vmatpush.msra.mxu0 %v810
  %1309 = vmatpush.msra.mxu0 %v802
  %1310 = vmatpush.msra.mxu0 %v794
  %1311 = vmatpush.msra.mxu0 %v786
  %1312 = vmatpush.msra.mxu0 %v778
  %1313 = vmatpush.msra.mxu0 %v770
  %1314 = vmatpush.msra.mxu0 %v762
  %1315 = vmatpush.msra.mxu0 %v754
  %1316 = vmatpush.msra.mxu0 %v746
  %1317 = vmatpush.msra.mxu0 %v738
  %1318 = vmatpush.msra.mxu0 %v730
  %1319 = vmatpush.msra.mxu0 %v722
  %1320 = vmatpush.msra.mxu0 %v714
  %1321 = vmatpush.msra.mxu0 %v706
  %1322 = vmatpush.msra.mxu0 %v698
  %1323 = vmatmul.f32.gmra.mxu0 %v107
  %v1324 = vpop.f32.mrf.mxu0
  %v1325 = vadd.f32 %v1212, %v1324
  %1326 = vdwg.mxu0
  %1327 = vmatpush.msra.mxu0 %v946
  %1328 = vmatpush.msra.mxu0 %v938
  %1329 = vmatpush.msra.mxu0 %v930
  %1330 = vmatpush.msra.mxu0 %v922
  %1331 = vmatpush.msra.mxu0 %v914
  %1332 = vmatpush.msra.mxu0 %v906
  %1333 = vmatpush.msra.mxu0 %v898
  %1334 = vmatpush.msra.mxu0 %v890
  %1335 = vmatpush.msra.mxu0 %v882
  %1336 = vmatpush.msra.mxu0 %v874
  %1337 = vmatpush.msra.mxu0 %v866
  %1338 = vmatpush.msra.mxu0 %v858
  %1339 = vmatpush.msra.mxu0 %v850
  %1340 = vmatpush.msra.mxu0 %v842
  %1341 = vmatpush.msra.mxu0 %v834
  %1342 = vmatpush.msra.mxu0 %v826
  %1343 = vmatmul.f32.gmra.mxu0 %v108
  %v1344 = vpop.f32.mrf.mxu0
  %v1345 = vadd.f32 %v1325, %v1344
  %1346 = vdwg.mxu0
  %1347 = vmatpush.msra.mxu0 %v1074
  %1348 = vmatpush.msra.mxu0 %v1066
  %1349 = vmatpush.msra.mxu0 %v1058
  %1350 = vmatpush.msra.mxu0 %v1050
  %1351 = vmatpush.msra.mxu0 %v1042
  %1352 = vmatpush.msra.mxu0 %v1034
  %1353 = vmatpush.msra.mxu0 %v1026
  %1354 = vmatpush.msra.mxu0 %v1018
  %1355 = vmatpush.msra.mxu0 %v1010
  %1356 = vmatpush.msra.mxu0 %v1002
  %1357 = vmatpush.msra.mxu0 %v994
  %1358 = vmatpush.msra.mxu0 %v986
  %1359 = vmatpush.msra.mxu0 %v978
  %1360 = vmatpush.msra.mxu0 %v970
  %1361 = vmatpush.msra.mxu0 %v962
  %1362 = vmatpush.msra.mxu0 %v954
  %1363 = vmatmul.f32.gmra.mxu0 %v109
  %v1364 = vpop.f32.mrf.mxu0
  %v1365 = vadd.f32 %v1345, %v1364
  %1366 = vdwg.mxu0
  %1367 = vmatpush.msra.mxu0 %v1202
  %1368 = vmatpush.msra.mxu0 %v1194
  %1369 = vmatpush.msra.mxu0 %v1186
  %1370 = vmatpush.msra.mxu0 %v1178
  %1371 = vmatpush.msra.mxu0 %v1170
  %1372 = vmatpush.msra.mxu0 %v1162
  %1373 = vmatpush.msra.mxu0 %v1154
  %1374 = vmatpush.msra.mxu0 %v1146
  %1375 = vmatpush.msra.mxu0 %v1138
  %1376 = vmatpush.msra.mxu0 %v1130
  %1377 = vmatpush.msra.mxu0 %v1122
  %1378 = vmatpush.msra.mxu0 %v1114
  %1379 = vmatpush.msra.mxu0 %v1106
  %1380 = vmatpush.msra.mxu0 %v1098
  %1381 = vmatpush.msra.mxu0 %v1090
  %1382 = vmatpush.msra.mxu0 %v1082
  %1383 = vmatmul.f32.gmra.mxu0 %v110
  %v1384 = vpop.f32.mrf.mxu0
  %v1385 = vadd.f32 %v1365, %v1384
  %1386 = vdwg.mxu0
  %1387 = vmatpush.msra.mxu0 %v819
  %1388 = vmatpush.msra.mxu0 %v811
  %1389 = vmatpush.msra.mxu0 %v803
  %1390 = vmatpush.msra.mxu0 %v795
  %1391 = vmatpush.msra.mxu0 %v787
  %1392 = vmatpush.msra.mxu0 %v779
  %1393 = vmatpush.msra.mxu0 %v771
  %1394 = vmatpush.msra.mxu0 %v763
  %1395 = vmatpush.msra.mxu0 %v755
  %1396 = vmatpush.msra.mxu0 %v747
  %1397 = vmatpush.msra.mxu0 %v739
  %1398 = vmatpush.msra.mxu0 %v731
  %1399 = vmatpush.msra.mxu0 %v723
  %1400 = vmatpush.msra.mxu0 %v715
  %1401 = vmatpush.msra.mxu0 %v707
  %1402 = vmatpush.msra.mxu0 %v699
  %1403 = vmatmul.f32.gmra.mxu0 %v107
  %v1404 = vpop.f32.mrf.mxu0
  %v1405 = vadd.f32 %v1213, %v1404
  %1406 = vdwg.mxu0
  %1407 = vmatpush.msra.mxu0 %v947
  %1408 = vmatpush.msra.mxu0 %v939
  %1409 = vmatpush.msra.mxu0 %v931
  %1410 = vmatpush.msra.mxu0 %v923
  %1411 = vmatpush.msra.mxu0 %v915
  %1412 = vmatpush.msra.mxu0 %v907
  %1413 = vmatpush.msra.mxu0 %v899
  %1414 = vmatpush.msra.mxu0 %v891
  %1415 = vmatpush.msra.mxu0 %v883
  %1416 = vmatpush.msra.mxu0 %v875
  %1417 = vmatpush.msra.mxu0 %v867
  %1418 = vmatpush.msra.mxu0 %v859
  %1419 = vmatpush.msra.mxu0 %v851
  %1420 = vmatpush.msra.mxu0 %v843
  %1421 = vmatpush.msra.mxu0 %v835
  %1422 = vmatpush.msra.mxu0 %v827
  %1423 = vmatmul.f32.gmra.mxu0 %v108
  %v1424 = vpop.f32.mrf.mxu0
  %v1425 = vadd.f32 %v1405, %v1424
  %1426 = vdwg.mxu0
  %1427 = vmatpush.msra.mxu0 %v1075
  %1428 = vmatpush.msra.mxu0 %v1067
  %1429 = vmatpush.msra.mxu0 %v1059
  %1430 = vmatpush.msra.mxu0 %v1051
  %1431 = vmatpush.msra.mxu0 %v1043
  %1432 = vmatpush.msra.mxu0 %v1035
  %1433 = vmatpush.msra.mxu0 %v1027
  %1434 = vmatpush.msra.mxu0 %v1019
  %1435 = vmatpush.msra.mxu0 %v1011
  %1436 = vmatpush.msra.mxu0 %v1003
  %1437 = vmatpush.msra.mxu0 %v995
  %1438 = vmatpush.msra.mxu0 %v987
  %1439 = vmatpush.msra.mxu0 %v979
  %1440 = vmatpush.msra.mxu0 %v971
  %1441 = vmatpush.msra.mxu0 %v963
  %1442 = vmatpush.msra.mxu0 %v955
  %1443 = vmatmul.f32.gmra.mxu0 %v109
  %v1444 = vpop.f32.mrf.mxu0
  %v1445 = vadd.f32 %v1425, %v1444
  %1446 = vdwg.mxu0
  %1447 = vmatpush.msra.mxu0 %v1203
  %1448 = vmatpush.msra.mxu0 %v1195
  %1449 = vmatpush.msra.mxu0 %v1187
  %1450 = vmatpush.msra.mxu0 %v1179
  %1451 = vmatpush.msra.mxu0 %v1171
  %1452 = vmatpush.msra.mxu0 %v1163
  %1453 = vmatpush.msra.mxu0 %v1155
  %1454 = vmatpush.msra.mxu0 %v1147
  %1455 = vmatpush.msra.mxu0 %v1139
  %1456 = vmatpush.msra.mxu0 %v1131
  %1457 = vmatpush.msra.mxu0 %v1123
  %1458 = vmatpush.msra.mxu0 %v1115
  %1459 = vmatpush.msra.mxu0 %v1107
  %1460 = vmatpush.msra.mxu0 %v1099
  %1461 = vmatpush.msra.mxu0 %v1091
  %1462 = vmatpush.msra.mxu0 %v1083
  %1463 = vmatmul.f32.gmra.mxu0 %v110
  %v1464 = vpop.f32.mrf.mxu0
  %v1465 = vadd.f32 %v1445, %v1464
  %1466 = vdwg.mxu0
  %1467 = vmatpush.msra.mxu0 %v820
  %1468 = vmatpush.msra.mxu0 %v812
  %1469 = vmatpush.msra.mxu0 %v804
  %1470 = vmatpush.msra.mxu0 %v796
  %1471 = vmatpush.msra.mxu0 %v788
  %1472 = vmatpush.msra.mxu0 %v780
  %1473 = vmatpush.msra.mxu0 %v772
  %1474 = vmatpush.msra.mxu0 %v764
  %1475 = vmatpush.msra.mxu0 %v756
  %1476 = vmatpush.msra.mxu0 %v748
  %1477 = vmatpush.msra.mxu0 %v740
  %1478 = vmatpush.msra.mxu0 %v732
  %1479 = vmatpush.msra.mxu0 %v724
  %1480 = vmatpush.msra.mxu0 %v716
  %1481 = vmatpush.msra.mxu0 %v708
  %1482 = vmatpush.msra.mxu0 %v700
  %1483 = vmatmul.f32.gmra.mxu0 %v107
  %v1484 = vpop.f32.mrf.mxu0
  %v1485 = vadd.f32 %v1214, %v1484
  %1486 = vdwg.mxu0
  %1487 = vmatpush.msra.mxu0 %v948
  %1488 = vmatpush.msra.mxu0 %v940
  %1489 = vmatpush.msra.mxu0 %v932
  %1490 = vmatpush.msra.mxu0 %v924
  %1491 = vmatpush.msra.mxu0 %v916
  %1492 = vmatpush.msra.mxu0 %v908
  %1493 = vmatpush.msra.mxu0 %v900
  %1494 = vmatpush.msra.mxu0 %v892
  %1495 = vmatpush.msra.mxu0 %v884
  %1496 = vmatpush.msra.mxu0 %v876
  %1497 = vmatpush.msra.mxu0 %v868
  %1498 = vmatpush.msra.mxu0 %v860
  %1499 = vmatpush.msra.mxu0 %v852
  %1500 = vmatpush.msra.mxu0 %v844
  %1501 = vmatpush.msra.mxu0 %v836
  %1502 = vmatpush.msra.mxu0 %v828
  %1503 = vmatmul.f32.gmra.mxu0 %v108
  %v1504 = vpop.f32.mrf.mxu0
  %v1505 = vadd.f32 %v1485, %v1504
  %1506 = vdwg.mxu0
  %1507 = vmatpush.msra.mxu0 %v1076
  %1508 = vmatpush.msra.mxu0 %v1068
  %1509 = vmatpush.msra.mxu0 %v1060
  %1510 = vmatpush.msra.mxu0 %v1052
  %1511 = vmatpush.msra.mxu0 %v1044
  %1512 = vmatpush.msra.mxu0 %v1036
  %1513 = vmatpush.msra.mxu0 %v1028
  %1514 = vmatpush.msra.mxu0 %v1020
  %1515 = vmatpush.msra.mxu0 %v1012
  %1516 = vmatpush.msra.mxu0 %v1004
  %1517 = vmatpush.msra.mxu0 %v996
  %1518 = vmatpush.msra.mxu0 %v988
  %1519 = vmatpush.msra.mxu0 %v980
  %1520 = vmatpush.msra.mxu0 %v972
  %1521 = vmatpush.msra.mxu0 %v964
  %1522 = vmatpush.msra.mxu0 %v956
  %1523 = vmatmul.f32.gmra.mxu0 %v109
  %v1524 = vpop.f32.mrf.mxu0
  %v1525 = vadd.f32 %v1505, %v1524
  %1526 = vdwg.mxu0
  %1527 = vmatpush.msra.mxu0 %v1204
  %1528 = vmatpush.msra.mxu0 %v1196
  %1529 = vmatpush.msra.mxu0 %v1188
  %1530 = vmatpush.msra.mxu0 %v1180
  %1531 = vmatpush.msra.mxu0 %v1172
  %1532 = vmatpush.msra.mxu0 %v1164
  %1533 = vmatpush.msra.mxu0 %v1156
  %1534 = vmatpush.msra.mxu0 %v1148
  %1535 = vmatpush.msra.mxu0 %v1140
  %1536 = vmatpush.msra.mxu0 %v1132
  %1537 = vmatpush.msra.mxu0 %v1124
  %1538 = vmatpush.msra.mxu0 %v1116
  %1539 = vmatpush.msra.mxu0 %v1108
  %1540 = vmatpush.msra.mxu0 %v1100
  %1541 = vmatpush.msra.mxu0 %v1092
  %1542 = vmatpush.msra.mxu0 %v1084
  %1543 = vmatmul.f32.gmra.mxu0 %v110
  %v1544 = vpop.f32.mrf.mxu0
  %v1545 = vadd.f32 %v1525, %v1544
  %1546 = vdwg.mxu0
  %1547 = vmatpush.msra.mxu0 %v821
  %1548 = vmatpush.msra.mxu0 %v813
  %1549 = vmatpush.msra.mxu0 %v805
  %1550 = vmatpush.msra.mxu0 %v797
  %1551 = vmatpush.msra.mxu0 %v789
  %1552 = vmatpush.msra.mxu0 %v781
  %1553 = vmatpush.msra.mxu0 %v773
  %1554 = vmatpush.msra.mxu0 %v765
  %1555 = vmatpush.msra.mxu0 %v757
  %1556 = vmatpush.msra.mxu0 %v749
  %1557 = vmatpush.msra.mxu0 %v741
  %1558 = vmatpush.msra.mxu0 %v733
  %1559 = vmatpush.msra.mxu0 %v725
  %1560 = vmatpush.msra.mxu0 %v717
  %1561 = vmatpush.msra.mxu0 %v709
  %1562 = vmatpush.msra.mxu0 %v701
  %1563 = vmatmul.f32.gmra.mxu0 %v107
  %v1564 = vpop.f32.mrf.mxu0
  %v1565 = vadd.f32 %v1215, %v1564
  %1566 = vdwg.mxu0
  %1567 = vmatpush.msra.mxu0 %v949
  %1568 = vmatpush.msra.mxu0 %v941
  %1569 = vmatpush.msra.mxu0 %v933
  %1570 = vmatpush.msra.mxu0 %v925
  %1571 = vmatpush.msra.mxu0 %v917
  %1572 = vmatpush.msra.mxu0 %v909
  %1573 = vmatpush.msra.mxu0 %v901
  %1574 = vmatpush.msra.mxu0 %v893
  %1575 = vmatpush.msra.mxu0 %v885
  %1576 = vmatpush.msra.mxu0 %v877
  %1577 = vmatpush.msra.mxu0 %v869
  %1578 = vmatpush.msra.mxu0 %v861
  %1579 = vmatpush.msra.mxu0 %v853
  %1580 = vmatpush.msra.mxu0 %v845
  %1581 = vmatpush.msra.mxu0 %v837
  %1582 = vmatpush.msra.mxu0 %v829
  %1583 = vmatmul.f32.gmra.mxu0 %v108
  %v1584 = vpop.f32.mrf.mxu0
  %v1585 = vadd.f32 %v1565, %v1584
  %1586 = vdwg.mxu0
  %1587 = vmatpush.msra.mxu0 %v1077
  %1588 = vmatpush.msra.mxu0 %v1069
  %1589 = vmatpush.msra.mxu0 %v1061
  %1590 = vmatpush.msra.mxu0 %v1053
  %1591 = vmatpush.msra.mxu0 %v1045
  %1592 = vmatpush.msra.mxu0 %v1037
  %1593 = vmatpush.msra.mxu0 %v1029
  %1594 = vmatpush.msra.mxu0 %v1021
  %1595 = vmatpush.msra.mxu0 %v1013
  %1596 = vmatpush.msra.mxu0 %v1005
  %1597 = vmatpush.msra.mxu0 %v997
  %1598 = vmatpush.msra.mxu0 %v989
  %1599 = vmatpush.msra.mxu0 %v981
  %1600 = vmatpush.msra.mxu0 %v973
  %1601 = vmatpush.msra.mxu0 %v965
  %1602 = vmatpush.msra.mxu0 %v957
  %1603 = vmatmul.f32.gmra.mxu0 %v109
  %v1604 = vpop.f32.mrf.mxu0
  %v1605 = vadd.f32 %v1585, %v1604
  %1606 = vdwg.mxu0
  %1607 = vmatpush.msra.mxu0 %v1205
  %1608 = vmatpush.msra.mxu0 %v1197
  %1609 = vmatpush.msra.mxu0 %v1189
  %1610 = vmatpush.msra.mxu0 %v1181
  %1611 = vmatpush.msra.mxu0 %v1173
  %1612 = vmatpush.msra.mxu0 %v1165
  %1613 = vmatpush.msra.mxu0 %v1157
  %1614 = vmatpush.msra.mxu0 %v1149
  %1615 = vmatpush.msra.mxu0 %v1141
  %1616 = vmatpush.msra.mxu0 %v1133
  %1617 = vmatpush.msra.mxu0 %v1125
  %1618 = vmatpush.msra.mxu0 %v1117
  %1619 = vmatpush.msra.mxu0 %v1109
  %1620 = vmatpush.msra.mxu0 %v1101
  %1621 = vmatpush.msra.mxu0 %v1093
  %1622 = vmatpush.msra.mxu0 %v1085
  %1623 = vmatmul.f32.gmra.mxu0 %v110
  %v1624 = vpop.f32.mrf.mxu0
  %v1625 = vadd.f32 %v1605, %v1624
  %1626 = vdwg.mxu0
  %1627 = vmatpush.msra.mxu0 %v822
  %1628 = vmatpush.msra.mxu0 %v814
  %1629 = vmatpush.msra.mxu0 %v806
  %1630 = vmatpush.msra.mxu0 %v798
  %1631 = vmatpush.msra.mxu0 %v790
  %1632 = vmatpush.msra.mxu0 %v782
  %1633 = vmatpush.msra.mxu0 %v774
  %1634 = vmatpush.msra.mxu0 %v766
  %1635 = vmatpush.msra.mxu0 %v758
  %1636 = vmatpush.msra.mxu0 %v750
  %1637 = vmatpush.msra.mxu0 %v742
  %1638 = vmatpush.msra.mxu0 %v734
  %1639 = vmatpush.msra.mxu0 %v726
  %1640 = vmatpush.msra.mxu0 %v718
  %1641 = vmatpush.msra.mxu0 %v710
  %1642 = vmatpush.msra.mxu0 %v702
  %1643 = vmatmul.f32.gmra.mxu0 %v107
  %v1644 = vpop.f32.mrf.mxu0
  %v1645 = vadd.f32 %v1216, %v1644
  %1646 = vdwg.mxu0
  %1647 = vmatpush.msra.mxu0 %v950
  %1648 = vmatpush.msra.mxu0 %v942
  %1649 = vmatpush.msra.mxu0 %v934
  %1650 = vmatpush.msra.mxu0 %v926
  %1651 = vmatpush.msra.mxu0 %v918
  %1652 = vmatpush.msra.mxu0 %v910
  %1653 = vmatpush.msra.mxu0 %v902
  %1654 = vmatpush.msra.mxu0 %v894
  %1655 = vmatpush.msra.mxu0 %v886
  %1656 = vmatpush.msra.mxu0 %v878
  %1657 = vmatpush.msra.mxu0 %v870
  %1658 = vmatpush.msra.mxu0 %v862
  %1659 = vmatpush.msra.mxu0 %v854
  %1660 = vmatpush.msra.mxu0 %v846
  %1661 = vmatpush.msra.mxu0 %v838
  %1662 = vmatpush.msra.mxu0 %v830
  %1663 = vmatmul.f32.gmra.mxu0 %v108
  %v1664 = vpop.f32.mrf.mxu0
  %v1665 = vadd.f32 %v1645, %v1664
  %1666 = vdwg.mxu0
  %1667 = vmatpush.msra.mxu0 %v1078
  %1668 = vmatpush.msra.mxu0 %v1070
  %1669 = vmatpush.msra.mxu0 %v1062
  %1670 = vmatpush.msra.mxu0 %v1054
  %1671 = vmatpush.msra.mxu0 %v1046
  %1672 = vmatpush.msra.mxu0 %v1038
  %1673 = vmatpush.msra.mxu0 %v1030
  %1674 = vmatpush.msra.mxu0 %v1022
  %1675 = vmatpush.msra.mxu0 %v1014
  %1676 = vmatpush.msra.mxu0 %v1006
  %1677 = vmatpush.msra.mxu0 %v998
  %1678 = vmatpush.msra.mxu0 %v990
  %1679 = vmatpush.msra.mxu0 %v982
  %1680 = vmatpush.msra.mxu0 %v974
  %1681 = vmatpush.msra.mxu0 %v966
  %1682 = vmatpush.msra.mxu0 %v958
  %1683 = vmatmul.f32.gmra.mxu0 %v109
  %v1684 = vpop.f32.mrf.mxu0
  %v1685 = vadd.f32 %v1665, %v1684
  %1686 = vdwg.mxu0
  %1687 = vmatpush.msra.mxu0 %v1206
  %1688 = vmatpush.msra.mxu0 %v1198
  %1689 = vmatpush.msra.mxu0 %v1190
  %1690 = vmatpush.msra.mxu0 %v1182
  %1691 = vmatpush.msra.mxu0 %v1174
  %1692 = vmatpush.msra.mxu0 %v1166
  %1693 = vmatpush.msra.mxu0 %v1158
  %1694 = vmatpush.msra.mxu0 %v1150
  %1695 = vmatpush.msra.mxu0 %v1142
  %1696 = vmatpush.msra.mxu0 %v1134
  %1697 = vmatpush.msra.mxu0 %v1126
  %1698 = vmatpush.msra.mxu0 %v1118
  %1699 = vmatpush.msra.mxu0 %v1110
  %1700 = vmatpush.msra.mxu0 %v1102
  %1701 = vmatpush.msra.mxu0 %v1094
  %1702 = vmatpush.msra.mxu0 %v1086
  %1703 = vmatmul.f32.gmra.mxu0 %v110
  %v1704 = vpop.f32.mrf.mxu0
  %v1705 = vadd.f32 %v1685, %v1704
  %1706 = vdwg.mxu0
  %1707 = vmatpush.msra.mxu0 %v823
  %1708 = vmatpush.msra.mxu0 %v815
  %1709 = vmatpush.msra.mxu0 %v807
  %1710 = vmatpush.msra.mxu0 %v799
  %1711 = vmatpush.msra.mxu0 %v791
  %1712 = vmatpush.msra.mxu0 %v783
  %1713 = vmatpush.msra.mxu0 %v775
  %1714 = vmatpush.msra.mxu0 %v767
  %1715 = vmatpush.msra.mxu0 %v759
  %1716 = vmatpush.msra.mxu0 %v751
  %1717 = vmatpush.msra.mxu0 %v743
  %1718 = vmatpush.msra.mxu0 %v735
  %1719 = vmatpush.msra.mxu0 %v727
  %1720 = vmatpush.msra.mxu0 %v719
  %1721 = vmatpush.msra.mxu0 %v711
  %1722 = vmatpush.msra.mxu0 %v703
  %1723 = vmatmul.f32.gmra.mxu0 %v107
  %v1724 = vpop.f32.mrf.mxu0
  %v1725 = vadd.f32 %v1217, %v1724
  %1726 = vdwg.mxu0
  %1727 = vmatpush.msra.mxu0 %v951
  %1728 = vmatpush.msra.mxu0 %v943
  %1729 = vmatpush.msra.mxu0 %v935
  %1730 = vmatpush.msra.mxu0 %v927
  %1731 = vmatpush.msra.mxu0 %v919
  %1732 = vmatpush.msra.mxu0 %v911
  %1733 = vmatpush.msra.mxu0 %v903
  %1734 = vmatpush.msra.mxu0 %v895
  %1735 = vmatpush.msra.mxu0 %v887
  %1736 = vmatpush.msra.mxu0 %v879
  %1737 = vmatpush.msra.mxu0 %v871
  %1738 = vmatpush.msra.mxu0 %v863
  %1739 = vmatpush.msra.mxu0 %v855
  %1740 = vmatpush.msra.mxu0 %v847
  %1741 = vmatpush.msra.mxu0 %v839
  %1742 = vmatpush.msra.mxu0 %v831
  %1743 = vmatmul.f32.gmra.mxu0 %v108
  %v1744 = vpop.f32.mrf.mxu0
  %v1745 = vadd.f32 %v1725, %v1744
  %1746 = vdwg.mxu0
  %1747 = vmatpush.msra.mxu0 %v1079
  %1748 = vmatpush.msra.mxu0 %v1071
  %1749 = vmatpush.msra.mxu0 %v1063
  %1750 = vmatpush.msra.mxu0 %v1055
  %1751 = vmatpush.msra.mxu0 %v1047
  %1752 = vmatpush.msra.mxu0 %v1039
  %1753 = vmatpush.msra.mxu0 %v1031
  %1754 = vmatpush.msra.mxu0 %v1023
  %1755 = vmatpush.msra.mxu0 %v1015
  %1756 = vmatpush.msra.mxu0 %v1007
  %1757 = vmatpush.msra.mxu0 %v999
  %1758 = vmatpush.msra.mxu0 %v991
  %1759 = vmatpush.msra.mxu0 %v983
  %1760 = vmatpush.msra.mxu0 %v975
  %1761 = vmatpush.msra.mxu0 %v967
  %1762 = vmatpush.msra.mxu0 %v959
  %1763 = vmatmul.f32.gmra.mxu0 %v109
  %v1764 = vpop.f32.mrf.mxu0
  %v1765 = vadd.f32 %v1745, %v1764
  %1766 = vdwg.mxu0
  %1767 = vmatpush.msra.mxu0 %v1207
  %1768 = vmatpush.msra.mxu0 %v1199
  %1769 = vmatpush.msra.mxu0 %v1191
  %1770 = vmatpush.msra.mxu0 %v1183
  %1771 = vmatpush.msra.mxu0 %v1175
  %1772 = vmatpush.msra.mxu0 %v1167
  %1773 = vmatpush.msra.mxu0 %v1159
  %1774 = vmatpush.msra.mxu0 %v1151
  %1775 = vmatpush.msra.mxu0 %v1143
  %1776 = vmatpush.msra.mxu0 %v1135
  %1777 = vmatpush.msra.mxu0 %v1127
  %1778 = vmatpush.msra.mxu0 %v1119
  %1779 = vmatpush.msra.mxu0 %v1111
  %1780 = vmatpush.msra.mxu0 %v1103
  %1781 = vmatpush.msra.mxu0 %v1095
  %1782 = vmatpush.msra.mxu0 %v1087
  %1783 = vmatmul.f32.gmra.mxu0 %v110
  %v1784 = vpop.f32.mrf.mxu0
  %v1785 = vadd.f32 %v1765, %v1784
  %1786 = vdwg.mxu0
  %1787 = vmatpush.msra.mxu0 %v824
  %1788 = vmatpush.msra.mxu0 %v816
  %1789 = vmatpush.msra.mxu0 %v808
  %1790 = vmatpush.msra.mxu0 %v800
  %1791 = vmatpush.msra.mxu0 %v792
  %1792 = vmatpush.msra.mxu0 %v784
  %1793 = vmatpush.msra.mxu0 %v776
  %1794 = vmatpush.msra.mxu0 %v768
  %1795 = vmatpush.msra.mxu0 %v760
  %1796 = vmatpush.msra.mxu0 %v752
  %1797 = vmatpush.msra.mxu0 %v744
  %1798 = vmatpush.msra.mxu0 %v736
  %1799 = vmatpush.msra.mxu0 %v728
  %1800 = vmatpush.msra.mxu0 %v720
  %1801 = vmatpush.msra.mxu0 %v712
  %1802 = vmatpush.msra.mxu0 %v704
  %1803 = vmatmul.f32.gmra.mxu0 %v107
  %v1804 = vpop.f32.mrf.mxu0
  %v1805 = vadd.f32 %v1218, %v1804
  %1806 = vdwg.mxu0
  %1807 = vmatpush.msra.mxu0 %v952
  %1808 = vmatpush.msra.mxu0 %v944
  %1809 = vmatpush.msra.mxu0 %v936
  %1810 = vmatpush.msra.mxu0 %v928
  %1811 = vmatpush.msra.mxu0 %v920
  %1812 = vmatpush.msra.mxu0 %v912
  %1813 = vmatpush.msra.mxu0 %v904
  %1814 = vmatpush.msra.mxu0 %v896
  %1815 = vmatpush.msra.mxu0 %v888
  %1816 = vmatpush.msra.mxu0 %v880
  %1817 = vmatpush.msra.mxu0 %v872
  %1818 = vmatpush.msra.mxu0 %v864
  %1819 = vmatpush.msra.mxu0 %v856
  %1820 = vmatpush.msra.mxu0 %v848
  %1821 = vmatpush.msra.mxu0 %v840
  %1822 = vmatpush.msra.mxu0 %v832
  %1823 = vmatmul.f32.gmra.mxu0 %v108
  %v1824 = vpop.f32.mrf.mxu0
  %v1825 = vadd.f32 %v1805, %v1824
  %1826 = vdwg.mxu0
  %1827 = vmatpush.msra.mxu0 %v1080
  %1828 = vmatpush.msra.mxu0 %v1072
  %1829 = vmatpush.msra.mxu0 %v1064
  %1830 = vmatpush.msra.mxu0 %v1056
  %1831 = vmatpush.msra.mxu0 %v1048
  %1832 = vmatpush.msra.mxu0 %v1040
  %1833 = vmatpush.msra.mxu0 %v1032
  %1834 = vmatpush.msra.mxu0 %v1024
  %1835 = vmatpush.msra.mxu0 %v1016
  %1836 = vmatpush.msra.mxu0 %v1008
  %1837 = vmatpush.msra.mxu0 %v1000
  %1838 = vmatpush.msra.mxu0 %v992
  %1839 = vmatpush.msra.mxu0 %v984
  %1840 = vmatpush.msra.mxu0 %v976
  %1841 = vmatpush.msra.mxu0 %v968
  %1842 = vmatpush.msra.mxu0 %v960
  %1843 = vmatmul.f32.gmra.mxu0 %v109
  %v1844 = vpop.f32.mrf.mxu0
  %v1845 = vadd.f32 %v1825, %v1844
  %1846 = vdwg.mxu0
  %1847 = vmatpush.msra.mxu0 %v1208
  %1848 = vmatpush.msra.mxu0 %v1200
  %1849 = vmatpush.msra.mxu0 %v1192
  %1850 = vmatpush.msra.mxu0 %v1184
  %1851 = vmatpush.msra.mxu0 %v1176
  %1852 = vmatpush.msra.mxu0 %v1168
  %1853 = vmatpush.msra.mxu0 %v1160
  %1854 = vmatpush.msra.mxu0 %v1152
  %1855 = vmatpush.msra.mxu0 %v1144
  %1856 = vmatpush.msra.mxu0 %v1136
  %1857 = vmatpush.msra.mxu0 %v1128
  %1858 = vmatpush.msra.mxu0 %v1120
  %1859 = vmatpush.msra.mxu0 %v1112
  %1860 = vmatpush.msra.mxu0 %v1104
  %1861 = vmatpush.msra.mxu0 %v1096
  %1862 = vmatpush.msra.mxu0 %v1088
  %1863 = vmatmul.f32.gmra.mxu0 %v110
  %v1864 = vpop.f32.mrf.mxu0
  %v1865 = vadd.f32 %v1845, %v1864
  %1866 = vdwg.mxu0
  %1867 = vst [vmem:[%s7] sm:$0xff] %v455
  %1868 = vst [vmem:[%s7 + $0x8] sm:$0xff] %v535
  %1869 = vst [vmem:[%s7 + $0x10] sm:$0xff] %v615
  %1870 = vst [vmem:[%s7 + $0x18] sm:$0xff] %v695
  %1871 = vst [vmem:[%s8] sm:$0xff] %v1305
  %1872 = vst [vmem:[%s8 + $0x8] sm:$0xff] %v1385
  %1873 = vst [vmem:[%s8 + $0x10] sm:$0xff] %v1465
  %1874 = vst [vmem:[%s8 + $0x18] sm:$0xff] %v1545
  %1875 = vst [vmem:[%s8 + $0x20] sm:$0xff] %v1625
  %1876 = vst [vmem:[%s8 + $0x28] sm:$0xff] %v1705
  %1877 = vst [vmem:[%s8 + $0x30] sm:$0xff] %v1785
  %1878 = vst [vmem:[%s8 + $0x38] sm:$0xff] %v1865
  // Predicated region
  $region30: #{decoder.17} parent=0 // pred_check
    _
  $region31: #{decoder.17} parent=0 // pred_check_branch
    %1880 = sbr.rel (0) target = $region33
  $region32: #{decoder.17} parent=0 // pred_region
    _
  $region33: #{decoder.17} parent=0 // pred_fallthru
    _
  // Predicated region
  $region34: #{decoder.17} parent=0 // pred_check
    _
  $region35: #{decoder.17} parent=0 // pred_check_branch
    %1882 = sbr.rel (0) target = $region37
  $region36: #{decoder.17} parent=0 // pred_region
    _
  $region37: #{decoder.17} parent=0 // pred_fallthru
    _
  // Predicated region
  $region38: #{decoder.17} parent=0 // pred_check
    _
  $region39: #{decoder.17} parent=0 // pred_check_branch
    %1884 = sbr.rel (0) target = $region41
  $region40: #{decoder.17} parent=0 // pred_region
    _
  $region41: #{decoder.17} parent=0 // pred_fallthru
    _
  // Predicated region
  $region42: #{decoder.17} parent=0 // pred_check
    _
  $region43: #{decoder.17} parent=0 // pred_check_branch
    %1886 = sbr.rel (0) target = $region45
  $region44: #{decoder.17} parent=0 // pred_region
    _
  $region45: #{decoder.17} parent=0 // pred_fallthru
    _

// kernel: decoder.20
$region0: #{decoder.20}
  #allocation0 [shape = 'u32[]', space=smem, size = 0x4, offset = 0x4, fixed_abs, tag = 'smem constant byte address 0x4 - core index']
  #allocation1 [shape = 'u32[72,128]{1,0:T(1,128)}', space=vmem, size = 0x9000, scoped, tag = 'internal scratch']
  %s0 = inlined_call_operand.vmem [shape: f32[8,512], index: 0, kind: input, shape index: {}]
  %s1 = inlined_call_operand.vmem [shape: f32[1,512], index: 1, kind: input, shape index: {}]
  %s2 = inlined_call_operand.vmem [shape: f32[1,512], index: 2, kind: input, shape index: {}]
  %s3 = inlined_call_operand.hbm [shape: f32[512,512], index: 3, kind: input, shape index: {}]
  %s4 = inlined_call_operand.vmem [shape: f32[1,512], index: 4, kind: input, shape index: {}]
  %s5 = inlined_call_operand.vmem [shape: f32[8,512], index: 5, kind: output, shape index: {}]
  %s6 = sld [smem:[#allocation0]]
  $region34: #{decoder.20} parent=0
    _
  %s8 = ssub.s32 1, %s6
  %s9 = scalar_select 0, %s8, %s6
  $region1: #{decoder.20} parent=0
    #allocation2 [shape = 'u8[1048576]{0}', space=vmem, size = 0x100000, scoped, tag = 'input window, operand 3, single buffered']
    #allocation3 [shape = 's32[1]{0}', space=sflag, size = 0x4, scoped, tag = 'scoped memory for decoder.20']
    %10 = vsyncpa [#allocation3], 0
    // Predicated region
    $region2: #{decoder.20} parent=1 // pred_check
      _
    $region3: #{decoder.20} parent=1 // pred_check_branch
      %12 = sbr.rel (0) target = $region5
    $region4: #{decoder.20} parent=1 // pred_region
      _
    $region5: #{decoder.20} parent=1 // pred_fallthru
      _
    // Predicated region
    $region6: #{decoder.20} parent=1 // pred_check
      _
    $region7: #{decoder.20} parent=1 // pred_check_branch
      %14 = sbr.rel (0) target = $region9
    $region8: #{decoder.20} parent=1 // pred_region
      _
    $region9: #{decoder.20} parent=1 // pred_fallthru
      _
    // Predicated region
    $region10: #{decoder.20} parent=1 // pred_check
      _
    $region11: #{decoder.20} parent=1 // pred_check_branch
      %16 = sbr.rel (0) target = $region13
    $region12: #{decoder.20} parent=1 // pred_region
      _
    $region13: #{decoder.20} parent=1 // pred_fallthru
      _
    // Predicated region
    $region14: #{decoder.20} parent=1 // pred_check
      _
    $region15: #{decoder.20} parent=1 // pred_check_branch
      %18 = sbr.rel (0) target = $region17
    $region16: #{decoder.20} parent=1 // pred_region
      %20 = vsyncadd [#allocation3], 0
      %s21 = sshll.u32 %s3, 4
      %s22 = int_to_ptr.hbm [resolvable:$true] %s21
      %s23 = sshll.u32 [#allocation2], 4
      %s24 = int_to_ptr.vmem [resolvable:$true] %s23
      %29 = dma.hbm_to_vmem [thread:$0]  %s22, 32768, %s24, [#allocation3], 512, 512, 32
    $region17: #{decoder.20} parent=1 // pred_fallthru
      _
    // Predicated region
    $region18: #{decoder.20} parent=1 // pred_check
      _
    $region19: #{decoder.20} parent=1 // pred_check_branch
      %31 = sbr.rel (0) target = $region21
    $region20: #{decoder.20} parent=1 // pred_region
      _
    $region21: #{decoder.20} parent=1 // pred_fallthru
      _
    // Predicated region
    $region22: #{decoder.20} parent=1 // pred_check
      _
    $region23: #{decoder.20} parent=1 // pred_check_branch
      %33 = sbr.rel (0) target = $region25
    $region24: #{decoder.20} parent=1 // pred_region
      %35 = dma.done [#allocation3], 32768
    $region25: #{decoder.20} parent=1 // pred_fallthru
      _
    %v36 = vld [vmem:[%s0] sm:$0xff]
    %v37 = vld [vmem:[%s0 + $0x8] sm:$0xff]
    %v38 = vld [vmem:[%s0 + $0x10] sm:$0xff]
    %v39 = vld [vmem:[%s0 + $0x18] sm:$0xff]
    %v40 = vld [vmem:[%s1] sm:$0xf]
    %v41 = vld [vmem:[%s2] sm:$0xf]
    %v42 = vadd.f32 %v36, %v37
    %v43 = vadd.f32 %v42, %v38
    %v44 = vadd.f32 %v43, %v39
    %45 = vadd.xlane.f32.xlu0 %v44
    %v46 = vpop.xlane.xlu0 %45
    %v47 = vmul.f32 %v46, 0.001953125
    %v48 = vsub.f32 %v36, %v47
    %v49 = vsub.f32 %v37, %v47
    %v50 = vsub.f32 %v38, %v47
    %v51 = vsub.f32 %v39, %v47
    %v52 = vmul.f32 %v48, %v48
    %v53 = vmul.f32 %v49, %v49
    %v54 = vmul.f32 %v50, %v50
    %v55 = vmul.f32 %v51, %v51
    %v56 = vadd.f32 %v52, %v53
    %v57 = vadd.f32 %v56, %v54
    %v58 = vadd.f32 %v57, %v55
    %59 = vadd.xlane.f32.xlu0 %v58
    %v60 = vpop.xlane.xlu0 %59
    %v61 = vmul.f32 %v60, 0.0019569471
    %v62 = vrsqrt.pop %v61
    %v63 = vmul.f32 %v62, %v61
    %v64 = vmul.f32 %v63, %v62
    %v65 = vmul.f32 0.5, %v64
    %v66 = vsub.f32 1.5, %v65
    %v67 = vmul.f32 %v62, %v66
    %v68 = vmul.f32 %v61, %v67
    %vm69 = vcmp.eq.f32.partialorder %v61, inf
    %v70 = vsel %vm69, %v61, %v68
    %vm71 = vcmp.eq.f32.partialorder %v61, 0.0
    %v72 = vand.u32 %v61, 2147483648
    %v73 = vsel %vm71, %v72, %v70
    %v74 = vadd.f32 %v73, 1e-06
    %v75 = vrcp.pop %v74
    %v76 = vmul.f32 %v74, %v75
    %v77 = vsub.f32 1.0, %v76
    %v78 = vmul.f32 %v75, %v77
    %v79 = vadd.f32 %v75, %v78
    %vm80 = vweird.f32 %v74
    %vm81 = vweird.f32 %v75
    %vm82 = vmor %vm80, %vm81
    %v83 = vsel %vm82, %v75, %v79
    %v84 = vand.u32 2147483647, %v74
    %vm85 = vcmp.eq.f32.partialorder %v84, 8.507059e+37
    %v86 = vand.u32 %v74, 2147483648
    %v87 = vor.u32 1.1754944e-38, %v86
    %v88 = vsel %vm85, %v87, %v83
    %v90 = vperm.slane %v40, 0
    %v91 = vperm.slane %v40, 1
    %v92 = vperm.slane %v40, 2
    %v93 = vperm.slane %v40, 3
    %v98 = vmul.f32 %v90, %v48
    %v99 = vmul.f32 %v91, %v49
    %v100 = vmul.f32 %v92, %v50
    %v101 = vmul.f32 %v93, %v51
    %v102 = vmul.f32 %v98, %v88
    %v103 = vmul.f32 %v99, %v88
    %v104 = vmul.f32 %v100, %v88
    %v105 = vmul.f32 %v101, %v88
    %v107 = vperm.slane %v41, 0
    %v108 = vperm.slane %v41, 1
    %v109 = vperm.slane %v41, 2
    %v110 = vperm.slane %v41, 3
    %v115 = vadd.f32 %v102, %v107
    %v116 = vadd.f32 %v103, %v108
    %v117 = vadd.f32 %v104, %v109
    %v118 = vadd.f32 %v105, %v110
    %v119 = vld [vmem:[#allocation2] sm:$0xff]
    %v120 = vld [vmem:[#allocation2 + $0x8] sm:$0xff]
    %v121 = vld [vmem:[#allocation2 + $0x10] sm:$0xff]
    %v122 = vld [vmem:[#allocation2 + $0x18] sm:$0xff]
    %v123 = vld [vmem:[#allocation2 + $0x20] sm:$0xff]
    %v124 = vld [vmem:[#allocation2 + $0x28] sm:$0xff]
    %v125 = vld [vmem:[#allocation2 + $0x30] sm:$0xff]
    %v126 = vld [vmem:[#allocation2 + $0x38] sm:$0xff]
    %v127 = vld [vmem:[#allocation2 + $0x40] sm:$0xff]
    %v128 = vld [vmem:[#allocation2 + $0x48] sm:$0xff]
    %v129 = vld [vmem:[#allocation2 + $0x50] sm:$0xff]
    %v130 = vld [vmem:[#allocation2 + $0x58] sm:$0xff]
    %v131 = vld [vmem:[#allocation2 + $0x60] sm:$0xff]
    %v132 = vld [vmem:[#allocation2 + $0x68] sm:$0xff]
    %v133 = vld [vmem:[#allocation2 + $0x70] sm:$0xff]
    %v134 = vld [vmem:[#allocation2 + $0x78] sm:$0xff]
    %v135 = vld [vmem:[#allocation2 + $0x80] sm:$0xff]
    %v136 = vld [vmem:[#allocation2 + $0x88] sm:$0xff]
    %v137 = vld [vmem:[#allocation2 + $0x90] sm:$0xff]
    %v138 = vld [vmem:[#allocation2 + $0x98] sm:$0xff]
    %v139 = vld [vmem:[#allocation2 + $0xa0] sm:$0xff]
    %v140 = vld [vmem:[#allocation2 + $0xa8] sm:$0xff]
    %v141 = vld [vmem:[#allocation2 + $0xb0] sm:$0xff]
    %v142 = vld [vmem:[#allocation2 + $0xb8] sm:$0xff]
    %v143 = vld [vmem:[#allocation2 + $0xc0] sm:$0xff]
    %v144 = vld [vmem:[#allocation2 + $0xc8] sm:$0xff]
    %v145 = vld [vmem:[#allocation2 + $0xd0] sm:$0xff]
    %v146 = vld [vmem:[#allocation2 + $0xd8] sm:$0xff]
    %v147 = vld [vmem:[#allocation2 + $0xe0] sm:$0xff]
    %v148 = vld [vmem:[#allocation2 + $0xe8] sm:$0xff]
    %v149 = vld [vmem:[#allocation2 + $0xf0] sm:$0xff]
    %v150 = vld [vmem:[#allocation2 + $0xf8] sm:$0xff]
    %v151 = vld [vmem:[#allocation2 + $0x100] sm:$0xff]
    %v152 = vld [vmem:[#allocation2 + $0x108] sm:$0xff]
    %v153 = vld [vmem:[#allocation2 + $0x110] sm:$0xff]
    %v154 = vld [vmem:[#allocation2 + $0x118] sm:$0xff]
    %v155 = vld [vmem:[#allocation2 + $0x120] sm:$0xff]
    %v156 = vld [vmem:[#allocation2 + $0x128] sm:$0xff]
    %v157 = vld [vmem:[#allocation2 + $0x130] sm:$0xff]
    %v158 = vld [vmem:[#allocation2 + $0x138] sm:$0xff]
    %v159 = vld [vmem:[#allocation2 + $0x140] sm:$0xff]
    %v160 = vld [vmem:[#allocation2 + $0x148] sm:$0xff]
    %v161 = vld [vmem:[#allocation2 + $0x150] sm:$0xff]
    %v162 = vld [vmem:[#allocation2 + $0x158] sm:$0xff]
    %v163 = vld [vmem:[#allocation2 + $0x160] sm:$0xff]
    %v164 = vld [vmem:[#allocation2 + $0x168] sm:$0xff]
    %v165 = vld [vmem:[#allocation2 + $0x170] sm:$0xff]
    %v166 = vld [vmem:[#allocation2 + $0x178] sm:$0xff]
    %v167 = vld [vmem:[#allocation2 + $0x180] sm:$0xff]
    %v168 = vld [vmem:[#allocation2 + $0x188] sm:$0xff]
    %v169 = vld [vmem:[#allocation2 + $0x190] sm:$0xff]
    %v170 = vld [vmem:[#allocation2 + $0x198] sm:$0xff]
    %v171 = vld [vmem:[#allocation2 + $0x1a0] sm:$0xff]
    %v172 = vld [vmem:[#allocation2 + $0x1a8] sm:$0xff]
    %v173 = vld [vmem:[#allocation2 + $0x1b0] sm:$0xff]
    %v174 = vld [vmem:[#allocation2 + $0x1b8] sm:$0xff]
    %v175 = vld [vmem:[#allocation2 + $0x1c0] sm:$0xff]
    %v176 = vld [vmem:[#allocation2 + $0x1c8] sm:$0xff]
    %v177 = vld [vmem:[#allocation2 + $0x1d0] sm:$0xff]
    %v178 = vld [vmem:[#allocation2 + $0x1d8] sm:$0xff]
    %v179 = vld [vmem:[#allocation2 + $0x1e0] sm:$0xff]
    %v180 = vld [vmem:[#allocation2 + $0x1e8] sm:$0xff]
    %v181 = vld [vmem:[#allocation2 + $0x1f0] sm:$0xff]
    %v182 = vld [vmem:[#allocation2 + $0x1f8] sm:$0xff]
    %v183 = vld [vmem:[#allocation2 + $0x200] sm:$0xff]
    %v184 = vld [vmem:[#allocation2 + $0x208] sm:$0xff]
    %v185 = vld [vmem:[#allocation2 + $0x210] sm:$0xff]
    %v186 = vld [vmem:[#allocation2 + $0x218] sm:$0xff]
    %v187 = vld [vmem:[#allocation2 + $0x220] sm:$0xff]
    %v188 = vld [vmem:[#allocation2 + $0x228] sm:$0xff]
    %v189 = vld [vmem:[#allocation2 + $0x230] sm:$0xff]
    %v190 = vld [vmem:[#allocation2 + $0x238] sm:$0xff]
    %v191 = vld [vmem:[#allocation2 + $0x240] sm:$0xff]
    %v192 = vld [vmem:[#allocation2 + $0x248] sm:$0xff]
    %v193 = vld [vmem:[#allocation2 + $0x250] sm:$0xff]
    %v194 = vld [vmem:[#allocation2 + $0x258] sm:$0xff]
    %v195 = vld [vmem:[#allocation2 + $0x260] sm:$0xff]
    %v196 = vld [vmem:[#allocation2 + $0x268] sm:$0xff]
    %v197 = vld [vmem:[#allocation2 + $0x270] sm:$0xff]
    %v198 = vld [vmem:[#allocation2 + $0x278] sm:$0xff]
    %v199 = vld [vmem:[#allocation2 + $0x280] sm:$0xff]
    %v200 = vld [vmem:[#allocation2 + $0x288] sm:$0xff]
    %v201 = vld [vmem:[#allocation2 + $0x290] sm:$0xff]
    %v202 = vld [vmem:[#allocation2 + $0x298] sm:$0xff]
    %v203 = vld [vmem:[#allocation2 + $0x2a0] sm:$0xff]
    %v204 = vld [vmem:[#allocation2 + $0x2a8] sm:$0xff]
    %v205 = vld [vmem:[#allocation2 + $0x2b0] sm:$0xff]
    %v206 = vld [vmem:[#allocation2 + $0x2b8] sm:$0xff]
    %v207 = vld [vmem:[#allocation2 + $0x2c0] sm:$0xff]
    %v208 = vld [vmem:[#allocation2 + $0x2c8] sm:$0xff]
    %v209 = vld [vmem:[#allocation2 + $0x2d0] sm:$0xff]
    %v210 = vld [vmem:[#allocation2 + $0x2d8] sm:$0xff]
    %v211 = vld [vmem:[#allocation2 + $0x2e0] sm:$0xff]
    %v212 = vld [vmem:[#allocation2 + $0x2e8] sm:$0xff]
    %v213 = vld [vmem:[#allocation2 + $0x2f0] sm:$0xff]
    %v214 = vld [vmem:[#allocation2 + $0x2f8] sm:$0xff]
    %v215 = vld [vmem:[#allocation2 + $0x300] sm:$0xff]
    %v216 = vld [vmem:[#allocation2 + $0x308] sm:$0xff]
    %v217 = vld [vmem:[#allocation2 + $0x310] sm:$0xff]
    %v218 = vld [vmem:[#allocation2 + $0x318] sm:$0xff]
    %v219 = vld [vmem:[#allocation2 + $0x320] sm:$0xff]
    %v220 = vld [vmem:[#allocation2 + $0x328] sm:$0xff]
    %v221 = vld [vmem:[#allocation2 + $0x330] sm:$0xff]
    %v222 = vld [vmem:[#allocation2 + $0x338] sm:$0xff]
    %v223 = vld [vmem:[#allocation2 + $0x340] sm:$0xff]
    %v224 = vld [vmem:[#allocation2 + $0x348] sm:$0xff]
    %v225 = vld [vmem:[#allocation2 + $0x350] sm:$0xff]
    %v226 = vld [vmem:[#allocation2 + $0x358] sm:$0xff]
    %v227 = vld [vmem:[#allocation2 + $0x360] sm:$0xff]
    %v228 = vld [vmem:[#allocation2 + $0x368] sm:$0xff]
    %v229 = vld [vmem:[#allocation2 + $0x370] sm:$0xff]
    %v230 = vld [vmem:[#allocation2 + $0x378] sm:$0xff]
    %v231 = vld [vmem:[#allocation2 + $0x380] sm:$0xff]
    %v232 = vld [vmem:[#allocation2 + $0x388] sm:$0xff]
    %v233 = vld [vmem:[#allocation2 + $0x390] sm:$0xff]
    %v234 = vld [vmem:[#allocation2 + $0x398] sm:$0xff]
    %v235 = vld [vmem:[#allocation2 + $0x3a0] sm:$0xff]
    %v236 = vld [vmem:[#allocation2 + $0x3a8] sm:$0xff]
    %v237 = vld [vmem:[#allocation2 + $0x3b0] sm:$0xff]
    %v238 = vld [vmem:[#allocation2 + $0x3b8] sm:$0xff]
    %v239 = vld [vmem:[#allocation2 + $0x3c0] sm:$0xff]
    %v240 = vld [vmem:[#allocation2 + $0x3c8] sm:$0xff]
    %v241 = vld [vmem:[#allocation2 + $0x3d0] sm:$0xff]
    %v242 = vld [vmem:[#allocation2 + $0x3d8] sm:$0xff]
    %v243 = vld [vmem:[#allocation2 + $0x3e0] sm:$0xff]
    %v244 = vld [vmem:[#allocation2 + $0x3e8] sm:$0xff]
    %v245 = vld [vmem:[#allocation2 + $0x3f0] sm:$0xff]
    %v246 = vld [vmem:[#allocation2 + $0x3f8] sm:$0xff]
    %v247 = vld [vmem:[#allocation2 + $0x400] sm:$0xff]
    %v248 = vld [vmem:[#allocation2 + $0x408] sm:$0xff]
    %v249 = vld [vmem:[#allocation2 + $0x410] sm:$0xff]
    %v250 = vld [vmem:[#allocation2 + $0x418] sm:$0xff]
    %v251 = vld [vmem:[#allocation2 + $0x420] sm:$0xff]
    %v252 = vld [vmem:[#allocation2 + $0x428] sm:$0xff]
    %v253 = vld [vmem:[#allocation2 + $0x430] sm:$0xff]
    %v254 = vld [vmem:[#allocation2 + $0x438] sm:$0xff]
    %v255 = vld [vmem:[#allocation2 + $0x440] sm:$0xff]
    %v256 = vld [vmem:[#allocation2 + $0x448] sm:$0xff]
    %v257 = vld [vmem:[#allocation2 + $0x450] sm:$0xff]
    %v258 = vld [vmem:[#allocation2 + $0x458] sm:$0xff]
    %v259 = vld [vmem:[#allocation2 + $0x460] sm:$0xff]
    %v260 = vld [vmem:[#allocation2 + $0x468] sm:$0xff]
    %v261 = vld [vmem:[#allocation2 + $0x470] sm:$0xff]
    %v262 = vld [vmem:[#allocation2 + $0x478] sm:$0xff]
    %v263 = vld [vmem:[#allocation2 + $0x480] sm:$0xff]
    %v264 = vld [vmem:[#allocation2 + $0x488] sm:$0xff]
    %v265 = vld [vmem:[#allocation2 + $0x490] sm:$0xff]
    %v266 = vld [vmem:[#allocation2 + $0x498] sm:$0xff]
    %v267 = vld [vmem:[#allocation2 + $0x4a0] sm:$0xff]
    %v268 = vld [vmem:[#allocation2 + $0x4a8] sm:$0xff]
    %v269 = vld [vmem:[#allocation2 + $0x4b0] sm:$0xff]
    %v270 = vld [vmem:[#allocation2 + $0x4b8] sm:$0xff]
    %v271 = vld [vmem:[#allocation2 + $0x4c0] sm:$0xff]
    %v272 = vld [vmem:[#allocation2 + $0x4c8] sm:$0xff]
    %v273 = vld [vmem:[#allocation2 + $0x4d0] sm:$0xff]
    %v274 = vld [vmem:[#allocation2 + $0x4d8] sm:$0xff]
    %v275 = vld [vmem:[#allocation2 + $0x4e0] sm:$0xff]
    %v276 = vld [vmem:[#allocation2 + $0x4e8] sm:$0xff]
    %v277 = vld [vmem:[#allocation2 + $0x4f0] sm:$0xff]
    %v278 = vld [vmem:[#allocation2 + $0x4f8] sm:$0xff]
    %v279 = vld [vmem:[#allocation2 + $0x500] sm:$0xff]
    %v280 = vld [vmem:[#allocation2 + $0x508] sm:$0xff]
    %v281 = vld [vmem:[#allocation2 + $0x510] sm:$0xff]
    %v282 = vld [vmem:[#allocation2 + $0x518] sm:$0xff]
    %v283 = vld [vmem:[#allocation2 + $0x520] sm:$0xff]
    %v284 = vld [vmem:[#allocation2 + $0x528] sm:$0xff]
    %v285 = vld [vmem:[#allocation2 + $0x530] sm:$0xff]
    %v286 = vld [vmem:[#allocation2 + $0x538] sm:$0xff]
    %v287 = vld [vmem:[#allocation2 + $0x540] sm:$0xff]
    %v288 = vld [vmem:[#allocation2 + $0x548] sm:$0xff]
    %v289 = vld [vmem:[#allocation2 + $0x550] sm:$0xff]
    %v290 = vld [vmem:[#allocation2 + $0x558] sm:$0xff]
    %v291 = vld [vmem:[#allocation2 + $0x560] sm:$0xff]
    %v292 = vld [vmem:[#allocation2 + $0x568] sm:$0xff]
    %v293 = vld [vmem:[#allocation2 + $0x570] sm:$0xff]
    %v294 = vld [vmem:[#allocation2 + $0x578] sm:$0xff]
    %v295 = vld [vmem:[#allocation2 + $0x580] sm:$0xff]
    %v296 = vld [vmem:[#allocation2 + $0x588] sm:$0xff]
    %v297 = vld [vmem:[#allocation2 + $0x590] sm:$0xff]
    %v298 = vld [vmem:[#allocation2 + $0x598] sm:$0xff]
    %v299 = vld [vmem:[#allocation2 + $0x5a0] sm:$0xff]
    %v300 = vld [vmem:[#allocation2 + $0x5a8] sm:$0xff]
    %v301 = vld [vmem:[#allocation2 + $0x5b0] sm:$0xff]
    %v302 = vld [vmem:[#allocation2 + $0x5b8] sm:$0xff]
    %v303 = vld [vmem:[#allocation2 + $0x5c0] sm:$0xff]
    %v304 = vld [vmem:[#allocation2 + $0x5c8] sm:$0xff]
    %v305 = vld [vmem:[#allocation2 + $0x5d0] sm:$0xff]
    %v306 = vld [vmem:[#allocation2 + $0x5d8] sm:$0xff]
    %v307 = vld [vmem:[#allocation2 + $0x5e0] sm:$0xff]
    %v308 = vld [vmem:[#allocation2 + $0x5e8] sm:$0xff]
    %v309 = vld [vmem:[#allocation2 + $0x5f0] sm:$0xff]
    %v310 = vld [vmem:[#allocation2 + $0x5f8] sm:$0xff]
    %v311 = vld [vmem:[#allocation2 + $0x600] sm:$0xff]
    %v312 = vld [vmem:[#allocation2 + $0x608] sm:$0xff]
    %v313 = vld [vmem:[#allocation2 + $0x610] sm:$0xff]
    %v314 = vld [vmem:[#allocation2 + $0x618] sm:$0xff]
    %v315 = vld [vmem:[#allocation2 + $0x620] sm:$0xff]
    %v316 = vld [vmem:[#allocation2 + $0x628] sm:$0xff]
    %v317 = vld [vmem:[#allocation2 + $0x630] sm:$0xff]
    %v318 = vld [vmem:[#allocation2 + $0x638] sm:$0xff]
    %v319 = vld [vmem:[#allocation2 + $0x640] sm:$0xff]
    %v320 = vld [vmem:[#allocation2 + $0x648] sm:$0xff]
    %v321 = vld [vmem:[#allocation2 + $0x650] sm:$0xff]
    %v322 = vld [vmem:[#allocation2 + $0x658] sm:$0xff]
    %v323 = vld [vmem:[#allocation2 + $0x660] sm:$0xff]
    %v324 = vld [vmem:[#allocation2 + $0x668] sm:$0xff]
    %v325 = vld [vmem:[#allocation2 + $0x670] sm:$0xff]
    %v326 = vld [vmem:[#allocation2 + $0x678] sm:$0xff]
    %v327 = vld [vmem:[#allocation2 + $0x680] sm:$0xff]
    %v328 = vld [vmem:[#allocation2 + $0x688] sm:$0xff]
    %v329 = vld [vmem:[#allocation2 + $0x690] sm:$0xff]
    %v330 = vld [vmem:[#allocation2 + $0x698] sm:$0xff]
    %v331 = vld [vmem:[#allocation2 + $0x6a0] sm:$0xff]
    %v332 = vld [vmem:[#allocation2 + $0x6a8] sm:$0xff]
    %v333 = vld [vmem:[#allocation2 + $0x6b0] sm:$0xff]
    %v334 = vld [vmem:[#allocation2 + $0x6b8] sm:$0xff]
    %v335 = vld [vmem:[#allocation2 + $0x6c0] sm:$0xff]
    %v336 = vld [vmem:[#allocation2 + $0x6c8] sm:$0xff]
    %v337 = vld [vmem:[#allocation2 + $0x6d0] sm:$0xff]
    %v338 = vld [vmem:[#allocation2 + $0x6d8] sm:$0xff]
    %v339 = vld [vmem:[#allocation2 + $0x6e0] sm:$0xff]
    %v340 = vld [vmem:[#allocation2 + $0x6e8] sm:$0xff]
    %v341 = vld [vmem:[#allocation2 + $0x6f0] sm:$0xff]
    %v342 = vld [vmem:[#allocation2 + $0x6f8] sm:$0xff]
    %v343 = vld [vmem:[#allocation2 + $0x700] sm:$0xff]
    %v344 = vld [vmem:[#allocation2 + $0x708] sm:$0xff]
    %v345 = vld [vmem:[#allocation2 + $0x710] sm:$0xff]
    %v346 = vld [vmem:[#allocation2 + $0x718] sm:$0xff]
    %v347 = vld [vmem:[#allocation2 + $0x720] sm:$0xff]
    %v348 = vld [vmem:[#allocation2 + $0x728] sm:$0xff]
    %v349 = vld [vmem:[#allocation2 + $0x730] sm:$0xff]
    %v350 = vld [vmem:[#allocation2 + $0x738] sm:$0xff]
    %v351 = vld [vmem:[#allocation2 + $0x740] sm:$0xff]
    %v352 = vld [vmem:[#allocation2 + $0x748] sm:$0xff]
    %v353 = vld [vmem:[#allocation2 + $0x750] sm:$0xff]
    %v354 = vld [vmem:[#allocation2 + $0x758] sm:$0xff]
    %v355 = vld [vmem:[#allocation2 + $0x760] sm:$0xff]
    %v356 = vld [vmem:[#allocation2 + $0x768] sm:$0xff]
    %v357 = vld [vmem:[#allocation2 + $0x770] sm:$0xff]
    %v358 = vld [vmem:[#allocation2 + $0x778] sm:$0xff]
    %v359 = vld [vmem:[#allocation2 + $0x780] sm:$0xff]
    %v360 = vld [vmem:[#allocation2 + $0x788] sm:$0xff]
    %v361 = vld [vmem:[#allocation2 + $0x790] sm:$0xff]
    %v362 = vld [vmem:[#allocation2 + $0x798] sm:$0xff]
    %v363 = vld [vmem:[#allocation2 + $0x7a0] sm:$0xff]
    %v364 = vld [vmem:[#allocation2 + $0x7a8] sm:$0xff]
    %v365 = vld [vmem:[#allocation2 + $0x7b0] sm:$0xff]
    %v366 = vld [vmem:[#allocation2 + $0x7b8] sm:$0xff]
    %v367 = vld [vmem:[#allocation2 + $0x7c0] sm:$0xff]
    %v368 = vld [vmem:[#allocation2 + $0x7c8] sm:$0xff]
    %v369 = vld [vmem:[#allocation2 + $0x7d0] sm:$0xff]
    %v370 = vld [vmem:[#allocation2 + $0x7d8] sm:$0xff]
    %v371 = vld [vmem:[#allocation2 + $0x7e0] sm:$0xff]
    %v372 = vld [vmem:[#allocation2 + $0x7e8] sm:$0xff]
    %v373 = vld [vmem:[#allocation2 + $0x7f0] sm:$0xff]
    %v374 = vld [vmem:[#allocation2 + $0x7f8] sm:$0xff]
    %v375 = vld [vmem:[%s4] sm:$0xf]
    %v377 = vperm.slane %v375, 0
    %v378 = vperm.slane %v375, 1
    %v379 = vperm.slane %v375, 2
    %v380 = vperm.slane %v375, 3
    %385 = vmatpush.msra.mxu0 %v179
    %386 = vmatpush.msra.mxu0 %v175
    %387 = vmatpush.msra.mxu0 %v171
    %388 = vmatpush.msra.mxu0 %v167
    %389 = vmatpush.msra.mxu0 %v163
    %390 = vmatpush.msra.mxu0 %v159
    %391 = vmatpush.msra.mxu0 %v155
    %392 = vmatpush.msra.mxu0 %v151
    %393 = vmatpush.msra.mxu0 %v147
    %394 = vmatpush.msra.mxu0 %v143
    %395 = vmatpush.msra.mxu0 %v139
    %396 = vmatpush.msra.mxu0 %v135
    %397 = vmatpush.msra.mxu0 %v131
    %398 = vmatpush.msra.mxu0 %v127
    %399 = vmatpush.msra.mxu0 %v123
    %400 = vmatpush.msra.mxu0 %v119
    %401 = vmatmul.f32.gmra.mxu0 %v115
    %v402 = vpop.f32.mrf.mxu0
    %v403 = vadd.f32 %v377, %v402
    %404 = vdwg.mxu0
    %405 = vmatpush.msra.mxu0 %v243
    %406 = vmatpush.msra.mxu0 %v239
    %407 = vmatpush.msra.mxu0 %v235
    %408 = vmatpush.msra.mxu0 %v231
    %409 = vmatpush.msra.mxu0 %v227
    %410 = vmatpush.msra.mxu0 %v223
    %411 = vmatpush.msra.mxu0 %v219
    %412 = vmatpush.msra.mxu0 %v215
    %413 = vmatpush.msra.mxu0 %v211
    %414 = vmatpush.msra.mxu0 %v207
    %415 = vmatpush.msra.mxu0 %v203
    %416 = vmatpush.msra.mxu0 %v199
    %417 = vmatpush.msra.mxu0 %v195
    %418 = vmatpush.msra.mxu0 %v191
    %419 = vmatpush.msra.mxu0 %v187
    %420 = vmatpush.msra.mxu0 %v183
    %421 = vmatmul.f32.gmra.mxu0 %v116
    %v422 = vpop.f32.mrf.mxu0
    %v423 = vadd.f32 %v403, %v422
    %424 = vdwg.mxu0
    %425 = vmatpush.msra.mxu0 %v307
    %426 = vmatpush.msra.mxu0 %v303
    %427 = vmatpush.msra.mxu0 %v299
    %428 = vmatpush.msra.mxu0 %v295
    %429 = vmatpush.msra.mxu0 %v291
    %430 = vmatpush.msra.mxu0 %v287
    %431 = vmatpush.msra.mxu0 %v283
    %432 = vmatpush.msra.mxu0 %v279
    %433 = vmatpush.msra.mxu0 %v275
    %434 = vmatpush.msra.mxu0 %v271
    %435 = vmatpush.msra.mxu0 %v267
    %436 = vmatpush.msra.mxu0 %v263
    %437 = vmatpush.msra.mxu0 %v259
    %438 = vmatpush.msra.mxu0 %v255
    %439 = vmatpush.msra.mxu0 %v251
    %440 = vmatpush.msra.mxu0 %v247
    %441 = vmatmul.f32.gmra.mxu0 %v117
    %v442 = vpop.f32.mrf.mxu0
    %v443 = vadd.f32 %v423, %v442
    %444 = vdwg.mxu0
    %445 = vmatpush.msra.mxu0 %v371
    %446 = vmatpush.msra.mxu0 %v367
    %447 = vmatpush.msra.mxu0 %v363
    %448 = vmatpush.msra.mxu0 %v359
    %449 = vmatpush.msra.mxu0 %v355
    %450 = vmatpush.msra.mxu0 %v351
    %451 = vmatpush.msra.mxu0 %v347
    %452 = vmatpush.msra.mxu0 %v343
    %453 = vmatpush.msra.mxu0 %v339
    %454 = vmatpush.msra.mxu0 %v335
    %455 = vmatpush.msra.mxu0 %v331
    %456 = vmatpush.msra.mxu0 %v327
    %457 = vmatpush.msra.mxu0 %v323
    %458 = vmatpush.msra.mxu0 %v319
    %459 = vmatpush.msra.mxu0 %v315
    %460 = vmatpush.msra.mxu0 %v311
    %461 = vmatmul.f32.gmra.mxu0 %v118
    %v462 = vpop.f32.mrf.mxu0
    %v463 = vadd.f32 %v443, %v462
    %464 = vdwg.mxu0
    %465 = vmatpush.msra.mxu0 %v180
    %466 = vmatpush.msra.mxu0 %v176
    %467 = vmatpush.msra.mxu0 %v172
    %468 = vmatpush.msra.mxu0 %v168
    %469 = vmatpush.msra.mxu0 %v164
    %470 = vmatpush.msra.mxu0 %v160
    %471 = vmatpush.msra.mxu0 %v156
    %472 = vmatpush.msra.mxu0 %v152
    %473 = vmatpush.msra.mxu0 %v148
    %474 = vmatpush.msra.mxu0 %v144
    %475 = vmatpush.msra.mxu0 %v140
    %476 = vmatpush.msra.mxu0 %v136
    %477 = vmatpush.msra.mxu0 %v132
    %478 = vmatpush.msra.mxu0 %v128
    %479 = vmatpush.msra.mxu0 %v124
    %480 = vmatpush.msra.mxu0 %v120
    %481 = vmatmul.f32.gmra.mxu0 %v115
    %v482 = vpop.f32.mrf.mxu0
    %v483 = vadd.f32 %v378, %v482
    %484 = vdwg.mxu0
    %485 = vmatpush.msra.mxu0 %v244
    %486 = vmatpush.msra.mxu0 %v240
    %487 = vmatpush.msra.mxu0 %v236
    %488 = vmatpush.msra.mxu0 %v232
    %489 = vmatpush.msra.mxu0 %v228
    %490 = vmatpush.msra.mxu0 %v224
    %491 = vmatpush.msra.mxu0 %v220
    %492 = vmatpush.msra.mxu0 %v216
    %493 = vmatpush.msra.mxu0 %v212
    %494 = vmatpush.msra.mxu0 %v208
    %495 = vmatpush.msra.mxu0 %v204
    %496 = vmatpush.msra.mxu0 %v200
    %497 = vmatpush.msra.mxu0 %v196
    %498 = vmatpush.msra.mxu0 %v192
    %499 = vmatpush.msra.mxu0 %v188
    %500 = vmatpush.msra.mxu0 %v184
    %501 = vmatmul.f32.gmra.mxu0 %v116
    %v502 = vpop.f32.mrf.mxu0
    %v503 = vadd.f32 %v483, %v502
    %504 = vdwg.mxu0
    %505 = vmatpush.msra.mxu0 %v308
    %506 = vmatpush.msra.mxu0 %v304
    %507 = vmatpush.msra.mxu0 %v300
    %508 = vmatpush.msra.mxu0 %v296
    %509 = vmatpush.msra.mxu0 %v292
    %510 = vmatpush.msra.mxu0 %v288
    %511 = vmatpush.msra.mxu0 %v284
    %512 = vmatpush.msra.mxu0 %v280
    %513 = vmatpush.msra.mxu0 %v276
    %514 = vmatpush.msra.mxu0 %v272
    %515 = vmatpush.msra.mxu0 %v268
    %516 = vmatpush.msra.mxu0 %v264
    %517 = vmatpush.msra.mxu0 %v260
    %518 = vmatpush.msra.mxu0 %v256
    %519 = vmatpush.msra.mxu0 %v252
    %520 = vmatpush.msra.mxu0 %v248
    %521 = vmatmul.f32.gmra.mxu0 %v117
    %v522 = vpop.f32.mrf.mxu0
    %v523 = vadd.f32 %v503, %v522
    %524 = vdwg.mxu0
    %525 = vmatpush.msra.mxu0 %v372
    %526 = vmatpush.msra.mxu0 %v368
    %527 = vmatpush.msra.mxu0 %v364
    %528 = vmatpush.msra.mxu0 %v360
    %529 = vmatpush.msra.mxu0 %v356
    %530 = vmatpush.msra.mxu0 %v352
    %531 = vmatpush.msra.mxu0 %v348
    %532 = vmatpush.msra.mxu0 %v344
    %533 = vmatpush.msra.mxu0 %v340
    %534 = vmatpush.msra.mxu0 %v336
    %535 = vmatpush.msra.mxu0 %v332
    %536 = vmatpush.msra.mxu0 %v328
    %537 = vmatpush.msra.mxu0 %v324
    %538 = vmatpush.msra.mxu0 %v320
    %539 = vmatpush.msra.mxu0 %v316
    %540 = vmatpush.msra.mxu0 %v312
    %541 = vmatmul.f32.gmra.mxu0 %v118
    %v542 = vpop.f32.mrf.mxu0
    %v543 = vadd.f32 %v523, %v542
    %544 = vdwg.mxu0
    %545 = vmatpush.msra.mxu0 %v181
    %546 = vmatpush.msra.mxu0 %v177
    %547 = vmatpush.msra.mxu0 %v173
    %548 = vmatpush.msra.mxu0 %v169
    %549 = vmatpush.msra.mxu0 %v165
    %550 = vmatpush.msra.mxu0 %v161
    %551 = vmatpush.msra.mxu0 %v157
    %552 = vmatpush.msra.mxu0 %v153
    %553 = vmatpush.msra.mxu0 %v149
    %554 = vmatpush.msra.mxu0 %v145
    %555 = vmatpush.msra.mxu0 %v141
    %556 = vmatpush.msra.mxu0 %v137
    %557 = vmatpush.msra.mxu0 %v133
    %558 = vmatpush.msra.mxu0 %v129
    %559 = vmatpush.msra.mxu0 %v125
    %560 = vmatpush.msra.mxu0 %v121
    %561 = vmatmul.f32.gmra.mxu0 %v115
    %v562 = vpop.f32.mrf.mxu0
    %v563 = vadd.f32 %v379, %v562
    %564 = vdwg.mxu0
    %565 = vmatpush.msra.mxu0 %v245
    %566 = vmatpush.msra.mxu0 %v241
    %567 = vmatpush.msra.mxu0 %v237
    %568 = vmatpush.msra.mxu0 %v233
    %569 = vmatpush.msra.mxu0 %v229
    %570 = vmatpush.msra.mxu0 %v225
    %571 = vmatpush.msra.mxu0 %v221
    %572 = vmatpush.msra.mxu0 %v217
    %573 = vmatpush.msra.mxu0 %v213
    %574 = vmatpush.msra.mxu0 %v209
    %575 = vmatpush.msra.mxu0 %v205
    %576 = vmatpush.msra.mxu0 %v201
    %577 = vmatpush.msra.mxu0 %v197
    %578 = vmatpush.msra.mxu0 %v193
    %579 = vmatpush.msra.mxu0 %v189
    %580 = vmatpush.msra.mxu0 %v185
    %581 = vmatmul.f32.gmra.mxu0 %v116
    %v582 = vpop.f32.mrf.mxu0
    %v583 = vadd.f32 %v563, %v582
    %584 = vdwg.mxu0
    %585 = vmatpush.msra.mxu0 %v309
    %586 = vmatpush.msra.mxu0 %v305
    %587 = vmatpush.msra.mxu0 %v301
    %588 = vmatpush.msra.mxu0 %v297
    %589 = vmatpush.msra.mxu0 %v293
    %590 = vmatpush.msra.mxu0 %v289
    %591 = vmatpush.msra.mxu0 %v285
    %592 = vmatpush.msra.mxu0 %v281
    %593 = vmatpush.msra.mxu0 %v277
    %594 = vmatpush.msra.mxu0 %v273
    %595 = vmatpush.msra.mxu0 %v269
    %596 = vmatpush.msra.mxu0 %v265
    %597 = vmatpush.msra.mxu0 %v261
    %598 = vmatpush.msra.mxu0 %v257
    %599 = vmatpush.msra.mxu0 %v253
    %600 = vmatpush.msra.mxu0 %v249
    %601 = vmatmul.f32.gmra.mxu0 %v117
    %v602 = vpop.f32.mrf.mxu0
    %v603 = vadd.f32 %v583, %v602
    %604 = vdwg.mxu0
    %605 = vmatpush.msra.mxu0 %v373
    %606 = vmatpush.msra.mxu0 %v369
    %607 = vmatpush.msra.mxu0 %v365
    %608 = vmatpush.msra.mxu0 %v361
    %609 = vmatpush.msra.mxu0 %v357
    %610 = vmatpush.msra.mxu0 %v353
    %611 = vmatpush.msra.mxu0 %v349
    %612 = vmatpush.msra.mxu0 %v345
    %613 = vmatpush.msra.mxu0 %v341
    %614 = vmatpush.msra.mxu0 %v337
    %615 = vmatpush.msra.mxu0 %v333
    %616 = vmatpush.msra.mxu0 %v329
    %617 = vmatpush.msra.mxu0 %v325
    %618 = vmatpush.msra.mxu0 %v321
    %619 = vmatpush.msra.mxu0 %v317
    %620 = vmatpush.msra.mxu0 %v313
    %621 = vmatmul.f32.gmra.mxu0 %v118
    %v622 = vpop.f32.mrf.mxu0
    %v623 = vadd.f32 %v603, %v622
    %624 = vdwg.mxu0
    %625 = vmatpush.msra.mxu0 %v182
    %626 = vmatpush.msra.mxu0 %v178
    %627 = vmatpush.msra.mxu0 %v174
    %628 = vmatpush.msra.mxu0 %v170
    %629 = vmatpush.msra.mxu0 %v166
    %630 = vmatpush.msra.mxu0 %v162
    %631 = vmatpush.msra.mxu0 %v158
    %632 = vmatpush.msra.mxu0 %v154
    %633 = vmatpush.msra.mxu0 %v150
    %634 = vmatpush.msra.mxu0 %v146
    %635 = vmatpush.msra.mxu0 %v142
    %636 = vmatpush.msra.mxu0 %v138
    %637 = vmatpush.msra.mxu0 %v134
    %638 = vmatpush.msra.mxu0 %v130
    %639 = vmatpush.msra.mxu0 %v126
    %640 = vmatpush.msra.mxu0 %v122
    %641 = vmatmul.f32.gmra.mxu0 %v115
    %v642 = vpop.f32.mrf.mxu0
    %v643 = vadd.f32 %v380, %v642
    %644 = vdwg.mxu0
    %645 = vmatpush.msra.mxu0 %v246
    %646 = vmatpush.msra.mxu0 %v242
    %647 = vmatpush.msra.mxu0 %v238
    %648 = vmatpush.msra.mxu0 %v234
    %649 = vmatpush.msra.mxu0 %v230
    %650 = vmatpush.msra.mxu0 %v226
    %651 = vmatpush.msra.mxu0 %v222
    %652 = vmatpush.msra.mxu0 %v218
    %653 = vmatpush.msra.mxu0 %v214
    %654 = vmatpush.msra.mxu0 %v210
    %655 = vmatpush.msra.mxu0 %v206
    %656 = vmatpush.msra.mxu0 %v202
    %657 = vmatpush.msra.mxu0 %v198
    %658 = vmatpush.msra.mxu0 %v194
    %659 = vmatpush.msra.mxu0 %v190
    %660 = vmatpush.msra.mxu0 %v186
    %661 = vmatmul.f32.gmra.mxu0 %v116
    %v662 = vpop.f32.mrf.mxu0
    %v663 = vadd.f32 %v643, %v662
    %664 = vdwg.mxu0
    %665 = vmatpush.msra.mxu0 %v310
    %666 = vmatpush.msra.mxu0 %v306
    %667 = vmatpush.msra.mxu0 %v302
    %668 = vmatpush.msra.mxu0 %v298
    %669 = vmatpush.msra.mxu0 %v294
    %670 = vmatpush.msra.mxu0 %v290
    %671 = vmatpush.msra.mxu0 %v286
    %672 = vmatpush.msra.mxu0 %v282
    %673 = vmatpush.msra.mxu0 %v278
    %674 = vmatpush.msra.mxu0 %v274
    %675 = vmatpush.msra.mxu0 %v270
    %676 = vmatpush.msra.mxu0 %v266
    %677 = vmatpush.msra.mxu0 %v262
    %678 = vmatpush.msra.mxu0 %v258
    %679 = vmatpush.msra.mxu0 %v254
    %680 = vmatpush.msra.mxu0 %v250
    %681 = vmatmul.f32.gmra.mxu0 %v117
    %v682 = vpop.f32.mrf.mxu0
    %v683 = vadd.f32 %v663, %v682
    %684 = vdwg.mxu0
    %685 = vmatpush.msra.mxu0 %v374
    %686 = vmatpush.msra.mxu0 %v370
    %687 = vmatpush.msra.mxu0 %v366
    %688 = vmatpush.msra.mxu0 %v362
    %689 = vmatpush.msra.mxu0 %v358
    %690 = vmatpush.msra.mxu0 %v354
    %691 = vmatpush.msra.mxu0 %v350
    %692 = vmatpush.msra.mxu0 %v346
    %693 = vmatpush.msra.mxu0 %v342
    %694 = vmatpush.msra.mxu0 %v338
    %695 = vmatpush.msra.mxu0 %v334
    %696 = vmatpush.msra.mxu0 %v330
    %697 = vmatpush.msra.mxu0 %v326
    %698 = vmatpush.msra.mxu0 %v322
    %699 = vmatpush.msra.mxu0 %v318
    %700 = vmatpush.msra.mxu0 %v314
    %701 = vmatmul.f32.gmra.mxu0 %v118
    %v702 = vpop.f32.mrf.mxu0
    %v703 = vadd.f32 %v683, %v702
    %704 = vdwg.mxu0
    %705 = vst [vmem:[%s5] sm:$0xff] %v463
    %706 = vst [vmem:[%s5 + $0x8] sm:$0xff] %v543
    %707 = vst [vmem:[%s5 + $0x10] sm:$0xff] %v623
    %708 = vst [vmem:[%s5 + $0x18] sm:$0xff] %v703
    // Predicated region
    $region26: #{decoder.20} parent=1 // pred_check
      _
    $region27: #{decoder.20} parent=1 // pred_check_branch
      %710 = sbr.rel (0) target = $region29
    $region28: #{decoder.20} parent=1 // pred_region
      _
    $region29: #{decoder.20} parent=1 // pred_fallthru
      _
    // Predicated region
    $region30: #{decoder.20} parent=1 // pred_check
      _
    $region31: #{decoder.20} parent=1 // pred_check_branch
      %712 = sbr.rel (0) target = $region33
    $region32: #{decoder.20} parent=1 // pred_region
      _
    $region33: #{decoder.20} parent=1 // pred_fallthru
      _
    %713 = vsyncpa [#allocation3], 1

// kernel: decoder.21
$region0: #{decoder.21}
  #allocation0 [shape = 'u32[]', space=smem, size = 0x4, offset = 0x4, fixed_abs, tag = 'smem constant byte address 0x4 - core index']
  #allocation1 [shape = 'u32[72,128]{1,0:T(1,128)}', space=vmem, size = 0x9000, scoped, tag = 'internal scratch']
  %s0 = inlined_call_operand.vmem [shape: f32[8,512], index: 0, kind: input, shape index: {}]
  %s1 = inlined_call_operand.vmem [shape: f32[512,1024], index: 1, kind: input, shape index: {}]
  %s2 = inlined_call_operand.vmem [shape: f32[1,1024], index: 2, kind: input, shape index: {}]
  %s3 = inlined_call_operand.vmem [shape: f32[8,1024], index: 3, kind: output, shape index: {}]
  %s4 = sld [smem:[#allocation0]]
  $region22: #{decoder.21} parent=0
    _
  %s6 = ssub.s32 1, %s4
  %s7 = scalar_select 0, %s6, %s4
  // Predicated region
  $region2: #{decoder.21} parent=0 // pred_check
    _
  $region3: #{decoder.21} parent=0 // pred_check_branch
    %9 = sbr.rel (0) target = $region5
  $region4: #{decoder.21} parent=0 // pred_region
    _
  $region5: #{decoder.21} parent=0 // pred_fallthru
    _
  // Predicated region
  $region6: #{decoder.21} parent=0 // pred_check
    _
  $region7: #{decoder.21} parent=0 // pred_check_branch
    %11 = sbr.rel (0) target = $region9
  $region8: #{decoder.21} parent=0 // pred_region
    _
  $region9: #{decoder.21} parent=0 // pred_fallthru
    _
  // Predicated region
  $region10: #{decoder.21} parent=0 // pred_check
    _
  $region11: #{decoder.21} parent=0 // pred_check_branch
    %13 = sbr.rel (0) target = $region13
  $region12: #{decoder.21} parent=0 // pred_region
    _
  $region13: #{decoder.21} parent=0 // pred_fallthru
    _
  %v14 = vld [vmem:[%s0] sm:$0xff]
  %v15 = vld [vmem:[%s0 + $0x8] sm:$0xff]
  %v16 = vld [vmem:[%s0 + $0x10] sm:$0xff]
  %v17 = vld [vmem:[%s0 + $0x18] sm:$0xff]
  %v18 = vld [vmem:[%s1] sm:$0xff]
  %v19 = vld [vmem:[%s1 + $0x8] sm:$0xff]
  %v20 = vld [vmem:[%s1 + $0x10] sm:$0xff]
  %v21 = vld [vmem:[%s1 + $0x18] sm:$0xff]
  %v22 = vld [vmem:[%s1 + $0x20] sm:$0xff]
  %v23 = vld [vmem:[%s1 + $0x28] sm:$0xff]
  %v24 = vld [vmem:[%s1 + $0x30] sm:$0xff]
  %v25 = vld [vmem:[%s1 + $0x38] sm:$0xff]
  %v26 = vld [vmem:[%s1 + $0x40] sm:$0xff]
  %v27 = vld [vmem:[%s1 + $0x48] sm:$0xff]
  %v28 = vld [vmem:[%s1 + $0x50] sm:$0xff]
  %v29 = vld [vmem:[%s1 + $0x58] sm:$0xff]
  %v30 = vld [vmem:[%s1 + $0x60] sm:$0xff]
  %v31 = vld [vmem:[%s1 + $0x68] sm:$0xff]
  %v32 = vld [vmem:[%s1 + $0x70] sm:$0xff]
  %v33 = vld [vmem:[%s1 + $0x78] sm:$0xff]
  %v34 = vld [vmem:[%s1 + $0x80] sm:$0xff]
  %v35 = vld [vmem:[%s1 + $0x88] sm:$0xff]
  %v36 = vld [vmem:[%s1 + $0x90] sm:$0xff]
  %v37 = vld [vmem:[%s1 + $0x98] sm:$0xff]
  %v38 = vld [vmem:[%s1 + $0xa0] sm:$0xff]
  %v39 = vld [vmem:[%s1 + $0xa8] sm:$0xff]
  %v40 = vld [vmem:[%s1 + $0xb0] sm:$0xff]
  %v41 = vld [vmem:[%s1 + $0xb8] sm:$0xff]
  %v42 = vld [vmem:[%s1 + $0xc0] sm:$0xff]
  %v43 = vld [vmem:[%s1 + $0xc8] sm:$0xff]
  %v44 = vld [vmem:[%s1 + $0xd0] sm:$0xff]
  %v45 = vld [vmem:[%s1 + $0xd8] sm:$0xff]
  %v46 = vld [vmem:[%s1 + $0xe0] sm:$0xff]
  %v47 = vld [vmem:[%s1 + $0xe8] sm:$0xff]
  %v48 = vld [vmem:[%s1 + $0xf0] sm:$0xff]
  %v49 = vld [vmem:[%s1 + $0xf8] sm:$0xff]
  %v50 = vld [vmem:[%s1 + $0x100] sm:$0xff]
  %v51 = vld [vmem:[%s1 + $0x108] sm:$0xff]
  %v52 = vld [vmem:[%s1 + $0x110] sm:$0xff]
  %v53 = vld [vmem:[%s1 + $0x118] sm:$0xff]
  %v54 = vld [vmem:[%s1 + $0x120] sm:$0xff]
  %v55 = vld [vmem:[%s1 + $0x128] sm:$0xff]
  %v56 = vld [vmem:[%s1 + $0x130] sm:$0xff]
  %v57 = vld [vmem:[%s1 + $0x138] sm:$0xff]
  %v58 = vld [vmem:[%s1 + $0x140] sm:$0xff]
  %v59 = vld [vmem:[%s1 + $0x148] sm:$0xff]
  %v60 = vld [vmem:[%s1 + $0x150] sm:$0xff]
  %v61 = vld [vmem:[%s1 + $0x158] sm:$0xff]
  %v62 = vld [vmem:[%s1 + $0x160] sm:$0xff]
  %v63 = vld [vmem:[%s1 + $0x168] sm:$0xff]
  %v64 = vld [vmem:[%s1 + $0x170] sm:$0xff]
  %v65 = vld [vmem:[%s1 + $0x178] sm:$0xff]
  %v66 = vld [vmem:[%s1 + $0x180] sm:$0xff]
  %v67 = vld [vmem:[%s1 + $0x188] sm:$0xff]
  %v68 = vld [vmem:[%s1 + $0x190] sm:$0xff]
  %v69 = vld [vmem:[%s1 + $0x198] sm:$0xff]
  %v70 = vld [vmem:[%s1 + $0x1a0] sm:$0xff]
  %v71 = vld [vmem:[%s1 + $0x1a8] sm:$0xff]
  %v72 = vld [vmem:[%s1 + $0x1b0] sm:$0xff]
  %v73 = vld [vmem:[%s1 + $0x1b8] sm:$0xff]
  %v74 = vld [vmem:[%s1 + $0x1c0] sm:$0xff]
  %v75 = vld [vmem:[%s1 + $0x1c8] sm:$0xff]
  %v76 = vld [vmem:[%s1 + $0x1d0] sm:$0xff]
  %v77 = vld [vmem:[%s1 + $0x1d8] sm:$0xff]
  %v78 = vld [vmem:[%s1 + $0x1e0] sm:$0xff]
  %v79 = vld [vmem:[%s1 + $0x1e8] sm:$0xff]
  %v80 = vld [vmem:[%s1 + $0x1f0] sm:$0xff]
  %v81 = vld [vmem:[%s1 + $0x1f8] sm:$0xff]
  %v82 = vld [vmem:[%s1 + $0x200] sm:$0xff]
  %v83 = vld [vmem:[%s1 + $0x208] sm:$0xff]
  %v84 = vld [vmem:[%s1 + $0x210] sm:$0xff]
  %v85 = vld [vmem:[%s1 + $0x218] sm:$0xff]
  %v86 = vld [vmem:[%s1 + $0x220] sm:$0xff]
  %v87 = vld [vmem:[%s1 + $0x228] sm:$0xff]
  %v88 = vld [vmem:[%s1 + $0x230] sm:$0xff]
  %v89 = vld [vmem:[%s1 + $0x238] sm:$0xff]
  %v90 = vld [vmem:[%s1 + $0x240] sm:$0xff]
  %v91 = vld [vmem:[%s1 + $0x248] sm:$0xff]
  %v92 = vld [vmem:[%s1 + $0x250] sm:$0xff]
  %v93 = vld [vmem:[%s1 + $0x258] sm:$0xff]
  %v94 = vld [vmem:[%s1 + $0x260] sm:$0xff]
  %v95 = vld [vmem:[%s1 + $0x268] sm:$0xff]
  %v96 = vld [vmem:[%s1 + $0x270] sm:$0xff]
  %v97 = vld [vmem:[%s1 + $0x278] sm:$0xff]
  %v98 = vld [vmem:[%s1 + $0x280] sm:$0xff]
  %v99 = vld [vmem:[%s1 + $0x288] sm:$0xff]
  %v100 = vld [vmem:[%s1 + $0x290] sm:$0xff]
  %v101 = vld [vmem:[%s1 + $0x298] sm:$0xff]
  %v102 = vld [vmem:[%s1 + $0x2a0] sm:$0xff]
  %v103 = vld [vmem:[%s1 + $0x2a8] sm:$0xff]
  %v104 = vld [vmem:[%s1 + $0x2b0] sm:$0xff]
  %v105 = vld [vmem:[%s1 + $0x2b8] sm:$0xff]
  %v106 = vld [vmem:[%s1 + $0x2c0] sm:$0xff]
  %v107 = vld [vmem:[%s1 + $0x2c8] sm:$0xff]
  %v108 = vld [vmem:[%s1 + $0x2d0] sm:$0xff]
  %v109 = vld [vmem:[%s1 + $0x2d8] sm:$0xff]
  %v110 = vld [vmem:[%s1 + $0x2e0] sm:$0xff]
  %v111 = vld [vmem:[%s1 + $0x2e8] sm:$0xff]
  %v112 = vld [vmem:[%s1 + $0x2f0] sm:$0xff]
  %v113 = vld [vmem:[%s1 + $0x2f8] sm:$0xff]
  %v114 = vld [vmem:[%s1 + $0x300] sm:$0xff]
  %v115 = vld [vmem:[%s1 + $0x308] sm:$0xff]
  %v116 = vld [vmem:[%s1 + $0x310] sm:$0xff]
  %v117 = vld [vmem:[%s1 + $0x318] sm:$0xff]
  %v118 = vld [vmem:[%s1 + $0x320] sm:$0xff]
  %v119 = vld [vmem:[%s1 + $0x328] sm:$0xff]
  %v120 = vld [vmem:[%s1 + $0x330] sm:$0xff]
  %v121 = vld [vmem:[%s1 + $0x338] sm:$0xff]
  %v122 = vld [vmem:[%s1 + $0x340] sm:$0xff]
  %v123 = vld [vmem:[%s1 + $0x348] sm:$0xff]
  %v124 = vld [vmem:[%s1 + $0x350] sm:$0xff]
  %v125 = vld [vmem:[%s1 + $0x358] sm:$0xff]
  %v126 = vld [vmem:[%s1 + $0x360] sm:$0xff]
  %v127 = vld [vmem:[%s1 + $0x368] sm:$0xff]
  %v128 = vld [vmem:[%s1 + $0x370] sm:$0xff]
  %v129 = vld [vmem:[%s1 + $0x378] sm:$0xff]
  %v130 = vld [vmem:[%s1 + $0x380] sm:$0xff]
  %v131 = vld [vmem:[%s1 + $0x388] sm:$0xff]
  %v132 = vld [vmem:[%s1 + $0x390] sm:$0xff]
  %v133 = vld [vmem:[%s1 + $0x398] sm:$0xff]
  %v134 = vld [vmem:[%s1 + $0x3a0] sm:$0xff]
  %v135 = vld [vmem:[%s1 + $0x3a8] sm:$0xff]
  %v136 = vld [vmem:[%s1 + $0x3b0] sm:$0xff]
  %v137 = vld [vmem:[%s1 + $0x3b8] sm:$0xff]
  %v138 = vld [vmem:[%s1 + $0x3c0] sm:$0xff]
  %v139 = vld [vmem:[%s1 + $0x3c8] sm:$0xff]
  %v140 = vld [vmem:[%s1 + $0x3d0] sm:$0xff]
  %v141 = vld [vmem:[%s1 + $0x3d8] sm:$0xff]
  %v142 = vld [vmem:[%s1 + $0x3e0] sm:$0xff]
  %v143 = vld [vmem:[%s1 + $0x3e8] sm:$0xff]
  %v144 = vld [vmem:[%s1 + $0x3f0] sm:$0xff]
  %v145 = vld [vmem:[%s1 + $0x3f8] sm:$0xff]
  %v146 = vld [vmem:[%s1 + $0x400] sm:$0xff]
  %v147 = vld [vmem:[%s1 + $0x408] sm:$0xff]
  %v148 = vld [vmem:[%s1 + $0x410] sm:$0xff]
  %v149 = vld [vmem:[%s1 + $0x418] sm:$0xff]
  %v150 = vld [vmem:[%s1 + $0x420] sm:$0xff]
  %v151 = vld [vmem:[%s1 + $0x428] sm:$0xff]
  %v152 = vld [vmem:[%s1 + $0x430] sm:$0xff]
  %v153 = vld [vmem:[%s1 + $0x438] sm:$0xff]
  %v154 = vld [vmem:[%s1 + $0x440] sm:$0xff]
  %v155 = vld [vmem:[%s1 + $0x448] sm:$0xff]
  %v156 = vld [vmem:[%s1 + $0x450] sm:$0xff]
  %v157 = vld [vmem:[%s1 + $0x458] sm:$0xff]
  %v158 = vld [vmem:[%s1 + $0x460] sm:$0xff]
  %v159 = vld [vmem:[%s1 + $0x468] sm:$0xff]
  %v160 = vld [vmem:[%s1 + $0x470] sm:$0xff]
  %v161 = vld [vmem:[%s1 + $0x478] sm:$0xff]
  %v162 = vld [vmem:[%s1 + $0x480] sm:$0xff]
  %v163 = vld [vmem:[%s1 + $0x488] sm:$0xff]
  %v164 = vld [vmem:[%s1 + $0x490] sm:$0xff]
  %v165 = vld [vmem:[%s1 + $0x498] sm:$0xff]
  %v166 = vld [vmem:[%s1 + $0x4a0] sm:$0xff]
  %v167 = vld [vmem:[%s1 + $0x4a8] sm:$0xff]
  %v168 = vld [vmem:[%s1 + $0x4b0] sm:$0xff]
  %v169 = vld [vmem:[%s1 + $0x4b8] sm:$0xff]
  %v170 = vld [vmem:[%s1 + $0x4c0] sm:$0xff]
  %v171 = vld [vmem:[%s1 + $0x4c8] sm:$0xff]
  %v172 = vld [vmem:[%s1 + $0x4d0] sm:$0xff]
  %v173 = vld [vmem:[%s1 + $0x4d8] sm:$0xff]
  %v174 = vld [vmem:[%s1 + $0x4e0] sm:$0xff]
  %v175 = vld [vmem:[%s1 + $0x4e8] sm:$0xff]
  %v176 = vld [vmem:[%s1 + $0x4f0] sm:$0xff]
  %v177 = vld [vmem:[%s1 + $0x4f8] sm:$0xff]
  %v178 = vld [vmem:[%s1 + $0x500] sm:$0xff]
  %v179 = vld [vmem:[%s1 + $0x508] sm:$0xff]
  %v180 = vld [vmem:[%s1 + $0x510] sm:$0xff]
  %v181 = vld [vmem:[%s1 + $0x518] sm:$0xff]
  %v182 = vld [vmem:[%s1 + $0x520] sm:$0xff]
  %v183 = vld [vmem:[%s1 + $0x528] sm:$0xff]
  %v184 = vld [vmem:[%s1 + $0x530] sm:$0xff]
  %v185 = vld [vmem:[%s1 + $0x538] sm:$0xff]
  %v186 = vld [vmem:[%s1 + $0x540] sm:$0xff]
  %v187 = vld [vmem:[%s1 + $0x548] sm:$0xff]
  %v188 = vld [vmem:[%s1 + $0x550] sm:$0xff]
  %v189 = vld [vmem:[%s1 + $0x558] sm:$0xff]
  %v190 = vld [vmem:[%s1 + $0x560] sm:$0xff]
  %v191 = vld [vmem:[%s1 + $0x568] sm:$0xff]
  %v192 = vld [vmem:[%s1 + $0x570] sm:$0xff]
  %v193 = vld [vmem:[%s1 + $0x578] sm:$0xff]
  %v194 = vld [vmem:[%s1 + $0x580] sm:$0xff]
  %v195 = vld [vmem:[%s1 + $0x588] sm:$0xff]
  %v196 = vld [vmem:[%s1 + $0x590] sm:$0xff]
  %v197 = vld [vmem:[%s1 + $0x598] sm:$0xff]
  %v198 = vld [vmem:[%s1 + $0x5a0] sm:$0xff]
  %v199 = vld [vmem:[%s1 + $0x5a8] sm:$0xff]
  %v200 = vld [vmem:[%s1 + $0x5b0] sm:$0xff]
  %v201 = vld [vmem:[%s1 + $0x5b8] sm:$0xff]
  %v202 = vld [vmem:[%s1 + $0x5c0] sm:$0xff]
  %v203 = vld [vmem:[%s1 + $0x5c8] sm:$0xff]
  %v204 = vld [vmem:[%s1 + $0x5d0] sm:$0xff]
  %v205 = vld [vmem:[%s1 + $0x5d8] sm:$0xff]
  %v206 = vld [vmem:[%s1 + $0x5e0] sm:$0xff]
  %v207 = vld [vmem:[%s1 + $0x5e8] sm:$0xff]
  %v208 = vld [vmem:[%s1 + $0x5f0] sm:$0xff]
  %v209 = vld [vmem:[%s1 + $0x5f8] sm:$0xff]
  %v210 = vld [vmem:[%s1 + $0x600] sm:$0xff]
  %v211 = vld [vmem:[%s1 + $0x608] sm:$0xff]
  %v212 = vld [vmem:[%s1 + $0x610] sm:$0xff]
  %v213 = vld [vmem:[%s1 + $0x618] sm:$0xff]
  %v214 = vld [vmem:[%s1 + $0x620] sm:$0xff]
  %v215 = vld [vmem:[%s1 + $0x628] sm:$0xff]
  %v216 = vld [vmem:[%s1 + $0x630] sm:$0xff]
  %v217 = vld [vmem:[%s1 + $0x638] sm:$0xff]
  %v218 = vld [vmem:[%s1 + $0x640] sm:$0xff]
  %v219 = vld [vmem:[%s1 + $0x648] sm:$0xff]
  %v220 = vld [vmem:[%s1 + $0x650] sm:$0xff]
  %v221 = vld [vmem:[%s1 + $0x658] sm:$0xff]
  %v222 = vld [vmem:[%s1 + $0x660] sm:$0xff]
  %v223 = vld [vmem:[%s1 + $0x668] sm:$0xff]
  %v224 = vld [vmem:[%s1 + $0x670] sm:$0xff]
  %v225 = vld [vmem:[%s1 + $0x678] sm:$0xff]
  %v226 = vld [vmem:[%s1 + $0x680] sm:$0xff]
  %v227 = vld [vmem:[%s1 + $0x688] sm:$0xff]
  %v228 = vld [vmem:[%s1 + $0x690] sm:$0xff]
  %v229 = vld [vmem:[%s1 + $0x698] sm:$0xff]
  %v230 = vld [vmem:[%s1 + $0x6a0] sm:$0xff]
  %v231 = vld [vmem:[%s1 + $0x6a8] sm:$0xff]
  %v232 = vld [vmem:[%s1 + $0x6b0] sm:$0xff]
  %v233 = vld [vmem:[%s1 + $0x6b8] sm:$0xff]
  %v234 = vld [vmem:[%s1 + $0x6c0] sm:$0xff]
  %v235 = vld [vmem:[%s1 + $0x6c8] sm:$0xff]
  %v236 = vld [vmem:[%s1 + $0x6d0] sm:$0xff]
  %v237 = vld [vmem:[%s1 + $0x6d8] sm:$0xff]
  %v238 = vld [vmem:[%s1 + $0x6e0] sm:$0xff]
  %v239 = vld [vmem:[%s1 + $0x6e8] sm:$0xff]
  %v240 = vld [vmem:[%s1 + $0x6f0] sm:$0xff]
  %v241 = vld [vmem:[%s1 + $0x6f8] sm:$0xff]
  %v242 = vld [vmem:[%s1 + $0x700] sm:$0xff]
  %v243 = vld [vmem:[%s1 + $0x708] sm:$0xff]
  %v244 = vld [vmem:[%s1 + $0x710] sm:$0xff]
  %v245 = vld [vmem:[%s1 + $0x718] sm:$0xff]
  %v246 = vld [vmem:[%s1 + $0x720] sm:$0xff]
  %v247 = vld [vmem:[%s1 + $0x728] sm:$0xff]
  %v248 = vld [vmem:[%s1 + $0x730] sm:$0xff]
  %v249 = vld [vmem:[%s1 + $0x738] sm:$0xff]
  %v250 = vld [vmem:[%s1 + $0x740] sm:$0xff]
  %v251 = vld [vmem:[%s1 + $0x748] sm:$0xff]
  %v252 = vld [vmem:[%s1 + $0x750] sm:$0xff]
  %v253 = vld [vmem:[%s1 + $0x758] sm:$0xff]
  %v254 = vld [vmem:[%s1 + $0x760] sm:$0xff]
  %v255 = vld [vmem:[%s1 + $0x768] sm:$0xff]
  %v256 = vld [vmem:[%s1 + $0x770] sm:$0xff]
  %v257 = vld [vmem:[%s1 + $0x778] sm:$0xff]
  %v258 = vld [vmem:[%s1 + $0x780] sm:$0xff]
  %v259 = vld [vmem:[%s1 + $0x788] sm:$0xff]
  %v260 = vld [vmem:[%s1 + $0x790] sm:$0xff]
  %v261 = vld [vmem:[%s1 + $0x798] sm:$0xff]
  %v262 = vld [vmem:[%s1 + $0x7a0] sm:$0xff]
  %v263 = vld [vmem:[%s1 + $0x7a8] sm:$0xff]
  %v264 = vld [vmem:[%s1 + $0x7b0] sm:$0xff]
  %v265 = vld [vmem:[%s1 + $0x7b8] sm:$0xff]
  %v266 = vld [vmem:[%s1 + $0x7c0] sm:$0xff]
  %v267 = vld [vmem:[%s1 + $0x7c8] sm:$0xff]
  %v268 = vld [vmem:[%s1 + $0x7d0] sm:$0xff]
  %v269 = vld [vmem:[%s1 + $0x7d8] sm:$0xff]
  %v270 = vld [vmem:[%s1 + $0x7e0] sm:$0xff]
  %v271 = vld [vmem:[%s1 + $0x7e8] sm:$0xff]
  %v272 = vld [vmem:[%s1 + $0x7f0] sm:$0xff]
  %v273 = vld [vmem:[%s1 + $0x7f8] sm:$0xff]
  %v274 = vld [vmem:[%s1 + $0x800] sm:$0xff]
  %v275 = vld [vmem:[%s1 + $0x808] sm:$0xff]
  %v276 = vld [vmem:[%s1 + $0x810] sm:$0xff]
  %v277 = vld [vmem:[%s1 + $0x818] sm:$0xff]
  %v278 = vld [vmem:[%s1 + $0x820] sm:$0xff]
  %v279 = vld [vmem:[%s1 + $0x828] sm:$0xff]
  %v280 = vld [vmem:[%s1 + $0x830] sm:$0xff]
  %v281 = vld [vmem:[%s1 + $0x838] sm:$0xff]
  %v282 = vld [vmem:[%s1 + $0x840] sm:$0xff]
  %v283 = vld [vmem:[%s1 + $0x848] sm:$0xff]
  %v284 = vld [vmem:[%s1 + $0x850] sm:$0xff]
  %v285 = vld [vmem:[%s1 + $0x858] sm:$0xff]
  %v286 = vld [vmem:[%s1 + $0x860] sm:$0xff]
  %v287 = vld [vmem:[%s1 + $0x868] sm:$0xff]
  %v288 = vld [vmem:[%s1 + $0x870] sm:$0xff]
  %v289 = vld [vmem:[%s1 + $0x878] sm:$0xff]
  %v290 = vld [vmem:[%s1 + $0x880] sm:$0xff]
  %v291 = vld [vmem:[%s1 + $0x888] sm:$0xff]
  %v292 = vld [vmem:[%s1 + $0x890] sm:$0xff]
  %v293 = vld [vmem:[%s1 + $0x898] sm:$0xff]
  %v294 = vld [vmem:[%s1 + $0x8a0] sm:$0xff]
  %v295 = vld [vmem:[%s1 + $0x8a8] sm:$0xff]
  %v296 = vld [vmem:[%s1 + $0x8b0] sm:$0xff]
  %v297 = vld [vmem:[%s1 + $0x8b8] sm:$0xff]
  %v298 = vld [vmem:[%s1 + $0x8c0] sm:$0xff]
  %v299 = vld [vmem:[%s1 + $0x8c8] sm:$0xff]
  %v300 = vld [vmem:[%s1 + $0x8d0] sm:$0xff]
  %v301 = vld [vmem:[%s1 + $0x8d8] sm:$0xff]
  %v302 = vld [vmem:[%s1 + $0x8e0] sm:$0xff]
  %v303 = vld [vmem:[%s1 + $0x8e8] sm:$0xff]
  %v304 = vld [vmem:[%s1 + $0x8f0] sm:$0xff]
  %v305 = vld [vmem:[%s1 + $0x8f8] sm:$0xff]
  %v306 = vld [vmem:[%s1 + $0x900] sm:$0xff]
  %v307 = vld [vmem:[%s1 + $0x908] sm:$0xff]
  %v308 = vld [vmem:[%s1 + $0x910] sm:$0xff]
  %v309 = vld [vmem:[%s1 + $0x918] sm:$0xff]
  %v310 = vld [vmem:[%s1 + $0x920] sm:$0xff]
  %v311 = vld [vmem:[%s1 + $0x928] sm:$0xff]
  %v312 = vld [vmem:[%s1 + $0x930] sm:$0xff]
  %v313 = vld [vmem:[%s1 + $0x938] sm:$0xff]
  %v314 = vld [vmem:[%s1 + $0x940] sm:$0xff]
  %v315 = vld [vmem:[%s1 + $0x948] sm:$0xff]
  %v316 = vld [vmem:[%s1 + $0x950] sm:$0xff]
  %v317 = vld [vmem:[%s1 + $0x958] sm:$0xff]
  %v318 = vld [vmem:[%s1 + $0x960] sm:$0xff]
  %v319 = vld [vmem:[%s1 + $0x968] sm:$0xff]
  %v320 = vld [vmem:[%s1 + $0x970] sm:$0xff]
  %v321 = vld [vmem:[%s1 + $0x978] sm:$0xff]
  %v322 = vld [vmem:[%s1 + $0x980] sm:$0xff]
  %v323 = vld [vmem:[%s1 + $0x988] sm:$0xff]
  %v324 = vld [vmem:[%s1 + $0x990] sm:$0xff]
  %v325 = vld [vmem:[%s1 + $0x998] sm:$0xff]
  %v326 = vld [vmem:[%s1 + $0x9a0] sm:$0xff]
  %v327 = vld [vmem:[%s1 + $0x9a8] sm:$0xff]
  %v328 = vld [vmem:[%s1 + $0x9b0] sm:$0xff]
  %v329 = vld [vmem:[%s1 + $0x9b8] sm:$0xff]
  %v330 = vld [vmem:[%s1 + $0x9c0] sm:$0xff]
  %v331 = vld [vmem:[%s1 + $0x9c8] sm:$0xff]
  %v332 = vld [vmem:[%s1 + $0x9d0] sm:$0xff]
  %v333 = vld [vmem:[%s1 + $0x9d8] sm:$0xff]
  %v334 = vld [vmem:[%s1 + $0x9e0] sm:$0xff]
  %v335 = vld [vmem:[%s1 + $0x9e8] sm:$0xff]
  %v336 = vld [vmem:[%s1 + $0x9f0] sm:$0xff]
  %v337 = vld [vmem:[%s1 + $0x9f8] sm:$0xff]
  %v338 = vld [vmem:[%s1 + $0xa00] sm:$0xff]
  %v339 = vld [vmem:[%s1 + $0xa08] sm:$0xff]
  %v340 = vld [vmem:[%s1 + $0xa10] sm:$0xff]
  %v341 = vld [vmem:[%s1 + $0xa18] sm:$0xff]
  %v342 = vld [vmem:[%s1 + $0xa20] sm:$0xff]
  %v343 = vld [vmem:[%s1 + $0xa28] sm:$0xff]
  %v344 = vld [vmem:[%s1 + $0xa30] sm:$0xff]
  %v345 = vld [vmem:[%s1 + $0xa38] sm:$0xff]
  %v346 = vld [vmem:[%s1 + $0xa40] sm:$0xff]
  %v347 = vld [vmem:[%s1 + $0xa48] sm:$0xff]
  %v348 = vld [vmem:[%s1 + $0xa50] sm:$0xff]
  %v349 = vld [vmem:[%s1 + $0xa58] sm:$0xff]
  %v350 = vld [vmem:[%s1 + $0xa60] sm:$0xff]
  %v351 = vld [vmem:[%s1 + $0xa68] sm:$0xff]
  %v352 = vld [vmem:[%s1 + $0xa70] sm:$0xff]
  %v353 = vld [vmem:[%s1 + $0xa78] sm:$0xff]
  %v354 = vld [vmem:[%s1 + $0xa80] sm:$0xff]
  %v355 = vld [vmem:[%s1 + $0xa88] sm:$0xff]
  %v356 = vld [vmem:[%s1 + $0xa90] sm:$0xff]
  %v357 = vld [vmem:[%s1 + $0xa98] sm:$0xff]
  %v358 = vld [vmem:[%s1 + $0xaa0] sm:$0xff]
  %v359 = vld [vmem:[%s1 + $0xaa8] sm:$0xff]
  %v360 = vld [vmem:[%s1 + $0xab0] sm:$0xff]
  %v361 = vld [vmem:[%s1 + $0xab8] sm:$0xff]
  %v362 = vld [vmem:[%s1 + $0xac0] sm:$0xff]
  %v363 = vld [vmem:[%s1 + $0xac8] sm:$0xff]
  %v364 = vld [vmem:[%s1 + $0xad0] sm:$0xff]
  %v365 = vld [vmem:[%s1 + $0xad8] sm:$0xff]
  %v366 = vld [vmem:[%s1 + $0xae0] sm:$0xff]
  %v367 = vld [vmem:[%s1 + $0xae8] sm:$0xff]
  %v368 = vld [vmem:[%s1 + $0xaf0] sm:$0xff]
  %v369 = vld [vmem:[%s1 + $0xaf8] sm:$0xff]
  %v370 = vld [vmem:[%s1 + $0xb00] sm:$0xff]
  %v371 = vld [vmem:[%s1 + $0xb08] sm:$0xff]
  %v372 = vld [vmem:[%s1 + $0xb10] sm:$0xff]
  %v373 = vld [vmem:[%s1 + $0xb18] sm:$0xff]
  %v374 = vld [vmem:[%s1 + $0xb20] sm:$0xff]
  %v375 = vld [vmem:[%s1 + $0xb28] sm:$0xff]
  %v376 = vld [vmem:[%s1 + $0xb30] sm:$0xff]
  %v377 = vld [vmem:[%s1 + $0xb38] sm:$0xff]
  %v378 = vld [vmem:[%s1 + $0xb40] sm:$0xff]
  %v379 = vld [vmem:[%s1 + $0xb48] sm:$0xff]
  %v380 = vld [vmem:[%s1 + $0xb50] sm:$0xff]
  %v381 = vld [vmem:[%s1 + $0xb58] sm:$0xff]
  %v382 = vld [vmem:[%s1 + $0xb60] sm:$0xff]
  %v383 = vld [vmem:[%s1 + $0xb68] sm:$0xff]
  %v384 = vld [vmem:[%s1 + $0xb70] sm:$0xff]
  %v385 = vld [vmem:[%s1 + $0xb78] sm:$0xff]
  %v386 = vld [vmem:[%s1 + $0xb80] sm:$0xff]
  %v387 = vld [vmem:[%s1 + $0xb88] sm:$0xff]
  %v388 = vld [vmem:[%s1 + $0xb90] sm:$0xff]
  %v389 = vld [vmem:[%s1 + $0xb98] sm:$0xff]
  %v390 = vld [vmem:[%s1 + $0xba0] sm:$0xff]
  %v391 = vld [vmem:[%s1 + $0xba8] sm:$0xff]
  %v392 = vld [vmem:[%s1 + $0xbb0] sm:$0xff]
  %v393 = vld [vmem:[%s1 + $0xbb8] sm:$0xff]
  %v394 = vld [vmem:[%s1 + $0xbc0] sm:$0xff]
  %v395 = vld [vmem:[%s1 + $0xbc8] sm:$0xff]
  %v396 = vld [vmem:[%s1 + $0xbd0] sm:$0xff]
  %v397 = vld [vmem:[%s1 + $0xbd8] sm:$0xff]
  %v398 = vld [vmem:[%s1 + $0xbe0] sm:$0xff]
  %v399 = vld [vmem:[%s1 + $0xbe8] sm:$0xff]
  %v400 = vld [vmem:[%s1 + $0xbf0] sm:$0xff]
  %v401 = vld [vmem:[%s1 + $0xbf8] sm:$0xff]
  %v402 = vld [vmem:[%s1 + $0xc00] sm:$0xff]
  %v403 = vld [vmem:[%s1 + $0xc08] sm:$0xff]
  %v404 = vld [vmem:[%s1 + $0xc10] sm:$0xff]
  %v405 = vld [vmem:[%s1 + $0xc18] sm:$0xff]
  %v406 = vld [vmem:[%s1 + $0xc20] sm:$0xff]
  %v407 = vld [vmem:[%s1 + $0xc28] sm:$0xff]
  %v408 = vld [vmem:[%s1 + $0xc30] sm:$0xff]
  %v409 = vld [vmem:[%s1 + $0xc38] sm:$0xff]
  %v410 = vld [vmem:[%s1 + $0xc40] sm:$0xff]
  %v411 = vld [vmem:[%s1 + $0xc48] sm:$0xff]
  %v412 = vld [vmem:[%s1 + $0xc50] sm:$0xff]
  %v413 = vld [vmem:[%s1 + $0xc58] sm:$0xff]
  %v414 = vld [vmem:[%s1 + $0xc60] sm:$0xff]
  %v415 = vld [vmem:[%s1 + $0xc68] sm:$0xff]
  %v416 = vld [vmem:[%s1 + $0xc70] sm:$0xff]
  %v417 = vld [vmem:[%s1 + $0xc78] sm:$0xff]
  %v418 = vld [vmem:[%s1 + $0xc80] sm:$0xff]
  %v419 = vld [vmem:[%s1 + $0xc88] sm:$0xff]
  %v420 = vld [vmem:[%s1 + $0xc90] sm:$0xff]
  %v421 = vld [vmem:[%s1 + $0xc98] sm:$0xff]
  %v422 = vld [vmem:[%s1 + $0xca0] sm:$0xff]
  %v423 = vld [vmem:[%s1 + $0xca8] sm:$0xff]
  %v424 = vld [vmem:[%s1 + $0xcb0] sm:$0xff]
  %v425 = vld [vmem:[%s1 + $0xcb8] sm:$0xff]
  %v426 = vld [vmem:[%s1 + $0xcc0] sm:$0xff]
  %v427 = vld [vmem:[%s1 + $0xcc8] sm:$0xff]
  %v428 = vld [vmem:[%s1 + $0xcd0] sm:$0xff]
  %v429 = vld [vmem:[%s1 + $0xcd8] sm:$0xff]
  %v430 = vld [vmem:[%s1 + $0xce0] sm:$0xff]
  %v431 = vld [vmem:[%s1 + $0xce8] sm:$0xff]
  %v432 = vld [vmem:[%s1 + $0xcf0] sm:$0xff]
  %v433 = vld [vmem:[%s1 + $0xcf8] sm:$0xff]
  %v434 = vld [vmem:[%s1 + $0xd00] sm:$0xff]
  %v435 = vld [vmem:[%s1 + $0xd08] sm:$0xff]
  %v436 = vld [vmem:[%s1 + $0xd10] sm:$0xff]
  %v437 = vld [vmem:[%s1 + $0xd18] sm:$0xff]
  %v438 = vld [vmem:[%s1 + $0xd20] sm:$0xff]
  %v439 = vld [vmem:[%s1 + $0xd28] sm:$0xff]
  %v440 = vld [vmem:[%s1 + $0xd30] sm:$0xff]
  %v441 = vld [vmem:[%s1 + $0xd38] sm:$0xff]
  %v442 = vld [vmem:[%s1 + $0xd40] sm:$0xff]
  %v443 = vld [vmem:[%s1 + $0xd48] sm:$0xff]
  %v444 = vld [vmem:[%s1 + $0xd50] sm:$0xff]
  %v445 = vld [vmem:[%s1 + $0xd58] sm:$0xff]
  %v446 = vld [vmem:[%s1 + $0xd60] sm:$0xff]
  %v447 = vld [vmem:[%s1 + $0xd68] sm:$0xff]
  %v448 = vld [vmem:[%s1 + $0xd70] sm:$0xff]
  %v449 = vld [vmem:[%s1 + $0xd78] sm:$0xff]
  %v450 = vld [vmem:[%s1 + $0xd80] sm:$0xff]
  %v451 = vld [vmem:[%s1 + $0xd88] sm:$0xff]
  %v452 = vld [vmem:[%s1 + $0xd90] sm:$0xff]
  %v453 = vld [vmem:[%s1 + $0xd98] sm:$0xff]
  %v454 = vld [vmem:[%s1 + $0xda0] sm:$0xff]
  %v455 = vld [vmem:[%s1 + $0xda8] sm:$0xff]
  %v456 = vld [vmem:[%s1 + $0xdb0] sm:$0xff]
  %v457 = vld [vmem:[%s1 + $0xdb8] sm:$0xff]
  %v458 = vld [vmem:[%s1 + $0xdc0] sm:$0xff]
  %v459 = vld [vmem:[%s1 + $0xdc8] sm:$0xff]
  %v460 = vld [vmem:[%s1 + $0xdd0] sm:$0xff]
  %v461 = vld [vmem:[%s1 + $0xdd8] sm:$0xff]
  %v462 = vld [vmem:[%s1 + $0xde0] sm:$0xff]
  %v463 = vld [vmem:[%s1 + $0xde8] sm:$0xff]
  %v464 = vld [vmem:[%s1 + $0xdf0] sm:$0xff]
  %v465 = vld [vmem:[%s1 + $0xdf8] sm:$0xff]
  %v466 = vld [vmem:[%s1 + $0xe00] sm:$0xff]
  %v467 = vld [vmem:[%s1 + $0xe08] sm:$0xff]
  %v468 = vld [vmem:[%s1 + $0xe10] sm:$0xff]
  %v469 = vld [vmem:[%s1 + $0xe18] sm:$0xff]
  %v470 = vld [vmem:[%s1 + $0xe20] sm:$0xff]
  %v471 = vld [vmem:[%s1 + $0xe28] sm:$0xff]
  %v472 = vld [vmem:[%s1 + $0xe30] sm:$0xff]
  %v473 = vld [vmem:[%s1 + $0xe38] sm:$0xff]
  %v474 = vld [vmem:[%s1 + $0xe40] sm:$0xff]
  %v475 = vld [vmem:[%s1 + $0xe48] sm:$0xff]
  %v476 = vld [vmem:[%s1 + $0xe50] sm:$0xff]
  %v477 = vld [vmem:[%s1 + $0xe58] sm:$0xff]
  %v478 = vld [vmem:[%s1 + $0xe60] sm:$0xff]
  %v479 = vld [vmem:[%s1 + $0xe68] sm:$0xff]
  %v480 = vld [vmem:[%s1 + $0xe70] sm:$0xff]
  %v481 = vld [vmem:[%s1 + $0xe78] sm:$0xff]
  %v482 = vld [vmem:[%s1 + $0xe80] sm:$0xff]
  %v483 = vld [vmem:[%s1 + $0xe88] sm:$0xff]
  %v484 = vld [vmem:[%s1 + $0xe90] sm:$0xff]
  %v485 = vld [vmem:[%s1 + $0xe98] sm:$0xff]
  %v486 = vld [vmem:[%s1 + $0xea0] sm:$0xff]
  %v487 = vld [vmem:[%s1 + $0xea8] sm:$0xff]
  %v488 = vld [vmem:[%s1 + $0xeb0] sm:$0xff]
  %v489 = vld [vmem:[%s1 + $0xeb8] sm:$0xff]
  %v490 = vld [vmem:[%s1 + $0xec0] sm:$0xff]
  %v491 = vld [vmem:[%s1 + $0xec8] sm:$0xff]
  %v492 = vld [vmem:[%s1 + $0xed0] sm:$0xff]
  %v493 = vld [vmem:[%s1 + $0xed8] sm:$0xff]
  %v494 = vld [vmem:[%s1 + $0xee0] sm:$0xff]
  %v495 = vld [vmem:[%s1 + $0xee8] sm:$0xff]
  %v496 = vld [vmem:[%s1 + $0xef0] sm:$0xff]
  %v497 = vld [vmem:[%s1 + $0xef8] sm:$0xff]
  %v498 = vld [vmem:[%s1 + $0xf00] sm:$0xff]
  %v499 = vld [vmem:[%s1 + $0xf08] sm:$0xff]
  %v500 = vld [vmem:[%s1 + $0xf10] sm:$0xff]
  %v501 = vld [vmem:[%s1 + $0xf18] sm:$0xff]
  %v502 = vld [vmem:[%s1 + $0xf20] sm:$0xff]
  %v503 = vld [vmem:[%s1 + $0xf28] sm:$0xff]
  %v504 = vld [vmem:[%s1 + $0xf30] sm:$0xff]
  %v505 = vld [vmem:[%s1 + $0xf38] sm:$0xff]
  %v506 = vld [vmem:[%s1 + $0xf40] sm:$0xff]
  %v507 = vld [vmem:[%s1 + $0xf48] sm:$0xff]
  %v508 = vld [vmem:[%s1 + $0xf50] sm:$0xff]
  %v509 = vld [vmem:[%s1 + $0xf58] sm:$0xff]
  %v510 = vld [vmem:[%s1 + $0xf60] sm:$0xff]
  %v511 = vld [vmem:[%s1 + $0xf68] sm:$0xff]
  %v512 = vld [vmem:[%s1 + $0xf70] sm:$0xff]
  %v513 = vld [vmem:[%s1 + $0xf78] sm:$0xff]
  %v514 = vld [vmem:[%s1 + $0xf80] sm:$0xff]
  %v515 = vld [vmem:[%s1 + $0xf88] sm:$0xff]
  %v516 = vld [vmem:[%s1 + $0xf90] sm:$0xff]
  %v517 = vld [vmem:[%s1 + $0xf98] sm:$0xff]
  %v518 = vld [vmem:[%s1 + $0xfa0] sm:$0xff]
  %v519 = vld [vmem:[%s1 + $0xfa8] sm:$0xff]
  %v520 = vld [vmem:[%s1 + $0xfb0] sm:$0xff]
  %v521 = vld [vmem:[%s1 + $0xfb8] sm:$0xff]
  %v522 = vld [vmem:[%s1 + $0xfc0] sm:$0xff]
  %v523 = vld [vmem:[%s1 + $0xfc8] sm:$0xff]
  %v524 = vld [vmem:[%s1 + $0xfd0] sm:$0xff]
  %v525 = vld [vmem:[%s1 + $0xfd8] sm:$0xff]
  %v526 = vld [vmem:[%s1 + $0xfe0] sm:$0xff]
  %v527 = vld [vmem:[%s1 + $0xfe8] sm:$0xff]
  %v528 = vld [vmem:[%s1 + $0xff0] sm:$0xff]
  %v529 = vld [vmem:[%s1 + $0xff8] sm:$0xff]
  %v530 = vld [vmem:[%s2] sm:$0xff]
  %v532 = vperm.slane %v530, 0
  %v533 = vperm.slane %v530, 1
  %v534 = vperm.slane %v530, 2
  %v535 = vperm.slane %v530, 3
  %v536 = vperm.slane %v530, 4
  %v537 = vperm.slane %v530, 5
  %v538 = vperm.slane %v530, 6
  %v539 = vperm.slane %v530, 7
  %548 = vmatpush.msra.mxu0 %v138
  %549 = vmatpush.msra.mxu0 %v130
  %550 = vmatpush.msra.mxu0 %v122
  %551 = vmatpush.msra.mxu0 %v114
  %552 = vmatpush.msra.mxu0 %v106
  %553 = vmatpush.msra.mxu0 %v98
  %554 = vmatpush.msra.mxu0 %v90
  %555 = vmatpush.msra.mxu0 %v82
  %556 = vmatpush.msra.mxu0 %v74
  %557 = vmatpush.msra.mxu0 %v66
  %558 = vmatpush.msra.mxu0 %v58
  %559 = vmatpush.msra.mxu0 %v50
  %560 = vmatpush.msra.mxu0 %v42
  %561 = vmatpush.msra.mxu0 %v34
  %562 = vmatpush.msra.mxu0 %v26
  %563 = vmatpush.msra.mxu0 %v18
  %564 = vmatmul.f32.gmra.mxu0 %v14
  %v565 = vpop.f32.mrf.mxu0
  %v566 = vadd.f32 %v532, %v565
  %567 = vdwg.mxu0
  %568 = vmatpush.msra.mxu0 %v266
  %569 = vmatpush.msra.mxu0 %v258
  %570 = vmatpush.msra.mxu0 %v250
  %571 = vmatpush.msra.mxu0 %v242
  %572 = vmatpush.msra.mxu0 %v234
  %573 = vmatpush.msra.mxu0 %v226
  %574 = vmatpush.msra.mxu0 %v218
  %575 = vmatpush.msra.mxu0 %v210
  %576 = vmatpush.msra.mxu0 %v202
  %577 = vmatpush.msra.mxu0 %v194
  %578 = vmatpush.msra.mxu0 %v186
  %579 = vmatpush.msra.mxu0 %v178
  %580 = vmatpush.msra.mxu0 %v170
  %581 = vmatpush.msra.mxu0 %v162
  %582 = vmatpush.msra.mxu0 %v154
  %583 = vmatpush.msra.mxu0 %v146
  %584 = vmatmul.f32.gmra.mxu0 %v15
  %v585 = vpop.f32.mrf.mxu0
  %v586 = vadd.f32 %v566, %v585
  %587 = vdwg.mxu0
  %588 = vmatpush.msra.mxu0 %v394
  %589 = vmatpush.msra.mxu0 %v386
  %590 = vmatpush.msra.mxu0 %v378
  %591 = vmatpush.msra.mxu0 %v370
  %592 = vmatpush.msra.mxu0 %v362
  %593 = vmatpush.msra.mxu0 %v354
  %594 = vmatpush.msra.mxu0 %v346
  %595 = vmatpush.msra.mxu0 %v338
  %596 = vmatpush.msra.mxu0 %v330
  %597 = vmatpush.msra.mxu0 %v322
  %598 = vmatpush.msra.mxu0 %v314
  %599 = vmatpush.msra.mxu0 %v306
  %600 = vmatpush.msra.mxu0 %v298
  %601 = vmatpush.msra.mxu0 %v290
  %602 = vmatpush.msra.mxu0 %v282
  %603 = vmatpush.msra.mxu0 %v274
  %604 = vmatmul.f32.gmra.mxu0 %v16
  %v605 = vpop.f32.mrf.mxu0
  %v606 = vadd.f32 %v586, %v605
  %607 = vdwg.mxu0
  %608 = vmatpush.msra.mxu0 %v522
  %609 = vmatpush.msra.mxu0 %v514
  %610 = vmatpush.msra.mxu0 %v506
  %611 = vmatpush.msra.mxu0 %v498
  %612 = vmatpush.msra.mxu0 %v490
  %613 = vmatpush.msra.mxu0 %v482
  %614 = vmatpush.msra.mxu0 %v474
  %615 = vmatpush.msra.mxu0 %v466
  %616 = vmatpush.msra.mxu0 %v458
  %617 = vmatpush.msra.mxu0 %v450
  %618 = vmatpush.msra.mxu0 %v442
  %619 = vmatpush.msra.mxu0 %v434
  %620 = vmatpush.msra.mxu0 %v426
  %621 = vmatpush.msra.mxu0 %v418
  %622 = vmatpush.msra.mxu0 %v410
  %623 = vmatpush.msra.mxu0 %v402
  %624 = vmatmul.f32.gmra.mxu0 %v17
  %v625 = vpop.f32.mrf.mxu0
  %v626 = vadd.f32 %v606, %v625
  %627 = vdwg.mxu0
  %628 = vmatpush.msra.mxu0 %v139
  %629 = vmatpush.msra.mxu0 %v131
  %630 = vmatpush.msra.mxu0 %v123
  %631 = vmatpush.msra.mxu0 %v115
  %632 = vmatpush.msra.mxu0 %v107
  %633 = vmatpush.msra.mxu0 %v99
  %634 = vmatpush.msra.mxu0 %v91
  %635 = vmatpush.msra.mxu0 %v83
  %636 = vmatpush.msra.mxu0 %v75
  %637 = vmatpush.msra.mxu0 %v67
  %638 = vmatpush.msra.mxu0 %v59
  %639 = vmatpush.msra.mxu0 %v51
  %640 = vmatpush.msra.mxu0 %v43
  %641 = vmatpush.msra.mxu0 %v35
  %642 = vmatpush.msra.mxu0 %v27
  %643 = vmatpush.msra.mxu0 %v19
  %644 = vmatmul.f32.gmra.mxu0 %v14
  %v645 = vpop.f32.mrf.mxu0
  %v646 = vadd.f32 %v533, %v645
  %647 = vdwg.mxu0
  %648 = vmatpush.msra.mxu0 %v267
  %649 = vmatpush.msra.mxu0 %v259
  %650 = vmatpush.msra.mxu0 %v251
  %651 = vmatpush.msra.mxu0 %v243
  %652 = vmatpush.msra.mxu0 %v235
  %653 = vmatpush.msra.mxu0 %v227
  %654 = vmatpush.msra.mxu0 %v219
  %655 = vmatpush.msra.mxu0 %v211
  %656 = vmatpush.msra.mxu0 %v203
  %657 = vmatpush.msra.mxu0 %v195
  %658 = vmatpush.msra.mxu0 %v187
  %659 = vmatpush.msra.mxu0 %v179
  %660 = vmatpush.msra.mxu0 %v171
  %661 = vmatpush.msra.mxu0 %v163
  %662 = vmatpush.msra.mxu0 %v155
  %663 = vmatpush.msra.mxu0 %v147
  %664 = vmatmul.f32.gmra.mxu0 %v15
  %v665 = vpop.f32.mrf.mxu0
  %v666 = vadd.f32 %v646, %v665
  %667 = vdwg.mxu0
  %668 = vmatpush.msra.mxu0 %v395
  %669 = vmatpush.msra.mxu0 %v387
  %670 = vmatpush.msra.mxu0 %v379
  %671 = vmatpush.msra.mxu0 %v371
  %672 = vmatpush.msra.mxu0 %v363
  %673 = vmatpush.msra.mxu0 %v355
  %674 = vmatpush.msra.mxu0 %v347
  %675 = vmatpush.msra.mxu0 %v339
  %676 = vmatpush.msra.mxu0 %v331
  %677 = vmatpush.msra.mxu0 %v323
  %678 = vmatpush.msra.mxu0 %v315
  %679 = vmatpush.msra.mxu0 %v307
  %680 = vmatpush.msra.mxu0 %v299
  %681 = vmatpush.msra.mxu0 %v291
  %682 = vmatpush.msra.mxu0 %v283
  %683 = vmatpush.msra.mxu0 %v275
  %684 = vmatmul.f32.gmra.mxu0 %v16
  %v685 = vpop.f32.mrf.mxu0
  %v686 = vadd.f32 %v666, %v685
  %687 = vdwg.mxu0
  %688 = vmatpush.msra.mxu0 %v523
  %689 = vmatpush.msra.mxu0 %v515
  %690 = vmatpush.msra.mxu0 %v507
  %691 = vmatpush.msra.mxu0 %v499
  %692 = vmatpush.msra.mxu0 %v491
  %693 = vmatpush.msra.mxu0 %v483
  %694 = vmatpush.msra.mxu0 %v475
  %695 = vmatpush.msra.mxu0 %v467
  %696 = vmatpush.msra.mxu0 %v459
  %697 = vmatpush.msra.mxu0 %v451
  %698 = vmatpush.msra.mxu0 %v443
  %699 = vmatpush.msra.mxu0 %v435
  %700 = vmatpush.msra.mxu0 %v427
  %701 = vmatpush.msra.mxu0 %v419
  %702 = vmatpush.msra.mxu0 %v411
  %703 = vmatpush.msra.mxu0 %v403
  %704 = vmatmul.f32.gmra.mxu0 %v17
  %v705 = vpop.f32.mrf.mxu0
  %v706 = vadd.f32 %v686, %v705
  %707 = vdwg.mxu0
  %708 = vmatpush.msra.mxu0 %v140
  %709 = vmatpush.msra.mxu0 %v132
  %710 = vmatpush.msra.mxu0 %v124
  %711 = vmatpush.msra.mxu0 %v116
  %712 = vmatpush.msra.mxu0 %v108
  %713 = vmatpush.msra.mxu0 %v100
  %714 = vmatpush.msra.mxu0 %v92
  %715 = vmatpush.msra.mxu0 %v84
  %716 = vmatpush.msra.mxu0 %v76
  %717 = vmatpush.msra.mxu0 %v68
  %718 = vmatpush.msra.mxu0 %v60
  %719 = vmatpush.msra.mxu0 %v52
  %720 = vmatpush.msra.mxu0 %v44
  %721 = vmatpush.msra.mxu0 %v36
  %722 = vmatpush.msra.mxu0 %v28
  %723 = vmatpush.msra.mxu0 %v20
  %724 = vmatmul.f32.gmra.mxu0 %v14
  %v725 = vpop.f32.mrf.mxu0
  %v726 = vadd.f32 %v534, %v725
  %727 = vdwg.mxu0
  %728 = vmatpush.msra.mxu0 %v268
  %729 = vmatpush.msra.mxu0 %v260
  %730 = vmatpush.msra.mxu0 %v252
  %731 = vmatpush.msra.mxu0 %v244
  %732 = vmatpush.msra.mxu0 %v236
  %733 = vmatpush.msra.mxu0 %v228
  %734 = vmatpush.msra.mxu0 %v220
  %735 = vmatpush.msra.mxu0 %v212
  %736 = vmatpush.msra.mxu0 %v204
  %737 = vmatpush.msra.mxu0 %v196
  %738 = vmatpush.msra.mxu0 %v188
  %739 = vmatpush.msra.mxu0 %v180
  %740 = vmatpush.msra.mxu0 %v172
  %741 = vmatpush.msra.mxu0 %v164
  %742 = vmatpush.msra.mxu0 %v156
  %743 = vmatpush.msra.mxu0 %v148
  %744 = vmatmul.f32.gmra.mxu0 %v15
  %v745 = vpop.f32.mrf.mxu0
  %v746 = vadd.f32 %v726, %v745
  %747 = vdwg.mxu0
  %748 = vmatpush.msra.mxu0 %v396
  %749 = vmatpush.msra.mxu0 %v388
  %750 = vmatpush.msra.mxu0 %v380
  %751 = vmatpush.msra.mxu0 %v372
  %752 = vmatpush.msra.mxu0 %v364
  %753 = vmatpush.msra.mxu0 %v356
  %754 = vmatpush.msra.mxu0 %v348
  %755 = vmatpush.msra.mxu0 %v340
  %756 = vmatpush.msra.mxu0 %v332
  %757 = vmatpush.msra.mxu0 %v324
  %758 = vmatpush.msra.mxu0 %v316
  %759 = vmatpush.msra.mxu0 %v308
  %760 = vmatpush.msra.mxu0 %v300
  %761 = vmatpush.msra.mxu0 %v292
  %762 = vmatpush.msra.mxu0 %v284
  %763 = vmatpush.msra.mxu0 %v276
  %764 = vmatmul.f32.gmra.mxu0 %v16
  %v765 = vpop.f32.mrf.mxu0
  %v766 = vadd.f32 %v746, %v765
  %767 = vdwg.mxu0
  %768 = vmatpush.msra.mxu0 %v524
  %769 = vmatpush.msra.mxu0 %v516
  %770 = vmatpush.msra.mxu0 %v508
  %771 = vmatpush.msra.mxu0 %v500
  %772 = vmatpush.msra.mxu0 %v492
  %773 = vmatpush.msra.mxu0 %v484
  %774 = vmatpush.msra.mxu0 %v476
  %775 = vmatpush.msra.mxu0 %v468
  %776 = vmatpush.msra.mxu0 %v460
  %777 = vmatpush.msra.mxu0 %v452
  %778 = vmatpush.msra.mxu0 %v444
  %779 = vmatpush.msra.mxu0 %v436
  %780 = vmatpush.msra.mxu0 %v428
  %781 = vmatpush.msra.mxu0 %v420
  %782 = vmatpush.msra.mxu0 %v412
  %783 = vmatpush.msra.mxu0 %v404
  %784 = vmatmul.f32.gmra.mxu0 %v17
  %v785 = vpop.f32.mrf.mxu0
  %v786 = vadd.f32 %v766, %v785
  %787 = vdwg.mxu0
  %788 = vmatpush.msra.mxu0 %v141
  %789 = vmatpush.msra.mxu0 %v133
  %790 = vmatpush.msra.mxu0 %v125
  %791 = vmatpush.msra.mxu0 %v117
  %792 = vmatpush.msra.mxu0 %v109
  %793 = vmatpush.msra.mxu0 %v101
  %794 = vmatpush.msra.mxu0 %v93
  %795 = vmatpush.msra.mxu0 %v85
  %796 = vmatpush.msra.mxu0 %v77
  %797 = vmatpush.msra.mxu0 %v69
  %798 = vmatpush.msra.mxu0 %v61
  %799 = vmatpush.msra.mxu0 %v53
  %800 = vmatpush.msra.mxu0 %v45
  %801 = vmatpush.msra.mxu0 %v37
  %802 = vmatpush.msra.mxu0 %v29
  %803 = vmatpush.msra.mxu0 %v21
  %804 = vmatmul.f32.gmra.mxu0 %v14
  %v805 = vpop.f32.mrf.mxu0
  %v806 = vadd.f32 %v535, %v805
  %807 = vdwg.mxu0
  %808 = vmatpush.msra.mxu0 %v269
  %809 = vmatpush.msra.mxu0 %v261
  %810 = vmatpush.msra.mxu0 %v253
  %811 = vmatpush.msra.mxu0 %v245
  %812 = vmatpush.msra.mxu0 %v237
  %813 = vmatpush.msra.mxu0 %v229
  %814 = vmatpush.msra.mxu0 %v221
  %815 = vmatpush.msra.mxu0 %v213
  %816 = vmatpush.msra.mxu0 %v205
  %817 = vmatpush.msra.mxu0 %v197
  %818 = vmatpush.msra.mxu0 %v189
  %819 = vmatpush.msra.mxu0 %v181
  %820 = vmatpush.msra.mxu0 %v173
  %821 = vmatpush.msra.mxu0 %v165
  %822 = vmatpush.msra.mxu0 %v157
  %823 = vmatpush.msra.mxu0 %v149
  %824 = vmatmul.f32.gmra.mxu0 %v15
  %v825 = vpop.f32.mrf.mxu0
  %v826 = vadd.f32 %v806, %v825
  %827 = vdwg.mxu0
  %828 = vmatpush.msra.mxu0 %v397
  %829 = vmatpush.msra.mxu0 %v389
  %830 = vmatpush.msra.mxu0 %v381
  %831 = vmatpush.msra.mxu0 %v373
  %832 = vmatpush.msra.mxu0 %v365
  %833 = vmatpush.msra.mxu0 %v357
  %834 = vmatpush.msra.mxu0 %v349
  %835 = vmatpush.msra.mxu0 %v341
  %836 = vmatpush.msra.mxu0 %v333
  %837 = vmatpush.msra.mxu0 %v325
  %838 = vmatpush.msra.mxu0 %v317
  %839 = vmatpush.msra.mxu0 %v309
  %840 = vmatpush.msra.mxu0 %v301
  %841 = vmatpush.msra.mxu0 %v293
  %842 = vmatpush.msra.mxu0 %v285
  %843 = vmatpush.msra.mxu0 %v277
  %844 = vmatmul.f32.gmra.mxu0 %v16
  %v845 = vpop.f32.mrf.mxu0
  %v846 = vadd.f32 %v826, %v845
  %847 = vdwg.mxu0
  %848 = vmatpush.msra.mxu0 %v525
  %849 = vmatpush.msra.mxu0 %v517
  %850 = vmatpush.msra.mxu0 %v509
  %851 = vmatpush.msra.mxu0 %v501
  %852 = vmatpush.msra.mxu0 %v493
  %853 = vmatpush.msra.mxu0 %v485
  %854 = vmatpush.msra.mxu0 %v477
  %855 = vmatpush.msra.mxu0 %v469
  %856 = vmatpush.msra.mxu0 %v461
  %857 = vmatpush.msra.mxu0 %v453
  %858 = vmatpush.msra.mxu0 %v445
  %859 = vmatpush.msra.mxu0 %v437
  %860 = vmatpush.msra.mxu0 %v429
  %861 = vmatpush.msra.mxu0 %v421
  %862 = vmatpush.msra.mxu0 %v413
  %863 = vmatpush.msra.mxu0 %v405
  %864 = vmatmul.f32.gmra.mxu0 %v17
  %v865 = vpop.f32.mrf.mxu0
  %v866 = vadd.f32 %v846, %v865
  %867 = vdwg.mxu0
  %868 = vmatpush.msra.mxu0 %v142
  %869 = vmatpush.msra.mxu0 %v134
  %870 = vmatpush.msra.mxu0 %v126
  %871 = vmatpush.msra.mxu0 %v118
  %872 = vmatpush.msra.mxu0 %v110
  %873 = vmatpush.msra.mxu0 %v102
  %874 = vmatpush.msra.mxu0 %v94
  %875 = vmatpush.msra.mxu0 %v86
  %876 = vmatpush.msra.mxu0 %v78
  %877 = vmatpush.msra.mxu0 %v70
  %878 = vmatpush.msra.mxu0 %v62
  %879 = vmatpush.msra.mxu0 %v54
  %880 = vmatpush.msra.mxu0 %v46
  %881 = vmatpush.msra.mxu0 %v38
  %882 = vmatpush.msra.mxu0 %v30
  %883 = vmatpush.msra.mxu0 %v22
  %884 = vmatmul.f32.gmra.mxu0 %v14
  %v885 = vpop.f32.mrf.mxu0
  %v886 = vadd.f32 %v536, %v885
  %887 = vdwg.mxu0
  %888 = vmatpush.msra.mxu0 %v270
  %889 = vmatpush.msra.mxu0 %v262
  %890 = vmatpush.msra.mxu0 %v254
  %891 = vmatpush.msra.mxu0 %v246
  %892 = vmatpush.msra.mxu0 %v238
  %893 = vmatpush.msra.mxu0 %v230
  %894 = vmatpush.msra.mxu0 %v222
  %895 = vmatpush.msra.mxu0 %v214
  %896 = vmatpush.msra.mxu0 %v206
  %897 = vmatpush.msra.mxu0 %v198
  %898 = vmatpush.msra.mxu0 %v190
  %899 = vmatpush.msra.mxu0 %v182
  %900 = vmatpush.msra.mxu0 %v174
  %901 = vmatpush.msra.mxu0 %v166
  %902 = vmatpush.msra.mxu0 %v158
  %903 = vmatpush.msra.mxu0 %v150
  %904 = vmatmul.f32.gmra.mxu0 %v15
  %v905 = vpop.f32.mrf.mxu0
  %v906 = vadd.f32 %v886, %v905
  %907 = vdwg.mxu0
  %908 = vmatpush.msra.mxu0 %v398
  %909 = vmatpush.msra.mxu0 %v390
  %910 = vmatpush.msra.mxu0 %v382
  %911 = vmatpush.msra.mxu0 %v374
  %912 = vmatpush.msra.mxu0 %v366
  %913 = vmatpush.msra.mxu0 %v358
  %914 = vmatpush.msra.mxu0 %v350
  %915 = vmatpush.msra.mxu0 %v342
  %916 = vmatpush.msra.mxu0 %v334
  %917 = vmatpush.msra.mxu0 %v326
  %918 = vmatpush.msra.mxu0 %v318
  %919 = vmatpush.msra.mxu0 %v310
  %920 = vmatpush.msra.mxu0 %v302
  %921 = vmatpush.msra.mxu0 %v294
  %922 = vmatpush.msra.mxu0 %v286
  %923 = vmatpush.msra.mxu0 %v278
  %924 = vmatmul.f32.gmra.mxu0 %v16
  %v925 = vpop.f32.mrf.mxu0
  %v926 = vadd.f32 %v906, %v925
  %927 = vdwg.mxu0
  %928 = vmatpush.msra.mxu0 %v526
  %929 = vmatpush.msra.mxu0 %v518
  %930 = vmatpush.msra.mxu0 %v510
  %931 = vmatpush.msra.mxu0 %v502
  %932 = vmatpush.msra.mxu0 %v494
  %933 = vmatpush.msra.mxu0 %v486
  %934 = vmatpush.msra.mxu0 %v478
  %935 = vmatpush.msra.mxu0 %v470
  %936 = vmatpush.msra.mxu0 %v462
  %937 = vmatpush.msra.mxu0 %v454
  %938 = vmatpush.msra.mxu0 %v446
  %939 = vmatpush.msra.mxu0 %v438
  %940 = vmatpush.msra.mxu0 %v430
  %941 = vmatpush.msra.mxu0 %v422
  %942 = vmatpush.msra.mxu0 %v414
  %943 = vmatpush.msra.mxu0 %v406
  %944 = vmatmul.f32.gmra.mxu0 %v17
  %v945 = vpop.f32.mrf.mxu0
  %v946 = vadd.f32 %v926, %v945
  %947 = vdwg.mxu0
  %948 = vmatpush.msra.mxu0 %v143
  %949 = vmatpush.msra.mxu0 %v135
  %950 = vmatpush.msra.mxu0 %v127
  %951 = vmatpush.msra.mxu0 %v119
  %952 = vmatpush.msra.mxu0 %v111
  %953 = vmatpush.msra.mxu0 %v103
  %954 = vmatpush.msra.mxu0 %v95
  %955 = vmatpush.msra.mxu0 %v87
  %956 = vmatpush.msra.mxu0 %v79
  %957 = vmatpush.msra.mxu0 %v71
  %958 = vmatpush.msra.mxu0 %v63
  %959 = vmatpush.msra.mxu0 %v55
  %960 = vmatpush.msra.mxu0 %v47
  %961 = vmatpush.msra.mxu0 %v39
  %962 = vmatpush.msra.mxu0 %v31
  %963 = vmatpush.msra.mxu0 %v23
  %964 = vmatmul.f32.gmra.mxu0 %v14
  %v965 = vpop.f32.mrf.mxu0
  %v966 = vadd.f32 %v537, %v965
  %967 = vdwg.mxu0
  %968 = vmatpush.msra.mxu0 %v271
  %969 = vmatpush.msra.mxu0 %v263
  %970 = vmatpush.msra.mxu0 %v255
  %971 = vmatpush.msra.mxu0 %v247
  %972 = vmatpush.msra.mxu0 %v239
  %973 = vmatpush.msra.mxu0 %v231
  %974 = vmatpush.msra.mxu0 %v223
  %975 = vmatpush.msra.mxu0 %v215
  %976 = vmatpush.msra.mxu0 %v207
  %977 = vmatpush.msra.mxu0 %v199
  %978 = vmatpush.msra.mxu0 %v191
  %979 = vmatpush.msra.mxu0 %v183
  %980 = vmatpush.msra.mxu0 %v175
  %981 = vmatpush.msra.mxu0 %v167
  %982 = vmatpush.msra.mxu0 %v159
  %983 = vmatpush.msra.mxu0 %v151
  %984 = vmatmul.f32.gmra.mxu0 %v15
  %v985 = vpop.f32.mrf.mxu0
  %v986 = vadd.f32 %v966, %v985
  %987 = vdwg.mxu0
  %988 = vmatpush.msra.mxu0 %v399
  %989 = vmatpush.msra.mxu0 %v391
  %990 = vmatpush.msra.mxu0 %v383
  %991 = vmatpush.msra.mxu0 %v375
  %992 = vmatpush.msra.mxu0 %v367
  %993 = vmatpush.msra.mxu0 %v359
  %994 = vmatpush.msra.mxu0 %v351
  %995 = vmatpush.msra.mxu0 %v343
  %996 = vmatpush.msra.mxu0 %v335
  %997 = vmatpush.msra.mxu0 %v327
  %998 = vmatpush.msra.mxu0 %v319
  %999 = vmatpush.msra.mxu0 %v311
  %1000 = vmatpush.msra.mxu0 %v303
  %1001 = vmatpush.msra.mxu0 %v295
  %1002 = vmatpush.msra.mxu0 %v287
  %1003 = vmatpush.msra.mxu0 %v279
  %1004 = vmatmul.f32.gmra.mxu0 %v16
  %v1005 = vpop.f32.mrf.mxu0
  %v1006 = vadd.f32 %v986, %v1005
  %1007 = vdwg.mxu0
  %1008 = vmatpush.msra.mxu0 %v527
  %1009 = vmatpush.msra.mxu0 %v519
  %1010 = vmatpush.msra.mxu0 %v511
  %1011 = vmatpush.msra.mxu0 %v503
  %1012 = vmatpush.msra.mxu0 %v495
  %1013 = vmatpush.msra.mxu0 %v487
  %1014 = vmatpush.msra.mxu0 %v479
  %1015 = vmatpush.msra.mxu0 %v471
  %1016 = vmatpush.msra.mxu0 %v463
  %1017 = vmatpush.msra.mxu0 %v455
  %1018 = vmatpush.msra.mxu0 %v447
  %1019 = vmatpush.msra.mxu0 %v439
  %1020 = vmatpush.msra.mxu0 %v431
  %1021 = vmatpush.msra.mxu0 %v423
  %1022 = vmatpush.msra.mxu0 %v415
  %1023 = vmatpush.msra.mxu0 %v407
  %1024 = vmatmul.f32.gmra.mxu0 %v17
  %v1025 = vpop.f32.mrf.mxu0
  %v1026 = vadd.f32 %v1006, %v1025
  %1027 = vdwg.mxu0
  %1028 = vmatpush.msra.mxu0 %v144
  %1029 = vmatpush.msra.mxu0 %v136
  %1030 = vmatpush.msra.mxu0 %v128
  %1031 = vmatpush.msra.mxu0 %v120
  %1032 = vmatpush.msra.mxu0 %v112
  %1033 = vmatpush.msra.mxu0 %v104
  %1034 = vmatpush.msra.mxu0 %v96
  %1035 = vmatpush.msra.mxu0 %v88
  %1036 = vmatpush.msra.mxu0 %v80
  %1037 = vmatpush.msra.mxu0 %v72
  %1038 = vmatpush.msra.mxu0 %v64
  %1039 = vmatpush.msra.mxu0 %v56
  %1040 = vmatpush.msra.mxu0 %v48
  %1041 = vmatpush.msra.mxu0 %v40
  %1042 = vmatpush.msra.mxu0 %v32
  %1043 = vmatpush.msra.mxu0 %v24
  %1044 = vmatmul.f32.gmra.mxu0 %v14
  %v1045 = vpop.f32.mrf.mxu0
  %v1046 = vadd.f32 %v538, %v1045
  %1047 = vdwg.mxu0
  %1048 = vmatpush.msra.mxu0 %v272
  %1049 = vmatpush.msra.mxu0 %v264
  %1050 = vmatpush.msra.mxu0 %v256
  %1051 = vmatpush.msra.mxu0 %v248
  %1052 = vmatpush.msra.mxu0 %v240
  %1053 = vmatpush.msra.mxu0 %v232
  %1054 = vmatpush.msra.mxu0 %v224
  %1055 = vmatpush.msra.mxu0 %v216
  %1056 = vmatpush.msra.mxu0 %v208
  %1057 = vmatpush.msra.mxu0 %v200
  %1058 = vmatpush.msra.mxu0 %v192
  %1059 = vmatpush.msra.mxu0 %v184
  %1060 = vmatpush.msra.mxu0 %v176
  %1061 = vmatpush.msra.mxu0 %v168
  %1062 = vmatpush.msra.mxu0 %v160
  %1063 = vmatpush.msra.mxu0 %v152
  %1064 = vmatmul.f32.gmra.mxu0 %v15
  %v1065 = vpop.f32.mrf.mxu0
  %v1066 = vadd.f32 %v1046, %v1065
  %1067 = vdwg.mxu0
  %1068 = vmatpush.msra.mxu0 %v400
  %1069 = vmatpush.msra.mxu0 %v392
  %1070 = vmatpush.msra.mxu0 %v384
  %1071 = vmatpush.msra.mxu0 %v376
  %1072 = vmatpush.msra.mxu0 %v368
  %1073 = vmatpush.msra.mxu0 %v360
  %1074 = vmatpush.msra.mxu0 %v352
  %1075 = vmatpush.msra.mxu0 %v344
  %1076 = vmatpush.msra.mxu0 %v336
  %1077 = vmatpush.msra.mxu0 %v328
  %1078 = vmatpush.msra.mxu0 %v320
  %1079 = vmatpush.msra.mxu0 %v312
  %1080 = vmatpush.msra.mxu0 %v304
  %1081 = vmatpush.msra.mxu0 %v296
  %1082 = vmatpush.msra.mxu0 %v288
  %1083 = vmatpush.msra.mxu0 %v280
  %1084 = vmatmul.f32.gmra.mxu0 %v16
  %v1085 = vpop.f32.mrf.mxu0
  %v1086 = vadd.f32 %v1066, %v1085
  %1087 = vdwg.mxu0
  %1088 = vmatpush.msra.mxu0 %v528
  %1089 = vmatpush.msra.mxu0 %v520
  %1090 = vmatpush.msra.mxu0 %v512
  %1091 = vmatpush.msra.mxu0 %v504
  %1092 = vmatpush.msra.mxu0 %v496
  %1093 = vmatpush.msra.mxu0 %v488
  %1094 = vmatpush.msra.mxu0 %v480
  %1095 = vmatpush.msra.mxu0 %v472
  %1096 = vmatpush.msra.mxu0 %v464
  %1097 = vmatpush.msra.mxu0 %v456
  %1098 = vmatpush.msra.mxu0 %v448
  %1099 = vmatpush.msra.mxu0 %v440
  %1100 = vmatpush.msra.mxu0 %v432
  %1101 = vmatpush.msra.mxu0 %v424
  %1102 = vmatpush.msra.mxu0 %v416
  %1103 = vmatpush.msra.mxu0 %v408
  %1104 = vmatmul.f32.gmra.mxu0 %v17
  %v1105 = vpop.f32.mrf.mxu0
  %v1106 = vadd.f32 %v1086, %v1105
  %1107 = vdwg.mxu0
  %1108 = vmatpush.msra.mxu0 %v145
  %1109 = vmatpush.msra.mxu0 %v137
  %1110 = vmatpush.msra.mxu0 %v129
  %1111 = vmatpush.msra.mxu0 %v121
  %1112 = vmatpush.msra.mxu0 %v113
  %1113 = vmatpush.msra.mxu0 %v105
  %1114 = vmatpush.msra.mxu0 %v97
  %1115 = vmatpush.msra.mxu0 %v89
  %1116 = vmatpush.msra.mxu0 %v81
  %1117 = vmatpush.msra.mxu0 %v73
  %1118 = vmatpush.msra.mxu0 %v65
  %1119 = vmatpush.msra.mxu0 %v57
  %1120 = vmatpush.msra.mxu0 %v49
  %1121 = vmatpush.msra.mxu0 %v41
  %1122 = vmatpush.msra.mxu0 %v33
  %1123 = vmatpush.msra.mxu0 %v25
  %1124 = vmatmul.f32.gmra.mxu0 %v14
  %v1125 = vpop.f32.mrf.mxu0
  %v1126 = vadd.f32 %v539, %v1125
  %1127 = vdwg.mxu0
  %1128 = vmatpush.msra.mxu0 %v273
  %1129 = vmatpush.msra.mxu0 %v265
  %1130 = vmatpush.msra.mxu0 %v257
  %1131 = vmatpush.msra.mxu0 %v249
  %1132 = vmatpush.msra.mxu0 %v241
  %1133 = vmatpush.msra.mxu0 %v233
  %1134 = vmatpush.msra.mxu0 %v225
  %1135 = vmatpush.msra.mxu0 %v217
  %1136 = vmatpush.msra.mxu0 %v209
  %1137 = vmatpush.msra.mxu0 %v201
  %1138 = vmatpush.msra.mxu0 %v193
  %1139 = vmatpush.msra.mxu0 %v185
  %1140 = vmatpush.msra.mxu0 %v177
  %1141 = vmatpush.msra.mxu0 %v169
  %1142 = vmatpush.msra.mxu0 %v161
  %1143 = vmatpush.msra.mxu0 %v153
  %1144 = vmatmul.f32.gmra.mxu0 %v15
  %v1145 = vpop.f32.mrf.mxu0
  %v1146 = vadd.f32 %v1126, %v1145
  %1147 = vdwg.mxu0
  %1148 = vmatpush.msra.mxu0 %v401
  %1149 = vmatpush.msra.mxu0 %v393
  %1150 = vmatpush.msra.mxu0 %v385
  %1151 = vmatpush.msra.mxu0 %v377
  %1152 = vmatpush.msra.mxu0 %v369
  %1153 = vmatpush.msra.mxu0 %v361
  %1154 = vmatpush.msra.mxu0 %v353
  %1155 = vmatpush.msra.mxu0 %v345
  %1156 = vmatpush.msra.mxu0 %v337
  %1157 = vmatpush.msra.mxu0 %v329
  %1158 = vmatpush.msra.mxu0 %v321
  %1159 = vmatpush.msra.mxu0 %v313
  %1160 = vmatpush.msra.mxu0 %v305
  %1161 = vmatpush.msra.mxu0 %v297
  %1162 = vmatpush.msra.mxu0 %v289
  %1163 = vmatpush.msra.mxu0 %v281
  %1164 = vmatmul.f32.gmra.mxu0 %v16
  %v1165 = vpop.f32.mrf.mxu0
  %v1166 = vadd.f32 %v1146, %v1165
  %1167 = vdwg.mxu0
  %1168 = vmatpush.msra.mxu0 %v529
  %1169 = vmatpush.msra.mxu0 %v521
  %1170 = vmatpush.msra.mxu0 %v513
  %1171 = vmatpush.msra.mxu0 %v505
  %1172 = vmatpush.msra.mxu0 %v497
  %1173 = vmatpush.msra.mxu0 %v489
  %1174 = vmatpush.msra.mxu0 %v481
  %1175 = vmatpush.msra.mxu0 %v473
  %1176 = vmatpush.msra.mxu0 %v465
  %1177 = vmatpush.msra.mxu0 %v457
  %1178 = vmatpush.msra.mxu0 %v449
  %1179 = vmatpush.msra.mxu0 %v441
  %1180 = vmatpush.msra.mxu0 %v433
  %1181 = vmatpush.msra.mxu0 %v425
  %1182 = vmatpush.msra.mxu0 %v417
  %1183 = vmatpush.msra.mxu0 %v409
  %1184 = vmatmul.f32.gmra.mxu0 %v17
  %v1185 = vpop.f32.mrf.mxu0
  %v1186 = vadd.f32 %v1166, %v1185
  %1187 = vdwg.mxu0
  %1188 = vst [vmem:[%s3] sm:$0xff] %v626
  %1189 = vst [vmem:[%s3 + $0x8] sm:$0xff] %v706
  %1190 = vst [vmem:[%s3 + $0x10] sm:$0xff] %v786
  %1191 = vst [vmem:[%s3 + $0x18] sm:$0xff] %v866
  %1192 = vst [vmem:[%s3 + $0x20] sm:$0xff] %v946
  %1193 = vst [vmem:[%s3 + $0x28] sm:$0xff] %v1026
  %1194 = vst [vmem:[%s3 + $0x30] sm:$0xff] %v1106
  %1195 = vst [vmem:[%s3 + $0x38] sm:$0xff] %v1186
  // Predicated region
  $region14: #{decoder.21} parent=0 // pred_check
    _
  $region15: #{decoder.21} parent=0 // pred_check_branch
    %1197 = sbr.rel (0) target = $region17
  $region16: #{decoder.21} parent=0 // pred_region
    _
  $region17: #{decoder.21} parent=0 // pred_fallthru
    _
  // Predicated region
  $region18: #{decoder.21} parent=0 // pred_check
    _
  $region19: #{decoder.21} parent=0 // pred_check_branch
    %1199 = sbr.rel (0) target = $region21
  $region20: #{decoder.21} parent=0 // pred_region
    _
  $region21: #{decoder.21} parent=0 // pred_fallthru
    _

// kernel: decoder.24
$region0: #{decoder.24}
  #allocation0 [shape = 'u32[]', space=smem, size = 0x4, offset = 0x4, fixed_abs, tag = 'smem constant byte address 0x4 - core index']
  #allocation1 [shape = 'u32[72,128]{1,0:T(1,128)}', space=vmem, size = 0x9000, scoped, tag = 'internal scratch']
  %s0 = inlined_call_operand.vmem [shape: f32[8,512], index: 0, kind: input, shape index: {}]
  %s1 = inlined_call_operand.vmem [shape: f32[1,512], index: 1, kind: input, shape index: {}]
  %s2 = inlined_call_operand.hbm [shape: f32[1,512], index: 2, kind: input, shape index: {}]
  %s3 = inlined_call_operand.vmem [shape: f32[512,64], index: 3, kind: input, shape index: {}]
  %s4 = inlined_call_operand.hbm [shape: f32[1,64], index: 4, kind: input, shape index: {}]
  %s5 = inlined_call_operand.vmem [shape: f32[64,512], index: 5, kind: input, shape index: {}]
  %s6 = inlined_call_operand.hbm [shape: f32[1,512], index: 6, kind: input, shape index: {}]
  %s7 = inlined_call_operand.vmem [shape: f32[8,512], index: 7, kind: output, shape index: {}]
  %s8 = sld [smem:[#allocation0]]
  $region50: #{decoder.24} parent=0
    _
  %s10 = ssub.s32 1, %s8
  %s11 = scalar_select 0, %s10, %s8
  $region1: #{decoder.24} parent=0
    #allocation2 [shape = 'u8[2048]{0}', space=vmem, size = 0x800, scoped, tag = 'input window, operand 2, single buffered']
    #allocation3 [shape = 's32[1]{0}', space=sflag, size = 0x4, scoped, tag = 'scoped memory for decoder.24']
    #allocation4 [shape = 'u8[512]{0}', space=vmem, size = 0x400, scoped, tag = 'input window, operand 4, single buffered']
    #allocation5 [shape = 's32[1]{0}', space=sflag, size = 0x4, scoped, tag = 'scoped memory for decoder.24']
    #allocation6 [shape = 'u8[2048]{0}', space=vmem, size = 0x800, scoped, tag = 'input window, operand 6, single buffered']
    %12 = vsyncpa [#allocation3], 0
    %13 = vsyncpa [#allocation5], 0
    // Predicated region
    $region2: #{decoder.24} parent=1 // pred_check
      _
    $region3: #{decoder.24} parent=1 // pred_check_branch
      %15 = sbr.rel (0) target = $region5
    $region4: #{decoder.24} parent=1 // pred_region
      _
    $region5: #{decoder.24} parent=1 // pred_fallthru
      _
    // Predicated region
    $region6: #{decoder.24} parent=1 // pred_check
      _
    $region7: #{decoder.24} parent=1 // pred_check_branch
      %17 = sbr.rel (0) target = $region9
    $region8: #{decoder.24} parent=1 // pred_region
      _
    $region9: #{decoder.24} parent=1 // pred_fallthru
      _
    // Predicated region
    $region10: #{decoder.24} parent=1 // pred_check
      _
    $region11: #{decoder.24} parent=1 // pred_check_branch
      %19 = sbr.rel (0) target = $region13
    $region12: #{decoder.24} parent=1 // pred_region
      %21 = vsyncadd [#allocation3], 0
      %s23 = sshll.u32 %s2, 4
      %s24 = int_to_ptr.hbm [resolvable:$true] %s23
      %s25 = sshll.u32 [#allocation2], 4
      %s26 = int_to_ptr.vmem [resolvable:$true] %s25
      %28 = dma.hbm_to_vmem [thread:$0]  %s24, 64, %s26, [#allocation3]
    $region13: #{decoder.24} parent=1 // pred_fallthru
      _
    // Predicated region
    $region14: #{decoder.24} parent=1 // pred_check
      _
    $region15: #{decoder.24} parent=1 // pred_check_branch
      %30 = sbr.rel (0) target = $region17
    $region16: #{decoder.24} parent=1 // pred_region
      _
    $region17: #{decoder.24} parent=1 // pred_fallthru
      _
    // Predicated region
    $region18: #{decoder.24} parent=1 // pred_check
      _
    $region19: #{decoder.24} parent=1 // pred_check_branch
      %32 = sbr.rel (0) target = $region21
    $region20: #{decoder.24} parent=1 // pred_region
      %34 = vsyncadd [#allocation5], 0
      %s36 = sshll.u32 %s4, 4
      %s37 = int_to_ptr.hbm [resolvable:$true] %s36
      %s38 = sshll.u32 [#allocation4], 4
      %s39 = int_to_ptr.vmem [resolvable:$true] %s38
      %41 = dma.hbm_to_vmem [thread:$0]  %s37, 16, %s39, [#allocation5]
    $region21: #{decoder.24} parent=1 // pred_fallthru
      _
    // Predicated region
    $region22: #{decoder.24} parent=1 // pred_check
      _
    $region23: #{decoder.24} parent=1 // pred_check_branch
      %43 = sbr.rel (0) target = $region25
    $region24: #{decoder.24} parent=1 // pred_region
      _
    $region25: #{decoder.24} parent=1 // pred_fallthru
      _
    // Predicated region
    $region26: #{decoder.24} parent=1 // pred_check
      _
    $region27: #{decoder.24} parent=1 // pred_check_branch
      %45 = sbr.rel (0) target = $region29
    $region28: #{decoder.24} parent=1 // pred_region
      %47 = vsyncadd [#allocation5], 0
      %s49 = sshll.u32 %s6, 4
      %s50 = int_to_ptr.hbm [resolvable:$true] %s49
      %s51 = sshll.u32 [#allocation6], 4
      %s52 = int_to_ptr.vmem [resolvable:$true] %s51
      %54 = dma.hbm_to_vmem [thread:$0]  %s50, 64, %s52, [#allocation5]
    $region29: #{decoder.24} parent=1 // pred_fallthru
      _
    // Predicated region
    $region30: #{decoder.24} parent=1 // pred_check
      _
    $region31: #{decoder.24} parent=1 // pred_check_branch
      %56 = sbr.rel (0) target = $region33
    $region32: #{decoder.24} parent=1 // pred_region
      %58 = dma.done [#allocation3], 64
    $region33: #{decoder.24} parent=1 // pred_fallthru
      _
    // Predicated region
    $region34: #{decoder.24} parent=1 // pred_check
      _
    $region35: #{decoder.24} parent=1 // pred_check_branch
      %60 = sbr.rel (0) target = $region37
    $region36: #{decoder.24} parent=1 // pred_region
      %62 = dma.done [#allocation5], 16
    $region37: #{decoder.24} parent=1 // pred_fallthru
      _
    // Predicated region
    $region38: #{decoder.24} parent=1 // pred_check
      _
    $region39: #{decoder.24} parent=1 // pred_check_branch
      %64 = sbr.rel (0) target = $region41
    $region40: #{decoder.24} parent=1 // pred_region
      %66 = dma.done [#allocation5], 64
    $region41: #{decoder.24} parent=1 // pred_fallthru
      _
    %v67 = vld [vmem:[%s0] sm:$0xff]
    %v68 = vld [vmem:[%s0 + $0x8] sm:$0xff]
    %v69 = vld [vmem:[%s0 + $0x10] sm:$0xff]
    %v70 = vld [vmem:[%s0 + $0x18] sm:$0xff]
    %v71 = vld [vmem:[%s1] sm:$0xf]
    %v72 = vld [vmem:[#allocation2] sm:$0xf]
    %v73 = vadd.f32 %v67, %v68
    %v74 = vadd.f32 %v73, %v69
    %v75 = vadd.f32 %v74, %v70
    %76 = vadd.xlane.f32.xlu0 %v75
    %v77 = vpop.xlane.xlu0 %76
    %v78 = vmul.f32 %v77, 0.001953125
    %v79 = vsub.f32 %v67, %v78
    %v80 = vsub.f32 %v68, %v78
    %v81 = vsub.f32 %v69, %v78
    %v82 = vsub.f32 %v70, %v78
    %v83 = vmul.f32 %v79, %v79
    %v84 = vmul.f32 %v80, %v80
    %v85 = vmul.f32 %v81, %v81
    %v86 = vmul.f32 %v82, %v82
    %v87 = vadd.f32 %v83, %v84
    %v88 = vadd.f32 %v87, %v85
    %v89 = vadd.f32 %v88, %v86
    %90 = vadd.xlane.f32.xlu0 %v89
    %v91 = vpop.xlane.xlu0 %90
    %v92 = vmul.f32 %v91, 0.0019569471
    %v93 = vrsqrt.pop %v92
    %v94 = vmul.f32 %v93, %v92
    %v95 = vmul.f32 %v94, %v93
    %v96 = vmul.f32 0.5, %v95
    %v97 = vsub.f32 1.5, %v96
    %v98 = vmul.f32 %v93, %v97
    %v99 = vmul.f32 %v92, %v98
    %vm100 = vcmp.eq.f32.partialorder %v92, inf
    %v101 = vsel %vm100, %v92, %v99
    %vm102 = vcmp.eq.f32.partialorder %v92, 0.0
    %v103 = vand.u32 %v92, 2147483648
    %v104 = vsel %vm102, %v103, %v101
    %v105 = vadd.f32 %v104, 1e-06
    %v106 = vrcp.pop %v105
    %v107 = vmul.f32 %v105, %v106
    %v108 = vsub.f32 1.0, %v107
    %v109 = vmul.f32 %v106, %v108
    %v110 = vadd.f32 %v106, %v109
    %vm111 = vweird.f32 %v105
    %vm112 = vweird.f32 %v106
    %vm113 = vmor %vm111, %vm112
    %v114 = vsel %vm113, %v106, %v110
    %v115 = vand.u32 2147483647, %v105
    %vm116 = vcmp.eq.f32.partialorder %v115, 8.507059e+37
    %v117 = vand.u32 %v105, 2147483648
    %v118 = vor.u32 1.1754944e-38, %v117
    %v119 = vsel %vm116, %v118, %v114
    %v121 = vperm.slane %v71, 0
    %v122 = vperm.slane %v71, 1
    %v123 = vperm.slane %v71, 2
    %v124 = vperm.slane %v71, 3
    %v129 = vmul.f32 %v121, %v79
    %v130 = vmul.f32 %v122, %v80
    %v131 = vmul.f32 %v123, %v81
    %v132 = vmul.f32 %v124, %v82
    %v133 = vmul.f32 %v129, %v119
    %v134 = vmul.f32 %v130, %v119
    %v135 = vmul.f32 %v131, %v119
    %v136 = vmul.f32 %v132, %v119
    %v138 = vperm.slane %v72, 0
    %v139 = vperm.slane %v72, 1
    %v140 = vperm.slane %v72, 2
    %v141 = vperm.slane %v72, 3
    %v146 = vadd.f32 %v133, %v138
    %v147 = vadd.f32 %v134, %v139
    %v148 = vadd.f32 %v135, %v140
    %v149 = vadd.f32 %v136, %v141
    %v150 = vld [vmem:[%s3] sm:$0xff]
    %v151 = vld [vmem:[%s3 + $0x8] sm:$0xff]
    %v152 = vld [vmem:[%s3 + $0x10] sm:$0xff]
    %v153 = vld [vmem:[%s3 + $0x18] sm:$0xff]
    %v154 = vld [vmem:[%s3 + $0x20] sm:$0xff]
    %v155 = vld [vmem:[%s3 + $0x28] sm:$0xff]
    %v156 = vld [vmem:[%s3 + $0x30] sm:$0xff]
    %v157 = vld [vmem:[%s3 + $0x38] sm:$0xff]
    %v158 = vld [vmem:[%s3 + $0x40] sm:$0xff]
    %v159 = vld [vmem:[%s3 + $0x48] sm:$0xff]
    %v160 = vld [vmem:[%s3 + $0x50] sm:$0xff]
    %v161 = vld [vmem:[%s3 + $0x58] sm:$0xff]
    %v162 = vld [vmem:[%s3 + $0x60] sm:$0xff]
    %v163 = vld [vmem:[%s3 + $0x68] sm:$0xff]
    %v164 = vld [vmem:[%s3 + $0x70] sm:$0xff]
    %v165 = vld [vmem:[%s3 + $0x78] sm:$0xff]
    %v166 = vld [vmem:[%s3 + $0x80] sm:$0xff]
    %v167 = vld [vmem:[%s3 + $0x88] sm:$0xff]
    %v168 = vld [vmem:[%s3 + $0x90] sm:$0xff]
    %v169 = vld [vmem:[%s3 + $0x98] sm:$0xff]
    %v170 = vld [vmem:[%s3 + $0xa0] sm:$0xff]
    %v171 = vld [vmem:[%s3 + $0xa8] sm:$0xff]
    %v172 = vld [vmem:[%s3 + $0xb0] sm:$0xff]
    %v173 = vld [vmem:[%s3 + $0xb8] sm:$0xff]
    %v174 = vld [vmem:[%s3 + $0xc0] sm:$0xff]
    %v175 = vld [vmem:[%s3 + $0xc8] sm:$0xff]
    %v176 = vld [vmem:[%s3 + $0xd0] sm:$0xff]
    %v177 = vld [vmem:[%s3 + $0xd8] sm:$0xff]
    %v178 = vld [vmem:[%s3 + $0xe0] sm:$0xff]
    %v179 = vld [vmem:[%s3 + $0xe8] sm:$0xff]
    %v180 = vld [vmem:[%s3 + $0xf0] sm:$0xff]
    %v181 = vld [vmem:[%s3 + $0xf8] sm:$0xff]
    %v182 = vld [vmem:[%s3 + $0x100] sm:$0xff]
    %v183 = vld [vmem:[%s3 + $0x108] sm:$0xff]
    %v184 = vld [vmem:[%s3 + $0x110] sm:$0xff]
    %v185 = vld [vmem:[%s3 + $0x118] sm:$0xff]
    %v186 = vld [vmem:[%s3 + $0x120] sm:$0xff]
    %v187 = vld [vmem:[%s3 + $0x128] sm:$0xff]
    %v188 = vld [vmem:[%s3 + $0x130] sm:$0xff]
    %v189 = vld [vmem:[%s3 + $0x138] sm:$0xff]
    %v190 = vld [vmem:[%s3 + $0x140] sm:$0xff]
    %v191 = vld [vmem:[%s3 + $0x148] sm:$0xff]
    %v192 = vld [vmem:[%s3 + $0x150] sm:$0xff]
    %v193 = vld [vmem:[%s3 + $0x158] sm:$0xff]
    %v194 = vld [vmem:[%s3 + $0x160] sm:$0xff]
    %v195 = vld [vmem:[%s3 + $0x168] sm:$0xff]
    %v196 = vld [vmem:[%s3 + $0x170] sm:$0xff]
    %v197 = vld [vmem:[%s3 + $0x178] sm:$0xff]
    %v198 = vld [vmem:[%s3 + $0x180] sm:$0xff]
    %v199 = vld [vmem:[%s3 + $0x188] sm:$0xff]
    %v200 = vld [vmem:[%s3 + $0x190] sm:$0xff]
    %v201 = vld [vmem:[%s3 + $0x198] sm:$0xff]
    %v202 = vld [vmem:[%s3 + $0x1a0] sm:$0xff]
    %v203 = vld [vmem:[%s3 + $0x1a8] sm:$0xff]
    %v204 = vld [vmem:[%s3 + $0x1b0] sm:$0xff]
    %v205 = vld [vmem:[%s3 + $0x1b8] sm:$0xff]
    %v206 = vld [vmem:[%s3 + $0x1c0] sm:$0xff]
    %v207 = vld [vmem:[%s3 + $0x1c8] sm:$0xff]
    %v208 = vld [vmem:[%s3 + $0x1d0] sm:$0xff]
    %v209 = vld [vmem:[%s3 + $0x1d8] sm:$0xff]
    %v210 = vld [vmem:[%s3 + $0x1e0] sm:$0xff]
    %v211 = vld [vmem:[%s3 + $0x1e8] sm:$0xff]
    %v212 = vld [vmem:[%s3 + $0x1f0] sm:$0xff]
    %v213 = vld [vmem:[%s3 + $0x1f8] sm:$0xff]
    %v214 = vld [vmem:[#allocation4] sm:$0x1]
    %v216 = vperm.slane %v214, 0
    %218 = vmatpush.msra.mxu0 %v165
    %219 = vmatpush.msra.mxu0 %v164
    %220 = vmatpush.msra.mxu0 %v163
    %221 = vmatpush.msra.mxu0 %v162
    %222 = vmatpush.msra.mxu0 %v161
    %223 = vmatpush.msra.mxu0 %v160
    %224 = vmatpush.msra.mxu0 %v159
    %225 = vmatpush.msra.mxu0 %v158
    %226 = vmatpush.msra.mxu0 %v157
    %227 = vmatpush.msra.mxu0 %v156
    %228 = vmatpush.msra.mxu0 %v155
    %229 = vmatpush.msra.mxu0 %v154
    %230 = vmatpush.msra.mxu0 %v153
    %231 = vmatpush.msra.mxu0 %v152
    %232 = vmatpush.msra.mxu0 %v151
    %233 = vmatpush.msra.mxu0 %v150
    %234 = vmatmul.f32.gmra.mxu0 %v146
    %v235 = vpop.f32.mrf.mxu0
    %v236 = vadd.f32 %v216, %v235
    %237 = vdwg.mxu0
    %238 = vmatpush.msra.mxu0 %v181
    %239 = vmatpush.msra.mxu0 %v180
    %240 = vmatpush.msra.mxu0 %v179
    %241 = vmatpush.msra.mxu0 %v178
    %242 = vmatpush.msra.mxu0 %v177
    %243 = vmatpush.msra.mxu0 %v176
    %244 = vmatpush.msra.mxu0 %v175
    %245 = vmatpush.msra.mxu0 %v174
    %246 = vmatpush.msra.mxu0 %v173
    %247 = vmatpush.msra.mxu0 %v172
    %248 = vmatpush.msra.mxu0 %v171
    %249 = vmatpush.msra.mxu0 %v170
    %250 = vmatpush.msra.mxu0 %v169
    %251 = vmatpush.msra.mxu0 %v168
    %252 = vmatpush.msra.mxu0 %v167
    %253 = vmatpush.msra.mxu0 %v166
    %254 = vmatmul.f32.gmra.mxu0 %v147
    %v255 = vpop.f32.mrf.mxu0
    %v256 = vadd.f32 %v236, %v255
    %257 = vdwg.mxu0
    %258 = vmatpush.msra.mxu0 %v197
    %259 = vmatpush.msra.mxu0 %v196
    %260 = vmatpush.msra.mxu0 %v195
    %261 = vmatpush.msra.mxu0 %v194
    %262 = vmatpush.msra.mxu0 %v193
    %263 = vmatpush.msra.mxu0 %v192
    %264 = vmatpush.msra.mxu0 %v191
    %265 = vmatpush.msra.mxu0 %v190
    %266 = vmatpush.msra.mxu0 %v189
    %267 = vmatpush.msra.mxu0 %v188
    %268 = vmatpush.msra.mxu0 %v187
    %269 = vmatpush.msra.mxu0 %v186
    %270 = vmatpush.msra.mxu0 %v185
    %271 = vmatpush.msra.mxu0 %v184
    %272 = vmatpush.msra.mxu0 %v183
    %273 = vmatpush.msra.mxu0 %v182
    %274 = vmatmul.f32.gmra.mxu0 %v148
    %v275 = vpop.f32.mrf.mxu0
    %v276 = vadd.f32 %v256, %v275
    %277 = vdwg.mxu0
    %278 = vmatpush.msra.mxu0 %v213
    %279 = vmatpush.msra.mxu0 %v212
    %280 = vmatpush.msra.mxu0 %v211
    %281 = vmatpush.msra.mxu0 %v210
    %282 = vmatpush.msra.mxu0 %v209
    %283 = vmatpush.msra.mxu0 %v208
    %284 = vmatpush.msra.mxu0 %v207
    %285 = vmatpush.msra.mxu0 %v206
    %286 = vmatpush.msra.mxu0 %v205
    %287 = vmatpush.msra.mxu0 %v204
    %288 = vmatpush.msra.mxu0 %v203
    %289 = vmatpush.msra.mxu0 %v202
    %290 = vmatpush.msra.mxu0 %v201
    %291 = vmatpush.msra.mxu0 %v200
    %292 = vmatpush.msra.mxu0 %v199
    %293 = vmatpush.msra.mxu0 %v198
    %294 = vmatmul.f32.gmra.mxu0 %v149
    %v295 = vpop.f32.mrf.mxu0
    %v296 = vadd.f32 %v276, %v295
    %297 = vdwg.mxu0
    %v298 = vmax.f32 %v296, 0.0
    %v299 = vld [vmem:[%s5] sm:$0xff]
    %v300 = vld [vmem:[%s5 + $0x8] sm:$0xff]
    %v301 = vld [vmem:[%s5 + $0x10] sm:$0xff]
    %v302 = vld [vmem:[%s5 + $0x18] sm:$0xff]
    %v303 = vld [vmem:[%s5 + $0x20] sm:$0xff]
    %v304 = vld [vmem:[%s5 + $0x28] sm:$0xff]
    %v305 = vld [vmem:[%s5 + $0x30] sm:$0xff]
    %v306 = vld [vmem:[%s5 + $0x38] sm:$0xff]
    %v307 = vld [vmem:[%s5 + $0x40] sm:$0xff]
    %v308 = vld [vmem:[%s5 + $0x48] sm:$0xff]
    %v309 = vld [vmem:[%s5 + $0x50] sm:$0xff]
    %v310 = vld [vmem:[%s5 + $0x58] sm:$0xff]
    %v311 = vld [vmem:[%s5 + $0x60] sm:$0xff]
    %v312 = vld [vmem:[%s5 + $0x68] sm:$0xff]
    %v313 = vld [vmem:[%s5 + $0x70] sm:$0xff]
    %v314 = vld [vmem:[%s5 + $0x78] sm:$0xff]
    %v315 = vld [vmem:[%s5 + $0x80] sm:$0xff]
    %v316 = vld [vmem:[%s5 + $0x88] sm:$0xff]
    %v317 = vld [vmem:[%s5 + $0x90] sm:$0xff]
    %v318 = vld [vmem:[%s5 + $0x98] sm:$0xff]
    %v319 = vld [vmem:[%s5 + $0xa0] sm:$0xff]
    %v320 = vld [vmem:[%s5 + $0xa8] sm:$0xff]
    %v321 = vld [vmem:[%s5 + $0xb0] sm:$0xff]
    %v322 = vld [vmem:[%s5 + $0xb8] sm:$0xff]
    %v323 = vld [vmem:[%s5 + $0xc0] sm:$0xff]
    %v324 = vld [vmem:[%s5 + $0xc8] sm:$0xff]
    %v325 = vld [vmem:[%s5 + $0xd0] sm:$0xff]
    %v326 = vld [vmem:[%s5 + $0xd8] sm:$0xff]
    %v327 = vld [vmem:[%s5 + $0xe0] sm:$0xff]
    %v328 = vld [vmem:[%s5 + $0xe8] sm:$0xff]
    %v329 = vld [vmem:[%s5 + $0xf0] sm:$0xff]
    %v330 = vld [vmem:[%s5 + $0xf8] sm:$0xff]
    %v331 = vld [vmem:[#allocation6] sm:$0xf]
    %v333 = vperm.slane %v331, 0
    %v334 = vperm.slane %v331, 1
    %v335 = vperm.slane %v331, 2
    %v336 = vperm.slane %v331, 3
    %vm341 = vcmask 523264
    %v343 = vsel %vm341, %v298, 0
    %345 = vmatpush.msra.mxu0 0.0
    %346 = vmatpush.msra.mxu0 0.0
    %347 = vmatpush.msra.mxu0 0.0
    %348 = vmatpush.msra.mxu0 0.0
    %349 = vmatpush.msra.mxu0 0.0
    %350 = vmatpush.msra.mxu0 0.0
    %351 = vmatpush.msra.mxu0 0.0
    %352 = vmatpush.msra.mxu0 0.0
    %353 = vmatpush.msra.mxu0 %v327
    %354 = vmatpush.msra.mxu0 %v323
    %355 = vmatpush.msra.mxu0 %v319
    %356 = vmatpush.msra.mxu0 %v315
    %357 = vmatpush.msra.mxu0 %v311
    %358 = vmatpush.msra.mxu0 %v307
    %359 = vmatpush.msra.mxu0 %v303
    %360 = vmatpush.msra.mxu0 %v299
    %361 = vmatmul.f32.gmra.mxu0 %v343
    %v362 = vpop.f32.mrf.mxu0
    %v363 = vadd.f32 %v333, %v362
    %364 = vdwg.mxu0
    %365 = vmatpush.msra.mxu0 0.0
    %366 = vmatpush.msra.mxu0 0.0
    %367 = vmatpush.msra.mxu0 0.0
    %368 = vmatpush.msra.mxu0 0.0
    %369 = vmatpush.msra.mxu0 0.0
    %370 = vmatpush.msra.mxu0 0.0
    %371 = vmatpush.msra.mxu0 0.0
    %372 = vmatpush.msra.mxu0 0.0
    %373 = vmatpush.msra.mxu0 %v328
    %374 = vmatpush.msra.mxu0 %v324
    %375 = vmatpush.msra.mxu0 %v320
    %376 = vmatpush.msra.mxu0 %v316
    %377 = vmatpush.msra.mxu0 %v312
    %378 = vmatpush.msra.mxu0 %v308
    %379 = vmatpush.msra.mxu0 %v304
    %380 = vmatpush.msra.mxu0 %v300
    %381 = vmatmul.f32.gmra.mxu0 %v343
    %v382 = vpop.f32.mrf.mxu0
    %v383 = vadd.f32 %v334, %v382
    %384 = vdwg.mxu0
    %385 = vmatpush.msra.mxu0 0.0
    %386 = vmatpush.msra.mxu0 0.0
    %387 = vmatpush.msra.mxu0 0.0
    %388 = vmatpush.msra.mxu0 0.0
    %389 = vmatpush.msra.mxu0 0.0
    %390 = vmatpush.msra.mxu0 0.0
    %391 = vmatpush.msra.mxu0 0.0
    %392 = vmatpush.msra.mxu0 0.0
    %393 = vmatpush.msra.mxu0 %v329
    %394 = vmatpush.msra.mxu0 %v325
    %395 = vmatpush.msra.mxu0 %v321
    %396 = vmatpush.msra.mxu0 %v317
    %397 = vmatpush.msra.mxu0 %v313
    %398 = vmatpush.msra.mxu0 %v309
    %399 = vmatpush.msra.mxu0 %v305
    %400 = vmatpush.msra.mxu0 %v301
    %401 = vmatmul.f32.gmra.mxu0 %v343
    %v402 = vpop.f32.mrf.mxu0
    %v403 = vadd.f32 %v335, %v402
    %404 = vdwg.mxu0
    %405 = vmatpush.msra.mxu0 0.0
    %406 = vmatpush.msra.mxu0 0.0
    %407 = vmatpush.msra.mxu0 0.0
    %408 = vmatpush.msra.mxu0 0.0
    %409 = vmatpush.msra.mxu0 0.0
    %410 = vmatpush.msra.mxu0 0.0
    %411 = vmatpush.msra.mxu0 0.0
    %412 = vmatpush.msra.mxu0 0.0
    %413 = vmatpush.msra.mxu0 %v330
    %414 = vmatpush.msra.mxu0 %v326
    %415 = vmatpush.msra.mxu0 %v322
    %416 = vmatpush.msra.mxu0 %v318
    %417 = vmatpush.msra.mxu0 %v314
    %418 = vmatpush.msra.mxu0 %v310
    %419 = vmatpush.msra.mxu0 %v306
    %420 = vmatpush.msra.mxu0 %v302
    %421 = vmatmul.f32.gmra.mxu0 %v343
    %v422 = vpop.f32.mrf.mxu0
    %v423 = vadd.f32 %v336, %v422
    %424 = vdwg.mxu0
    %v425 = vadd.f32 %v67, %v363
    %v426 = vadd.f32 %v68, %v383
    %v427 = vadd.f32 %v69, %v403
    %v428 = vadd.f32 %v70, %v423
    %429 = vst [vmem:[%s7] sm:$0xff] %v425
    %430 = vst [vmem:[%s7 + $0x8] sm:$0xff] %v426
    %431 = vst [vmem:[%s7 + $0x10] sm:$0xff] %v427
    %432 = vst [vmem:[%s7 + $0x18] sm:$0xff] %v428
    // Predicated region
    $region42: #{decoder.24} parent=1 // pred_check
      _
    $region43: #{decoder.24} parent=1 // pred_check_branch
      %434 = sbr.rel (0) target = $region45
    $region44: #{decoder.24} parent=1 // pred_region
      _
    $region45: #{decoder.24} parent=1 // pred_fallthru
      _
    // Predicated region
    $region46: #{decoder.24} parent=1 // pred_check
      _
    $region47: #{decoder.24} parent=1 // pred_check_branch
      %436 = sbr.rel (0) target = $region49
    $region48: #{decoder.24} parent=1 // pred_region
      _
    $region49: #{decoder.24} parent=1 // pred_fallthru
      _
    %437 = vsyncpa [#allocation3], 1
    %438 = vsyncpa [#allocation5], 1

// kernel: decoder.32
$region0: #{decoder.32}
  #allocation0 [shape = 'u32[]', space=smem, size = 0x4, offset = 0x4, fixed_abs, tag = 'smem constant byte address 0x4 - core index']
  #allocation1 [shape = 'u32[72,128]{1,0:T(1,128)}', space=vmem, size = 0x9000, scoped, tag = 'internal scratch']
  %s0 = inlined_call_operand.vmem [shape: f32[8,512], index: 0, kind: input, shape index: {}]
  %s1 = inlined_call_operand.vmem [shape: f32[1,512], index: 1, kind: input, shape index: {}]
  %s2 = inlined_call_operand.vmem [shape: f32[1,512], index: 2, kind: input, shape index: {}]
  %s3 = inlined_call_operand.vmem [shape: f32[512,64], index: 3, kind: input, shape index: {}]
  %s4 = inlined_call_operand.vmem [shape: f32[1,64], index: 4, kind: input, shape index: {}]
  %s5 = inlined_call_operand.vmem [shape: f32[64,512], index: 5, kind: input, shape index: {}]
  %s6 = inlined_call_operand.vmem [shape: f32[1,512], index: 6, kind: input, shape index: {}]
  %s7 = inlined_call_operand.vmem [shape: f32[8,512], index: 7, kind: output, shape index: {}]
  %s8 = sld [smem:[#allocation0]]
  $region38: #{decoder.32} parent=0
    _
  %s10 = ssub.s32 1, %s8
  %s11 = scalar_select 0, %s10, %s8
  // Predicated region
  $region2: #{decoder.32} parent=0 // pred_check
    _
  $region3: #{decoder.32} parent=0 // pred_check_branch
    %13 = sbr.rel (0) target = $region5
  $region4: #{decoder.32} parent=0 // pred_region
    _
  $region5: #{decoder.32} parent=0 // pred_fallthru
    _
  // Predicated region
  $region6: #{decoder.32} parent=0 // pred_check
    _
  $region7: #{decoder.32} parent=0 // pred_check_branch
    %15 = sbr.rel (0) target = $region9
  $region8: #{decoder.32} parent=0 // pred_region
    _
  $region9: #{decoder.32} parent=0 // pred_fallthru
    _
  // Predicated region
  $region10: #{decoder.32} parent=0 // pred_check
    _
  $region11: #{decoder.32} parent=0 // pred_check_branch
    %17 = sbr.rel (0) target = $region13
  $region12: #{decoder.32} parent=0 // pred_region
    _
  $region13: #{decoder.32} parent=0 // pred_fallthru
    _
  // Predicated region
  $region14: #{decoder.32} parent=0 // pred_check
    _
  $region15: #{decoder.32} parent=0 // pred_check_branch
    %19 = sbr.rel (0) target = $region17
  $region16: #{decoder.32} parent=0 // pred_region
    _
  $region17: #{decoder.32} parent=0 // pred_fallthru
    _
  // Predicated region
  $region18: #{decoder.32} parent=0 // pred_check
    _
  $region19: #{decoder.32} parent=0 // pred_check_branch
    %21 = sbr.rel (0) target = $region21
  $region20: #{decoder.32} parent=0 // pred_region
    _
  $region21: #{decoder.32} parent=0 // pred_fallthru
    _
  // Predicated region
  $region22: #{decoder.32} parent=0 // pred_check
    _
  $region23: #{decoder.32} parent=0 // pred_check_branch
    %23 = sbr.rel (0) target = $region25
  $region24: #{decoder.32} parent=0 // pred_region
    _
  $region25: #{decoder.32} parent=0 // pred_fallthru
    _
  // Predicated region
  $region26: #{decoder.32} parent=0 // pred_check
    _
  $region27: #{decoder.32} parent=0 // pred_check_branch
    %25 = sbr.rel (0) target = $region29
  $region28: #{decoder.32} parent=0 // pred_region
    _
  $region29: #{decoder.32} parent=0 // pred_fallthru
    _
  %v26 = vld [vmem:[%s0] sm:$0xff]
  %v27 = vld [vmem:[%s0 + $0x8] sm:$0xff]
  %v28 = vld [vmem:[%s0 + $0x10] sm:$0xff]
  %v29 = vld [vmem:[%s0 + $0x18] sm:$0xff]
  %v30 = vld [vmem:[%s1] sm:$0xf]
  %v31 = vld [vmem:[%s2] sm:$0xf]
  %v32 = vadd.f32 %v26, %v27
  %v33 = vadd.f32 %v32, %v28
  %v34 = vadd.f32 %v33, %v29
  %35 = vadd.xlane.f32.xlu0 %v34
  %v36 = vpop.xlane.xlu0 %35
  %v37 = vmul.f32 %v36, 0.001953125
  %v38 = vsub.f32 %v26, %v37
  %v39 = vsub.f32 %v27, %v37
  %v40 = vsub.f32 %v28, %v37
  %v41 = vsub.f32 %v29, %v37
  %v42 = vmul.f32 %v38, %v38
  %v43 = vmul.f32 %v39, %v39
  %v44 = vmul.f32 %v40, %v40
  %v45 = vmul.f32 %v41, %v41
  %v46 = vadd.f32 %v42, %v43
  %v47 = vadd.f32 %v46, %v44
  %v48 = vadd.f32 %v47, %v45
  %49 = vadd.xlane.f32.xlu0 %v48
  %v50 = vpop.xlane.xlu0 %49
  %v51 = vmul.f32 %v50, 0.0019569471
  %v52 = vrsqrt.pop %v51
  %v53 = vmul.f32 %v52, %v51
  %v54 = vmul.f32 %v53, %v52
  %v55 = vmul.f32 0.5, %v54
  %v56 = vsub.f32 1.5, %v55
  %v57 = vmul.f32 %v52, %v56
  %v58 = vmul.f32 %v51, %v57
  %vm59 = vcmp.eq.f32.partialorder %v51, inf
  %v60 = vsel %vm59, %v51, %v58
  %vm61 = vcmp.eq.f32.partialorder %v51, 0.0
  %v62 = vand.u32 %v51, 2147483648
  %v63 = vsel %vm61, %v62, %v60
  %v64 = vadd.f32 %v63, 1e-06
  %v65 = vrcp.pop %v64
  %v66 = vmul.f32 %v64, %v65
  %v67 = vsub.f32 1.0, %v66
  %v68 = vmul.f32 %v65, %v67
  %v69 = vadd.f32 %v65, %v68
  %vm70 = vweird.f32 %v64
  %vm71 = vweird.f32 %v65
  %vm72 = vmor %vm70, %vm71
  %v73 = vsel %vm72, %v65, %v69
  %v74 = vand.u32 2147483647, %v64
  %vm75 = vcmp.eq.f32.partialorder %v74, 8.507059e+37
  %v76 = vand.u32 %v64, 2147483648
  %v77 = vor.u32 1.1754944e-38, %v76
  %v78 = vsel %vm75, %v77, %v73
  %v80 = vperm.slane %v30, 0
  %v81 = vperm.slane %v30, 1
  %v82 = vperm.slane %v30, 2
  %v83 = vperm.slane %v30, 3
  %v88 = vmul.f32 %v80, %v38
  %v89 = vmul.f32 %v81, %v39
  %v90 = vmul.f32 %v82, %v40
  %v91 = vmul.f32 %v83, %v41
  %v92 = vmul.f32 %v88, %v78
  %v93 = vmul.f32 %v89, %v78
  %v94 = vmul.f32 %v90, %v78
  %v95 = vmul.f32 %v91, %v78
  %v97 = vperm.slane %v31, 0
  %v98 = vperm.slane %v31, 1
  %v99 = vperm.slane %v31, 2
  %v100 = vperm.slane %v31, 3
  %v105 = vadd.f32 %v92, %v97
  %v106 = vadd.f32 %v93, %v98
  %v107 = vadd.f32 %v94, %v99
  %v108 = vadd.f32 %v95, %v100
  %v109 = vld [vmem:[%s3] sm:$0xff]
  %v110 = vld [vmem:[%s3 + $0x8] sm:$0xff]
  %v111 = vld [vmem:[%s3 + $0x10] sm:$0xff]
  %v112 = vld [vmem:[%s3 + $0x18] sm:$0xff]
  %v113 = vld [vmem:[%s3 + $0x20] sm:$0xff]
  %v114 = vld [vmem:[%s3 + $0x28] sm:$0xff]
  %v115 = vld [vmem:[%s3 + $0x30] sm:$0xff]
  %v116 = vld [vmem:[%s3 + $0x38] sm:$0xff]
  %v117 = vld [vmem:[%s3 + $0x40] sm:$0xff]
  %v118 = vld [vmem:[%s3 + $0x48] sm:$0xff]
  %v119 = vld [vmem:[%s3 + $0x50] sm:$0xff]
  %v120 = vld [vmem:[%s3 + $0x58] sm:$0xff]
  %v121 = vld [vmem:[%s3 + $0x60] sm:$0xff]
  %v122 = vld [vmem:[%s3 + $0x68] sm:$0xff]
  %v123 = vld [vmem:[%s3 + $0x70] sm:$0xff]
  %v124 = vld [vmem:[%s3 + $0x78] sm:$0xff]
  %v125 = vld [vmem:[%s3 + $0x80] sm:$0xff]
  %v126 = vld [vmem:[%s3 + $0x88] sm:$0xff]
  %v127 = vld [vmem:[%s3 + $0x90] sm:$0xff]
  %v128 = vld [vmem:[%s3 + $0x98] sm:$0xff]
  %v129 = vld [vmem:[%s3 + $0xa0] sm:$0xff]
  %v130 = vld [vmem:[%s3 + $0xa8] sm:$0xff]
  %v131 = vld [vmem:[%s3 + $0xb0] sm:$0xff]
  %v132 = vld [vmem:[%s3 + $0xb8] sm:$0xff]
  %v133 = vld [vmem:[%s3 + $0xc0] sm:$0xff]
  %v134 = vld [vmem:[%s3 + $0xc8] sm:$0xff]
  %v135 = vld [vmem:[%s3 + $0xd0] sm:$0xff]
  %v136 = vld [vmem:[%s3 + $0xd8] sm:$0xff]
  %v137 = vld [vmem:[%s3 + $0xe0] sm:$0xff]
  %v138 = vld [vmem:[%s3 + $0xe8] sm:$0xff]
  %v139 = vld [vmem:[%s3 + $0xf0] sm:$0xff]
  %v140 = vld [vmem:[%s3 + $0xf8] sm:$0xff]
  %v141 = vld [vmem:[%s3 + $0x100] sm:$0xff]
  %v142 = vld [vmem:[%s3 + $0x108] sm:$0xff]
  %v143 = vld [vmem:[%s3 + $0x110] sm:$0xff]
  %v144 = vld [vmem:[%s3 + $0x118] sm:$0xff]
  %v145 = vld [vmem:[%s3 + $0x120] sm:$0xff]
  %v146 = vld [vmem:[%s3 + $0x128] sm:$0xff]
  %v147 = vld [vmem:[%s3 + $0x130] sm:$0xff]
  %v148 = vld [vmem:[%s3 + $0x138] sm:$0xff]
  %v149 = vld [vmem:[%s3 + $0x140] sm:$0xff]
  %v150 = vld [vmem:[%s3 + $0x148] sm:$0xff]
  %v151 = vld [vmem:[%s3 + $0x150] sm:$0xff]
  %v152 = vld [vmem:[%s3 + $0x158] sm:$0xff]
  %v153 = vld [vmem:[%s3 + $0x160] sm:$0xff]
  %v154 = vld [vmem:[%s3 + $0x168] sm:$0xff]
  %v155 = vld [vmem:[%s3 + $0x170] sm:$0xff]
  %v156 = vld [vmem:[%s3 + $0x178] sm:$0xff]
  %v157 = vld [vmem:[%s3 + $0x180] sm:$0xff]
  %v158 = vld [vmem:[%s3 + $0x188] sm:$0xff]
  %v159 = vld [vmem:[%s3 + $0x190] sm:$0xff]
  %v160 = vld [vmem:[%s3 + $0x198] sm:$0xff]
  %v161 = vld [vmem:[%s3 + $0x1a0] sm:$0xff]
  %v162 = vld [vmem:[%s3 + $0x1a8] sm:$0xff]
  %v163 = vld [vmem:[%s3 + $0x1b0] sm:$0xff]
  %v164 = vld [vmem:[%s3 + $0x1b8] sm:$0xff]
  %v165 = vld [vmem:[%s3 + $0x1c0] sm:$0xff]
  %v166 = vld [vmem:[%s3 + $0x1c8] sm:$0xff]
  %v167 = vld [vmem:[%s3 + $0x1d0] sm:$0xff]
  %v168 = vld [vmem:[%s3 + $0x1d8] sm:$0xff]
  %v169 = vld [vmem:[%s3 + $0x1e0] sm:$0xff]
  %v170 = vld [vmem:[%s3 + $0x1e8] sm:$0xff]
  %v171 = vld [vmem:[%s3 + $0x1f0] sm:$0xff]
  %v172 = vld [vmem:[%s3 + $0x1f8] sm:$0xff]
  %v173 = vld [vmem:[%s4] sm:$0x1]
  %v175 = vperm.slane %v173, 0
  %177 = vmatpush.msra.mxu0 %v124
  %178 = vmatpush.msra.mxu0 %v123
  %179 = vmatpush.msra.mxu0 %v122
  %180 = vmatpush.msra.mxu0 %v121
  %181 = vmatpush.msra.mxu0 %v120
  %182 = vmatpush.msra.mxu0 %v119
  %183 = vmatpush.msra.mxu0 %v118
  %184 = vmatpush.msra.mxu0 %v117
  %185 = vmatpush.msra.mxu0 %v116
  %186 = vmatpush.msra.mxu0 %v115
  %187 = vmatpush.msra.mxu0 %v114
  %188 = vmatpush.msra.mxu0 %v113
  %189 = vmatpush.msra.mxu0 %v112
  %190 = vmatpush.msra.mxu0 %v111
  %191 = vmatpush.msra.mxu0 %v110
  %192 = vmatpush.msra.mxu0 %v109
  %193 = vmatmul.f32.gmra.mxu0 %v105
  %v194 = vpop.f32.mrf.mxu0
  %v195 = vadd.f32 %v175, %v194
  %196 = vdwg.mxu0
  %197 = vmatpush.msra.mxu0 %v140
  %198 = vmatpush.msra.mxu0 %v139
  %199 = vmatpush.msra.mxu0 %v138
  %200 = vmatpush.msra.mxu0 %v137
  %201 = vmatpush.msra.mxu0 %v136
  %202 = vmatpush.msra.mxu0 %v135
  %203 = vmatpush.msra.mxu0 %v134
  %204 = vmatpush.msra.mxu0 %v133
  %205 = vmatpush.msra.mxu0 %v132
  %206 = vmatpush.msra.mxu0 %v131
  %207 = vmatpush.msra.mxu0 %v130
  %208 = vmatpush.msra.mxu0 %v129
  %209 = vmatpush.msra.mxu0 %v128
  %210 = vmatpush.msra.mxu0 %v127
  %211 = vmatpush.msra.mxu0 %v126
  %212 = vmatpush.msra.mxu0 %v125
  %213 = vmatmul.f32.gmra.mxu0 %v106
  %v214 = vpop.f32.mrf.mxu0
  %v215 = vadd.f32 %v195, %v214
  %216 = vdwg.mxu0
  %217 = vmatpush.msra.mxu0 %v156
  %218 = vmatpush.msra.mxu0 %v155
  %219 = vmatpush.msra.mxu0 %v154
  %220 = vmatpush.msra.mxu0 %v153
  %221 = vmatpush.msra.mxu0 %v152
  %222 = vmatpush.msra.mxu0 %v151
  %223 = vmatpush.msra.mxu0 %v150
  %224 = vmatpush.msra.mxu0 %v149
  %225 = vmatpush.msra.mxu0 %v148
  %226 = vmatpush.msra.mxu0 %v147
  %227 = vmatpush.msra.mxu0 %v146
  %228 = vmatpush.msra.mxu0 %v145
  %229 = vmatpush.msra.mxu0 %v144
  %230 = vmatpush.msra.mxu0 %v143
  %231 = vmatpush.msra.mxu0 %v142
  %232 = vmatpush.msra.mxu0 %v141
  %233 = vmatmul.f32.gmra.mxu0 %v107
  %v234 = vpop.f32.mrf.mxu0
  %v235 = vadd.f32 %v215, %v234
  %236 = vdwg.mxu0
  %237 = vmatpush.msra.mxu0 %v172
  %238 = vmatpush.msra.mxu0 %v171
  %239 = vmatpush.msra.mxu0 %v170
  %240 = vmatpush.msra.mxu0 %v169
  %241 = vmatpush.msra.mxu0 %v168
  %242 = vmatpush.msra.mxu0 %v167
  %243 = vmatpush.msra.mxu0 %v166
  %244 = vmatpush.msra.mxu0 %v165
  %245 = vmatpush.msra.mxu0 %v164
  %246 = vmatpush.msra.mxu0 %v163
  %247 = vmatpush.msra.mxu0 %v162
  %248 = vmatpush.msra.mxu0 %v161
  %249 = vmatpush.msra.mxu0 %v160
  %250 = vmatpush.msra.mxu0 %v159
  %251 = vmatpush.msra.mxu0 %v158
  %252 = vmatpush.msra.mxu0 %v157
  %253 = vmatmul.f32.gmra.mxu0 %v108
  %v254 = vpop.f32.mrf.mxu0
  %v255 = vadd.f32 %v235, %v254
  %256 = vdwg.mxu0
  %v257 = vmax.f32 %v255, 0.0
  %v258 = vld [vmem:[%s5] sm:$0xff]
  %v259 = vld [vmem:[%s5 + $0x8] sm:$0xff]
  %v260 = vld [vmem:[%s5 + $0x10] sm:$0xff]
  %v261 = vld [vmem:[%s5 + $0x18] sm:$0xff]
  %v262 = vld [vmem:[%s5 + $0x20] sm:$0xff]
  %v263 = vld [vmem:[%s5 + $0x28] sm:$0xff]
  %v264 = vld [vmem:[%s5 + $0x30] sm:$0xff]
  %v265 = vld [vmem:[%s5 + $0x38] sm:$0xff]
  %v266 = vld [vmem:[%s5 + $0x40] sm:$0xff]
  %v267 = vld [vmem:[%s5 + $0x48] sm:$0xff]
  %v268 = vld [vmem:[%s5 + $0x50] sm:$0xff]
  %v269 = vld [vmem:[%s5 + $0x58] sm:$0xff]
  %v270 = vld [vmem:[%s5 + $0x60] sm:$0xff]
  %v271 = vld [vmem:[%s5 + $0x68] sm:$0xff]
  %v272 = vld [vmem:[%s5 + $0x70] sm:$0xff]
  %v273 = vld [vmem:[%s5 + $0x78] sm:$0xff]
  %v274 = vld [vmem:[%s5 + $0x80] sm:$0xff]
  %v275 = vld [vmem:[%s5 + $0x88] sm:$0xff]
  %v276 = vld [vmem:[%s5 + $0x90] sm:$0xff]
  %v277 = vld [vmem:[%s5 + $0x98] sm:$0xff]
  %v278 = vld [vmem:[%s5 + $0xa0] sm:$0xff]
  %v279 = vld [vmem:[%s5 + $0xa8] sm:$0xff]
  %v280 = vld [vmem:[%s5 + $0xb0] sm:$0xff]
  %v281 = vld [vmem:[%s5 + $0xb8] sm:$0xff]
  %v282 = vld [vmem:[%s5 + $0xc0] sm:$0xff]
  %v283 = vld [vmem:[%s5 + $0xc8] sm:$0xff]
  %v284 = vld [vmem:[%s5 + $0xd0] sm:$0xff]
  %v285 = vld [vmem:[%s5 + $0xd8] sm:$0xff]
  %v286 = vld [vmem:[%s5 + $0xe0] sm:$0xff]
  %v287 = vld [vmem:[%s5 + $0xe8] sm:$0xff]
  %v288 = vld [vmem:[%s5 + $0xf0] sm:$0xff]
  %v289 = vld [vmem:[%s5 + $0xf8] sm:$0xff]
  %v290 = vld [vmem:[%s6] sm:$0xf]
  %v292 = vperm.slane %v290, 0
  %v293 = vperm.slane %v290, 1
  %v294 = vperm.slane %v290, 2
  %v295 = vperm.slane %v290, 3
  %vm300 = vcmask 523264
  %v302 = vsel %vm300, %v257, 0
  %304 = vmatpush.msra.mxu0 0.0
  %305 = vmatpush.msra.mxu0 0.0
  %306 = vmatpush.msra.mxu0 0.0
  %307 = vmatpush.msra.mxu0 0.0
  %308 = vmatpush.msra.mxu0 0.0
  %309 = vmatpush.msra.mxu0 0.0
  %310 = vmatpush.msra.mxu0 0.0
  %311 = vmatpush.msra.mxu0 0.0
  %312 = vmatpush.msra.mxu0 %v286
  %313 = vmatpush.msra.mxu0 %v282
  %314 = vmatpush.msra.mxu0 %v278
  %315 = vmatpush.msra.mxu0 %v274
  %316 = vmatpush.msra.mxu0 %v270
  %317 = vmatpush.msra.mxu0 %v266
  %318 = vmatpush.msra.mxu0 %v262
  %319 = vmatpush.msra.mxu0 %v258
  %320 = vmatmul.f32.gmra.mxu0 %v302
  %v321 = vpop.f32.mrf.mxu0
  %v322 = vadd.f32 %v292, %v321
  %323 = vdwg.mxu0
  %324 = vmatpush.msra.mxu0 0.0
  %325 = vmatpush.msra.mxu0 0.0
  %326 = vmatpush.msra.mxu0 0.0
  %327 = vmatpush.msra.mxu0 0.0
  %328 = vmatpush.msra.mxu0 0.0
  %329 = vmatpush.msra.mxu0 0.0
  %330 = vmatpush.msra.mxu0 0.0
  %331 = vmatpush.msra.mxu0 0.0
  %332 = vmatpush.msra.mxu0 %v287
  %333 = vmatpush.msra.mxu0 %v283
  %334 = vmatpush.msra.mxu0 %v279
  %335 = vmatpush.msra.mxu0 %v275
  %336 = vmatpush.msra.mxu0 %v271
  %337 = vmatpush.msra.mxu0 %v267
  %338 = vmatpush.msra.mxu0 %v263
  %339 = vmatpush.msra.mxu0 %v259
  %340 = vmatmul.f32.gmra.mxu0 %v302
  %v341 = vpop.f32.mrf.mxu0
  %v342 = vadd.f32 %v293, %v341
  %343 = vdwg.mxu0
  %344 = vmatpush.msra.mxu0 0.0
  %345 = vmatpush.msra.mxu0 0.0
  %346 = vmatpush.msra.mxu0 0.0
  %347 = vmatpush.msra.mxu0 0.0
  %348 = vmatpush.msra.mxu0 0.0
  %349 = vmatpush.msra.mxu0 0.0
  %350 = vmatpush.msra.mxu0 0.0
  %351 = vmatpush.msra.mxu0 0.0
  %352 = vmatpush.msra.mxu0 %v288
  %353 = vmatpush.msra.mxu0 %v284
  %354 = vmatpush.msra.mxu0 %v280
  %355 = vmatpush.msra.mxu0 %v276
  %356 = vmatpush.msra.mxu0 %v272
  %357 = vmatpush.msra.mxu0 %v268
  %358 = vmatpush.msra.mxu0 %v264
  %359 = vmatpush.msra.mxu0 %v260
  %360 = vmatmul.f32.gmra.mxu0 %v302
  %v361 = vpop.f32.mrf.mxu0
  %v362 = vadd.f32 %v294, %v361
  %363 = vdwg.mxu0
  %364 = vmatpush.msra.mxu0 0.0
  %365 = vmatpush.msra.mxu0 0.0
  %366 = vmatpush.msra.mxu0 0.0
  %367 = vmatpush.msra.mxu0 0.0
  %368 = vmatpush.msra.mxu0 0.0
  %369 = vmatpush.msra.mxu0 0.0
  %370 = vmatpush.msra.mxu0 0.0
  %371 = vmatpush.msra.mxu0 0.0
  %372 = vmatpush.msra.mxu0 %v289
  %373 = vmatpush.msra.mxu0 %v285
  %374 = vmatpush.msra.mxu0 %v281
  %375 = vmatpush.msra.mxu0 %v277
  %376 = vmatpush.msra.mxu0 %v273
  %377 = vmatpush.msra.mxu0 %v269
  %378 = vmatpush.msra.mxu0 %v265
  %379 = vmatpush.msra.mxu0 %v261
  %380 = vmatmul.f32.gmra.mxu0 %v302
  %v381 = vpop.f32.mrf.mxu0
  %v382 = vadd.f32 %v295, %v381
  %383 = vdwg.mxu0
  %v384 = vadd.f32 %v26, %v322
  %v385 = vadd.f32 %v27, %v342
  %v386 = vadd.f32 %v28, %v362
  %v387 = vadd.f32 %v29, %v382
  %388 = vst [vmem:[%s7] sm:$0xff] %v384
  %389 = vst [vmem:[%s7 + $0x8] sm:$0xff] %v385
  %390 = vst [vmem:[%s7 + $0x10] sm:$0xff] %v386
  %391 = vst [vmem:[%s7 + $0x18] sm:$0xff] %v387
  // Predicated region
  $region30: #{decoder.32} parent=0 // pred_check
    _
  $region31: #{decoder.32} parent=0 // pred_check_branch
    %393 = sbr.rel (0) target = $region33
  $region32: #{decoder.32} parent=0 // pred_region
    _
  $region33: #{decoder.32} parent=0 // pred_fallthru
    _
  // Predicated region
  $region34: #{decoder.32} parent=0 // pred_check
    _
  $region35: #{decoder.32} parent=0 // pred_check_branch
    %395 = sbr.rel (0) target = $region37
  $region36: #{decoder.32} parent=0 // pred_region
    _
  $region37: #{decoder.32} parent=0 // pred_fallthru
    _

// kernel: decoder.33
$region0: #{decoder.33}
  #allocation0 [shape = 'u32[]', space=smem, size = 0x4, offset = 0x4, fixed_abs, tag = 'smem constant byte address 0x4 - core index']
  #allocation1 [shape = 'u32[72,128]{1,0:T(1,128)}', space=vmem, size = 0x9000, scoped, tag = 'internal scratch']
  %s0 = inlined_call_operand.vmem [shape: f32[8,512], index: 0, kind: input, shape index: {}]
  %s1 = inlined_call_operand.vmem [shape: f32[1,512], index: 1, kind: input, shape index: {}]
  %s2 = inlined_call_operand.vmem [shape: f32[1,512], index: 2, kind: input, shape index: {}]
  %s3 = inlined_call_operand.vmem [shape: f32[8,512], index: 3, kind: output, shape index: {}]
  %s4 = sld [smem:[#allocation0]]
  $region22: #{decoder.33} parent=0
    _
  %s6 = ssub.s32 1, %s4
  %s7 = scalar_select 0, %s6, %s4
  // Predicated region
  $region2: #{decoder.33} parent=0 // pred_check
    _
  $region3: #{decoder.33} parent=0 // pred_check_branch
    %9 = sbr.rel (0) target = $region5
  $region4: #{decoder.33} parent=0 // pred_region
    _
  $region5: #{decoder.33} parent=0 // pred_fallthru
    _
  // Predicated region
  $region6: #{decoder.33} parent=0 // pred_check
    _
  $region7: #{decoder.33} parent=0 // pred_check_branch
    %11 = sbr.rel (0) target = $region9
  $region8: #{decoder.33} parent=0 // pred_region
    _
  $region9: #{decoder.33} parent=0 // pred_fallthru
    _
  // Predicated region
  $region10: #{decoder.33} parent=0 // pred_check
    _
  $region11: #{decoder.33} parent=0 // pred_check_branch
    %13 = sbr.rel (0) target = $region13
  $region12: #{decoder.33} parent=0 // pred_region
    _
  $region13: #{decoder.33} parent=0 // pred_fallthru
    _
  %v14 = vld [vmem:[%s0] sm:$0xff]
  %v15 = vld [vmem:[%s0 + $0x8] sm:$0xff]
  %v16 = vld [vmem:[%s0 + $0x10] sm:$0xff]
  %v17 = vld [vmem:[%s0 + $0x18] sm:$0xff]
  %v18 = vld [vmem:[%s1] sm:$0xf]
  %v19 = vld [vmem:[%s2] sm:$0xf]
  %v20 = vadd.f32 %v14, %v15
  %v21 = vadd.f32 %v20, %v16
  %v22 = vadd.f32 %v21, %v17
  %23 = vadd.xlane.f32.xlu0 %v22
  %v24 = vpop.xlane.xlu0 %23
  %v25 = vmul.f32 %v24, 0.001953125
  %v26 = vsub.f32 %v14, %v25
  %v27 = vsub.f32 %v15, %v25
  %v28 = vsub.f32 %v16, %v25
  %v29 = vsub.f32 %v17, %v25
  %v30 = vmul.f32 %v26, %v26
  %v31 = vmul.f32 %v27, %v27
  %v32 = vmul.f32 %v28, %v28
  %v33 = vmul.f32 %v29, %v29
  %v34 = vadd.f32 %v30, %v31
  %v35 = vadd.f32 %v34, %v32
  %v36 = vadd.f32 %v35, %v33
  %37 = vadd.xlane.f32.xlu0 %v36
  %v38 = vpop.xlane.xlu0 %37
  %v39 = vmul.f32 %v38, 0.0019569471
  %v40 = vrsqrt.pop %v39
  %v41 = vmul.f32 %v40, %v39
  %v42 = vmul.f32 %v41, %v40
  %v43 = vmul.f32 0.5, %v42
  %v44 = vsub.f32 1.5, %v43
  %v45 = vmul.f32 %v40, %v44
  %v46 = vmul.f32 %v39, %v45
  %vm47 = vcmp.eq.f32.partialorder %v39, inf
  %v48 = vsel %vm47, %v39, %v46
  %vm49 = vcmp.eq.f32.partialorder %v39, 0.0
  %v50 = vand.u32 %v39, 2147483648
  %v51 = vsel %vm49, %v50, %v48
  %v52 = vadd.f32 %v51, 1e-06
  %v53 = vrcp.pop %v52
  %v54 = vmul.f32 %v52, %v53
  %v55 = vsub.f32 1.0, %v54
  %v56 = vmul.f32 %v53, %v55
  %v57 = vadd.f32 %v53, %v56
  %vm58 = vweird.f32 %v52
  %vm59 = vweird.f32 %v53
  %vm60 = vmor %vm58, %vm59
  %v61 = vsel %vm60, %v53, %v57
  %v62 = vand.u32 2147483647, %v52
  %vm63 = vcmp.eq.f32.partialorder %v62, 8.507059e+37
  %v64 = vand.u32 %v52, 2147483648
  %v65 = vor.u32 1.1754944e-38, %v64
  %v66 = vsel %vm63, %v65, %v61
  %v68 = vperm.slane %v18, 0
  %v69 = vperm.slane %v18, 1
  %v70 = vperm.slane %v18, 2
  %v71 = vperm.slane %v18, 3
  %v76 = vmul.f32 %v68, %v26
  %v77 = vmul.f32 %v69, %v27
  %v78 = vmul.f32 %v70, %v28
  %v79 = vmul.f32 %v71, %v29
  %v80 = vmul.f32 %v76, %v66
  %v81 = vmul.f32 %v77, %v66
  %v82 = vmul.f32 %v78, %v66
  %v83 = vmul.f32 %v79, %v66
  %v85 = vperm.slane %v19, 0
  %v86 = vperm.slane %v19, 1
  %v87 = vperm.slane %v19, 2
  %v88 = vperm.slane %v19, 3
  %v93 = vadd.f32 %v80, %v85
  %v94 = vadd.f32 %v81, %v86
  %v95 = vadd.f32 %v82, %v87
  %v96 = vadd.f32 %v83, %v88
  %97 = vst [vmem:[%s3] sm:$0xff] %v93
  %98 = vst [vmem:[%s3 + $0x8] sm:$0xff] %v94
  %99 = vst [vmem:[%s3 + $0x10] sm:$0xff] %v95
  %100 = vst [vmem:[%s3 + $0x18] sm:$0xff] %v96
  // Predicated region
  $region14: #{decoder.33} parent=0 // pred_check
    _
  $region15: #{decoder.33} parent=0 // pred_check_branch
    %102 = sbr.rel (0) target = $region17
  $region16: #{decoder.33} parent=0 // pred_region
    _
  $region17: #{decoder.33} parent=0 // pred_fallthru
    _
  // Predicated region
  $region18: #{decoder.33} parent=0 // pred_check
    _
  $region19: #{decoder.33} parent=0 // pred_check_branch
    %104 = sbr.rel (0) target = $region21
  $region20: #{decoder.33} parent=0 // pred_region
    _
  $region21: #{decoder.33} parent=0 // pred_fallthru
    _

</llo_original>
